<compile_context>
chip_gen: v7x
topology: tpu7x:2x2x1
jax: 0.10.0
libtpu: 0.0.40
codegen_flags: <defaults>
</compile_context>

<pallas_src>
import functools

import jax
import jax.numpy as jnp
import numpy as np
from jax.experimental import pallas as pl
from jax.experimental.pallas import tpu as pltpu


# ------------------------------ Pallas kernel -------------------------------


def _layernorm(x, gamma, beta, eps=1e-5):
    mu = jnp.mean(x, axis=-1, keepdims=True)
    var = jnp.mean((x - mu) * (x - mu), axis=-1, keepdims=True)
    return (x - mu) * jax.lax.rsqrt(var + eps) * gamma + beta


def _fused_window_mhsa_kernel(num_heads, n_tok,
                              x_ref, wqkv_ref, bqkv_ref, sel_ref, wm_ref,
                              w1_ref, w2_ref, ln_ref, out_ref):
    """One grid step = TB windows. x_ref block: (TB * n_tok, E) tokens."""
    tbn, e = x_ref.shape
    tb = tbn // n_tok
    hd = e // num_heads
    f32 = jnp.float32

    x2 = x_ref[...]                                                  # (TB*N, E)

    # ---- fused QKV projection: one lane-dense (TB*N, E) @ (E, 3E) matmul ----
    qkv = jnp.dot(x2, wqkv_ref[...], preferred_element_type=f32) + bqkv_ref[...]

    # ---- per-head attention, batched over the TB windows of this block -----
    o_heads = []
    for h in range(num_heads):
        q = qkv[:, h * hd:(h + 1) * hd].reshape(tb, n_tok, hd)
        k = qkv[:, e + h * hd:e + (h + 1) * hd].reshape(tb, n_tok, hd)
        v = qkv[:, 2 * e + h * hd:2 * e + (h + 1) * hd].reshape(tb, n_tok, hd)
        # attention_scores = q @ k^T (NO 1/sqrt(d) scaling, as in FullAttention)
        s = jnp.einsum("bqd,bkd->bqk", q, k, preferred_element_type=f32)
        s = s - jnp.max(s, axis=-1, keepdims=True)
        p = jnp.exp(s)
        p = p * pl.reciprocal(jnp.sum(p, axis=-1, keepdims=True), approx=True)
        o_heads.append(jnp.einsum("bqk,bkd->bqd", p, v,
                                  preferred_element_type=f32))
    # PyTorch-contiguous (head, token) row order per window: (TB, nh*N, hd)
    o_flat = jnp.concatenate(o_heads, axis=1)

    # ---- faithful `.view(b, -1, nh*hd)` + merge Linear, done on the MXU -----
    # The raw reinterpretation means  y[b, q, j*hd + d] == o_flat[b, q*nh + j, d]
    # so  merge(y)[b, q, :] = sum_j (S_j @ o_flat[b]) @ Wm[j*hd:(j+1)*hd, :]
    # with constant selection matrices S_j[q, q*nh + j] = 1.  This keeps the
    # head-mixing data movement on the MXU and avoids lane-dim reshapes.
    m2 = jnp.zeros((tbn, e), f32)
    for j in range(num_heads):                 # E // hd == num_heads chunks/row
        sel = jnp.broadcast_to(sel_ref[j], (tb, n_tok, num_heads * n_tok))
        t = jnp.einsum("bqk,bkd->bqd", sel, o_flat, preferred_element_type=f32)
        m2 = m2 + jnp.dot(t.reshape(tbn, hd), wm_ref[j * hd:(j + 1) * hd, :],
                          preferred_element_type=f32)

    # ---- LayerNorm1 -> MLP(cat[x, ln1]) -> LayerNorm2 -> residual -----------
    ln1 = _layernorm(m2, ln_ref[0:1, :], ln_ref[1:2, :])
    h1 = jnp.dot(x2, w1_ref[:e, :], preferred_element_type=f32) + \
         jnp.dot(ln1, w1_ref[e:, :], preferred_element_type=f32)
    h1 = jnp.maximum(h1, 0.0)                                         # ReLU
    h2 = jnp.dot(h1, w2_ref[...], preferred_element_type=f32)
    ln2 = _layernorm(h2, ln_ref[2:3, :], ln_ref[3:4, :])
    out_ref[...] = x2 + ln2


# -------------------------------- JAX wrapper --------------------------------


def window_partition_tokens(x, ws):
    """NCHW -> (B * num_windows, ws*ws, C), matching window_partition_nchw
    followed by .view(b, c, h*w).permute(0, 2, 1)."""
    B, C, H, W = x.shape
    Hn, Wn = H // ws, W // ws
    x = x.reshape(B, C, Hn, ws, Wn, ws)
    x = jnp.transpose(x, (0, 2, 4, 3, 5, 1))             # (B, Hn, Wn, ws, ws, C)
    return x.reshape(B * Hn * Wn, ws * ws, C)


def _pick_block_windows(bw, n, e, target_bytes=1 << 20):
    """Largest divisor of bw whose token tile stays under target_bytes; prefer
    >=2 grid steps so ("parallel",) can shard windows across v7x TensorCores."""
    best = 1
    for tb in range(1, bw + 1):
        if bw % tb == 0 and tb * n * e * 4 <= target_bytes:
            best = tb
    if best == bw and bw > 1 and bw % 2 == 0:
        best = bw // 2
    return best


def mhsa_pallas(tokens, params, num_heads):
    """MultiheadSelfAttention.forward(x, x) on windowed tokens (BW, N, E)."""
    BW, N, E = tokens.shape
    f32 = jnp.float32

    TB = _pick_block_windows(BW, N, E)
    grid = (BW // TB,)

    # Fused QKV weight/bias (PyTorch Linear stores (out_features, in_features)).
    wqkv = jnp.concatenate([params["wq"].T, params["wk"].T, params["wv"].T],
                           axis=1)                                  # (E, 3E)
    bqkv = jnp.concatenate([params["bq"], params["bk"],
                            params["bv"]]).reshape(1, 3 * E)        # (1, 3E)

    # Constant selection matrices implementing the contiguous-buffer
    # `.view(b, -1, nh*hd)` reinterpretation inside the kernel.
    sel_np = np.zeros((num_heads, N, num_heads * N), np.float32)
    q_idx = np.arange(N)
    for j in range(num_heads):
        sel_np[j, q_idx, q_idx * num_heads + j] = 1.0
    sel = jnp.asarray(sel_np)

    wm_t = params["wm"].T                          # (E, E)
    w1_t = params["w1"].T                          # (2E, 2E); rows [:E]->x, [E:]->ln1
    w2_t = params["w2"].T                          # (2E, E)
    ln = jnp.stack([params["ln1_g"], params["ln1_b"],
                    params["ln2_g"], params["ln2_b"]])              # (4, E)

    x2 = tokens.reshape(BW * N, E)                 # lane-dense token slab

    def full(shape):
        nd = len(shape)
        return pl.BlockSpec(shape, lambda i, nd=nd: (0,) * nd)

    tok_spec = pl.BlockSpec((TB * N, E), lambda i: (i, 0))

    # NOTE: at larger embed_dim / window counts, re-derive TB and add
    # vmem_limit_bytes (v7x has 64 MiB physical / 32 MiB default scoped VMEM).
    out2 = pl.pallas_call(
        functools.partial(_fused_window_mhsa_kernel, num_heads, N),
        out_shape=jax.ShapeDtypeStruct((BW * N, E), f32),
        grid=grid,
        in_specs=[
            tok_spec,
            full((E, 3 * E)),
            full((1, 3 * E)),
            full((num_heads, N, num_heads * N)),
            full((E, E)),
            full((2 * E, 2 * E)),
            full((2 * E, E)),
            full((4, E)),
        ],
        out_specs=tok_spec,
        compiler_params=pltpu.CompilerParams(
            dimension_semantics=("parallel",)),
    )(x2, wqkv, bqkv, sel, wm_t, w1_t, w2_t, ln)
    return out2.reshape(BW, N, E)


def window_attention_forward(x, source, params, window_size, num_heads):
    """WindowAttention.forward(x, source) -> (x_win_attn, s_win_attn)."""
    xw = window_partition_tokens(x, window_size)         # (BWx, N, E)
    sw = window_partition_tokens(source, window_size)    # (BWs, N, E)
    bw = xw.shape[0]
    tokens = jnp.concatenate([xw, sw], axis=0)            # shared weights
    out = mhsa_pallas(tokens, params, num_heads)
    return out[:bw], out[bw:]


# ------------------------ deterministic parameter init ------------------------


def init_params(key, embed_dim):
    e = embed_dim
    ks = jax.random.split(key, 8)
    u = lambda k, shape, fan_in: jax.random.uniform(
        k, shape, jnp.float32, -1.0 / np.sqrt(fan_in), 1.0 / np.sqrt(fan_in))
    return {
        "wq": u(ks[0], (e, e), e), "bq": u(ks[1], (e,), e),
        "wk": u(ks[2], (e, e), e), "bk": u(ks[3], (e,), e),
        "wv": u(ks[4], (e, e), e), "bv": u(ks[5], (e,), e),
        "wm": u(ks[6], (e, e), e),
        "w1": u(ks[7], (2 * e, 2 * e), 2 * e),
        "w2": u(jax.random.fold_in(key, 99), (e, 2 * e), 2 * e),
        "ln1_g": jnp.ones((e,), jnp.float32), "ln1_b": jnp.zeros((e,), jnp.float32),
        "ln2_g": jnp.ones((e,), jnp.float32), "ln2_b": jnp.zeros((e,), jnp.float32),
    }


# ------------------------------ pure-JAX reference ----------------------------


def _ln_ref(x, g, b, eps=1e-5):
    mu = x.mean(-1, keepdims=True)
    var = ((x - mu) ** 2).mean(-1, keepdims=True)
    return (x - mu) / jnp.sqrt(var + eps) * g + b


def mhsa_ref(tokens, p, num_heads):
    Bp, N, E = tokens.shape
    HD = E // num_heads
    hp = jax.lax.Precision.HIGHEST
    q = (tokens @ p["wq"].T + p["bq"]).reshape(Bp, N, num_heads, HD).transpose(0, 2, 1, 3)
    k = (tokens @ p["wk"].T + p["bk"]).reshape(Bp, N, num_heads, HD).transpose(0, 2, 1, 3)
    v = (tokens @ p["wv"].T + p["bv"]).reshape(Bp, N, num_heads, HD).transpose(0, 2, 1, 3)
    s = jnp.einsum("bhqd,bhkd->bhqk", q, k, precision=hp)
    a = jax.nn.softmax(s, axis=-1)
    o = jnp.einsum("bhqk,bhkd->bhqd", a, v, precision=hp)
    y = o.reshape(Bp, N, E)                               # the raw .view()
    m = jnp.matmul(y, p["wm"].T, precision=hp)
    ln1 = _ln_ref(m, p["ln1_g"], p["ln1_b"])
    cat = jnp.concatenate([tokens, ln1], axis=-1)
    h1 = jax.nn.relu(jnp.matmul(cat, p["w1"].T, precision=hp))
    h2 = jnp.matmul(h1, p["w2"].T, precision=hp)
    ln2 = _ln_ref(h2, p["ln2_g"], p["ln2_b"])
    return tokens + ln2


def window_attention_ref(x, source, p, ws, num_heads):
    xw = window_partition_tokens(x, ws)
    sw = window_partition_tokens(source, ws)
    return mhsa_ref(xw, p, num_heads), mhsa_ref(sw, p, num_heads)


# ------------------------------------ main ------------------------------------


if __name__ == "__main__":
    B, E, H, W = 2, 32, 8, 8
    WINDOW_SIZE, NUM_HEADS = 4, 4

    key = jax.random.PRNGKey(0)
    kx, ks, kp = jax.random.split(key, 3)
    x = jax.random.normal(kx, (B, E, H, W), jnp.float32)       # NCHW
    source = jax.random.normal(ks, (B, E, H, W), jnp.float32)  # NCHW
    params = init_params(kp, E)

    fwd = jax.jit(functools.partial(window_attention_forward,
                                    window_size=WINDOW_SIZE, num_heads=NUM_HEADS))
    x_attn, s_attn = fwd(x, source, params)
    jax.block_until_ready((x_attn, s_attn))

    x_ref, s_ref = window_attention_ref(x, source, params, WINDOW_SIZE, NUM_HEADS)
    assert x_attn.shape == (B * (H // WINDOW_SIZE) * (W // WINDOW_SIZE),
                            WINDOW_SIZE * WINDOW_SIZE, E)
    np.testing.assert_allclose(np.asarray(x_attn), np.asarray(x_ref), rtol=2e-2, atol=2e-2)
    np.testing.assert_allclose(np.asarray(s_attn), np.asarray(s_ref), rtol=2e-2, atol=2e-2)

    print("KERNEL_OK")
</pallas_src>

<mosaic_0001>
module attributes {stable_mosaic.version = 11 : i64} {
  func.func @_fused_window_mhsa_kernel(%arg0: i32, %arg1: memref<128x32xf32, #tpu.memory_space<vmem>>, %arg2: memref<32x96xf32, #tpu.memory_space<vmem>>, %arg3: memref<1x96xf32, #tpu.memory_space<vmem>>, %arg4: memref<4x16x64xf32, #tpu.memory_space<vmem>>, %arg5: memref<32x32xf32, #tpu.memory_space<vmem>>, %arg6: memref<64x64xf32, #tpu.memory_space<vmem>>, %arg7: memref<64x32xf32, #tpu.memory_space<vmem>>, %arg8: memref<4x32xf32, #tpu.memory_space<vmem>>, %arg9: memref<128x32xf32, #tpu.memory_space<vmem>>) attributes {dimension_semantics = [#tpu.dimension_semantics<parallel>], iteration_bounds = array<i64: 2>, scalar_prefetch = 0 : i64, scratch_operands = 0 : i64, tpu.core_type = #tpu.core_type<tc>, window_params = [{transform_indices = @transform_0, window_bounds = array<i64: 128, 32>}, {pipeline_mode = #tpu.pipeline_mode<synchronous>, transform_indices = @transform_1, window_bounds = array<i64: 32, 96>}, {pipeline_mode = #tpu.pipeline_mode<synchronous>, transform_indices = @transform_2, window_bounds = array<i64: 1, 96>}, {pipeline_mode = #tpu.pipeline_mode<synchronous>, transform_indices = @transform_3, window_bounds = array<i64: 4, 16, 64>}, {pipeline_mode = #tpu.pipeline_mode<synchronous>, transform_indices = @transform_4, window_bounds = array<i64: 32, 32>}, {pipeline_mode = #tpu.pipeline_mode<synchronous>, transform_indices = @transform_5, window_bounds = array<i64: 64, 64>}, {pipeline_mode = #tpu.pipeline_mode<synchronous>, transform_indices = @transform_6, window_bounds = array<i64: 64, 32>}, {pipeline_mode = #tpu.pipeline_mode<synchronous>, transform_indices = @transform_7, window_bounds = array<i64: 4, 32>}, {transform_indices = @transform_8, window_bounds = array<i64: 128, 32>}]} {
    %c0 = arith.constant 0 : index
    %c0_0 = arith.constant 0 : index
    %0 = vector.load %arg1[%c0, %c0_0] : memref<128x32xf32, #tpu.memory_space<vmem>>, vector<128x32xf32>
    %c0_1 = arith.constant 0 : index
    %c0_2 = arith.constant 0 : index
    %1 = vector.load %arg2[%c0_1, %c0_2] : memref<32x96xf32, #tpu.memory_space<vmem>>, vector<32x96xf32>
    %cst = arith.constant dense<0.000000e+00> : vector<128x96xf32>
    %2 = tpu.matmul %0, %1, %cst {dimension_numbers = #tpu.dot_dimension_numbers<[1], [0], [0], [1], [0, 0, 1, 1], [], []>} : vector<128x32xf32>, vector<32x96xf32>, vector<128x96xf32> -> vector<128x96xf32>
    %c0_3 = arith.constant 0 : index
    %c0_4 = arith.constant 0 : index
    %3 = vector.load %arg3[%c0_3, %c0_4] : memref<1x96xf32, #tpu.memory_space<vmem>>, vector<1x96xf32>
    %4 = vector.broadcast %3 : vector<1x96xf32> to vector<128x96xf32>
    %5 = arith.addf %2, %4 : vector<128x96xf32>
    %6 = vector.extract_strided_slice %5 {offsets = [0, 0], sizes = [128, 8], strides = [1, 1]} : vector<128x96xf32> to vector<128x8xf32>
    %7 = vector.shape_cast %6 : vector<128x8xf32> to vector<8x16x8xf32>
    %8 = vector.extract_strided_slice %5 {offsets = [0, 32], sizes = [128, 8], strides = [1, 1]} : vector<128x96xf32> to vector<128x8xf32>
    %9 = vector.shape_cast %8 : vector<128x8xf32> to vector<8x16x8xf32>
    %10 = vector.extract_strided_slice %5 {offsets = [0, 64], sizes = [128, 8], strides = [1, 1]} : vector<128x96xf32> to vector<128x8xf32>
    %11 = vector.shape_cast %10 : vector<128x8xf32> to vector<8x16x8xf32>
    "tpu.trace_start"() <{level = 10 : i32, message = "bqd,bkd->bqk"}> : () -> ()
    %cst_5 = arith.constant dense<0.000000e+00> : vector<8x16x16xf32>
    %12 = tpu.matmul %7, %9, %cst_5 {dimension_numbers = #tpu.dot_dimension_numbers<[2], [2], [1], [1], [0, 0, 0, 1, 1, 1], [0], [0]>} : vector<8x16x8xf32>, vector<8x16x8xf32>, vector<8x16x16xf32> -> vector<8x16x16xf32>
    "tpu.trace_stop"() : () -> ()
    %cst_6 = arith.constant dense<0xFF800000> : vector<8x16xf32>
    %13 = vector.multi_reduction <maximumf>, %12, %cst_6 [2] : vector<8x16x16xf32> to vector<8x16xf32>
    %14 = vector.shape_cast %13 : vector<8x16xf32> to vector<8x16x1xf32>
    %15 = vector.broadcast %14 : vector<8x16x1xf32> to vector<8x16x16xf32>
    %16 = arith.subf %12, %15 : vector<8x16x16xf32>
    %17 = math.exp %16 : vector<8x16x16xf32>
    %cst_7 = arith.constant dense<0.000000e+00> : vector<8x16xf32>
    %18 = vector.multi_reduction <add>, %17, %cst_7 [2] : vector<8x16x16xf32> to vector<8x16xf32>
    %19 = vector.shape_cast %18 : vector<8x16xf32> to vector<8x16x1xf32>
    %20 = tpu.reciprocal %19 {approx = true} : vector<8x16x1xf32> -> vector<8x16x1xf32>
    %21 = vector.broadcast %20 : vector<8x16x1xf32> to vector<8x16x16xf32>
    %22 = arith.mulf %17, %21 : vector<8x16x16xf32>
    "tpu.trace_start"() <{level = 10 : i32, message = "bqk,bkd->bqd"}> : () -> ()
    %cst_8 = arith.constant dense<0.000000e+00> : vector<8x16x8xf32>
    %23 = tpu.matmul %22, %11, %cst_8 {dimension_numbers = #tpu.dot_dimension_numbers<[2], [1], [1], [2], [0, 0, 0, 1, 1, 2], [0], [0]>} : vector<8x16x16xf32>, vector<8x16x8xf32>, vector<8x16x8xf32> -> vector<8x16x8xf32>
    "tpu.trace_stop"() : () -> ()
    %24 = vector.extract_strided_slice %5 {offsets = [0, 8], sizes = [128, 8], strides = [1, 1]} : vector<128x96xf32> to vector<128x8xf32>
    %25 = vector.shape_cast %24 : vector<128x8xf32> to vector<8x16x8xf32>
    %26 = vector.extract_strided_slice %5 {offsets = [0, 40], sizes = [128, 8], strides = [1, 1]} : vector<128x96xf32> to vector<128x8xf32>
    %27 = vector.shape_cast %26 : vector<128x8xf32> to vector<8x16x8xf32>
    %28 = vector.extract_strided_slice %5 {offsets = [0, 72], sizes = [128, 8], strides = [1, 1]} : vector<128x96xf32> to vector<128x8xf32>
    %29 = vector.shape_cast %28 : vector<128x8xf32> to vector<8x16x8xf32>
    "tpu.trace_start"() <{level = 10 : i32, message = "bqd,bkd->bqk"}> : () -> ()
    %cst_9 = arith.constant dense<0.000000e+00> : vector<8x16x16xf32>
    %30 = tpu.matmul %25, %27, %cst_9 {dimension_numbers = #tpu.dot_dimension_numbers<[2], [2], [1], [1], [0, 0, 0, 1, 1, 1], [0], [0]>} : vector<8x16x8xf32>, vector<8x16x8xf32>, vector<8x16x16xf32> -> vector<8x16x16xf32>
    "tpu.trace_stop"() : () -> ()
    %cst_10 = arith.constant dense<0xFF800000> : vector<8x16xf32>
    %31 = vector.multi_reduction <maximumf>, %30, %cst_10 [2] : vector<8x16x16xf32> to vector<8x16xf32>
    %32 = vector.shape_cast %31 : vector<8x16xf32> to vector<8x16x1xf32>
    %33 = vector.broadcast %32 : vector<8x16x1xf32> to vector<8x16x16xf32>
    %34 = arith.subf %30, %33 : vector<8x16x16xf32>
    %35 = math.exp %34 : vector<8x16x16xf32>
    %cst_11 = arith.constant dense<0.000000e+00> : vector<8x16xf32>
    %36 = vector.multi_reduction <add>, %35, %cst_11 [2] : vector<8x16x16xf32> to vector<8x16xf32>
    %37 = vector.shape_cast %36 : vector<8x16xf32> to vector<8x16x1xf32>
    %38 = tpu.reciprocal %37 {approx = true} : vector<8x16x1xf32> -> vector<8x16x1xf32>
    %39 = vector.broadcast %38 : vector<8x16x1xf32> to vector<8x16x16xf32>
    %40 = arith.mulf %35, %39 : vector<8x16x16xf32>
    "tpu.trace_start"() <{level = 10 : i32, message = "bqk,bkd->bqd"}> : () -> ()
    %cst_12 = arith.constant dense<0.000000e+00> : vector<8x16x8xf32>
    %41 = tpu.matmul %40, %29, %cst_12 {dimension_numbers = #tpu.dot_dimension_numbers<[2], [1], [1], [2], [0, 0, 0, 1, 1, 2], [0], [0]>} : vector<8x16x16xf32>, vector<8x16x8xf32>, vector<8x16x8xf32> -> vector<8x16x8xf32>
    "tpu.trace_stop"() : () -> ()
    %42 = vector.extract_strided_slice %5 {offsets = [0, 16], sizes = [128, 8], strides = [1, 1]} : vector<128x96xf32> to vector<128x8xf32>
    %43 = vector.shape_cast %42 : vector<128x8xf32> to vector<8x16x8xf32>
    %44 = vector.extract_strided_slice %5 {offsets = [0, 48], sizes = [128, 8], strides = [1, 1]} : vector<128x96xf32> to vector<128x8xf32>
    %45 = vector.shape_cast %44 : vector<128x8xf32> to vector<8x16x8xf32>
    %46 = vector.extract_strided_slice %5 {offsets = [0, 80], sizes = [128, 8], strides = [1, 1]} : vector<128x96xf32> to vector<128x8xf32>
    %47 = vector.shape_cast %46 : vector<128x8xf32> to vector<8x16x8xf32>
    "tpu.trace_start"() <{level = 10 : i32, message = "bqd,bkd->bqk"}> : () -> ()
    %cst_13 = arith.constant dense<0.000000e+00> : vector<8x16x16xf32>
    %48 = tpu.matmul %43, %45, %cst_13 {dimension_numbers = #tpu.dot_dimension_numbers<[2], [2], [1], [1], [0, 0, 0, 1, 1, 1], [0], [0]>} : vector<8x16x8xf32>, vector<8x16x8xf32>, vector<8x16x16xf32> -> vector<8x16x16xf32>
    "tpu.trace_stop"() : () -> ()
    %cst_14 = arith.constant dense<0xFF800000> : vector<8x16xf32>
    %49 = vector.multi_reduction <maximumf>, %48, %cst_14 [2] : vector<8x16x16xf32> to vector<8x16xf32>
    %50 = vector.shape_cast %49 : vector<8x16xf32> to vector<8x16x1xf32>
    %51 = vector.broadcast %50 : vector<8x16x1xf32> to vector<8x16x16xf32>
    %52 = arith.subf %48, %51 : vector<8x16x16xf32>
    %53 = math.exp %52 : vector<8x16x16xf32>
    %cst_15 = arith.constant dense<0.000000e+00> : vector<8x16xf32>
    %54 = vector.multi_reduction <add>, %53, %cst_15 [2] : vector<8x16x16xf32> to vector<8x16xf32>
    %55 = vector.shape_cast %54 : vector<8x16xf32> to vector<8x16x1xf32>
    %56 = tpu.reciprocal %55 {approx = true} : vector<8x16x1xf32> -> vector<8x16x1xf32>
    %57 = vector.broadcast %56 : vector<8x16x1xf32> to vector<8x16x16xf32>
    %58 = arith.mulf %53, %57 : vector<8x16x16xf32>
    "tpu.trace_start"() <{level = 10 : i32, message = "bqk,bkd->bqd"}> : () -> ()
    %cst_16 = arith.constant dense<0.000000e+00> : vector<8x16x8xf32>
    %59 = tpu.matmul %58, %47, %cst_16 {dimension_numbers = #tpu.dot_dimension_numbers<[2], [1], [1], [2], [0, 0, 0, 1, 1, 2], [0], [0]>} : vector<8x16x16xf32>, vector<8x16x8xf32>, vector<8x16x8xf32> -> vector<8x16x8xf32>
    "tpu.trace_stop"() : () -> ()
    %60 = vector.extract_strided_slice %5 {offsets = [0, 24], sizes = [128, 8], strides = [1, 1]} : vector<128x96xf32> to vector<128x8xf32>
    %61 = vector.shape_cast %60 : vector<128x8xf32> to vector<8x16x8xf32>
    %62 = vector.extract_strided_slice %5 {offsets = [0, 56], sizes = [128, 8], strides = [1, 1]} : vector<128x96xf32> to vector<128x8xf32>
    %63 = vector.shape_cast %62 : vector<128x8xf32> to vector<8x16x8xf32>
    %64 = vector.extract_strided_slice %5 {offsets = [0, 88], sizes = [128, 8], strides = [1, 1]} : vector<128x96xf32> to vector<128x8xf32>
    %65 = vector.shape_cast %64 : vector<128x8xf32> to vector<8x16x8xf32>
    "tpu.trace_start"() <{level = 10 : i32, message = "bqd,bkd->bqk"}> : () -> ()
    %cst_17 = arith.constant dense<0.000000e+00> : vector<8x16x16xf32>
    %66 = tpu.matmul %61, %63, %cst_17 {dimension_numbers = #tpu.dot_dimension_numbers<[2], [2], [1], [1], [0, 0, 0, 1, 1, 1], [0], [0]>} : vector<8x16x8xf32>, vector<8x16x8xf32>, vector<8x16x16xf32> -> vector<8x16x16xf32>
    "tpu.trace_stop"() : () -> ()
    %cst_18 = arith.constant dense<0xFF800000> : vector<8x16xf32>
    %67 = vector.multi_reduction <maximumf>, %66, %cst_18 [2] : vector<8x16x16xf32> to vector<8x16xf32>
    %68 = vector.shape_cast %67 : vector<8x16xf32> to vector<8x16x1xf32>
    %69 = vector.broadcast %68 : vector<8x16x1xf32> to vector<8x16x16xf32>
    %70 = arith.subf %66, %69 : vector<8x16x16xf32>
    %71 = math.exp %70 : vector<8x16x16xf32>
    %cst_19 = arith.constant dense<0.000000e+00> : vector<8x16xf32>
    %72 = vector.multi_reduction <add>, %71, %cst_19 [2] : vector<8x16x16xf32> to vector<8x16xf32>
    %73 = vector.shape_cast %72 : vector<8x16xf32> to vector<8x16x1xf32>
    %74 = tpu.reciprocal %73 {approx = true} : vector<8x16x1xf32> -> vector<8x16x1xf32>
    %75 = vector.broadcast %74 : vector<8x16x1xf32> to vector<8x16x16xf32>
    %76 = arith.mulf %71, %75 : vector<8x16x16xf32>
    "tpu.trace_start"() <{level = 10 : i32, message = "bqk,bkd->bqd"}> : () -> ()
    %cst_20 = arith.constant dense<0.000000e+00> : vector<8x16x8xf32>
    %77 = tpu.matmul %76, %65, %cst_20 {dimension_numbers = #tpu.dot_dimension_numbers<[2], [1], [1], [2], [0, 0, 0, 1, 1, 2], [0], [0]>} : vector<8x16x16xf32>, vector<8x16x8xf32>, vector<8x16x8xf32> -> vector<8x16x8xf32>
    "tpu.trace_stop"() : () -> ()
    %78 = tpu.concatenate %23, %41, %59, %77 in 1 : vector<8x16x8xf32>, vector<8x16x8xf32>, vector<8x16x8xf32>, vector<8x16x8xf32> -> vector<8x64x8xf32>
    %cst_21 = arith.constant 0.000000e+00 : f32
    %79 = vector.broadcast %cst_21 : f32 to vector<128x32xf32>
    %c0_22 = arith.constant 0 : index
    %c0_23 = arith.constant 0 : index
    %c0_24 = arith.constant 0 : index
    %80 = vector.load %arg4[%c0_22, %c0_23, %c0_24] : memref<4x16x64xf32, #tpu.memory_space<vmem>>, vector<1x16x64xf32>
    %81 = vector.shape_cast %80 : vector<1x16x64xf32> to vector<16x64xf32>
    %82 = vector.shape_cast %81 : vector<16x64xf32> to vector<1x16x64xf32>
    %83 = vector.broadcast %82 : vector<1x16x64xf32> to vector<8x16x64xf32>
    "tpu.trace_start"() <{level = 10 : i32, message = "bqk,bkd->bqd"}> : () -> ()
    %cst_25 = arith.constant dense<0.000000e+00> : vector<8x16x8xf32>
    %84 = tpu.matmul %83, %78, %cst_25 {dimension_numbers = #tpu.dot_dimension_numbers<[2], [1], [1], [2], [0, 0, 0, 1, 1, 2], [0], [0]>} : vector<8x16x64xf32>, vector<8x64x8xf32>, vector<8x16x8xf32> -> vector<8x16x8xf32>
    "tpu.trace_stop"() : () -> ()
    %85 = vector.shape_cast %84 : vector<8x16x8xf32> to vector<128x8xf32>
    %c0_26 = arith.constant 0 : index
    %c0_27 = arith.constant 0 : index
    %86 = vector.load %arg5[%c0_26, %c0_27] : memref<32x32xf32, #tpu.memory_space<vmem>>, vector<8x32xf32>
    %cst_28 = arith.constant dense<0.000000e+00> : vector<128x32xf32>
    %87 = tpu.matmul %85, %86, %cst_28 {dimension_numbers = #tpu.dot_dimension_numbers<[1], [0], [0], [1], [0, 0, 1, 1], [], []>} : vector<128x8xf32>, vector<8x32xf32>, vector<128x32xf32> -> vector<128x32xf32>
    %88 = arith.addf %79, %87 : vector<128x32xf32>
    %c1 = arith.constant 1 : index
    %c0_29 = arith.constant 0 : index
    %c0_30 = arith.constant 0 : index
    %89 = vector.load %arg4[%c1, %c0_29, %c0_30] : memref<4x16x64xf32, #tpu.memory_space<vmem>>, vector<1x16x64xf32>
    %90 = vector.shape_cast %89 : vector<1x16x64xf32> to vector<16x64xf32>
    %91 = vector.shape_cast %90 : vector<16x64xf32> to vector<1x16x64xf32>
    %92 = vector.broadcast %91 : vector<1x16x64xf32> to vector<8x16x64xf32>
    "tpu.trace_start"() <{level = 10 : i32, message = "bqk,bkd->bqd"}> : () -> ()
    %cst_31 = arith.constant dense<0.000000e+00> : vector<8x16x8xf32>
    %93 = tpu.matmul %92, %78, %cst_31 {dimension_numbers = #tpu.dot_dimension_numbers<[2], [1], [1], [2], [0, 0, 0, 1, 1, 2], [0], [0]>} : vector<8x16x64xf32>, vector<8x64x8xf32>, vector<8x16x8xf32> -> vector<8x16x8xf32>
    "tpu.trace_stop"() : () -> ()
    %94 = vector.shape_cast %93 : vector<8x16x8xf32> to vector<128x8xf32>
    %c8 = arith.constant 8 : index
    %c0_32 = arith.constant 0 : index
    %95 = vector.load %arg5[%c8, %c0_32] : memref<32x32xf32, #tpu.memory_space<vmem>>, vector<8x32xf32>
    %cst_33 = arith.constant dense<0.000000e+00> : vector<128x32xf32>
    %96 = tpu.matmul %94, %95, %cst_33 {dimension_numbers = #tpu.dot_dimension_numbers<[1], [0], [0], [1], [0, 0, 1, 1], [], []>} : vector<128x8xf32>, vector<8x32xf32>, vector<128x32xf32> -> vector<128x32xf32>
    %97 = arith.addf %88, %96 : vector<128x32xf32>
    %c2 = arith.constant 2 : index
    %c0_34 = arith.constant 0 : index
    %c0_35 = arith.constant 0 : index
    %98 = vector.load %arg4[%c2, %c0_34, %c0_35] : memref<4x16x64xf32, #tpu.memory_space<vmem>>, vector<1x16x64xf32>
    %99 = vector.shape_cast %98 : vector<1x16x64xf32> to vector<16x64xf32>
    %100 = vector.shape_cast %99 : vector<16x64xf32> to vector<1x16x64xf32>
    %101 = vector.broadcast %100 : vector<1x16x64xf32> to vector<8x16x64xf32>
    "tpu.trace_start"() <{level = 10 : i32, message = "bqk,bkd->bqd"}> : () -> ()
    %cst_36 = arith.constant dense<0.000000e+00> : vector<8x16x8xf32>
    %102 = tpu.matmul %101, %78, %cst_36 {dimension_numbers = #tpu.dot_dimension_numbers<[2], [1], [1], [2], [0, 0, 0, 1, 1, 2], [0], [0]>} : vector<8x16x64xf32>, vector<8x64x8xf32>, vector<8x16x8xf32> -> vector<8x16x8xf32>
    "tpu.trace_stop"() : () -> ()
    %103 = vector.shape_cast %102 : vector<8x16x8xf32> to vector<128x8xf32>
    %c16 = arith.constant 16 : index
    %c0_37 = arith.constant 0 : index
    %104 = vector.load %arg5[%c16, %c0_37] : memref<32x32xf32, #tpu.memory_space<vmem>>, vector<8x32xf32>
    %cst_38 = arith.constant dense<0.000000e+00> : vector<128x32xf32>
    %105 = tpu.matmul %103, %104, %cst_38 {dimension_numbers = #tpu.dot_dimension_numbers<[1], [0], [0], [1], [0, 0, 1, 1], [], []>} : vector<128x8xf32>, vector<8x32xf32>, vector<128x32xf32> -> vector<128x32xf32>
    %106 = arith.addf %97, %105 : vector<128x32xf32>
    %c3 = arith.constant 3 : index
    %c0_39 = arith.constant 0 : index
    %c0_40 = arith.constant 0 : index
    %107 = vector.load %arg4[%c3, %c0_39, %c0_40] : memref<4x16x64xf32, #tpu.memory_space<vmem>>, vector<1x16x64xf32>
    %108 = vector.shape_cast %107 : vector<1x16x64xf32> to vector<16x64xf32>
    %109 = vector.shape_cast %108 : vector<16x64xf32> to vector<1x16x64xf32>
    %110 = vector.broadcast %109 : vector<1x16x64xf32> to vector<8x16x64xf32>
    "tpu.trace_start"() <{level = 10 : i32, message = "bqk,bkd->bqd"}> : () -> ()
    %cst_41 = arith.constant dense<0.000000e+00> : vector<8x16x8xf32>
    %111 = tpu.matmul %110, %78, %cst_41 {dimension_numbers = #tpu.dot_dimension_numbers<[2], [1], [1], [2], [0, 0, 0, 1, 1, 2], [0], [0]>} : vector<8x16x64xf32>, vector<8x64x8xf32>, vector<8x16x8xf32> -> vector<8x16x8xf32>
    "tpu.trace_stop"() : () -> ()
    %112 = vector.shape_cast %111 : vector<8x16x8xf32> to vector<128x8xf32>
    %c24 = arith.constant 24 : index
    %c0_42 = arith.constant 0 : index
    %113 = vector.load %arg5[%c24, %c0_42] : memref<32x32xf32, #tpu.memory_space<vmem>>, vector<8x32xf32>
    %cst_43 = arith.constant dense<0.000000e+00> : vector<128x32xf32>
    %114 = tpu.matmul %112, %113, %cst_43 {dimension_numbers = #tpu.dot_dimension_numbers<[1], [0], [0], [1], [0, 0, 1, 1], [], []>} : vector<128x8xf32>, vector<8x32xf32>, vector<128x32xf32> -> vector<128x32xf32>
    %115 = arith.addf %106, %114 : vector<128x32xf32>
    %c0_44 = arith.constant 0 : index
    %c0_45 = arith.constant 0 : index
    %116 = vector.load %arg8[%c0_44, %c0_45] : memref<4x32xf32, #tpu.memory_space<vmem>>, vector<1x32xf32>
    %c1_46 = arith.constant 1 : index
    %c0_47 = arith.constant 0 : index
    %117 = vector.load %arg8[%c1_46, %c0_47] : memref<4x32xf32, #tpu.memory_space<vmem>>, vector<1x32xf32>
    %cst_48 = arith.constant dense<0.000000e+00> : vector<128xf32>
    %118 = vector.multi_reduction <add>, %115, %cst_48 [1] : vector<128x32xf32> to vector<128xf32>
    %119 = vector.shape_cast %118 : vector<128xf32> to vector<128x1xf32>
    %cst_49 = arith.constant 3.200000e+01 : f32
    %120 = vector.broadcast %cst_49 : f32 to vector<128x1xf32>
    %121 = arith.divf %119, %120 : vector<128x1xf32>
    %122 = vector.broadcast %121 : vector<128x1xf32> to vector<128x32xf32>
    %123 = arith.subf %115, %122 : vector<128x32xf32>
    %124 = vector.broadcast %121 : vector<128x1xf32> to vector<128x32xf32>
    %125 = arith.subf %115, %124 : vector<128x32xf32>
    %126 = arith.mulf %123, %125 : vector<128x32xf32>
    %cst_50 = arith.constant dense<0.000000e+00> : vector<128xf32>
    %127 = vector.multi_reduction <add>, %126, %cst_50 [1] : vector<128x32xf32> to vector<128xf32>
    %128 = vector.shape_cast %127 : vector<128xf32> to vector<128x1xf32>
    %cst_51 = arith.constant 3.200000e+01 : f32
    %129 = vector.broadcast %cst_51 : f32 to vector<128x1xf32>
    %130 = arith.divf %128, %129 : vector<128x1xf32>
    %131 = vector.broadcast %121 : vector<128x1xf32> to vector<128x32xf32>
    %132 = arith.subf %115, %131 : vector<128x32xf32>
    %cst_52 = arith.constant 9.99999974E-6 : f32
    %133 = vector.broadcast %cst_52 : f32 to vector<128x1xf32>
    %134 = arith.addf %130, %133 : vector<128x1xf32>
    %135 = math.rsqrt %134 : vector<128x1xf32>
    %136 = vector.broadcast %135 : vector<128x1xf32> to vector<128x32xf32>
    %137 = arith.mulf %132, %136 : vector<128x32xf32>
    %138 = vector.broadcast %116 : vector<1x32xf32> to vector<128x32xf32>
    %139 = arith.mulf %137, %138 : vector<128x32xf32>
    %140 = vector.broadcast %117 : vector<1x32xf32> to vector<128x32xf32>
    %141 = arith.addf %139, %140 : vector<128x32xf32>
    %c0_53 = arith.constant 0 : index
    %c0_54 = arith.constant 0 : index
    %142 = vector.load %arg6[%c0_53, %c0_54] : memref<64x64xf32, #tpu.memory_space<vmem>>, vector<32x64xf32>
    %cst_55 = arith.constant dense<0.000000e+00> : vector<128x64xf32>
    %143 = tpu.matmul %0, %142, %cst_55 {dimension_numbers = #tpu.dot_dimension_numbers<[1], [0], [0], [1], [0, 0, 1, 1], [], []>} : vector<128x32xf32>, vector<32x64xf32>, vector<128x64xf32> -> vector<128x64xf32>
    %c32 = arith.constant 32 : index
    %c0_56 = arith.constant 0 : index
    %144 = vector.load %arg6[%c32, %c0_56] : memref<64x64xf32, #tpu.memory_space<vmem>>, vector<32x64xf32>
    %cst_57 = arith.constant dense<0.000000e+00> : vector<128x64xf32>
    %145 = tpu.matmul %141, %144, %cst_57 {dimension_numbers = #tpu.dot_dimension_numbers<[1], [0], [0], [1], [0, 0, 1, 1], [], []>} : vector<128x32xf32>, vector<32x64xf32>, vector<128x64xf32> -> vector<128x64xf32>
    %146 = arith.addf %143, %145 : vector<128x64xf32>
    %cst_58 = arith.constant 0.000000e+00 : f32
    %147 = vector.broadcast %cst_58 : f32 to vector<128x64xf32>
    %148 = arith.maximumf %146, %147 : vector<128x64xf32>
    %c0_59 = arith.constant 0 : index
    %c0_60 = arith.constant 0 : index
    %149 = vector.load %arg7[%c0_59, %c0_60] : memref<64x32xf32, #tpu.memory_space<vmem>>, vector<64x32xf32>
    %cst_61 = arith.constant dense<0.000000e+00> : vector<128x32xf32>
    %150 = tpu.matmul %148, %149, %cst_61 {dimension_numbers = #tpu.dot_dimension_numbers<[1], [0], [0], [1], [0, 0, 1, 1], [], []>} : vector<128x64xf32>, vector<64x32xf32>, vector<128x32xf32> -> vector<128x32xf32>
    %c2_62 = arith.constant 2 : index
    %c0_63 = arith.constant 0 : index
    %151 = vector.load %arg8[%c2_62, %c0_63] : memref<4x32xf32, #tpu.memory_space<vmem>>, vector<1x32xf32>
    %c3_64 = arith.constant 3 : index
    %c0_65 = arith.constant 0 : index
    %152 = vector.load %arg8[%c3_64, %c0_65] : memref<4x32xf32, #tpu.memory_space<vmem>>, vector<1x32xf32>
    %cst_66 = arith.constant dense<0.000000e+00> : vector<128xf32>
    %153 = vector.multi_reduction <add>, %150, %cst_66 [1] : vector<128x32xf32> to vector<128xf32>
    %154 = vector.shape_cast %153 : vector<128xf32> to vector<128x1xf32>
    %cst_67 = arith.constant 3.200000e+01 : f32
    %155 = vector.broadcast %cst_67 : f32 to vector<128x1xf32>
    %156 = arith.divf %154, %155 : vector<128x1xf32>
    %157 = vector.broadcast %156 : vector<128x1xf32> to vector<128x32xf32>
    %158 = arith.subf %150, %157 : vector<128x32xf32>
    %159 = vector.broadcast %156 : vector<128x1xf32> to vector<128x32xf32>
    %160 = arith.subf %150, %159 : vector<128x32xf32>
    %161 = arith.mulf %158, %160 : vector<128x32xf32>
    %cst_68 = arith.constant dense<0.000000e+00> : vector<128xf32>
    %162 = vector.multi_reduction <add>, %161, %cst_68 [1] : vector<128x32xf32> to vector<128xf32>
    %163 = vector.shape_cast %162 : vector<128xf32> to vector<128x1xf32>
    %cst_69 = arith.constant 3.200000e+01 : f32
    %164 = vector.broadcast %cst_69 : f32 to vector<128x1xf32>
    %165 = arith.divf %163, %164 : vector<128x1xf32>
    %166 = vector.broadcast %156 : vector<128x1xf32> to vector<128x32xf32>
    %167 = arith.subf %150, %166 : vector<128x32xf32>
    %cst_70 = arith.constant 9.99999974E-6 : f32
    %168 = vector.broadcast %cst_70 : f32 to vector<128x1xf32>
    %169 = arith.addf %165, %168 : vector<128x1xf32>
    %170 = math.rsqrt %169 : vector<128x1xf32>
    %171 = vector.broadcast %170 : vector<128x1xf32> to vector<128x32xf32>
    %172 = arith.mulf %167, %171 : vector<128x32xf32>
    %173 = vector.broadcast %151 : vector<1x32xf32> to vector<128x32xf32>
    %174 = arith.mulf %172, %173 : vector<128x32xf32>
    %175 = vector.broadcast %152 : vector<1x32xf32> to vector<128x32xf32>
    %176 = arith.addf %174, %175 : vector<128x32xf32>
    %177 = arith.addf %0, %176 : vector<128x32xf32>
    %c0_71 = arith.constant 0 : index
    %c0_72 = arith.constant 0 : index
    %178 = vector.load %arg9[%c0_71, %c0_72] : memref<128x32xf32, #tpu.memory_space<vmem>>, vector<128x32xf32>
    tpu.vector_store %arg9[%c0_71, %c0_72], %177 {strides = array<i32>} : memref<128x32xf32, #tpu.memory_space<vmem>>, vector<128x32xf32>,
    return
  }
  func.func @transform_0(%arg0: i32) -> (i32, i32) {
    %c0_i32 = arith.constant 0 : i32
    %c0_i32_0 = arith.constant 0 : i32
    return %arg0, %c0_i32 : i32, i32
  }
  func.func @transform_1(%arg0: i32) -> (i32, i32) {
    %c0_i32 = arith.constant 0 : i32
    %c0_i32_0 = arith.constant 0 : i32
    %c0_i32_1 = arith.constant 0 : i32
    return %c0_i32, %c0_i32_0 : i32, i32
  }
  func.func @transform_2(%arg0: i32) -> (i32, i32) {
    %c0_i32 = arith.constant 0 : i32
    %c0_i32_0 = arith.constant 0 : i32
    %c0_i32_1 = arith.constant 0 : i32
    return %c0_i32, %c0_i32_0 : i32, i32
  }
  func.func @transform_3(%arg0: i32) -> (i32, i32, i32) {
    %c0_i32 = arith.constant 0 : i32
    %c0_i32_0 = arith.constant 0 : i32
    %c0_i32_1 = arith.constant 0 : i32
    %c0_i32_2 = arith.constant 0 : i32
    return %c0_i32, %c0_i32_0, %c0_i32_1 : i32, i32, i32
  }
  func.func @transform_4(%arg0: i32) -> (i32, i32) {
    %c0_i32 = arith.constant 0 : i32
    %c0_i32_0 = arith.constant 0 : i32
    %c0_i32_1 = arith.constant 0 : i32
    return %c0_i32, %c0_i32_0 : i32, i32
  }
  func.func @transform_5(%arg0: i32) -> (i32, i32) {
    %c0_i32 = arith.constant 0 : i32
    %c0_i32_0 = arith.constant 0 : i32
    %c0_i32_1 = arith.constant 0 : i32
    return %c0_i32, %c0_i32_0 : i32, i32
  }
  func.func @transform_6(%arg0: i32) -> (i32, i32) {
    %c0_i32 = arith.constant 0 : i32
    %c0_i32_0 = arith.constant 0 : i32
    %c0_i32_1 = arith.constant 0 : i32
    return %c0_i32, %c0_i32_0 : i32, i32
  }
  func.func @transform_7(%arg0: i32) -> (i32, i32) {
    %c0_i32 = arith.constant 0 : i32
    %c0_i32_0 = arith.constant 0 : i32
    %c0_i32_1 = arith.constant 0 : i32
    return %c0_i32, %c0_i32_0 : i32, i32
  }
  func.func @transform_8(%arg0: i32) -> (i32, i32) {
    %c0_i32 = arith.constant 0 : i32
    %c0_i32_0 = arith.constant 0 : i32
    return %arg0, %c0_i32 : i32, i32
  }
}

</mosaic_0001>

<llo_original>
// kernel: window_attention_forward.1
$region0: #{window_attention_forward.1}
  #allocation0 [shape = 'u32[]', space=smem, size = 0x4, offset = 0x4, fixed_abs, tag = 'smem constant byte address 0x4 - core index']
  #allocation1 [shape = 'u32[144,128]{1,0:T(1,128)}', space=vmem, size = 0x12000, scoped, tag = 'internal scratch']
  %s0 = inlined_call_operand.vmem [shape: f32[256,32], index: 0, kind: input, shape index: {}]
  %s1 = inlined_call_operand.vmem [shape: f32[32,96], index: 1, kind: input, shape index: {}]
  %s2 = inlined_call_operand.vmem [shape: f32[1,96], index: 2, kind: input, shape index: {}]
  %s3 = inlined_call_operand.vmem [shape: f32[4,16,64], index: 3, kind: input, shape index: {}]
  %s4 = inlined_call_operand.vmem [shape: f32[32,32], index: 4, kind: input, shape index: {}]
  %s5 = inlined_call_operand.vmem [shape: f32[64,64], index: 5, kind: input, shape index: {}]
  %s6 = inlined_call_operand.vmem [shape: f32[64,32], index: 6, kind: input, shape index: {}]
  %s7 = inlined_call_operand.vmem [shape: f32[4,32], index: 7, kind: input, shape index: {}]
  %s8 = inlined_call_operand.vmem [shape: f32[256,32], index: 8, kind: output, shape index: {}]
  %s9 = sld [smem:[#allocation0]]
  $region65: #{window_attention_forward.1} parent=0
    _
  %s11 = ssub.s32 1, %s9
  %s12 = scalar_select 0, %s11, %s9
  loop: start=0, step=1, limit=4
  $region2: #{window_attention_forward.1} parent=0 // loop_pre_header
    _
  $region3: #{window_attention_forward.1} parent=0 // loop_header
    %s14 = sphi 0, %s18
    %p15 = scmp.ge.s32.totalorder %s14, 4
    %s24 = sphi 0, %s26
    %s27 = sphi 0, %s24
    %s28 = sphi 0, %s27
    %s44 = sphi 0, %s28
    %s48 = sphi 0, %s48
    %s50 = sphi 0, %s48
    %s51 = sphi 0, %s50
    %s65 = sphi 0, %s51
    %s69 = sphi 0, %s69
    %s71 = sphi 0, %s69
    %s72 = sphi 0, %s71
    %s86 = sphi 0, %s72
    %s90 = sphi 0, %s90
    %s92 = sphi 0, %s90
    %s93 = sphi 0, %s92
    %s107 = sphi 0, %s93
    %s111 = sphi 0, %s111
    %s113 = sphi 0, %s111
    %s114 = sphi 0, %s113
    %s128 = sphi 0, %s114
    %s132 = sphi 0, %s132
    %s134 = sphi 0, %s132
    %s135 = sphi 0, %s134
    %s149 = sphi 0, %s135
    %s153 = sphi 0, %s153
    %s155 = sphi 0, %s153
    %s156 = sphi 0, %s155
    %s170 = sphi 0, %s156
    %s174 = sphi 0, %s174
    %s176 = sphi 0, %s174
    %s177 = sphi 0, %s176
    %s191 = sphi 0, %s177
    %s197 = sphi 0, %s199
    %s200 = sphi 0, %s197
    %s201 = sphi 0, %s200
    %s217 = sphi 0, %s201
  $region4: #{window_attention_forward.1} parent=0 // loop_header_branch
    %17 = sbr.rel (%p15) target = $region8
  $region5: #{window_attention_forward.1} parent=0 // loop_body
    %s19 = ssub.s32 %s14, 1
    %s20 = ssub.s32 %s14, 2
    %s21 = sadd.s32 %s14, 1
    %s22 = ssub.s32 %s14, %s21
    %p23 = scmp.eq.s32.totalorder %s22, 0
    %s25 = sadd.s32 %s24, 1
    %s26 = scalar_select %p23, %s24, %s25
    %p29 = pneg %p23
    %p30 = scmp.eq.s32.totalorder %s14, 1
    %p31 = por %p29, %p30
    %p32 = scmp.ne.s32.totalorder %s24, %s27
    %p33 = scmp.eq.s32.totalorder %s14, 0
    %p34 = por %p32, %p33
    %p35 = scmp.ne.s32.totalorder %s24, %s27
    %p36 = scmp.eq.s32.totalorder %s19, 1
    %p37 = por %p35, %p36
    %p38 = scmp.ne.s32.totalorder %s27, %s28
    %p39 = scmp.eq.s32.totalorder %s19, 0
    %p40 = por %p38, %p39
    %p41 = scmp.ne.s32.totalorder %s27, %s28
    %p42 = scmp.eq.s32.totalorder %s20, 1
    %p43 = por %p41, %p42
    %p45 = scmp.ne.s32.totalorder %s28, %s44
    %p46 = scmp.eq.s32.totalorder %s20, 0
    %p47 = por %p45, %p46
    %s49 = sadd.s32 %s48, 1
    %p52 = scmp.eq.s32.totalorder %s14, 1
    %p53 = scmp.ne.s32.totalorder %s48, %s50
    %p54 = scmp.eq.s32.totalorder %s14, 0
    %p55 = por %p53, %p54
    %p56 = scmp.ne.s32.totalorder %s48, %s50
    %p57 = scmp.eq.s32.totalorder %s19, 1
    %p58 = por %p56, %p57
    %p59 = scmp.ne.s32.totalorder %s50, %s51
    %p60 = scmp.eq.s32.totalorder %s19, 0
    %p61 = por %p59, %p60
    %p62 = scmp.ne.s32.totalorder %s50, %s51
    %p63 = scmp.eq.s32.totalorder %s20, 1
    %p64 = por %p62, %p63
    %p66 = scmp.ne.s32.totalorder %s51, %s65
    %p67 = scmp.eq.s32.totalorder %s20, 0
    %p68 = por %p66, %p67
    %s70 = sadd.s32 %s69, 1
    %p73 = scmp.eq.s32.totalorder %s14, 1
    %p74 = scmp.ne.s32.totalorder %s69, %s71
    %p75 = scmp.eq.s32.totalorder %s14, 0
    %p76 = por %p74, %p75
    %p77 = scmp.ne.s32.totalorder %s69, %s71
    %p78 = scmp.eq.s32.totalorder %s19, 1
    %p79 = por %p77, %p78
    %p80 = scmp.ne.s32.totalorder %s71, %s72
    %p81 = scmp.eq.s32.totalorder %s19, 0
    %p82 = por %p80, %p81
    %p83 = scmp.ne.s32.totalorder %s71, %s72
    %p84 = scmp.eq.s32.totalorder %s20, 1
    %p85 = por %p83, %p84
    %p87 = scmp.ne.s32.totalorder %s72, %s86
    %p88 = scmp.eq.s32.totalorder %s20, 0
    %p89 = por %p87, %p88
    %s91 = sadd.s32 %s90, 1
    %p94 = scmp.eq.s32.totalorder %s14, 1
    %p95 = scmp.ne.s32.totalorder %s90, %s92
    %p96 = scmp.eq.s32.totalorder %s14, 0
    %p97 = por %p95, %p96
    %p98 = scmp.ne.s32.totalorder %s90, %s92
    %p99 = scmp.eq.s32.totalorder %s19, 1
    %p100 = por %p98, %p99
    %p101 = scmp.ne.s32.totalorder %s92, %s93
    %p102 = scmp.eq.s32.totalorder %s19, 0
    %p103 = por %p101, %p102
    %p104 = scmp.ne.s32.totalorder %s92, %s93
    %p105 = scmp.eq.s32.totalorder %s20, 1
    %p106 = por %p104, %p105
    %p108 = scmp.ne.s32.totalorder %s93, %s107
    %p109 = scmp.eq.s32.totalorder %s20, 0
    %p110 = por %p108, %p109
    %s112 = sadd.s32 %s111, 1
    %p115 = scmp.eq.s32.totalorder %s14, 1
    %p116 = scmp.ne.s32.totalorder %s111, %s113
    %p117 = scmp.eq.s32.totalorder %s14, 0
    %p118 = por %p116, %p117
    %p119 = scmp.ne.s32.totalorder %s111, %s113
    %p120 = scmp.eq.s32.totalorder %s19, 1
    %p121 = por %p119, %p120
    %p122 = scmp.ne.s32.totalorder %s113, %s114
    %p123 = scmp.eq.s32.totalorder %s19, 0
    %p124 = por %p122, %p123
    %p125 = scmp.ne.s32.totalorder %s113, %s114
    %p126 = scmp.eq.s32.totalorder %s20, 1
    %p127 = por %p125, %p126
    %p129 = scmp.ne.s32.totalorder %s114, %s128
    %p130 = scmp.eq.s32.totalorder %s20, 0
    %p131 = por %p129, %p130
    %s133 = sadd.s32 %s132, 1
    %p136 = scmp.eq.s32.totalorder %s14, 1
    %p137 = scmp.ne.s32.totalorder %s132, %s134
    %p138 = scmp.eq.s32.totalorder %s14, 0
    %p139 = por %p137, %p138
    %p140 = scmp.ne.s32.totalorder %s132, %s134
    %p141 = scmp.eq.s32.totalorder %s19, 1
    %p142 = por %p140, %p141
    %p143 = scmp.ne.s32.totalorder %s134, %s135
    %p144 = scmp.eq.s32.totalorder %s19, 0
    %p145 = por %p143, %p144
    %p146 = scmp.ne.s32.totalorder %s134, %s135
    %p147 = scmp.eq.s32.totalorder %s20, 1
    %p148 = por %p146, %p147
    %p150 = scmp.ne.s32.totalorder %s135, %s149
    %p151 = scmp.eq.s32.totalorder %s20, 0
    %p152 = por %p150, %p151
    %s154 = sadd.s32 %s153, 1
    %p157 = scmp.eq.s32.totalorder %s14, 1
    %p158 = scmp.ne.s32.totalorder %s153, %s155
    %p159 = scmp.eq.s32.totalorder %s14, 0
    %p160 = por %p158, %p159
    %p161 = scmp.ne.s32.totalorder %s153, %s155
    %p162 = scmp.eq.s32.totalorder %s19, 1
    %p163 = por %p161, %p162
    %p164 = scmp.ne.s32.totalorder %s155, %s156
    %p165 = scmp.eq.s32.totalorder %s19, 0
    %p166 = por %p164, %p165
    %p167 = scmp.ne.s32.totalorder %s155, %s156
    %p168 = scmp.eq.s32.totalorder %s20, 1
    %p169 = por %p167, %p168
    %p171 = scmp.ne.s32.totalorder %s156, %s170
    %p172 = scmp.eq.s32.totalorder %s20, 0
    %p173 = por %p171, %p172
    %s175 = sadd.s32 %s174, 1
    %p178 = scmp.eq.s32.totalorder %s14, 1
    %p179 = scmp.ne.s32.totalorder %s174, %s176
    %p180 = scmp.eq.s32.totalorder %s14, 0
    %p181 = por %p179, %p180
    %p182 = scmp.ne.s32.totalorder %s174, %s176
    %p183 = scmp.eq.s32.totalorder %s19, 1
    %p184 = por %p182, %p183
    %p185 = scmp.ne.s32.totalorder %s176, %s177
    %p186 = scmp.eq.s32.totalorder %s19, 0
    %p187 = por %p185, %p186
    %p188 = scmp.ne.s32.totalorder %s176, %s177
    %p189 = scmp.eq.s32.totalorder %s20, 1
    %p190 = por %p188, %p189
    %p192 = scmp.ne.s32.totalorder %s177, %s191
    %p193 = scmp.eq.s32.totalorder %s20, 0
    %p194 = por %p192, %p193
    %s195 = ssub.s32 %s14, %s21
    %p196 = scmp.eq.s32.totalorder %s195, 0
    %s198 = sadd.s32 %s197, 1
    %s199 = scalar_select %p196, %s197, %s198
    %p202 = pneg %p196
    %p203 = scmp.eq.s32.totalorder %s14, 1
    %p204 = por %p202, %p203
    %p205 = scmp.ne.s32.totalorder %s197, %s200
    %p206 = scmp.eq.s32.totalorder %s14, 0
    %p207 = por %p205, %p206
    %p208 = scmp.ne.s32.totalorder %s197, %s200
    %p209 = scmp.eq.s32.totalorder %s19, 1
    %p210 = por %p208, %p209
    %p211 = scmp.ne.s32.totalorder %s200, %s201
    %p212 = scmp.eq.s32.totalorder %s19, 0
    %p213 = por %p211, %p212
    %p214 = scmp.ne.s32.totalorder %s200, %s201
    %p215 = scmp.eq.s32.totalorder %s20, 1
    %p216 = por %p214, %p215
    %p218 = scmp.ne.s32.totalorder %s201, %s217
    %p219 = scmp.eq.s32.totalorder %s20, 0
    %p220 = por %p218, %p219
    %p221 = scmp.le.s32.totalorder 1, %s14
    %p222 = scmp.lt.s32.totalorder %s14, 3
    %p223 = pnand %p221, %p222
    %p224 = pneg %p223
    // Predicated region
    $region9: #{window_attention_forward.1} parent=5 // pred_check
      _
    $region10: #{window_attention_forward.1} parent=5 // pred_check_branch
      %226 = sbr.rel (%p223) target = $region12
    $region11: #{window_attention_forward.1} parent=5 // pred_region
      %s227 = ssub.s32 %s14, 1
      // Predicated region
      $region13: #{window_attention_forward.1} parent=11 // pred_check
        %p228 = pneg %p61
      $region14: #{window_attention_forward.1} parent=11 // pred_check_branch
        %230 = sbr.rel (%p228) target = $region16
      $region15: #{window_attention_forward.1} parent=11 // pred_region
        _
      $region16: #{window_attention_forward.1} parent=11 // pred_fallthru
        _
      // Predicated region
      $region17: #{window_attention_forward.1} parent=11 // pred_check
        %p231 = pneg %p82
      $region18: #{window_attention_forward.1} parent=11 // pred_check_branch
        %233 = sbr.rel (%p231) target = $region20
      $region19: #{window_attention_forward.1} parent=11 // pred_region
        _
      $region20: #{window_attention_forward.1} parent=11 // pred_fallthru
        _
      // Predicated region
      $region21: #{window_attention_forward.1} parent=11 // pred_check
        %p234 = pneg %p103
      $region22: #{window_attention_forward.1} parent=11 // pred_check_branch
        %236 = sbr.rel (%p234) target = $region24
      $region23: #{window_attention_forward.1} parent=11 // pred_region
        _
      $region24: #{window_attention_forward.1} parent=11 // pred_fallthru
        _
      // Predicated region
      $region25: #{window_attention_forward.1} parent=11 // pred_check
        %p237 = pneg %p124
      $region26: #{window_attention_forward.1} parent=11 // pred_check_branch
        %239 = sbr.rel (%p237) target = $region28
      $region27: #{window_attention_forward.1} parent=11 // pred_region
        _
      $region28: #{window_attention_forward.1} parent=11 // pred_fallthru
        _
      // Predicated region
      $region29: #{window_attention_forward.1} parent=11 // pred_check
        %p240 = pneg %p145
      $region30: #{window_attention_forward.1} parent=11 // pred_check_branch
        %242 = sbr.rel (%p240) target = $region32
      $region31: #{window_attention_forward.1} parent=11 // pred_region
        _
      $region32: #{window_attention_forward.1} parent=11 // pred_fallthru
        _
      // Predicated region
      $region33: #{window_attention_forward.1} parent=11 // pred_check
        %p243 = pneg %p166
      $region34: #{window_attention_forward.1} parent=11 // pred_check_branch
        %245 = sbr.rel (%p243) target = $region36
      $region35: #{window_attention_forward.1} parent=11 // pred_region
        _
      $region36: #{window_attention_forward.1} parent=11 // pred_fallthru
        _
      // Predicated region
      $region37: #{window_attention_forward.1} parent=11 // pred_check
        %p246 = pneg %p187
      $region38: #{window_attention_forward.1} parent=11 // pred_check_branch
        %248 = sbr.rel (%p246) target = $region40
      $region39: #{window_attention_forward.1} parent=11 // pred_region
        _
      $region40: #{window_attention_forward.1} parent=11 // pred_fallthru
        _
    $region12: #{window_attention_forward.1} parent=5 // pred_fallthru
      _
    %p249 = scmp.lt.s32.totalorder %s14, 2
    // Predicated region
    $region41: #{window_attention_forward.1} parent=5 // pred_check
      %p250 = pneg %p249
    $region42: #{window_attention_forward.1} parent=5 // pred_check_branch
      %252 = sbr.rel (%p250) target = $region44
    $region43: #{window_attention_forward.1} parent=5 // pred_region
      // Predicated region
      $region45: #{window_attention_forward.1} parent=43 // pred_check
        %p253 = pneg %p34
      $region46: #{window_attention_forward.1} parent=43 // pred_check_branch
        %255 = sbr.rel (%p253) target = $region48
      $region47: #{window_attention_forward.1} parent=43 // pred_region
        %s256 = smul.u32 16, %s14
        %p257 = scmp.lt.s32.totalorder %s256, 31
        %s258 = scalar_select %p257, %s256, 31
        %s259 = smul.addr %s258, 8
        %s260 = scalar_lea.vmem %s0, %s259
        %s261 = smul.u32 16, %s14
      $region48: #{window_attention_forward.1} parent=43 // pred_fallthru
        _
    $region44: #{window_attention_forward.1} parent=5 // pred_fallthru
      _
    %p262 = scmp.le.s32.totalorder 1, %s14
    %p263 = scmp.lt.s32.totalorder %s14, 3
    %p264 = pnand %p262, %p263
    %p265 = pneg %p264
    // Predicated region
    $region49: #{window_attention_forward.1} parent=5 // pred_check
      _
    $region50: #{window_attention_forward.1} parent=5 // pred_check_branch
      %267 = sbr.rel (%p264) target = $region52
    $region51: #{window_attention_forward.1} parent=5 // pred_region
      %s268 = ssub.s32 %s14, 1
      %s269 = smul.u32 16, %s19
      %p270 = scmp.lt.s32.totalorder %s269, 31
      %s271 = scalar_select %p270, %s269, 31
      %s272 = smul.addr %s271, 8
      %s273 = scalar_lea.vmem %s0, %s272
      %p274 = pneg %p40
      %p275 = pneg %p37
      %p276 = pneg %p61
      %p277 = pneg %p58
      %p278 = pneg %p82
      %p279 = pneg %p79
      %p280 = pneg %p103
      %p281 = pneg %p100
      %p282 = pneg %p124
      %p283 = pneg %p121
      %p284 = pneg %p145
      %p285 = pneg %p142
      %p286 = pneg %p166
      %p287 = pneg %p163
      %p288 = pneg %p187
      %p289 = pneg %p184
      %p290 = pneg %p213
      %p291 = pneg %p210
      %s292 = smul.u32 16, %s19
      %p293 = scmp.lt.s32.totalorder %s292, 31
      %s294 = scalar_select %p293, %s292, 31
      %s295 = smul.addr %s294, 8
      %s296 = scalar_lea.vmem %s8, %s295
      %s297 = smul.u32 16, %s19
      %p298 = scmp.lt.s32.totalorder %s297, 31
      %s299 = scalar_select %p298, %s297, 31
      %s300 = smul.addr %s299, 8
      %s301 = scalar_lea.vmem %s0, %s300
      %s302 = smul.u32 16, %s19
      %s303 = smul.u32 16, %s19
      %p304 = scmp.lt.s32.totalorder %s303, 31
      %s305 = scalar_select %p304, %s303, 31
      %s306 = smul.addr %s305, 8
      %s307 = scalar_lea.vmem %s8, %s306
      %s308 = smul.u32 16, %s19
      %v309 = vld [vmem:[%s301] sm:$0xff]
      %v310 = vld [vmem:[%s301 + $0x8] sm:$0xff]
      %v311 = vld [vmem:[%s301 + $0x10] sm:$0xff]
      %v312 = vld [vmem:[%s301 + $0x18] sm:$0xff]
      %v313 = vld [vmem:[%s301 + $0x20] sm:$0xff]
      %v314 = vld [vmem:[%s301 + $0x28] sm:$0xff]
      %v315 = vld [vmem:[%s301 + $0x30] sm:$0xff]
      %v316 = vld [vmem:[%s301 + $0x38] sm:$0xff]
      %v317 = vld [vmem:[%s301 + $0x40] sm:$0xff]
      %v318 = vld [vmem:[%s301 + $0x48] sm:$0xff]
      %v319 = vld [vmem:[%s301 + $0x50] sm:$0xff]
      %v320 = vld [vmem:[%s301 + $0x58] sm:$0xff]
      %v321 = vld [vmem:[%s301 + $0x60] sm:$0xff]
      %v322 = vld [vmem:[%s301 + $0x68] sm:$0xff]
      %v323 = vld [vmem:[%s301 + $0x70] sm:$0xff]
      %v324 = vld [vmem:[%s301 + $0x78] sm:$0xff]
      %v325 = vld [vmem:[%s1] sm:$0xff]
      %v326 = vld [vmem:[%s1 + $0x8] sm:$0xff]
      %v327 = vld [vmem:[%s1 + $0x10] sm:$0xff]
      %v328 = vld [vmem:[%s1 + $0x18] sm:$0xff]
      %v329 = vld [vmem:[%s2] sm:$0x1]
      %v331 = vlaneseq
      %v332 = vshrl.u32 %v331, 7
      %v333 = vsub.s32 0, %v332
      %v334 = vrot.slane %v329, %v333
      %vm336 = vcmask 261120
      %v338 = vsel %vm336, %v309, 0
      %v341 = vsel %vm336, %v310, 0
      %v344 = vsel %vm336, %v311, 0
      %v347 = vsel %vm336, %v312, 0
      %v350 = vsel %vm336, %v313, 0
      %v353 = vsel %vm336, %v314, 0
      %v356 = vsel %vm336, %v315, 0
      %v359 = vsel %vm336, %v316, 0
      %v362 = vsel %vm336, %v317, 0
      %v365 = vsel %vm336, %v318, 0
      %v368 = vsel %vm336, %v319, 0
      %v371 = vsel %vm336, %v320, 0
      %v374 = vsel %vm336, %v321, 0
      %v377 = vsel %vm336, %v322, 0
      %v380 = vsel %vm336, %v323, 0
      %v383 = vsel %vm336, %v324, 0
      %385 = vmatprep.subr.mxu0 0.0
      %386 = vmatpush1.msra.mxu0 %v325
      %387 = vmatprep.subr.mxu0 0.0
      %388 = vmatpush1.msra.mxu0 %v326
      %389 = vmatprep.subr.mxu0 0.0
      %390 = vmatpush1.msra.mxu0 %v327
      %391 = vmatprep.subr.mxu0 0.0
      %392 = vmatpush1.msra.mxu0 %v328
      %393 = vmatprep.subr.mxu0 0.0
      %394 = vmatpush1.msra.mxu0 0.0
      %395 = vmatprep.subr.mxu0 0.0
      %396 = vmatpush1.msra.mxu0 0.0
      %397 = vmatprep.subr.mxu0 0.0
      %398 = vmatpush1.msra.mxu0 0.0
      %399 = vmatprep.subr.mxu0 0.0
      %400 = vmatpush1.msra.mxu0 0.0
      %401 = vmatprep.subr.mxu0 0.0
      %402 = vmatpush1.msra.mxu0 0.0
      %403 = vmatprep.subr.mxu0 0.0
      %404 = vmatpush1.msra.mxu0 0.0
      %405 = vmatprep.subr.mxu0 0.0
      %406 = vmatpush1.msra.mxu0 0.0
      %407 = vmatprep.subr.mxu0 0.0
      %408 = vmatpush1.msra.mxu0 0.0
      %409 = vmatprep.subr.mxu0 0.0
      %410 = vmatpush1.msra.mxu0 0.0
      %411 = vmatprep.subr.mxu0 0.0
      %412 = vmatpush1.msra.mxu0 0.0
      %413 = vmatprep.subr.mxu0 0.0
      %414 = vmatpush1.msra.mxu0 0.0
      %415 = vmatprep.subr.mxu0 0.0
      %416 = vmatpush1.msra.mxu0 0.0
      %417 = vmatprep.subr.mxu0 0.0
      %418 = vmatpush1.msra.mxu0 0.0
      %419 = vmatprep.subr.mxu0 0.0
      %420 = vmatpush1.msra.mxu0 0.0
      %421 = vmatprep.subr.mxu0 0.0
      %422 = vmatpush1.msra.mxu0 0.0
      %423 = vmatprep.subr.mxu0 0.0
      %424 = vmatpush1.msra.mxu0 0.0
      %425 = vmatprep.subr.mxu0 0.0
      %426 = vmatpush1.msra.mxu0 0.0
      %427 = vmatprep.subr.mxu0 0.0
      %428 = vmatpush1.msra.mxu0 0.0
      %429 = vmatprep.subr.mxu0 0.0
      %430 = vmatpush1.msra.mxu0 0.0
      %431 = vmatprep.subr.mxu0 0.0
      %432 = vmatpush1.msra.mxu0 0.0
      %433 = vmatprep.subr.mxu0 0.0
      %434 = vmatpush1.msra.mxu0 0.0
      %435 = vmatprep.subr.mxu0 0.0
      %436 = vmatpush1.msra.mxu0 0.0
      %437 = vmatprep.subr.mxu0 0.0
      %438 = vmatpush1.msra.mxu0 0.0
      %439 = vmatprep.subr.mxu0 0.0
      %440 = vmatpush1.msra.mxu0 0.0
      %441 = vmatprep.subr.mxu0 0.0
      %442 = vmatpush1.msra.mxu0 0.0
      %443 = vmatprep.subr.mxu0 0.0
      %444 = vmatpush1.msra.mxu0 0.0
      %445 = vmatprep.subr.mxu0 0.0
      %446 = vmatpush1.msra.mxu0 0.0
      %447 = vmatprep.subr.mxu0 0.0
      %448 = vmatpush1.msra.mxu0 0.0
      %449 = vmatprep.mubr.f32.mxu0 0.0
      %450 = vmatmul.mubr.f32.gmra.mrb[0].mxu0 %v338
      %v451 = vpop.f32.mrb[0].mxu0
      %v452 = vadd.f32 %v334, %v451
      %v453 = vpop.f32.mrb[0].mxu0
      %454 = vmatprep.mubr.f32.mxu0 0.0
      %455 = vmatmul.mubr.f32.gmra.mrb[0].mxu0 %v341
      %v456 = vpop.f32.mrb[0].mxu0
      %v457 = vadd.f32 %v334, %v456
      %v458 = vpop.f32.mrb[0].mxu0
      %459 = vmatprep.mubr.f32.mxu0 0.0
      %460 = vmatmul.mubr.f32.gmra.mrb[0].mxu0 %v344
      %v461 = vpop.f32.mrb[0].mxu0
      %v462 = vadd.f32 %v334, %v461
      %v463 = vpop.f32.mrb[0].mxu0
      %464 = vmatprep.mubr.f32.mxu0 0.0
      %465 = vmatmul.mubr.f32.gmra.mrb[0].mxu0 %v347
      %v466 = vpop.f32.mrb[0].mxu0
      %v467 = vadd.f32 %v334, %v466
      %v468 = vpop.f32.mrb[0].mxu0
      %469 = vmatprep.mubr.f32.mxu0 0.0
      %470 = vmatmul.mubr.f32.gmra.mrb[0].mxu0 %v350
      %v471 = vpop.f32.mrb[0].mxu0
      %v472 = vadd.f32 %v334, %v471
      %v473 = vpop.f32.mrb[0].mxu0
      %474 = vmatprep.mubr.f32.mxu0 0.0
      %475 = vmatmul.mubr.f32.gmra.mrb[0].mxu0 %v353
      %v476 = vpop.f32.mrb[0].mxu0
      %v477 = vadd.f32 %v334, %v476
      %v478 = vpop.f32.mrb[0].mxu0
      %479 = vmatprep.mubr.f32.mxu0 0.0
      %480 = vmatmul.mubr.f32.gmra.mrb[0].mxu0 %v356
      %v481 = vpop.f32.mrb[0].mxu0
      %v482 = vadd.f32 %v334, %v481
      %v483 = vpop.f32.mrb[0].mxu0
      %484 = vmatprep.mubr.f32.mxu0 0.0
      %485 = vmatmul.mubr.f32.gmra.mrb[0].mxu0 %v359
      %v486 = vpop.f32.mrb[0].mxu0
      %v487 = vadd.f32 %v334, %v486
      %v488 = vpop.f32.mrb[0].mxu0
      %489 = vmatprep.mubr.f32.mxu0 0.0
      %490 = vmatmul.mubr.f32.gmra.mrb[0].mxu0 %v362
      %v491 = vpop.f32.mrb[0].mxu0
      %v492 = vadd.f32 %v334, %v491
      %v493 = vpop.f32.mrb[0].mxu0
      %494 = vmatprep.mubr.f32.mxu0 0.0
      %495 = vmatmul.mubr.f32.gmra.mrb[0].mxu0 %v365
      %v496 = vpop.f32.mrb[0].mxu0
      %v497 = vadd.f32 %v334, %v496
      %v498 = vpop.f32.mrb[0].mxu0
      %499 = vmatprep.mubr.f32.mxu0 0.0
      %500 = vmatmul.mubr.f32.gmra.mrb[0].mxu0 %v368
      %v501 = vpop.f32.mrb[0].mxu0
      %v502 = vadd.f32 %v334, %v501
      %v503 = vpop.f32.mrb[0].mxu0
      %504 = vmatprep.mubr.f32.mxu0 0.0
      %505 = vmatmul.mubr.f32.gmra.mrb[0].mxu0 %v371
      %v506 = vpop.f32.mrb[0].mxu0
      %v507 = vadd.f32 %v334, %v506
      %v508 = vpop.f32.mrb[0].mxu0
      %509 = vmatprep.mubr.f32.mxu0 0.0
      %510 = vmatmul.mubr.f32.gmra.mrb[0].mxu0 %v374
      %v511 = vpop.f32.mrb[0].mxu0
      %v512 = vadd.f32 %v334, %v511
      %v513 = vpop.f32.mrb[0].mxu0
      %514 = vmatprep.mubr.f32.mxu0 0.0
      %515 = vmatmul.mubr.f32.gmra.mrb[0].mxu0 %v377
      %v516 = vpop.f32.mrb[0].mxu0
      %v517 = vadd.f32 %v334, %v516
      %v518 = vpop.f32.mrb[0].mxu0
      %519 = vmatprep.mubr.f32.mxu0 0.0
      %520 = vmatmul.mubr.f32.gmra.mrb[0].mxu0 %v380
      %v521 = vpop.f32.mrb[0].mxu0
      %v522 = vadd.f32 %v334, %v521
      %v523 = vpop.f32.mrb[0].mxu0
      %524 = vmatprep.mubr.f32.mxu0 0.0
      %525 = vmatmul.mubr.f32.gmra.mrb[0].mxu0 %v383
      %v526 = vpop.f32.mrb[0].mxu0
      %v527 = vadd.f32 %v334, %v526
      %v528 = vpop.f32.mrb[0].mxu0
      %529 = vdwg.mxu0
      %532 = vrot.lane.b32.xlu0 %v452, 96
      %v533 = vpop.permute.xlu0 %532
      %534 = vrot.lane.b32.xlu0 %v457, 96
      %v535 = vpop.permute.xlu0 %534
      %vm536 = vcmask 64512
      %v537 = vsel %vm536, %v452, 0
      %v539 = vsel %vm536, %v457, 0
      %v541 = vsel %vm536, %v533, 0
      %v543 = vsel %vm536, %v535, 0
      %545 = vmatprep.subr.mxu0 0.0
      %546 = vmatpush1.xpose.msra.mxu0 %v541
      %547 = vmatprep.subr.mxu0 0.0
      %548 = vmatpush1.xpose.msra.mxu0 %v543
      %549 = vmatprep.subr.mxu0 0.0
      %550 = vmatpush1.xpose.msra.mxu0 0.0
      %551 = vmatprep.subr.mxu0 0.0
      %552 = vmatpush1.xpose.msra.mxu0 0.0
      %553 = vmatprep.subr.mxu0 0.0
      %554 = vmatpush1.xpose.msra.mxu0 0.0
      %555 = vmatprep.subr.mxu0 0.0
      %556 = vmatpush1.xpose.msra.mxu0 0.0
      %557 = vmatprep.subr.mxu0 0.0
      %558 = vmatpush1.xpose.msra.mxu0 0.0
      %559 = vmatprep.subr.mxu0 0.0
      %560 = vmatpush1.xpose.msra.mxu0 0.0
      %561 = vmatprep.subr.mxu0 0.0
      %562 = vmatpush1.xpose.msra.mxu0 0.0
      %563 = vmatprep.subr.mxu0 0.0
      %564 = vmatpush1.xpose.msra.mxu0 0.0
      %565 = vmatprep.subr.mxu0 0.0
      %566 = vmatpush1.xpose.msra.mxu0 0.0
      %567 = vmatprep.subr.mxu0 0.0
      %568 = vmatpush1.xpose.msra.mxu0 0.0
      %569 = vmatprep.subr.mxu0 0.0
      %570 = vmatpush1.xpose.msra.mxu0 0.0
      %571 = vmatprep.subr.mxu0 0.0
      %572 = vmatpush1.xpose.msra.mxu0 0.0
      %573 = vmatprep.subr.mxu0 0.0
      %574 = vmatpush1.xpose.msra.mxu0 0.0
      %575 = vmatprep.subr.mxu0 0.0
      %576 = vmatpush1.xpose.msra.mxu0 0.0
      %577 = vmatprep.subr.mxu0 0.0
      %578 = vmatpush1.xpose.msra.mxu0 0.0
      %579 = vmatprep.subr.mxu0 0.0
      %580 = vmatpush1.xpose.msra.mxu0 0.0
      %581 = vmatprep.subr.mxu0 0.0
      %582 = vmatpush1.xpose.msra.mxu0 0.0
      %583 = vmatprep.subr.mxu0 0.0
      %584 = vmatpush1.xpose.msra.mxu0 0.0
      %585 = vmatprep.subr.mxu0 0.0
      %586 = vmatpush1.xpose.msra.mxu0 0.0
      %587 = vmatprep.subr.mxu0 0.0
      %588 = vmatpush1.xpose.msra.mxu0 0.0
      %589 = vmatprep.subr.mxu0 0.0
      %590 = vmatpush1.xpose.msra.mxu0 0.0
      %591 = vmatprep.subr.mxu0 0.0
      %592 = vmatpush1.xpose.msra.mxu0 0.0
      %593 = vmatprep.subr.mxu0 0.0
      %594 = vmatpush1.xpose.msra.mxu0 0.0
      %595 = vmatprep.subr.mxu0 0.0
      %596 = vmatpush1.xpose.msra.mxu0 0.0
      %597 = vmatprep.subr.mxu0 0.0
      %598 = vmatpush1.xpose.msra.mxu0 0.0
      %599 = vmatprep.subr.mxu0 0.0
      %600 = vmatpush1.xpose.msra.mxu0 0.0
      %601 = vmatprep.subr.mxu0 0.0
      %602 = vmatpush1.xpose.msra.mxu0 0.0
      %603 = vmatprep.subr.mxu0 0.0
      %604 = vmatpush1.xpose.msra.mxu0 0.0
      %605 = vmatprep.subr.mxu0 0.0
      %606 = vmatpush1.xpose.msra.mxu0 0.0
      %607 = vmatprep.subr.mxu0 0.0
      %608 = vmatpush1.xpose.msra.mxu0 0.0
      %609 = vmatprep.mubr.f32.mxu0 0.0
      %610 = vmatmul.mubr.f32.gmra.mrb[0].mxu0 %v537
      %v611 = vpop.f32.mrb[0].mxu0
      %v612 = vadd.f32 0.0, %v611
      %v613 = vpop.f32.mrb[0].mxu0
      %614 = vmatprep.mubr.f32.mxu0 0.0
      %615 = vmatmul.mubr.f32.gmra.mrb[0].mxu0 %v539
      %v616 = vpop.f32.mrb[0].mxu0
      %v617 = vadd.f32 0.0, %v616
      %v618 = vpop.f32.mrb[0].mxu0
      %619 = vdwg.mxu0
      %622 = vrot.lane.b32.xlu0 %v462, 96
      %v623 = vpop.permute.xlu0 %622
      %624 = vrot.lane.b32.xlu0 %v467, 96
      %v625 = vpop.permute.xlu0 %624
      %v626 = vsel %vm536, %v462, 0
      %v628 = vsel %vm536, %v467, 0
      %v630 = vsel %vm536, %v623, 0
      %v632 = vsel %vm536, %v625, 0
      %634 = vmatprep.subr.mxu0 0.0
      %635 = vmatpush1.xpose.msra.mxu0 %v630
      %636 = vmatprep.subr.mxu0 0.0
      %637 = vmatpush1.xpose.msra.mxu0 %v632
      %638 = vmatprep.subr.mxu0 0.0
      %639 = vmatpush1.xpose.msra.mxu0 0.0
      %640 = vmatprep.subr.mxu0 0.0
      %641 = vmatpush1.xpose.msra.mxu0 0.0
      %642 = vmatprep.subr.mxu0 0.0
      %643 = vmatpush1.xpose.msra.mxu0 0.0
      %644 = vmatprep.subr.mxu0 0.0
      %645 = vmatpush1.xpose.msra.mxu0 0.0
      %646 = vmatprep.subr.mxu0 0.0
      %647 = vmatpush1.xpose.msra.mxu0 0.0
      %648 = vmatprep.subr.mxu0 0.0
      %649 = vmatpush1.xpose.msra.mxu0 0.0
      %650 = vmatprep.subr.mxu0 0.0
      %651 = vmatpush1.xpose.msra.mxu0 0.0
      %652 = vmatprep.subr.mxu0 0.0
      %653 = vmatpush1.xpose.msra.mxu0 0.0
      %654 = vmatprep.subr.mxu0 0.0
      %655 = vmatpush1.xpose.msra.mxu0 0.0
      %656 = vmatprep.subr.mxu0 0.0
      %657 = vmatpush1.xpose.msra.mxu0 0.0
      %658 = vmatprep.subr.mxu0 0.0
      %659 = vmatpush1.xpose.msra.mxu0 0.0
      %660 = vmatprep.subr.mxu0 0.0
      %661 = vmatpush1.xpose.msra.mxu0 0.0
      %662 = vmatprep.subr.mxu0 0.0
      %663 = vmatpush1.xpose.msra.mxu0 0.0
      %664 = vmatprep.subr.mxu0 0.0
      %665 = vmatpush1.xpose.msra.mxu0 0.0
      %666 = vmatprep.subr.mxu0 0.0
      %667 = vmatpush1.xpose.msra.mxu0 0.0
      %668 = vmatprep.subr.mxu0 0.0
      %669 = vmatpush1.xpose.msra.mxu0 0.0
      %670 = vmatprep.subr.mxu0 0.0
      %671 = vmatpush1.xpose.msra.mxu0 0.0
      %672 = vmatprep.subr.mxu0 0.0
      %673 = vmatpush1.xpose.msra.mxu0 0.0
      %674 = vmatprep.subr.mxu0 0.0
      %675 = vmatpush1.xpose.msra.mxu0 0.0
      %676 = vmatprep.subr.mxu0 0.0
      %677 = vmatpush1.xpose.msra.mxu0 0.0
      %678 = vmatprep.subr.mxu0 0.0
      %679 = vmatpush1.xpose.msra.mxu0 0.0
      %680 = vmatprep.subr.mxu0 0.0
      %681 = vmatpush1.xpose.msra.mxu0 0.0
      %682 = vmatprep.subr.mxu0 0.0
      %683 = vmatpush1.xpose.msra.mxu0 0.0
      %684 = vmatprep.subr.mxu0 0.0
      %685 = vmatpush1.xpose.msra.mxu0 0.0
      %686 = vmatprep.subr.mxu0 0.0
      %687 = vmatpush1.xpose.msra.mxu0 0.0
      %688 = vmatprep.subr.mxu0 0.0
      %689 = vmatpush1.xpose.msra.mxu0 0.0
      %690 = vmatprep.subr.mxu0 0.0
      %691 = vmatpush1.xpose.msra.mxu0 0.0
      %692 = vmatprep.subr.mxu0 0.0
      %693 = vmatpush1.xpose.msra.mxu0 0.0
      %694 = vmatprep.subr.mxu0 0.0
      %695 = vmatpush1.xpose.msra.mxu0 0.0
      %696 = vmatprep.subr.mxu0 0.0
      %697 = vmatpush1.xpose.msra.mxu0 0.0
      %698 = vmatprep.mubr.f32.mxu0 0.0
      %699 = vmatmul.mubr.f32.gmra.mrb[0].mxu0 %v626
      %v700 = vpop.f32.mrb[0].mxu0
      %v701 = vadd.f32 0.0, %v700
      %v702 = vpop.f32.mrb[0].mxu0
      %703 = vmatprep.mubr.f32.mxu0 0.0
      %704 = vmatmul.mubr.f32.gmra.mrb[0].mxu0 %v628
      %v705 = vpop.f32.mrb[0].mxu0
      %v706 = vadd.f32 0.0, %v705
      %v707 = vpop.f32.mrb[0].mxu0
      %708 = vdwg.mxu0
      %711 = vrot.lane.b32.xlu0 %v472, 96
      %v712 = vpop.permute.xlu0 %711
      %713 = vrot.lane.b32.xlu0 %v477, 96
      %v714 = vpop.permute.xlu0 %713
      %v715 = vsel %vm536, %v472, 0
      %v717 = vsel %vm536, %v477, 0
      %v719 = vsel %vm536, %v712, 0
      %v721 = vsel %vm536, %v714, 0
      %723 = vmatprep.subr.mxu0 0.0
      %724 = vmatpush1.xpose.msra.mxu0 %v719
      %725 = vmatprep.subr.mxu0 0.0
      %726 = vmatpush1.xpose.msra.mxu0 %v721
      %727 = vmatprep.subr.mxu0 0.0
      %728 = vmatpush1.xpose.msra.mxu0 0.0
      %729 = vmatprep.subr.mxu0 0.0
      %730 = vmatpush1.xpose.msra.mxu0 0.0
      %731 = vmatprep.subr.mxu0 0.0
      %732 = vmatpush1.xpose.msra.mxu0 0.0
      %733 = vmatprep.subr.mxu0 0.0
      %734 = vmatpush1.xpose.msra.mxu0 0.0
      %735 = vmatprep.subr.mxu0 0.0
      %736 = vmatpush1.xpose.msra.mxu0 0.0
      %737 = vmatprep.subr.mxu0 0.0
      %738 = vmatpush1.xpose.msra.mxu0 0.0
      %739 = vmatprep.subr.mxu0 0.0
      %740 = vmatpush1.xpose.msra.mxu0 0.0
      %741 = vmatprep.subr.mxu0 0.0
      %742 = vmatpush1.xpose.msra.mxu0 0.0
      %743 = vmatprep.subr.mxu0 0.0
      %744 = vmatpush1.xpose.msra.mxu0 0.0
      %745 = vmatprep.subr.mxu0 0.0
      %746 = vmatpush1.xpose.msra.mxu0 0.0
      %747 = vmatprep.subr.mxu0 0.0
      %748 = vmatpush1.xpose.msra.mxu0 0.0
      %749 = vmatprep.subr.mxu0 0.0
      %750 = vmatpush1.xpose.msra.mxu0 0.0
      %751 = vmatprep.subr.mxu0 0.0
      %752 = vmatpush1.xpose.msra.mxu0 0.0
      %753 = vmatprep.subr.mxu0 0.0
      %754 = vmatpush1.xpose.msra.mxu0 0.0
      %755 = vmatprep.subr.mxu0 0.0
      %756 = vmatpush1.xpose.msra.mxu0 0.0
      %757 = vmatprep.subr.mxu0 0.0
      %758 = vmatpush1.xpose.msra.mxu0 0.0
      %759 = vmatprep.subr.mxu0 0.0
      %760 = vmatpush1.xpose.msra.mxu0 0.0
      %761 = vmatprep.subr.mxu0 0.0
      %762 = vmatpush1.xpose.msra.mxu0 0.0
      %763 = vmatprep.subr.mxu0 0.0
      %764 = vmatpush1.xpose.msra.mxu0 0.0
      %765 = vmatprep.subr.mxu0 0.0
      %766 = vmatpush1.xpose.msra.mxu0 0.0
      %767 = vmatprep.subr.mxu0 0.0
      %768 = vmatpush1.xpose.msra.mxu0 0.0
      %769 = vmatprep.subr.mxu0 0.0
      %770 = vmatpush1.xpose.msra.mxu0 0.0
      %771 = vmatprep.subr.mxu0 0.0
      %772 = vmatpush1.xpose.msra.mxu0 0.0
      %773 = vmatprep.subr.mxu0 0.0
      %774 = vmatpush1.xpose.msra.mxu0 0.0
      %775 = vmatprep.subr.mxu0 0.0
      %776 = vmatpush1.xpose.msra.mxu0 0.0
      %777 = vmatprep.subr.mxu0 0.0
      %778 = vmatpush1.xpose.msra.mxu0 0.0
      %779 = vmatprep.subr.mxu0 0.0
      %780 = vmatpush1.xpose.msra.mxu0 0.0
      %781 = vmatprep.subr.mxu0 0.0
      %782 = vmatpush1.xpose.msra.mxu0 0.0
      %783 = vmatprep.subr.mxu0 0.0
      %784 = vmatpush1.xpose.msra.mxu0 0.0
      %785 = vmatprep.subr.mxu0 0.0
      %786 = vmatpush1.xpose.msra.mxu0 0.0
      %787 = vmatprep.mubr.f32.mxu0 0.0
      %788 = vmatmul.mubr.f32.gmra.mrb[0].mxu0 %v715
      %v789 = vpop.f32.mrb[0].mxu0
      %v790 = vadd.f32 0.0, %v789
      %v791 = vpop.f32.mrb[0].mxu0
      %792 = vmatprep.mubr.f32.mxu0 0.0
      %793 = vmatmul.mubr.f32.gmra.mrb[0].mxu0 %v717
      %v794 = vpop.f32.mrb[0].mxu0
      %v795 = vadd.f32 0.0, %v794
      %v796 = vpop.f32.mrb[0].mxu0
      %797 = vdwg.mxu0
      %800 = vrot.lane.b32.xlu0 %v482, 96
      %v801 = vpop.permute.xlu0 %800
      %802 = vrot.lane.b32.xlu0 %v487, 96
      %v803 = vpop.permute.xlu0 %802
      %v804 = vsel %vm536, %v482, 0
      %v806 = vsel %vm536, %v487, 0
      %v808 = vsel %vm536, %v801, 0
      %v810 = vsel %vm536, %v803, 0
      %812 = vmatprep.subr.mxu0 0.0
      %813 = vmatpush1.xpose.msra.mxu0 %v808
      %814 = vmatprep.subr.mxu0 0.0
      %815 = vmatpush1.xpose.msra.mxu0 %v810
      %816 = vmatprep.subr.mxu0 0.0
      %817 = vmatpush1.xpose.msra.mxu0 0.0
      %818 = vmatprep.subr.mxu0 0.0
      %819 = vmatpush1.xpose.msra.mxu0 0.0
      %820 = vmatprep.subr.mxu0 0.0
      %821 = vmatpush1.xpose.msra.mxu0 0.0
      %822 = vmatprep.subr.mxu0 0.0
      %823 = vmatpush1.xpose.msra.mxu0 0.0
      %824 = vmatprep.subr.mxu0 0.0
      %825 = vmatpush1.xpose.msra.mxu0 0.0
      %826 = vmatprep.subr.mxu0 0.0
      %827 = vmatpush1.xpose.msra.mxu0 0.0
      %828 = vmatprep.subr.mxu0 0.0
      %829 = vmatpush1.xpose.msra.mxu0 0.0
      %830 = vmatprep.subr.mxu0 0.0
      %831 = vmatpush1.xpose.msra.mxu0 0.0
      %832 = vmatprep.subr.mxu0 0.0
      %833 = vmatpush1.xpose.msra.mxu0 0.0
      %834 = vmatprep.subr.mxu0 0.0
      %835 = vmatpush1.xpose.msra.mxu0 0.0
      %836 = vmatprep.subr.mxu0 0.0
      %837 = vmatpush1.xpose.msra.mxu0 0.0
      %838 = vmatprep.subr.mxu0 0.0
      %839 = vmatpush1.xpose.msra.mxu0 0.0
      %840 = vmatprep.subr.mxu0 0.0
      %841 = vmatpush1.xpose.msra.mxu0 0.0
      %842 = vmatprep.subr.mxu0 0.0
      %843 = vmatpush1.xpose.msra.mxu0 0.0
      %844 = vmatprep.subr.mxu0 0.0
      %845 = vmatpush1.xpose.msra.mxu0 0.0
      %846 = vmatprep.subr.mxu0 0.0
      %847 = vmatpush1.xpose.msra.mxu0 0.0
      %848 = vmatprep.subr.mxu0 0.0
      %849 = vmatpush1.xpose.msra.mxu0 0.0
      %850 = vmatprep.subr.mxu0 0.0
      %851 = vmatpush1.xpose.msra.mxu0 0.0
      %852 = vmatprep.subr.mxu0 0.0
      %853 = vmatpush1.xpose.msra.mxu0 0.0
      %854 = vmatprep.subr.mxu0 0.0
      %855 = vmatpush1.xpose.msra.mxu0 0.0
      %856 = vmatprep.subr.mxu0 0.0
      %857 = vmatpush1.xpose.msra.mxu0 0.0
      %858 = vmatprep.subr.mxu0 0.0
      %859 = vmatpush1.xpose.msra.mxu0 0.0
      %860 = vmatprep.subr.mxu0 0.0
      %861 = vmatpush1.xpose.msra.mxu0 0.0
      %862 = vmatprep.subr.mxu0 0.0
      %863 = vmatpush1.xpose.msra.mxu0 0.0
      %864 = vmatprep.subr.mxu0 0.0
      %865 = vmatpush1.xpose.msra.mxu0 0.0
      %866 = vmatprep.subr.mxu0 0.0
      %867 = vmatpush1.xpose.msra.mxu0 0.0
      %868 = vmatprep.subr.mxu0 0.0
      %869 = vmatpush1.xpose.msra.mxu0 0.0
      %870 = vmatprep.subr.mxu0 0.0
      %871 = vmatpush1.xpose.msra.mxu0 0.0
      %872 = vmatprep.subr.mxu0 0.0
      %873 = vmatpush1.xpose.msra.mxu0 0.0
      %874 = vmatprep.subr.mxu0 0.0
      %875 = vmatpush1.xpose.msra.mxu0 0.0
      %876 = vmatprep.mubr.f32.mxu0 0.0
      %877 = vmatmul.mubr.f32.gmra.mrb[0].mxu0 %v804
      %v878 = vpop.f32.mrb[0].mxu0
      %v879 = vadd.f32 0.0, %v878
      %v880 = vpop.f32.mrb[0].mxu0
      %881 = vmatprep.mubr.f32.mxu0 0.0
      %882 = vmatmul.mubr.f32.gmra.mrb[0].mxu0 %v806
      %v883 = vpop.f32.mrb[0].mxu0
      %v884 = vadd.f32 0.0, %v883
      %v885 = vpop.f32.mrb[0].mxu0
      %886 = vdwg.mxu0
      %889 = vrot.lane.b32.xlu0 %v492, 96
      %v890 = vpop.permute.xlu0 %889
      %891 = vrot.lane.b32.xlu0 %v497, 96
      %v892 = vpop.permute.xlu0 %891
      %v893 = vsel %vm536, %v492, 0
      %v895 = vsel %vm536, %v497, 0
      %v897 = vsel %vm536, %v890, 0
      %v899 = vsel %vm536, %v892, 0
      %901 = vmatprep.subr.mxu0 0.0
      %902 = vmatpush1.xpose.msra.mxu0 %v897
      %903 = vmatprep.subr.mxu0 0.0
      %904 = vmatpush1.xpose.msra.mxu0 %v899
      %905 = vmatprep.subr.mxu0 0.0
      %906 = vmatpush1.xpose.msra.mxu0 0.0
      %907 = vmatprep.subr.mxu0 0.0
      %908 = vmatpush1.xpose.msra.mxu0 0.0
      %909 = vmatprep.subr.mxu0 0.0
      %910 = vmatpush1.xpose.msra.mxu0 0.0
      %911 = vmatprep.subr.mxu0 0.0
      %912 = vmatpush1.xpose.msra.mxu0 0.0
      %913 = vmatprep.subr.mxu0 0.0
      %914 = vmatpush1.xpose.msra.mxu0 0.0
      %915 = vmatprep.subr.mxu0 0.0
      %916 = vmatpush1.xpose.msra.mxu0 0.0
      %917 = vmatprep.subr.mxu0 0.0
      %918 = vmatpush1.xpose.msra.mxu0 0.0
      %919 = vmatprep.subr.mxu0 0.0
      %920 = vmatpush1.xpose.msra.mxu0 0.0
      %921 = vmatprep.subr.mxu0 0.0
      %922 = vmatpush1.xpose.msra.mxu0 0.0
      %923 = vmatprep.subr.mxu0 0.0
      %924 = vmatpush1.xpose.msra.mxu0 0.0
      %925 = vmatprep.subr.mxu0 0.0
      %926 = vmatpush1.xpose.msra.mxu0 0.0
      %927 = vmatprep.subr.mxu0 0.0
      %928 = vmatpush1.xpose.msra.mxu0 0.0
      %929 = vmatprep.subr.mxu0 0.0
      %930 = vmatpush1.xpose.msra.mxu0 0.0
      %931 = vmatprep.subr.mxu0 0.0
      %932 = vmatpush1.xpose.msra.mxu0 0.0
      %933 = vmatprep.subr.mxu0 0.0
      %934 = vmatpush1.xpose.msra.mxu0 0.0
      %935 = vmatprep.subr.mxu0 0.0
      %936 = vmatpush1.xpose.msra.mxu0 0.0
      %937 = vmatprep.subr.mxu0 0.0
      %938 = vmatpush1.xpose.msra.mxu0 0.0
      %939 = vmatprep.subr.mxu0 0.0
      %940 = vmatpush1.xpose.msra.mxu0 0.0
      %941 = vmatprep.subr.mxu0 0.0
      %942 = vmatpush1.xpose.msra.mxu0 0.0
      %943 = vmatprep.subr.mxu0 0.0
      %944 = vmatpush1.xpose.msra.mxu0 0.0
      %945 = vmatprep.subr.mxu0 0.0
      %946 = vmatpush1.xpose.msra.mxu0 0.0
      %947 = vmatprep.subr.mxu0 0.0
      %948 = vmatpush1.xpose.msra.mxu0 0.0
      %949 = vmatprep.subr.mxu0 0.0
      %950 = vmatpush1.xpose.msra.mxu0 0.0
      %951 = vmatprep.subr.mxu0 0.0
      %952 = vmatpush1.xpose.msra.mxu0 0.0
      %953 = vmatprep.subr.mxu0 0.0
      %954 = vmatpush1.xpose.msra.mxu0 0.0
      %955 = vmatprep.subr.mxu0 0.0
      %956 = vmatpush1.xpose.msra.mxu0 0.0
      %957 = vmatprep.subr.mxu0 0.0
      %958 = vmatpush1.xpose.msra.mxu0 0.0
      %959 = vmatprep.subr.mxu0 0.0
      %960 = vmatpush1.xpose.msra.mxu0 0.0
      %961 = vmatprep.subr.mxu0 0.0
      %962 = vmatpush1.xpose.msra.mxu0 0.0
      %963 = vmatprep.subr.mxu0 0.0
      %964 = vmatpush1.xpose.msra.mxu0 0.0
      %965 = vmatprep.mubr.f32.mxu0 0.0
      %966 = vmatmul.mubr.f32.gmra.mrb[0].mxu0 %v893
      %v967 = vpop.f32.mrb[0].mxu0
      %v968 = vadd.f32 0.0, %v967
      %v969 = vpop.f32.mrb[0].mxu0
      %970 = vmatprep.mubr.f32.mxu0 0.0
      %971 = vmatmul.mubr.f32.gmra.mrb[0].mxu0 %v895
      %v972 = vpop.f32.mrb[0].mxu0
      %v973 = vadd.f32 0.0, %v972
      %v974 = vpop.f32.mrb[0].mxu0
      %975 = vdwg.mxu0
      %978 = vrot.lane.b32.xlu0 %v502, 96
      %v979 = vpop.permute.xlu0 %978
      %980 = vrot.lane.b32.xlu0 %v507, 96
      %v981 = vpop.permute.xlu0 %980
      %v982 = vsel %vm536, %v502, 0
      %v984 = vsel %vm536, %v507, 0
      %v986 = vsel %vm536, %v979, 0
      %v988 = vsel %vm536, %v981, 0
      %990 = vmatprep.subr.mxu0 0.0
      %991 = vmatpush1.xpose.msra.mxu0 %v986
      %992 = vmatprep.subr.mxu0 0.0
      %993 = vmatpush1.xpose.msra.mxu0 %v988
      %994 = vmatprep.subr.mxu0 0.0
      %995 = vmatpush1.xpose.msra.mxu0 0.0
      %996 = vmatprep.subr.mxu0 0.0
      %997 = vmatpush1.xpose.msra.mxu0 0.0
      %998 = vmatprep.subr.mxu0 0.0
      %999 = vmatpush1.xpose.msra.mxu0 0.0
      %1000 = vmatprep.subr.mxu0 0.0
      %1001 = vmatpush1.xpose.msra.mxu0 0.0
      %1002 = vmatprep.subr.mxu0 0.0
      %1003 = vmatpush1.xpose.msra.mxu0 0.0
      %1004 = vmatprep.subr.mxu0 0.0
      %1005 = vmatpush1.xpose.msra.mxu0 0.0
      %1006 = vmatprep.subr.mxu0 0.0
      %1007 = vmatpush1.xpose.msra.mxu0 0.0
      %1008 = vmatprep.subr.mxu0 0.0
      %1009 = vmatpush1.xpose.msra.mxu0 0.0
      %1010 = vmatprep.subr.mxu0 0.0
      %1011 = vmatpush1.xpose.msra.mxu0 0.0
      %1012 = vmatprep.subr.mxu0 0.0
      %1013 = vmatpush1.xpose.msra.mxu0 0.0
      %1014 = vmatprep.subr.mxu0 0.0
      %1015 = vmatpush1.xpose.msra.mxu0 0.0
      %1016 = vmatprep.subr.mxu0 0.0
      %1017 = vmatpush1.xpose.msra.mxu0 0.0
      %1018 = vmatprep.subr.mxu0 0.0
      %1019 = vmatpush1.xpose.msra.mxu0 0.0
      %1020 = vmatprep.subr.mxu0 0.0
      %1021 = vmatpush1.xpose.msra.mxu0 0.0
      %1022 = vmatprep.subr.mxu0 0.0
      %1023 = vmatpush1.xpose.msra.mxu0 0.0
      %1024 = vmatprep.subr.mxu0 0.0
      %1025 = vmatpush1.xpose.msra.mxu0 0.0
      %1026 = vmatprep.subr.mxu0 0.0
      %1027 = vmatpush1.xpose.msra.mxu0 0.0
      %1028 = vmatprep.subr.mxu0 0.0
      %1029 = vmatpush1.xpose.msra.mxu0 0.0
      %1030 = vmatprep.subr.mxu0 0.0
      %1031 = vmatpush1.xpose.msra.mxu0 0.0
      %1032 = vmatprep.subr.mxu0 0.0
      %1033 = vmatpush1.xpose.msra.mxu0 0.0
      %1034 = vmatprep.subr.mxu0 0.0
      %1035 = vmatpush1.xpose.msra.mxu0 0.0
      %1036 = vmatprep.subr.mxu0 0.0
      %1037 = vmatpush1.xpose.msra.mxu0 0.0
      %1038 = vmatprep.subr.mxu0 0.0
      %1039 = vmatpush1.xpose.msra.mxu0 0.0
      %1040 = vmatprep.subr.mxu0 0.0
      %1041 = vmatpush1.xpose.msra.mxu0 0.0
      %1042 = vmatprep.subr.mxu0 0.0
      %1043 = vmatpush1.xpose.msra.mxu0 0.0
      %1044 = vmatprep.subr.mxu0 0.0
      %1045 = vmatpush1.xpose.msra.mxu0 0.0
      %1046 = vmatprep.subr.mxu0 0.0
      %1047 = vmatpush1.xpose.msra.mxu0 0.0
      %1048 = vmatprep.subr.mxu0 0.0
      %1049 = vmatpush1.xpose.msra.mxu0 0.0
      %1050 = vmatprep.subr.mxu0 0.0
      %1051 = vmatpush1.xpose.msra.mxu0 0.0
      %1052 = vmatprep.subr.mxu0 0.0
      %1053 = vmatpush1.xpose.msra.mxu0 0.0
      %1054 = vmatprep.mubr.f32.mxu0 0.0
      %1055 = vmatmul.mubr.f32.gmra.mrb[0].mxu0 %v982
      %v1056 = vpop.f32.mrb[0].mxu0
      %v1057 = vadd.f32 0.0, %v1056
      %v1058 = vpop.f32.mrb[0].mxu0
      %1059 = vmatprep.mubr.f32.mxu0 0.0
      %1060 = vmatmul.mubr.f32.gmra.mrb[0].mxu0 %v984
      %v1061 = vpop.f32.mrb[0].mxu0
      %v1062 = vadd.f32 0.0, %v1061
      %v1063 = vpop.f32.mrb[0].mxu0
      %1064 = vdwg.mxu0
      %1067 = vrot.lane.b32.xlu0 %v512, 96
      %v1068 = vpop.permute.xlu0 %1067
      %1069 = vrot.lane.b32.xlu0 %v517, 96
      %v1070 = vpop.permute.xlu0 %1069
      %v1071 = vsel %vm536, %v512, 0
      %v1073 = vsel %vm536, %v517, 0
      %v1075 = vsel %vm536, %v1068, 0
      %v1077 = vsel %vm536, %v1070, 0
      %1079 = vmatprep.subr.mxu0 0.0
      %1080 = vmatpush1.xpose.msra.mxu0 %v1075
      %1081 = vmatprep.subr.mxu0 0.0
      %1082 = vmatpush1.xpose.msra.mxu0 %v1077
      %1083 = vmatprep.subr.mxu0 0.0
      %1084 = vmatpush1.xpose.msra.mxu0 0.0
      %1085 = vmatprep.subr.mxu0 0.0
      %1086 = vmatpush1.xpose.msra.mxu0 0.0
      %1087 = vmatprep.subr.mxu0 0.0
      %1088 = vmatpush1.xpose.msra.mxu0 0.0
      %1089 = vmatprep.subr.mxu0 0.0
      %1090 = vmatpush1.xpose.msra.mxu0 0.0
      %1091 = vmatprep.subr.mxu0 0.0
      %1092 = vmatpush1.xpose.msra.mxu0 0.0
      %1093 = vmatprep.subr.mxu0 0.0
      %1094 = vmatpush1.xpose.msra.mxu0 0.0
      %1095 = vmatprep.subr.mxu0 0.0
      %1096 = vmatpush1.xpose.msra.mxu0 0.0
      %1097 = vmatprep.subr.mxu0 0.0
      %1098 = vmatpush1.xpose.msra.mxu0 0.0
      %1099 = vmatprep.subr.mxu0 0.0
      %1100 = vmatpush1.xpose.msra.mxu0 0.0
      %1101 = vmatprep.subr.mxu0 0.0
      %1102 = vmatpush1.xpose.msra.mxu0 0.0
      %1103 = vmatprep.subr.mxu0 0.0
      %1104 = vmatpush1.xpose.msra.mxu0 0.0
      %1105 = vmatprep.subr.mxu0 0.0
      %1106 = vmatpush1.xpose.msra.mxu0 0.0
      %1107 = vmatprep.subr.mxu0 0.0
      %1108 = vmatpush1.xpose.msra.mxu0 0.0
      %1109 = vmatprep.subr.mxu0 0.0
      %1110 = vmatpush1.xpose.msra.mxu0 0.0
      %1111 = vmatprep.subr.mxu0 0.0
      %1112 = vmatpush1.xpose.msra.mxu0 0.0
      %1113 = vmatprep.subr.mxu0 0.0
      %1114 = vmatpush1.xpose.msra.mxu0 0.0
      %1115 = vmatprep.subr.mxu0 0.0
      %1116 = vmatpush1.xpose.msra.mxu0 0.0
      %1117 = vmatprep.subr.mxu0 0.0
      %1118 = vmatpush1.xpose.msra.mxu0 0.0
      %1119 = vmatprep.subr.mxu0 0.0
      %1120 = vmatpush1.xpose.msra.mxu0 0.0
      %1121 = vmatprep.subr.mxu0 0.0
      %1122 = vmatpush1.xpose.msra.mxu0 0.0
      %1123 = vmatprep.subr.mxu0 0.0
      %1124 = vmatpush1.xpose.msra.mxu0 0.0
      %1125 = vmatprep.subr.mxu0 0.0
      %1126 = vmatpush1.xpose.msra.mxu0 0.0
      %1127 = vmatprep.subr.mxu0 0.0
      %1128 = vmatpush1.xpose.msra.mxu0 0.0
      %1129 = vmatprep.subr.mxu0 0.0
      %1130 = vmatpush1.xpose.msra.mxu0 0.0
      %1131 = vmatprep.subr.mxu0 0.0
      %1132 = vmatpush1.xpose.msra.mxu0 0.0
      %1133 = vmatprep.subr.mxu0 0.0
      %1134 = vmatpush1.xpose.msra.mxu0 0.0
      %1135 = vmatprep.subr.mxu0 0.0
      %1136 = vmatpush1.xpose.msra.mxu0 0.0
      %1137 = vmatprep.subr.mxu0 0.0
      %1138 = vmatpush1.xpose.msra.mxu0 0.0
      %1139 = vmatprep.subr.mxu0 0.0
      %1140 = vmatpush1.xpose.msra.mxu0 0.0
      %1141 = vmatprep.subr.mxu0 0.0
      %1142 = vmatpush1.xpose.msra.mxu0 0.0
      %1143 = vmatprep.mubr.f32.mxu0 0.0
      %1144 = vmatmul.mubr.f32.gmra.mrb[0].mxu0 %v1071
      %v1145 = vpop.f32.mrb[0].mxu0
      %v1146 = vadd.f32 0.0, %v1145
      %v1147 = vpop.f32.mrb[0].mxu0
      %1148 = vmatprep.mubr.f32.mxu0 0.0
      %1149 = vmatmul.mubr.f32.gmra.mrb[0].mxu0 %v1073
      %v1150 = vpop.f32.mrb[0].mxu0
      %v1151 = vadd.f32 0.0, %v1150
      %v1152 = vpop.f32.mrb[0].mxu0
      %1153 = vdwg.mxu0
      %1156 = vrot.lane.b32.xlu0 %v522, 96
      %v1157 = vpop.permute.xlu0 %1156
      %1158 = vrot.lane.b32.xlu0 %v527, 96
      %v1159 = vpop.permute.xlu0 %1158
      %v1160 = vsel %vm536, %v522, 0
      %v1162 = vsel %vm536, %v527, 0
      %v1164 = vsel %vm536, %v1157, 0
      %v1166 = vsel %vm536, %v1159, 0
      %1168 = vmatprep.subr.mxu0 0.0
      %1169 = vmatpush1.xpose.msra.mxu0 %v1164
      %1170 = vmatprep.subr.mxu0 0.0
      %1171 = vmatpush1.xpose.msra.mxu0 %v1166
      %1172 = vmatprep.subr.mxu0 0.0
      %1173 = vmatpush1.xpose.msra.mxu0 0.0
      %1174 = vmatprep.subr.mxu0 0.0
      %1175 = vmatpush1.xpose.msra.mxu0 0.0
      %1176 = vmatprep.subr.mxu0 0.0
      %1177 = vmatpush1.xpose.msra.mxu0 0.0
      %1178 = vmatprep.subr.mxu0 0.0
      %1179 = vmatpush1.xpose.msra.mxu0 0.0
      %1180 = vmatprep.subr.mxu0 0.0
      %1181 = vmatpush1.xpose.msra.mxu0 0.0
      %1182 = vmatprep.subr.mxu0 0.0
      %1183 = vmatpush1.xpose.msra.mxu0 0.0
      %1184 = vmatprep.subr.mxu0 0.0
      %1185 = vmatpush1.xpose.msra.mxu0 0.0
      %1186 = vmatprep.subr.mxu0 0.0
      %1187 = vmatpush1.xpose.msra.mxu0 0.0
      %1188 = vmatprep.subr.mxu0 0.0
      %1189 = vmatpush1.xpose.msra.mxu0 0.0
      %1190 = vmatprep.subr.mxu0 0.0
      %1191 = vmatpush1.xpose.msra.mxu0 0.0
      %1192 = vmatprep.subr.mxu0 0.0
      %1193 = vmatpush1.xpose.msra.mxu0 0.0
      %1194 = vmatprep.subr.mxu0 0.0
      %1195 = vmatpush1.xpose.msra.mxu0 0.0
      %1196 = vmatprep.subr.mxu0 0.0
      %1197 = vmatpush1.xpose.msra.mxu0 0.0
      %1198 = vmatprep.subr.mxu0 0.0
      %1199 = vmatpush1.xpose.msra.mxu0 0.0
      %1200 = vmatprep.subr.mxu0 0.0
      %1201 = vmatpush1.xpose.msra.mxu0 0.0
      %1202 = vmatprep.subr.mxu0 0.0
      %1203 = vmatpush1.xpose.msra.mxu0 0.0
      %1204 = vmatprep.subr.mxu0 0.0
      %1205 = vmatpush1.xpose.msra.mxu0 0.0
      %1206 = vmatprep.subr.mxu0 0.0
      %1207 = vmatpush1.xpose.msra.mxu0 0.0
      %1208 = vmatprep.subr.mxu0 0.0
      %1209 = vmatpush1.xpose.msra.mxu0 0.0
      %1210 = vmatprep.subr.mxu0 0.0
      %1211 = vmatpush1.xpose.msra.mxu0 0.0
      %1212 = vmatprep.subr.mxu0 0.0
      %1213 = vmatpush1.xpose.msra.mxu0 0.0
      %1214 = vmatprep.subr.mxu0 0.0
      %1215 = vmatpush1.xpose.msra.mxu0 0.0
      %1216 = vmatprep.subr.mxu0 0.0
      %1217 = vmatpush1.xpose.msra.mxu0 0.0
      %1218 = vmatprep.subr.mxu0 0.0
      %1219 = vmatpush1.xpose.msra.mxu0 0.0
      %1220 = vmatprep.subr.mxu0 0.0
      %1221 = vmatpush1.xpose.msra.mxu0 0.0
      %1222 = vmatprep.subr.mxu0 0.0
      %1223 = vmatpush1.xpose.msra.mxu0 0.0
      %1224 = vmatprep.subr.mxu0 0.0
      %1225 = vmatpush1.xpose.msra.mxu0 0.0
      %1226 = vmatprep.subr.mxu0 0.0
      %1227 = vmatpush1.xpose.msra.mxu0 0.0
      %1228 = vmatprep.subr.mxu0 0.0
      %1229 = vmatpush1.xpose.msra.mxu0 0.0
      %1230 = vmatprep.subr.mxu0 0.0
      %1231 = vmatpush1.xpose.msra.mxu0 0.0
      %1232 = vmatprep.mubr.f32.mxu0 0.0
      %1233 = vmatmul.mubr.f32.gmra.mrb[0].mxu0 %v1160
      %v1234 = vpop.f32.mrb[0].mxu0
      %v1235 = vadd.f32 0.0, %v1234
      %v1236 = vpop.f32.mrb[0].mxu0
      %1237 = vmatprep.mubr.f32.mxu0 0.0
      %1238 = vmatmul.mubr.f32.gmra.mrb[0].mxu0 %v1162
      %v1239 = vpop.f32.mrb[0].mxu0
      %v1240 = vadd.f32 0.0, %v1239
      %v1241 = vpop.f32.mrb[0].mxu0
      %1242 = vdwg.mxu0
      %vm1243 = vcmask 130048
      %v1244 = vsel %vm1243, %v612, -inf
      %1245 = vmax.xlane.f32.xlu0 %v1244
      %v1246 = vpop.xlane.xlu0 %1245
      %v1247 = vsel %vm1243, %v617, -inf
      %1248 = vmax.xlane.f32.xlu0 %v1247
      %v1249 = vpop.xlane.xlu0 %1248
      %v1250 = vsel %vm1243, %v701, -inf
      %1251 = vmax.xlane.f32.xlu0 %v1250
      %v1252 = vpop.xlane.xlu0 %1251
      %v1253 = vsel %vm1243, %v706, -inf
      %1254 = vmax.xlane.f32.xlu0 %v1253
      %v1255 = vpop.xlane.xlu0 %1254
      %v1256 = vsel %vm1243, %v790, -inf
      %1257 = vmax.xlane.f32.xlu0 %v1256
      %v1258 = vpop.xlane.xlu0 %1257
      %v1259 = vsel %vm1243, %v795, -inf
      %1260 = vmax.xlane.f32.xlu0 %v1259
      %v1261 = vpop.xlane.xlu0 %1260
      %v1262 = vsel %vm1243, %v879, -inf
      %1263 = vmax.xlane.f32.xlu0 %v1262
      %v1264 = vpop.xlane.xlu0 %1263
      %v1265 = vsel %vm1243, %v884, -inf
      %1266 = vmax.xlane.f32.xlu0 %v1265
      %v1267 = vpop.xlane.xlu0 %1266
      %v1268 = vsel %vm1243, %v968, -inf
      %1269 = vmax.xlane.f32.xlu0 %v1268
      %v1270 = vpop.xlane.xlu0 %1269
      %v1271 = vsel %vm1243, %v973, -inf
      %1272 = vmax.xlane.f32.xlu0 %v1271
      %v1273 = vpop.xlane.xlu0 %1272
      %v1274 = vsel %vm1243, %v1057, -inf
      %1275 = vmax.xlane.f32.xlu0 %v1274
      %v1276 = vpop.xlane.xlu0 %1275
      %v1277 = vsel %vm1243, %v1062, -inf
      %1278 = vmax.xlane.f32.xlu0 %v1277
      %v1279 = vpop.xlane.xlu0 %1278
      %v1280 = vsel %vm1243, %v1146, -inf
      %1281 = vmax.xlane.f32.xlu0 %v1280
      %v1282 = vpop.xlane.xlu0 %1281
      %v1283 = vsel %vm1243, %v1151, -inf
      %1284 = vmax.xlane.f32.xlu0 %v1283
      %v1285 = vpop.xlane.xlu0 %1284
      %v1286 = vsel %vm1243, %v1235, -inf
      %1287 = vmax.xlane.f32.xlu0 %v1286
      %v1288 = vpop.xlane.xlu0 %1287
      %v1289 = vsel %vm1243, %v1240, -inf
      %1290 = vmax.xlane.f32.xlu0 %v1289
      %v1291 = vpop.xlane.xlu0 %1290
      %v1292 = vsub.f32 %v612, %v1246
      %v1293 = vsub.f32 %v617, %v1249
      %v1294 = vsub.f32 %v701, %v1252
      %v1295 = vsub.f32 %v706, %v1255
      %v1296 = vsub.f32 %v790, %v1258
      %v1297 = vsub.f32 %v795, %v1261
      %v1298 = vsub.f32 %v879, %v1264
      %v1299 = vsub.f32 %v884, %v1267
      %v1300 = vsub.f32 %v968, %v1270
      %v1301 = vsub.f32 %v973, %v1273
      %v1302 = vsub.f32 %v1057, %v1276
      %v1303 = vsub.f32 %v1062, %v1279
      %v1304 = vsub.f32 %v1146, %v1282
      %v1305 = vsub.f32 %v1151, %v1285
      %v1306 = vsub.f32 %v1235, %v1288
      %v1307 = vsub.f32 %v1240, %v1291
      %v1308 = vmul.f32 %v1292, 1.442695
      %v1309 = vpow.pop %v1308
      %v1310 = vmul.f32 %v1293, 1.442695
      %v1311 = vpow.pop %v1310
      %v1312 = vmul.f32 %v1294, 1.442695
      %v1313 = vpow.pop %v1312
      %v1314 = vmul.f32 %v1295, 1.442695
      %v1315 = vpow.pop %v1314
      %v1316 = vmul.f32 %v1296, 1.442695
      %v1317 = vpow.pop %v1316
      %v1318 = vmul.f32 %v1297, 1.442695
      %v1319 = vpow.pop %v1318
      %v1320 = vmul.f32 %v1298, 1.442695
      %v1321 = vpow.pop %v1320
      %v1322 = vmul.f32 %v1299, 1.442695
      %v1323 = vpow.pop %v1322
      %v1324 = vmul.f32 %v1300, 1.442695
      %v1325 = vpow.pop %v1324
      %v1326 = vmul.f32 %v1301, 1.442695
      %v1327 = vpow.pop %v1326
      %v1328 = vmul.f32 %v1302, 1.442695
      %v1329 = vpow.pop %v1328
      %v1330 = vmul.f32 %v1303, 1.442695
      %v1331 = vpow.pop %v1330
      %v1332 = vmul.f32 %v1304, 1.442695
      %v1333 = vpow.pop %v1332
      %v1334 = vmul.f32 %v1305, 1.442695
      %v1335 = vpow.pop %v1334
      %v1336 = vmul.f32 %v1306, 1.442695
      %v1337 = vpow.pop %v1336
      %v1338 = vmul.f32 %v1307, 1.442695
      %v1339 = vpow.pop %v1338
      %v1340 = vsel %vm1243, %v1309, 0.0
      %1341 = vadd.xlane.f32.xlu0 %v1340
      %v1342 = vpop.xlane.xlu0 %1341
      %v1343 = vsel %vm1243, %v1311, 0.0
      %1344 = vadd.xlane.f32.xlu0 %v1343
      %v1345 = vpop.xlane.xlu0 %1344
      %v1346 = vsel %vm1243, %v1313, 0.0
      %1347 = vadd.xlane.f32.xlu0 %v1346
      %v1348 = vpop.xlane.xlu0 %1347
      %v1349 = vsel %vm1243, %v1315, 0.0
      %1350 = vadd.xlane.f32.xlu0 %v1349
      %v1351 = vpop.xlane.xlu0 %1350
      %v1352 = vsel %vm1243, %v1317, 0.0
      %1353 = vadd.xlane.f32.xlu0 %v1352
      %v1354 = vpop.xlane.xlu0 %1353
      %v1355 = vsel %vm1243, %v1319, 0.0
      %1356 = vadd.xlane.f32.xlu0 %v1355
      %v1357 = vpop.xlane.xlu0 %1356
      %v1358 = vsel %vm1243, %v1321, 0.0
      %1359 = vadd.xlane.f32.xlu0 %v1358
      %v1360 = vpop.xlane.xlu0 %1359
      %v1361 = vsel %vm1243, %v1323, 0.0
      %1362 = vadd.xlane.f32.xlu0 %v1361
      %v1363 = vpop.xlane.xlu0 %1362
      %v1364 = vsel %vm1243, %v1325, 0.0
      %1365 = vadd.xlane.f32.xlu0 %v1364
      %v1366 = vpop.xlane.xlu0 %1365
      %v1367 = vsel %vm1243, %v1327, 0.0
      %1368 = vadd.xlane.f32.xlu0 %v1367
      %v1369 = vpop.xlane.xlu0 %1368
      %v1370 = vsel %vm1243, %v1329, 0.0
      %1371 = vadd.xlane.f32.xlu0 %v1370
      %v1372 = vpop.xlane.xlu0 %1371
      %v1373 = vsel %vm1243, %v1331, 0.0
      %1374 = vadd.xlane.f32.xlu0 %v1373
      %v1375 = vpop.xlane.xlu0 %1374
      %v1376 = vsel %vm1243, %v1333, 0.0
      %1377 = vadd.xlane.f32.xlu0 %v1376
      %v1378 = vpop.xlane.xlu0 %1377
      %v1379 = vsel %vm1243, %v1335, 0.0
      %1380 = vadd.xlane.f32.xlu0 %v1379
      %v1381 = vpop.xlane.xlu0 %1380
      %v1382 = vsel %vm1243, %v1337, 0.0
      %1383 = vadd.xlane.f32.xlu0 %v1382
      %v1384 = vpop.xlane.xlu0 %1383
      %v1385 = vsel %vm1243, %v1339, 0.0
      %1386 = vadd.xlane.f32.xlu0 %v1385
      %v1387 = vpop.xlane.xlu0 %1386
      %v1388 = vrcp.pop %v1342
      %v1389 = vrcp.pop %v1345
      %v1390 = vrcp.pop %v1348
      %v1391 = vrcp.pop %v1351
      %v1392 = vrcp.pop %v1354
      %v1393 = vrcp.pop %v1357
      %v1394 = vrcp.pop %v1360
      %v1395 = vrcp.pop %v1363
      %v1396 = vrcp.pop %v1366
      %v1397 = vrcp.pop %v1369
      %v1398 = vrcp.pop %v1372
      %v1399 = vrcp.pop %v1375
      %v1400 = vrcp.pop %v1378
      %v1401 = vrcp.pop %v1381
      %v1402 = vrcp.pop %v1384
      %v1403 = vrcp.pop %v1387
      %v1404 = vmul.f32 %v1309, %v1388
      %v1405 = vmul.f32 %v1311, %v1389
      %v1406 = vmul.f32 %v1313, %v1390
      %v1407 = vmul.f32 %v1315, %v1391
      %v1408 = vmul.f32 %v1317, %v1392
      %v1409 = vmul.f32 %v1319, %v1393
      %v1410 = vmul.f32 %v1321, %v1394
      %v1411 = vmul.f32 %v1323, %v1395
      %v1412 = vmul.f32 %v1325, %v1396
      %v1413 = vmul.f32 %v1327, %v1397
      %v1414 = vmul.f32 %v1329, %v1398
      %v1415 = vmul.f32 %v1331, %v1399
      %v1416 = vmul.f32 %v1333, %v1400
      %v1417 = vmul.f32 %v1335, %v1401
      %v1418 = vmul.f32 %v1337, %v1402
      %v1419 = vmul.f32 %v1339, %v1403
      %1420 = vrot.lane.b32.xlu0 %v452, 64
      %v1421 = vpop.permute.xlu0 %1420
      %1422 = vrot.lane.b32.xlu0 %v457, 64
      %v1423 = vpop.permute.xlu0 %1422
      %v1427 = vsel %vm1243, %v1404, 0
      %v1430 = vsel %vm1243, %v1405, 0
      %1432 = vmatprep.subr.mxu0 0.0
      %1433 = vmatpush1.msra.mxu0 %v1421
      %1434 = vmatprep.subr.mxu0 0.0
      %1435 = vmatpush1.msra.mxu0 %v1423
      %1436 = vmatprep.subr.mxu0 0.0
      %1437 = vmatpush1.msra.mxu0 0.0
      %1438 = vmatprep.subr.mxu0 0.0
      %1439 = vmatpush1.msra.mxu0 0.0
      %1440 = vmatprep.subr.mxu0 0.0
      %1441 = vmatpush1.msra.mxu0 0.0
      %1442 = vmatprep.subr.mxu0 0.0
      %1443 = vmatpush1.msra.mxu0 0.0
      %1444 = vmatprep.subr.mxu0 0.0
      %1445 = vmatpush1.msra.mxu0 0.0
      %1446 = vmatprep.subr.mxu0 0.0
      %1447 = vmatpush1.msra.mxu0 0.0
      %1448 = vmatprep.subr.mxu0 0.0
      %1449 = vmatpush1.msra.mxu0 0.0
      %1450 = vmatprep.subr.mxu0 0.0
      %1451 = vmatpush1.msra.mxu0 0.0
      %1452 = vmatprep.subr.mxu0 0.0
      %1453 = vmatpush1.msra.mxu0 0.0
      %1454 = vmatprep.subr.mxu0 0.0
      %1455 = vmatpush1.msra.mxu0 0.0
      %1456 = vmatprep.subr.mxu0 0.0
      %1457 = vmatpush1.msra.mxu0 0.0
      %1458 = vmatprep.subr.mxu0 0.0
      %1459 = vmatpush1.msra.mxu0 0.0
      %1460 = vmatprep.subr.mxu0 0.0
      %1461 = vmatpush1.msra.mxu0 0.0
      %1462 = vmatprep.subr.mxu0 0.0
      %1463 = vmatpush1.msra.mxu0 0.0
      %1464 = vmatprep.subr.mxu0 0.0
      %1465 = vmatpush1.msra.mxu0 0.0
      %1466 = vmatprep.subr.mxu0 0.0
      %1467 = vmatpush1.msra.mxu0 0.0
      %1468 = vmatprep.subr.mxu0 0.0
      %1469 = vmatpush1.msra.mxu0 0.0
      %1470 = vmatprep.subr.mxu0 0.0
      %1471 = vmatpush1.msra.mxu0 0.0
      %1472 = vmatprep.subr.mxu0 0.0
      %1473 = vmatpush1.msra.mxu0 0.0
      %1474 = vmatprep.subr.mxu0 0.0
      %1475 = vmatpush1.msra.mxu0 0.0
      %1476 = vmatprep.subr.mxu0 0.0
      %1477 = vmatpush1.msra.mxu0 0.0
      %1478 = vmatprep.subr.mxu0 0.0
      %1479 = vmatpush1.msra.mxu0 0.0
      %1480 = vmatprep.subr.mxu0 0.0
      %1481 = vmatpush1.msra.mxu0 0.0
      %1482 = vmatprep.subr.mxu0 0.0
      %1483 = vmatpush1.msra.mxu0 0.0
      %1484 = vmatprep.subr.mxu0 0.0
      %1485 = vmatpush1.msra.mxu0 0.0
      %1486 = vmatprep.subr.mxu0 0.0
      %1487 = vmatpush1.msra.mxu0 0.0
      %1488 = vmatprep.subr.mxu0 0.0
      %1489 = vmatpush1.msra.mxu0 0.0
      %1490 = vmatprep.subr.mxu0 0.0
      %1491 = vmatpush1.msra.mxu0 0.0
      %1492 = vmatprep.subr.mxu0 0.0
      %1493 = vmatpush1.msra.mxu0 0.0
      %1494 = vmatprep.subr.mxu0 0.0
      %1495 = vmatpush1.msra.mxu0 0.0
      %1496 = vmatprep.mubr.f32.mxu0 0.0
      %1497 = vmatmul.mubr.f32.gmra.mrb[0].mxu0 %v1427
      %v1498 = vpop.f32.mrb[0].mxu0
      %v1499 = vadd.f32 0.0, %v1498
      %v1500 = vpop.f32.mrb[0].mxu0
      %1501 = vmatprep.mubr.f32.mxu0 0.0
      %1502 = vmatmul.mubr.f32.gmra.mrb[0].mxu0 %v1430
      %v1503 = vpop.f32.mrb[0].mxu0
      %v1504 = vadd.f32 0.0, %v1503
      %v1505 = vpop.f32.mrb[0].mxu0
      %1506 = vdwg.mxu0
      %1507 = vrot.lane.b32.xlu0 %v462, 64
      %v1508 = vpop.permute.xlu0 %1507
      %1509 = vrot.lane.b32.xlu0 %v467, 64
      %v1510 = vpop.permute.xlu0 %1509
      %v1514 = vsel %vm1243, %v1406, 0
      %v1517 = vsel %vm1243, %v1407, 0
      %1519 = vmatprep.subr.mxu0 0.0
      %1520 = vmatpush1.msra.mxu0 %v1508
      %1521 = vmatprep.subr.mxu0 0.0
      %1522 = vmatpush1.msra.mxu0 %v1510
      %1523 = vmatprep.subr.mxu0 0.0
      %1524 = vmatpush1.msra.mxu0 0.0
      %1525 = vmatprep.subr.mxu0 0.0
      %1526 = vmatpush1.msra.mxu0 0.0
      %1527 = vmatprep.subr.mxu0 0.0
      %1528 = vmatpush1.msra.mxu0 0.0
      %1529 = vmatprep.subr.mxu0 0.0
      %1530 = vmatpush1.msra.mxu0 0.0
      %1531 = vmatprep.subr.mxu0 0.0
      %1532 = vmatpush1.msra.mxu0 0.0
      %1533 = vmatprep.subr.mxu0 0.0
      %1534 = vmatpush1.msra.mxu0 0.0
      %1535 = vmatprep.subr.mxu0 0.0
      %1536 = vmatpush1.msra.mxu0 0.0
      %1537 = vmatprep.subr.mxu0 0.0
      %1538 = vmatpush1.msra.mxu0 0.0
      %1539 = vmatprep.subr.mxu0 0.0
      %1540 = vmatpush1.msra.mxu0 0.0
      %1541 = vmatprep.subr.mxu0 0.0
      %1542 = vmatpush1.msra.mxu0 0.0
      %1543 = vmatprep.subr.mxu0 0.0
      %1544 = vmatpush1.msra.mxu0 0.0
      %1545 = vmatprep.subr.mxu0 0.0
      %1546 = vmatpush1.msra.mxu0 0.0
      %1547 = vmatprep.subr.mxu0 0.0
      %1548 = vmatpush1.msra.mxu0 0.0
      %1549 = vmatprep.subr.mxu0 0.0
      %1550 = vmatpush1.msra.mxu0 0.0
      %1551 = vmatprep.subr.mxu0 0.0
      %1552 = vmatpush1.msra.mxu0 0.0
      %1553 = vmatprep.subr.mxu0 0.0
      %1554 = vmatpush1.msra.mxu0 0.0
      %1555 = vmatprep.subr.mxu0 0.0
      %1556 = vmatpush1.msra.mxu0 0.0
      %1557 = vmatprep.subr.mxu0 0.0
      %1558 = vmatpush1.msra.mxu0 0.0
      %1559 = vmatprep.subr.mxu0 0.0
      %1560 = vmatpush1.msra.mxu0 0.0
      %1561 = vmatprep.subr.mxu0 0.0
      %1562 = vmatpush1.msra.mxu0 0.0
      %1563 = vmatprep.subr.mxu0 0.0
      %1564 = vmatpush1.msra.mxu0 0.0
      %1565 = vmatprep.subr.mxu0 0.0
      %1566 = vmatpush1.msra.mxu0 0.0
      %1567 = vmatprep.subr.mxu0 0.0
      %1568 = vmatpush1.msra.mxu0 0.0
      %1569 = vmatprep.subr.mxu0 0.0
      %1570 = vmatpush1.msra.mxu0 0.0
      %1571 = vmatprep.subr.mxu0 0.0
      %1572 = vmatpush1.msra.mxu0 0.0
      %1573 = vmatprep.subr.mxu0 0.0
      %1574 = vmatpush1.msra.mxu0 0.0
      %1575 = vmatprep.subr.mxu0 0.0
      %1576 = vmatpush1.msra.mxu0 0.0
      %1577 = vmatprep.subr.mxu0 0.0
      %1578 = vmatpush1.msra.mxu0 0.0
      %1579 = vmatprep.subr.mxu0 0.0
      %1580 = vmatpush1.msra.mxu0 0.0
      %1581 = vmatprep.subr.mxu0 0.0
      %1582 = vmatpush1.msra.mxu0 0.0
      %1583 = vmatprep.mubr.f32.mxu0 0.0
      %1584 = vmatmul.mubr.f32.gmra.mrb[0].mxu0 %v1514
      %v1585 = vpop.f32.mrb[0].mxu0
      %v1586 = vadd.f32 0.0, %v1585
      %v1587 = vpop.f32.mrb[0].mxu0
      %1588 = vmatprep.mubr.f32.mxu0 0.0
      %1589 = vmatmul.mubr.f32.gmra.mrb[0].mxu0 %v1517
      %v1590 = vpop.f32.mrb[0].mxu0
      %v1591 = vadd.f32 0.0, %v1590
      %v1592 = vpop.f32.mrb[0].mxu0
      %1593 = vdwg.mxu0
      %1594 = vrot.lane.b32.xlu0 %v472, 64
      %v1595 = vpop.permute.xlu0 %1594
      %1596 = vrot.lane.b32.xlu0 %v477, 64
      %v1597 = vpop.permute.xlu0 %1596
      %v1601 = vsel %vm1243, %v1408, 0
      %v1604 = vsel %vm1243, %v1409, 0
      %1606 = vmatprep.subr.mxu0 0.0
      %1607 = vmatpush1.msra.mxu0 %v1595
      %1608 = vmatprep.subr.mxu0 0.0
      %1609 = vmatpush1.msra.mxu0 %v1597
      %1610 = vmatprep.subr.mxu0 0.0
      %1611 = vmatpush1.msra.mxu0 0.0
      %1612 = vmatprep.subr.mxu0 0.0
      %1613 = vmatpush1.msra.mxu0 0.0
      %1614 = vmatprep.subr.mxu0 0.0
      %1615 = vmatpush1.msra.mxu0 0.0
      %1616 = vmatprep.subr.mxu0 0.0
      %1617 = vmatpush1.msra.mxu0 0.0
      %1618 = vmatprep.subr.mxu0 0.0
      %1619 = vmatpush1.msra.mxu0 0.0
      %1620 = vmatprep.subr.mxu0 0.0
      %1621 = vmatpush1.msra.mxu0 0.0
      %1622 = vmatprep.subr.mxu0 0.0
      %1623 = vmatpush1.msra.mxu0 0.0
      %1624 = vmatprep.subr.mxu0 0.0
      %1625 = vmatpush1.msra.mxu0 0.0
      %1626 = vmatprep.subr.mxu0 0.0
      %1627 = vmatpush1.msra.mxu0 0.0
      %1628 = vmatprep.subr.mxu0 0.0
      %1629 = vmatpush1.msra.mxu0 0.0
      %1630 = vmatprep.subr.mxu0 0.0
      %1631 = vmatpush1.msra.mxu0 0.0
      %1632 = vmatprep.subr.mxu0 0.0
      %1633 = vmatpush1.msra.mxu0 0.0
      %1634 = vmatprep.subr.mxu0 0.0
      %1635 = vmatpush1.msra.mxu0 0.0
      %1636 = vmatprep.subr.mxu0 0.0
      %1637 = vmatpush1.msra.mxu0 0.0
      %1638 = vmatprep.subr.mxu0 0.0
      %1639 = vmatpush1.msra.mxu0 0.0
      %1640 = vmatprep.subr.mxu0 0.0
      %1641 = vmatpush1.msra.mxu0 0.0
      %1642 = vmatprep.subr.mxu0 0.0
      %1643 = vmatpush1.msra.mxu0 0.0
      %1644 = vmatprep.subr.mxu0 0.0
      %1645 = vmatpush1.msra.mxu0 0.0
      %1646 = vmatprep.subr.mxu0 0.0
      %1647 = vmatpush1.msra.mxu0 0.0
      %1648 = vmatprep.subr.mxu0 0.0
      %1649 = vmatpush1.msra.mxu0 0.0
      %1650 = vmatprep.subr.mxu0 0.0
      %1651 = vmatpush1.msra.mxu0 0.0
      %1652 = vmatprep.subr.mxu0 0.0
      %1653 = vmatpush1.msra.mxu0 0.0
      %1654 = vmatprep.subr.mxu0 0.0
      %1655 = vmatpush1.msra.mxu0 0.0
      %1656 = vmatprep.subr.mxu0 0.0
      %1657 = vmatpush1.msra.mxu0 0.0
      %1658 = vmatprep.subr.mxu0 0.0
      %1659 = vmatpush1.msra.mxu0 0.0
      %1660 = vmatprep.subr.mxu0 0.0
      %1661 = vmatpush1.msra.mxu0 0.0
      %1662 = vmatprep.subr.mxu0 0.0
      %1663 = vmatpush1.msra.mxu0 0.0
      %1664 = vmatprep.subr.mxu0 0.0
      %1665 = vmatpush1.msra.mxu0 0.0
      %1666 = vmatprep.subr.mxu0 0.0
      %1667 = vmatpush1.msra.mxu0 0.0
      %1668 = vmatprep.subr.mxu0 0.0
      %1669 = vmatpush1.msra.mxu0 0.0
      %1670 = vmatprep.mubr.f32.mxu0 0.0
      %1671 = vmatmul.mubr.f32.gmra.mrb[0].mxu0 %v1601
      %v1672 = vpop.f32.mrb[0].mxu0
      %v1673 = vadd.f32 0.0, %v1672
      %v1674 = vpop.f32.mrb[0].mxu0
      %1675 = vmatprep.mubr.f32.mxu0 0.0
      %1676 = vmatmul.mubr.f32.gmra.mrb[0].mxu0 %v1604
      %v1677 = vpop.f32.mrb[0].mxu0
      %v1678 = vadd.f32 0.0, %v1677
      %v1679 = vpop.f32.mrb[0].mxu0
      %1680 = vdwg.mxu0
      %1681 = vrot.lane.b32.xlu0 %v482, 64
      %v1682 = vpop.permute.xlu0 %1681
      %1683 = vrot.lane.b32.xlu0 %v487, 64
      %v1684 = vpop.permute.xlu0 %1683
      %v1688 = vsel %vm1243, %v1410, 0
      %v1691 = vsel %vm1243, %v1411, 0
      %1693 = vmatprep.subr.mxu0 0.0
      %1694 = vmatpush1.msra.mxu0 %v1682
      %1695 = vmatprep.subr.mxu0 0.0
      %1696 = vmatpush1.msra.mxu0 %v1684
      %1697 = vmatprep.subr.mxu0 0.0
      %1698 = vmatpush1.msra.mxu0 0.0
      %1699 = vmatprep.subr.mxu0 0.0
      %1700 = vmatpush1.msra.mxu0 0.0
      %1701 = vmatprep.subr.mxu0 0.0
      %1702 = vmatpush1.msra.mxu0 0.0
      %1703 = vmatprep.subr.mxu0 0.0
      %1704 = vmatpush1.msra.mxu0 0.0
      %1705 = vmatprep.subr.mxu0 0.0
      %1706 = vmatpush1.msra.mxu0 0.0
      %1707 = vmatprep.subr.mxu0 0.0
      %1708 = vmatpush1.msra.mxu0 0.0
      %1709 = vmatprep.subr.mxu0 0.0
      %1710 = vmatpush1.msra.mxu0 0.0
      %1711 = vmatprep.subr.mxu0 0.0
      %1712 = vmatpush1.msra.mxu0 0.0
      %1713 = vmatprep.subr.mxu0 0.0
      %1714 = vmatpush1.msra.mxu0 0.0
      %1715 = vmatprep.subr.mxu0 0.0
      %1716 = vmatpush1.msra.mxu0 0.0
      %1717 = vmatprep.subr.mxu0 0.0
      %1718 = vmatpush1.msra.mxu0 0.0
      %1719 = vmatprep.subr.mxu0 0.0
      %1720 = vmatpush1.msra.mxu0 0.0
      %1721 = vmatprep.subr.mxu0 0.0
      %1722 = vmatpush1.msra.mxu0 0.0
      %1723 = vmatprep.subr.mxu0 0.0
      %1724 = vmatpush1.msra.mxu0 0.0
      %1725 = vmatprep.subr.mxu0 0.0
      %1726 = vmatpush1.msra.mxu0 0.0
      %1727 = vmatprep.subr.mxu0 0.0
      %1728 = vmatpush1.msra.mxu0 0.0
      %1729 = vmatprep.subr.mxu0 0.0
      %1730 = vmatpush1.msra.mxu0 0.0
      %1731 = vmatprep.subr.mxu0 0.0
      %1732 = vmatpush1.msra.mxu0 0.0
      %1733 = vmatprep.subr.mxu0 0.0
      %1734 = vmatpush1.msra.mxu0 0.0
      %1735 = vmatprep.subr.mxu0 0.0
      %1736 = vmatpush1.msra.mxu0 0.0
      %1737 = vmatprep.subr.mxu0 0.0
      %1738 = vmatpush1.msra.mxu0 0.0
      %1739 = vmatprep.subr.mxu0 0.0
      %1740 = vmatpush1.msra.mxu0 0.0
      %1741 = vmatprep.subr.mxu0 0.0
      %1742 = vmatpush1.msra.mxu0 0.0
      %1743 = vmatprep.subr.mxu0 0.0
      %1744 = vmatpush1.msra.mxu0 0.0
      %1745 = vmatprep.subr.mxu0 0.0
      %1746 = vmatpush1.msra.mxu0 0.0
      %1747 = vmatprep.subr.mxu0 0.0
      %1748 = vmatpush1.msra.mxu0 0.0
      %1749 = vmatprep.subr.mxu0 0.0
      %1750 = vmatpush1.msra.mxu0 0.0
      %1751 = vmatprep.subr.mxu0 0.0
      %1752 = vmatpush1.msra.mxu0 0.0
      %1753 = vmatprep.subr.mxu0 0.0
      %1754 = vmatpush1.msra.mxu0 0.0
      %1755 = vmatprep.subr.mxu0 0.0
      %1756 = vmatpush1.msra.mxu0 0.0
      %1757 = vmatprep.mubr.f32.mxu0 0.0
      %1758 = vmatmul.mubr.f32.gmra.mrb[0].mxu0 %v1688
      %v1759 = vpop.f32.mrb[0].mxu0
      %v1760 = vadd.f32 0.0, %v1759
      %v1761 = vpop.f32.mrb[0].mxu0
      %1762 = vmatprep.mubr.f32.mxu0 0.0
      %1763 = vmatmul.mubr.f32.gmra.mrb[0].mxu0 %v1691
      %v1764 = vpop.f32.mrb[0].mxu0
      %v1765 = vadd.f32 0.0, %v1764
      %v1766 = vpop.f32.mrb[0].mxu0
      %1767 = vdwg.mxu0
      %1768 = vrot.lane.b32.xlu0 %v492, 64
      %v1769 = vpop.permute.xlu0 %1768
      %1770 = vrot.lane.b32.xlu0 %v497, 64
      %v1771 = vpop.permute.xlu0 %1770
      %v1775 = vsel %vm1243, %v1412, 0
      %v1778 = vsel %vm1243, %v1413, 0
      %1780 = vmatprep.subr.mxu0 0.0
      %1781 = vmatpush1.msra.mxu0 %v1769
      %1782 = vmatprep.subr.mxu0 0.0
      %1783 = vmatpush1.msra.mxu0 %v1771
      %1784 = vmatprep.subr.mxu0 0.0
      %1785 = vmatpush1.msra.mxu0 0.0
      %1786 = vmatprep.subr.mxu0 0.0
      %1787 = vmatpush1.msra.mxu0 0.0
      %1788 = vmatprep.subr.mxu0 0.0
      %1789 = vmatpush1.msra.mxu0 0.0
      %1790 = vmatprep.subr.mxu0 0.0
      %1791 = vmatpush1.msra.mxu0 0.0
      %1792 = vmatprep.subr.mxu0 0.0
      %1793 = vmatpush1.msra.mxu0 0.0
      %1794 = vmatprep.subr.mxu0 0.0
      %1795 = vmatpush1.msra.mxu0 0.0
      %1796 = vmatprep.subr.mxu0 0.0
      %1797 = vmatpush1.msra.mxu0 0.0
      %1798 = vmatprep.subr.mxu0 0.0
      %1799 = vmatpush1.msra.mxu0 0.0
      %1800 = vmatprep.subr.mxu0 0.0
      %1801 = vmatpush1.msra.mxu0 0.0
      %1802 = vmatprep.subr.mxu0 0.0
      %1803 = vmatpush1.msra.mxu0 0.0
      %1804 = vmatprep.subr.mxu0 0.0
      %1805 = vmatpush1.msra.mxu0 0.0
      %1806 = vmatprep.subr.mxu0 0.0
      %1807 = vmatpush1.msra.mxu0 0.0
      %1808 = vmatprep.subr.mxu0 0.0
      %1809 = vmatpush1.msra.mxu0 0.0
      %1810 = vmatprep.subr.mxu0 0.0
      %1811 = vmatpush1.msra.mxu0 0.0
      %1812 = vmatprep.subr.mxu0 0.0
      %1813 = vmatpush1.msra.mxu0 0.0
      %1814 = vmatprep.subr.mxu0 0.0
      %1815 = vmatpush1.msra.mxu0 0.0
      %1816 = vmatprep.subr.mxu0 0.0
      %1817 = vmatpush1.msra.mxu0 0.0
      %1818 = vmatprep.subr.mxu0 0.0
      %1819 = vmatpush1.msra.mxu0 0.0
      %1820 = vmatprep.subr.mxu0 0.0
      %1821 = vmatpush1.msra.mxu0 0.0
      %1822 = vmatprep.subr.mxu0 0.0
      %1823 = vmatpush1.msra.mxu0 0.0
      %1824 = vmatprep.subr.mxu0 0.0
      %1825 = vmatpush1.msra.mxu0 0.0
      %1826 = vmatprep.subr.mxu0 0.0
      %1827 = vmatpush1.msra.mxu0 0.0
      %1828 = vmatprep.subr.mxu0 0.0
      %1829 = vmatpush1.msra.mxu0 0.0
      %1830 = vmatprep.subr.mxu0 0.0
      %1831 = vmatpush1.msra.mxu0 0.0
      %1832 = vmatprep.subr.mxu0 0.0
      %1833 = vmatpush1.msra.mxu0 0.0
      %1834 = vmatprep.subr.mxu0 0.0
      %1835 = vmatpush1.msra.mxu0 0.0
      %1836 = vmatprep.subr.mxu0 0.0
      %1837 = vmatpush1.msra.mxu0 0.0
      %1838 = vmatprep.subr.mxu0 0.0
      %1839 = vmatpush1.msra.mxu0 0.0
      %1840 = vmatprep.subr.mxu0 0.0
      %1841 = vmatpush1.msra.mxu0 0.0
      %1842 = vmatprep.subr.mxu0 0.0
      %1843 = vmatpush1.msra.mxu0 0.0
      %1844 = vmatprep.mubr.f32.mxu0 0.0
      %1845 = vmatmul.mubr.f32.gmra.mrb[0].mxu0 %v1775
      %v1846 = vpop.f32.mrb[0].mxu0
      %v1847 = vadd.f32 0.0, %v1846
      %v1848 = vpop.f32.mrb[0].mxu0
      %1849 = vmatprep.mubr.f32.mxu0 0.0
      %1850 = vmatmul.mubr.f32.gmra.mrb[0].mxu0 %v1778
      %v1851 = vpop.f32.mrb[0].mxu0
      %v1852 = vadd.f32 0.0, %v1851
      %v1853 = vpop.f32.mrb[0].mxu0
      %1854 = vdwg.mxu0
      %1855 = vrot.lane.b32.xlu0 %v502, 64
      %v1856 = vpop.permute.xlu0 %1855
      %1857 = vrot.lane.b32.xlu0 %v507, 64
      %v1858 = vpop.permute.xlu0 %1857
      %v1862 = vsel %vm1243, %v1414, 0
      %v1865 = vsel %vm1243, %v1415, 0
      %1867 = vmatprep.subr.mxu0 0.0
      %1868 = vmatpush1.msra.mxu0 %v1856
      %1869 = vmatprep.subr.mxu0 0.0
      %1870 = vmatpush1.msra.mxu0 %v1858
      %1871 = vmatprep.subr.mxu0 0.0
      %1872 = vmatpush1.msra.mxu0 0.0
      %1873 = vmatprep.subr.mxu0 0.0
      %1874 = vmatpush1.msra.mxu0 0.0
      %1875 = vmatprep.subr.mxu0 0.0
      %1876 = vmatpush1.msra.mxu0 0.0
      %1877 = vmatprep.subr.mxu0 0.0
      %1878 = vmatpush1.msra.mxu0 0.0
      %1879 = vmatprep.subr.mxu0 0.0
      %1880 = vmatpush1.msra.mxu0 0.0
      %1881 = vmatprep.subr.mxu0 0.0
      %1882 = vmatpush1.msra.mxu0 0.0
      %1883 = vmatprep.subr.mxu0 0.0
      %1884 = vmatpush1.msra.mxu0 0.0
      %1885 = vmatprep.subr.mxu0 0.0
      %1886 = vmatpush1.msra.mxu0 0.0
      %1887 = vmatprep.subr.mxu0 0.0
      %1888 = vmatpush1.msra.mxu0 0.0
      %1889 = vmatprep.subr.mxu0 0.0
      %1890 = vmatpush1.msra.mxu0 0.0
      %1891 = vmatprep.subr.mxu0 0.0
      %1892 = vmatpush1.msra.mxu0 0.0
      %1893 = vmatprep.subr.mxu0 0.0
      %1894 = vmatpush1.msra.mxu0 0.0
      %1895 = vmatprep.subr.mxu0 0.0
      %1896 = vmatpush1.msra.mxu0 0.0
      %1897 = vmatprep.subr.mxu0 0.0
      %1898 = vmatpush1.msra.mxu0 0.0
      %1899 = vmatprep.subr.mxu0 0.0
      %1900 = vmatpush1.msra.mxu0 0.0
      %1901 = vmatprep.subr.mxu0 0.0
      %1902 = vmatpush1.msra.mxu0 0.0
      %1903 = vmatprep.subr.mxu0 0.0
      %1904 = vmatpush1.msra.mxu0 0.0
      %1905 = vmatprep.subr.mxu0 0.0
      %1906 = vmatpush1.msra.mxu0 0.0
      %1907 = vmatprep.subr.mxu0 0.0
      %1908 = vmatpush1.msra.mxu0 0.0
      %1909 = vmatprep.subr.mxu0 0.0
      %1910 = vmatpush1.msra.mxu0 0.0
      %1911 = vmatprep.subr.mxu0 0.0
      %1912 = vmatpush1.msra.mxu0 0.0
      %1913 = vmatprep.subr.mxu0 0.0
      %1914 = vmatpush1.msra.mxu0 0.0
      %1915 = vmatprep.subr.mxu0 0.0
      %1916 = vmatpush1.msra.mxu0 0.0
      %1917 = vmatprep.subr.mxu0 0.0
      %1918 = vmatpush1.msra.mxu0 0.0
      %1919 = vmatprep.subr.mxu0 0.0
      %1920 = vmatpush1.msra.mxu0 0.0
      %1921 = vmatprep.subr.mxu0 0.0
      %1922 = vmatpush1.msra.mxu0 0.0
      %1923 = vmatprep.subr.mxu0 0.0
      %1924 = vmatpush1.msra.mxu0 0.0
      %1925 = vmatprep.subr.mxu0 0.0
      %1926 = vmatpush1.msra.mxu0 0.0
      %1927 = vmatprep.subr.mxu0 0.0
      %1928 = vmatpush1.msra.mxu0 0.0
      %1929 = vmatprep.subr.mxu0 0.0
      %1930 = vmatpush1.msra.mxu0 0.0
      %1931 = vmatprep.mubr.f32.mxu0 0.0
      %1932 = vmatmul.mubr.f32.gmra.mrb[0].mxu0 %v1862
      %v1933 = vpop.f32.mrb[0].mxu0
      %v1934 = vadd.f32 0.0, %v1933
      %v1935 = vpop.f32.mrb[0].mxu0
      %1936 = vmatprep.mubr.f32.mxu0 0.0
      %1937 = vmatmul.mubr.f32.gmra.mrb[0].mxu0 %v1865
      %v1938 = vpop.f32.mrb[0].mxu0
      %v1939 = vadd.f32 0.0, %v1938
      %v1940 = vpop.f32.mrb[0].mxu0
      %1941 = vdwg.mxu0
      %1942 = vrot.lane.b32.xlu0 %v512, 64
      %v1943 = vpop.permute.xlu0 %1942
      %1944 = vrot.lane.b32.xlu0 %v517, 64
      %v1945 = vpop.permute.xlu0 %1944
      %v1949 = vsel %vm1243, %v1416, 0
      %v1952 = vsel %vm1243, %v1417, 0
      %1954 = vmatprep.subr.mxu0 0.0
      %1955 = vmatpush1.msra.mxu0 %v1943
      %1956 = vmatprep.subr.mxu0 0.0
      %1957 = vmatpush1.msra.mxu0 %v1945
      %1958 = vmatprep.subr.mxu0 0.0
      %1959 = vmatpush1.msra.mxu0 0.0
      %1960 = vmatprep.subr.mxu0 0.0
      %1961 = vmatpush1.msra.mxu0 0.0
      %1962 = vmatprep.subr.mxu0 0.0
      %1963 = vmatpush1.msra.mxu0 0.0
      %1964 = vmatprep.subr.mxu0 0.0
      %1965 = vmatpush1.msra.mxu0 0.0
      %1966 = vmatprep.subr.mxu0 0.0
      %1967 = vmatpush1.msra.mxu0 0.0
      %1968 = vmatprep.subr.mxu0 0.0
      %1969 = vmatpush1.msra.mxu0 0.0
      %1970 = vmatprep.subr.mxu0 0.0
      %1971 = vmatpush1.msra.mxu0 0.0
      %1972 = vmatprep.subr.mxu0 0.0
      %1973 = vmatpush1.msra.mxu0 0.0
      %1974 = vmatprep.subr.mxu0 0.0
      %1975 = vmatpush1.msra.mxu0 0.0
      %1976 = vmatprep.subr.mxu0 0.0
      %1977 = vmatpush1.msra.mxu0 0.0
      %1978 = vmatprep.subr.mxu0 0.0
      %1979 = vmatpush1.msra.mxu0 0.0
      %1980 = vmatprep.subr.mxu0 0.0
      %1981 = vmatpush1.msra.mxu0 0.0
      %1982 = vmatprep.subr.mxu0 0.0
      %1983 = vmatpush1.msra.mxu0 0.0
      %1984 = vmatprep.subr.mxu0 0.0
      %1985 = vmatpush1.msra.mxu0 0.0
      %1986 = vmatprep.subr.mxu0 0.0
      %1987 = vmatpush1.msra.mxu0 0.0
      %1988 = vmatprep.subr.mxu0 0.0
      %1989 = vmatpush1.msra.mxu0 0.0
      %1990 = vmatprep.subr.mxu0 0.0
      %1991 = vmatpush1.msra.mxu0 0.0
      %1992 = vmatprep.subr.mxu0 0.0
      %1993 = vmatpush1.msra.mxu0 0.0
      %1994 = vmatprep.subr.mxu0 0.0
      %1995 = vmatpush1.msra.mxu0 0.0
      %1996 = vmatprep.subr.mxu0 0.0
      %1997 = vmatpush1.msra.mxu0 0.0
      %1998 = vmatprep.subr.mxu0 0.0
      %1999 = vmatpush1.msra.mxu0 0.0
      %2000 = vmatprep.subr.mxu0 0.0
      %2001 = vmatpush1.msra.mxu0 0.0
      %2002 = vmatprep.subr.mxu0 0.0
      %2003 = vmatpush1.msra.mxu0 0.0
      %2004 = vmatprep.subr.mxu0 0.0
      %2005 = vmatpush1.msra.mxu0 0.0
      %2006 = vmatprep.subr.mxu0 0.0
      %2007 = vmatpush1.msra.mxu0 0.0
      %2008 = vmatprep.subr.mxu0 0.0
      %2009 = vmatpush1.msra.mxu0 0.0
      %2010 = vmatprep.subr.mxu0 0.0
      %2011 = vmatpush1.msra.mxu0 0.0
      %2012 = vmatprep.subr.mxu0 0.0
      %2013 = vmatpush1.msra.mxu0 0.0
      %2014 = vmatprep.subr.mxu0 0.0
      %2015 = vmatpush1.msra.mxu0 0.0
      %2016 = vmatprep.subr.mxu0 0.0
      %2017 = vmatpush1.msra.mxu0 0.0
      %2018 = vmatprep.mubr.f32.mxu0 0.0
      %2019 = vmatmul.mubr.f32.gmra.mrb[0].mxu0 %v1949
      %v2020 = vpop.f32.mrb[0].mxu0
      %v2021 = vadd.f32 0.0, %v2020
      %v2022 = vpop.f32.mrb[0].mxu0
      %2023 = vmatprep.mubr.f32.mxu0 0.0
      %2024 = vmatmul.mubr.f32.gmra.mrb[0].mxu0 %v1952
      %v2025 = vpop.f32.mrb[0].mxu0
      %v2026 = vadd.f32 0.0, %v2025
      %v2027 = vpop.f32.mrb[0].mxu0
      %2028 = vdwg.mxu0
      %2029 = vrot.lane.b32.xlu0 %v522, 64
      %v2030 = vpop.permute.xlu0 %2029
      %2031 = vrot.lane.b32.xlu0 %v527, 64
      %v2032 = vpop.permute.xlu0 %2031
      %v2036 = vsel %vm1243, %v1418, 0
      %v2039 = vsel %vm1243, %v1419, 0
      %2041 = vmatprep.subr.mxu0 0.0
      %2042 = vmatpush1.msra.mxu0 %v2030
      %2043 = vmatprep.subr.mxu0 0.0
      %2044 = vmatpush1.msra.mxu0 %v2032
      %2045 = vmatprep.subr.mxu0 0.0
      %2046 = vmatpush1.msra.mxu0 0.0
      %2047 = vmatprep.subr.mxu0 0.0
      %2048 = vmatpush1.msra.mxu0 0.0
      %2049 = vmatprep.subr.mxu0 0.0
      %2050 = vmatpush1.msra.mxu0 0.0
      %2051 = vmatprep.subr.mxu0 0.0
      %2052 = vmatpush1.msra.mxu0 0.0
      %2053 = vmatprep.subr.mxu0 0.0
      %2054 = vmatpush1.msra.mxu0 0.0
      %2055 = vmatprep.subr.mxu0 0.0
      %2056 = vmatpush1.msra.mxu0 0.0
      %2057 = vmatprep.subr.mxu0 0.0
      %2058 = vmatpush1.msra.mxu0 0.0
      %2059 = vmatprep.subr.mxu0 0.0
      %2060 = vmatpush1.msra.mxu0 0.0
      %2061 = vmatprep.subr.mxu0 0.0
      %2062 = vmatpush1.msra.mxu0 0.0
      %2063 = vmatprep.subr.mxu0 0.0
      %2064 = vmatpush1.msra.mxu0 0.0
      %2065 = vmatprep.subr.mxu0 0.0
      %2066 = vmatpush1.msra.mxu0 0.0
      %2067 = vmatprep.subr.mxu0 0.0
      %2068 = vmatpush1.msra.mxu0 0.0
      %2069 = vmatprep.subr.mxu0 0.0
      %2070 = vmatpush1.msra.mxu0 0.0
      %2071 = vmatprep.subr.mxu0 0.0
      %2072 = vmatpush1.msra.mxu0 0.0
      %2073 = vmatprep.subr.mxu0 0.0
      %2074 = vmatpush1.msra.mxu0 0.0
      %2075 = vmatprep.subr.mxu0 0.0
      %2076 = vmatpush1.msra.mxu0 0.0
      %2077 = vmatprep.subr.mxu0 0.0
      %2078 = vmatpush1.msra.mxu0 0.0
      %2079 = vmatprep.subr.mxu0 0.0
      %2080 = vmatpush1.msra.mxu0 0.0
      %2081 = vmatprep.subr.mxu0 0.0
      %2082 = vmatpush1.msra.mxu0 0.0
      %2083 = vmatprep.subr.mxu0 0.0
      %2084 = vmatpush1.msra.mxu0 0.0
      %2085 = vmatprep.subr.mxu0 0.0
      %2086 = vmatpush1.msra.mxu0 0.0
      %2087 = vmatprep.subr.mxu0 0.0
      %2088 = vmatpush1.msra.mxu0 0.0
      %2089 = vmatprep.subr.mxu0 0.0
      %2090 = vmatpush1.msra.mxu0 0.0
      %2091 = vmatprep.subr.mxu0 0.0
      %2092 = vmatpush1.msra.mxu0 0.0
      %2093 = vmatprep.subr.mxu0 0.0
      %2094 = vmatpush1.msra.mxu0 0.0
      %2095 = vmatprep.subr.mxu0 0.0
      %2096 = vmatpush1.msra.mxu0 0.0
      %2097 = vmatprep.subr.mxu0 0.0
      %2098 = vmatpush1.msra.mxu0 0.0
      %2099 = vmatprep.subr.mxu0 0.0
      %2100 = vmatpush1.msra.mxu0 0.0
      %2101 = vmatprep.subr.mxu0 0.0
      %2102 = vmatpush1.msra.mxu0 0.0
      %2103 = vmatprep.subr.mxu0 0.0
      %2104 = vmatpush1.msra.mxu0 0.0
      %2105 = vmatprep.mubr.f32.mxu0 0.0
      %2106 = vmatmul.mubr.f32.gmra.mrb[0].mxu0 %v2036
      %v2107 = vpop.f32.mrb[0].mxu0
      %v2108 = vadd.f32 0.0, %v2107
      %v2109 = vpop.f32.mrb[0].mxu0
      %2110 = vmatprep.mubr.f32.mxu0 0.0
      %2111 = vmatmul.mubr.f32.gmra.mrb[0].mxu0 %v2039
      %v2112 = vpop.f32.mrb[0].mxu0
      %v2113 = vadd.f32 0.0, %v2112
      %v2114 = vpop.f32.mrb[0].mxu0
      %2115 = vdwg.mxu0
      %2116 = vrot.lane.b32.xlu0 %v452, 120
      %v2117 = vpop.permute.xlu0 %2116
      %2118 = vrot.lane.b32.xlu0 %v457, 120
      %v2119 = vpop.permute.xlu0 %2118
      %2120 = vrot.lane.b32.xlu0 %v452, 88
      %v2121 = vpop.permute.xlu0 %2120
      %2122 = vrot.lane.b32.xlu0 %v457, 88
      %v2123 = vpop.permute.xlu0 %2122
      %v2124 = vsel %vm536, %v2117, 0
      %v2126 = vsel %vm536, %v2119, 0
      %v2128 = vsel %vm536, %v2121, 0
      %v2130 = vsel %vm536, %v2123, 0
      %2132 = vmatprep.subr.mxu0 0.0
      %2133 = vmatpush1.xpose.msra.mxu0 %v2128
      %2134 = vmatprep.subr.mxu0 0.0
      %2135 = vmatpush1.xpose.msra.mxu0 %v2130
      %2136 = vmatprep.subr.mxu0 0.0
      %2137 = vmatpush1.xpose.msra.mxu0 0.0
      %2138 = vmatprep.subr.mxu0 0.0
      %2139 = vmatpush1.xpose.msra.mxu0 0.0
      %2140 = vmatprep.subr.mxu0 0.0
      %2141 = vmatpush1.xpose.msra.mxu0 0.0
      %2142 = vmatprep.subr.mxu0 0.0
      %2143 = vmatpush1.xpose.msra.mxu0 0.0
      %2144 = vmatprep.subr.mxu0 0.0
      %2145 = vmatpush1.xpose.msra.mxu0 0.0
      %2146 = vmatprep.subr.mxu0 0.0
      %2147 = vmatpush1.xpose.msra.mxu0 0.0
      %2148 = vmatprep.subr.mxu0 0.0
      %2149 = vmatpush1.xpose.msra.mxu0 0.0
      %2150 = vmatprep.subr.mxu0 0.0
      %2151 = vmatpush1.xpose.msra.mxu0 0.0
      %2152 = vmatprep.subr.mxu0 0.0
      %2153 = vmatpush1.xpose.msra.mxu0 0.0
      %2154 = vmatprep.subr.mxu0 0.0
      %2155 = vmatpush1.xpose.msra.mxu0 0.0
      %2156 = vmatprep.subr.mxu0 0.0
      %2157 = vmatpush1.xpose.msra.mxu0 0.0
      %2158 = vmatprep.subr.mxu0 0.0
      %2159 = vmatpush1.xpose.msra.mxu0 0.0
      %2160 = vmatprep.subr.mxu0 0.0
      %2161 = vmatpush1.xpose.msra.mxu0 0.0
      %2162 = vmatprep.subr.mxu0 0.0
      %2163 = vmatpush1.xpose.msra.mxu0 0.0
      %2164 = vmatprep.subr.mxu0 0.0
      %2165 = vmatpush1.xpose.msra.mxu0 0.0
      %2166 = vmatprep.subr.mxu0 0.0
      %2167 = vmatpush1.xpose.msra.mxu0 0.0
      %2168 = vmatprep.subr.mxu0 0.0
      %2169 = vmatpush1.xpose.msra.mxu0 0.0
      %2170 = vmatprep.subr.mxu0 0.0
      %2171 = vmatpush1.xpose.msra.mxu0 0.0
      %2172 = vmatprep.subr.mxu0 0.0
      %2173 = vmatpush1.xpose.msra.mxu0 0.0
      %2174 = vmatprep.subr.mxu0 0.0
      %2175 = vmatpush1.xpose.msra.mxu0 0.0
      %2176 = vmatprep.subr.mxu0 0.0
      %2177 = vmatpush1.xpose.msra.mxu0 0.0
      %2178 = vmatprep.subr.mxu0 0.0
      %2179 = vmatpush1.xpose.msra.mxu0 0.0
      %2180 = vmatprep.subr.mxu0 0.0
      %2181 = vmatpush1.xpose.msra.mxu0 0.0
      %2182 = vmatprep.subr.mxu0 0.0
      %2183 = vmatpush1.xpose.msra.mxu0 0.0
      %2184 = vmatprep.subr.mxu0 0.0
      %2185 = vmatpush1.xpose.msra.mxu0 0.0
      %2186 = vmatprep.subr.mxu0 0.0
      %2187 = vmatpush1.xpose.msra.mxu0 0.0
      %2188 = vmatprep.subr.mxu0 0.0
      %2189 = vmatpush1.xpose.msra.mxu0 0.0
      %2190 = vmatprep.subr.mxu0 0.0
      %2191 = vmatpush1.xpose.msra.mxu0 0.0
      %2192 = vmatprep.subr.mxu0 0.0
      %2193 = vmatpush1.xpose.msra.mxu0 0.0
      %2194 = vmatprep.subr.mxu0 0.0
      %2195 = vmatpush1.xpose.msra.mxu0 0.0
      %2196 = vmatprep.mubr.f32.mxu0 0.0
      %2197 = vmatmul.mubr.f32.gmra.mrb[0].mxu0 %v2124
      %v2198 = vpop.f32.mrb[0].mxu0
      %v2199 = vadd.f32 0.0, %v2198
      %v2200 = vpop.f32.mrb[0].mxu0
      %2201 = vmatprep.mubr.f32.mxu0 0.0
      %2202 = vmatmul.mubr.f32.gmra.mrb[0].mxu0 %v2126
      %v2203 = vpop.f32.mrb[0].mxu0
      %v2204 = vadd.f32 0.0, %v2203
      %v2205 = vpop.f32.mrb[0].mxu0
      %2206 = vdwg.mxu0
      %2207 = vrot.lane.b32.xlu0 %v462, 120
      %v2208 = vpop.permute.xlu0 %2207
      %2209 = vrot.lane.b32.xlu0 %v467, 120
      %v2210 = vpop.permute.xlu0 %2209
      %2211 = vrot.lane.b32.xlu0 %v462, 88
      %v2212 = vpop.permute.xlu0 %2211
      %2213 = vrot.lane.b32.xlu0 %v467, 88
      %v2214 = vpop.permute.xlu0 %2213
      %v2215 = vsel %vm536, %v2208, 0
      %v2217 = vsel %vm536, %v2210, 0
      %v2219 = vsel %vm536, %v2212, 0
      %v2221 = vsel %vm536, %v2214, 0
      %2223 = vmatprep.subr.mxu0 0.0
      %2224 = vmatpush1.xpose.msra.mxu0 %v2219
      %2225 = vmatprep.subr.mxu0 0.0
      %2226 = vmatpush1.xpose.msra.mxu0 %v2221
      %2227 = vmatprep.subr.mxu0 0.0
      %2228 = vmatpush1.xpose.msra.mxu0 0.0
      %2229 = vmatprep.subr.mxu0 0.0
      %2230 = vmatpush1.xpose.msra.mxu0 0.0
      %2231 = vmatprep.subr.mxu0 0.0
      %2232 = vmatpush1.xpose.msra.mxu0 0.0
      %2233 = vmatprep.subr.mxu0 0.0
      %2234 = vmatpush1.xpose.msra.mxu0 0.0
      %2235 = vmatprep.subr.mxu0 0.0
      %2236 = vmatpush1.xpose.msra.mxu0 0.0
      %2237 = vmatprep.subr.mxu0 0.0
      %2238 = vmatpush1.xpose.msra.mxu0 0.0
      %2239 = vmatprep.subr.mxu0 0.0
      %2240 = vmatpush1.xpose.msra.mxu0 0.0
      %2241 = vmatprep.subr.mxu0 0.0
      %2242 = vmatpush1.xpose.msra.mxu0 0.0
      %2243 = vmatprep.subr.mxu0 0.0
      %2244 = vmatpush1.xpose.msra.mxu0 0.0
      %2245 = vmatprep.subr.mxu0 0.0
      %2246 = vmatpush1.xpose.msra.mxu0 0.0
      %2247 = vmatprep.subr.mxu0 0.0
      %2248 = vmatpush1.xpose.msra.mxu0 0.0
      %2249 = vmatprep.subr.mxu0 0.0
      %2250 = vmatpush1.xpose.msra.mxu0 0.0
      %2251 = vmatprep.subr.mxu0 0.0
      %2252 = vmatpush1.xpose.msra.mxu0 0.0
      %2253 = vmatprep.subr.mxu0 0.0
      %2254 = vmatpush1.xpose.msra.mxu0 0.0
      %2255 = vmatprep.subr.mxu0 0.0
      %2256 = vmatpush1.xpose.msra.mxu0 0.0
      %2257 = vmatprep.subr.mxu0 0.0
      %2258 = vmatpush1.xpose.msra.mxu0 0.0
      %2259 = vmatprep.subr.mxu0 0.0
      %2260 = vmatpush1.xpose.msra.mxu0 0.0
      %2261 = vmatprep.subr.mxu0 0.0
      %2262 = vmatpush1.xpose.msra.mxu0 0.0
      %2263 = vmatprep.subr.mxu0 0.0
      %2264 = vmatpush1.xpose.msra.mxu0 0.0
      %2265 = vmatprep.subr.mxu0 0.0
      %2266 = vmatpush1.xpose.msra.mxu0 0.0
      %2267 = vmatprep.subr.mxu0 0.0
      %2268 = vmatpush1.xpose.msra.mxu0 0.0
      %2269 = vmatprep.subr.mxu0 0.0
      %2270 = vmatpush1.xpose.msra.mxu0 0.0
      %2271 = vmatprep.subr.mxu0 0.0
      %2272 = vmatpush1.xpose.msra.mxu0 0.0
      %2273 = vmatprep.subr.mxu0 0.0
      %2274 = vmatpush1.xpose.msra.mxu0 0.0
      %2275 = vmatprep.subr.mxu0 0.0
      %2276 = vmatpush1.xpose.msra.mxu0 0.0
      %2277 = vmatprep.subr.mxu0 0.0
      %2278 = vmatpush1.xpose.msra.mxu0 0.0
      %2279 = vmatprep.subr.mxu0 0.0
      %2280 = vmatpush1.xpose.msra.mxu0 0.0
      %2281 = vmatprep.subr.mxu0 0.0
      %2282 = vmatpush1.xpose.msra.mxu0 0.0
      %2283 = vmatprep.subr.mxu0 0.0
      %2284 = vmatpush1.xpose.msra.mxu0 0.0
      %2285 = vmatprep.subr.mxu0 0.0
      %2286 = vmatpush1.xpose.msra.mxu0 0.0
      %2287 = vmatprep.mubr.f32.mxu0 0.0
      %2288 = vmatmul.mubr.f32.gmra.mrb[0].mxu0 %v2215
      %v2289 = vpop.f32.mrb[0].mxu0
      %v2290 = vadd.f32 0.0, %v2289
      %v2291 = vpop.f32.mrb[0].mxu0
      %2292 = vmatprep.mubr.f32.mxu0 0.0
      %2293 = vmatmul.mubr.f32.gmra.mrb[0].mxu0 %v2217
      %v2294 = vpop.f32.mrb[0].mxu0
      %v2295 = vadd.f32 0.0, %v2294
      %v2296 = vpop.f32.mrb[0].mxu0
      %2297 = vdwg.mxu0
      %2298 = vrot.lane.b32.xlu0 %v472, 120
      %v2299 = vpop.permute.xlu0 %2298
      %2300 = vrot.lane.b32.xlu0 %v477, 120
      %v2301 = vpop.permute.xlu0 %2300
      %2302 = vrot.lane.b32.xlu0 %v472, 88
      %v2303 = vpop.permute.xlu0 %2302
      %2304 = vrot.lane.b32.xlu0 %v477, 88
      %v2305 = vpop.permute.xlu0 %2304
      %v2306 = vsel %vm536, %v2299, 0
      %v2308 = vsel %vm536, %v2301, 0
      %v2310 = vsel %vm536, %v2303, 0
      %v2312 = vsel %vm536, %v2305, 0
      %2314 = vmatprep.subr.mxu0 0.0
      %2315 = vmatpush1.xpose.msra.mxu0 %v2310
      %2316 = vmatprep.subr.mxu0 0.0
      %2317 = vmatpush1.xpose.msra.mxu0 %v2312
      %2318 = vmatprep.subr.mxu0 0.0
      %2319 = vmatpush1.xpose.msra.mxu0 0.0
      %2320 = vmatprep.subr.mxu0 0.0
      %2321 = vmatpush1.xpose.msra.mxu0 0.0
      %2322 = vmatprep.subr.mxu0 0.0
      %2323 = vmatpush1.xpose.msra.mxu0 0.0
      %2324 = vmatprep.subr.mxu0 0.0
      %2325 = vmatpush1.xpose.msra.mxu0 0.0
      %2326 = vmatprep.subr.mxu0 0.0
      %2327 = vmatpush1.xpose.msra.mxu0 0.0
      %2328 = vmatprep.subr.mxu0 0.0
      %2329 = vmatpush1.xpose.msra.mxu0 0.0
      %2330 = vmatprep.subr.mxu0 0.0
      %2331 = vmatpush1.xpose.msra.mxu0 0.0
      %2332 = vmatprep.subr.mxu0 0.0
      %2333 = vmatpush1.xpose.msra.mxu0 0.0
      %2334 = vmatprep.subr.mxu0 0.0
      %2335 = vmatpush1.xpose.msra.mxu0 0.0
      %2336 = vmatprep.subr.mxu0 0.0
      %2337 = vmatpush1.xpose.msra.mxu0 0.0
      %2338 = vmatprep.subr.mxu0 0.0
      %2339 = vmatpush1.xpose.msra.mxu0 0.0
      %2340 = vmatprep.subr.mxu0 0.0
      %2341 = vmatpush1.xpose.msra.mxu0 0.0
      %2342 = vmatprep.subr.mxu0 0.0
      %2343 = vmatpush1.xpose.msra.mxu0 0.0
      %2344 = vmatprep.subr.mxu0 0.0
      %2345 = vmatpush1.xpose.msra.mxu0 0.0
      %2346 = vmatprep.subr.mxu0 0.0
      %2347 = vmatpush1.xpose.msra.mxu0 0.0
      %2348 = vmatprep.subr.mxu0 0.0
      %2349 = vmatpush1.xpose.msra.mxu0 0.0
      %2350 = vmatprep.subr.mxu0 0.0
      %2351 = vmatpush1.xpose.msra.mxu0 0.0
      %2352 = vmatprep.subr.mxu0 0.0
      %2353 = vmatpush1.xpose.msra.mxu0 0.0
      %2354 = vmatprep.subr.mxu0 0.0
      %2355 = vmatpush1.xpose.msra.mxu0 0.0
      %2356 = vmatprep.subr.mxu0 0.0
      %2357 = vmatpush1.xpose.msra.mxu0 0.0
      %2358 = vmatprep.subr.mxu0 0.0
      %2359 = vmatpush1.xpose.msra.mxu0 0.0
      %2360 = vmatprep.subr.mxu0 0.0
      %2361 = vmatpush1.xpose.msra.mxu0 0.0
      %2362 = vmatprep.subr.mxu0 0.0
      %2363 = vmatpush1.xpose.msra.mxu0 0.0
      %2364 = vmatprep.subr.mxu0 0.0
      %2365 = vmatpush1.xpose.msra.mxu0 0.0
      %2366 = vmatprep.subr.mxu0 0.0
      %2367 = vmatpush1.xpose.msra.mxu0 0.0
      %2368 = vmatprep.subr.mxu0 0.0
      %2369 = vmatpush1.xpose.msra.mxu0 0.0
      %2370 = vmatprep.subr.mxu0 0.0
      %2371 = vmatpush1.xpose.msra.mxu0 0.0
      %2372 = vmatprep.subr.mxu0 0.0
      %2373 = vmatpush1.xpose.msra.mxu0 0.0
      %2374 = vmatprep.subr.mxu0 0.0
      %2375 = vmatpush1.xpose.msra.mxu0 0.0
      %2376 = vmatprep.subr.mxu0 0.0
      %2377 = vmatpush1.xpose.msra.mxu0 0.0
      %2378 = vmatprep.mubr.f32.mxu0 0.0
      %2379 = vmatmul.mubr.f32.gmra.mrb[0].mxu0 %v2306
      %v2380 = vpop.f32.mrb[0].mxu0
      %v2381 = vadd.f32 0.0, %v2380
      %v2382 = vpop.f32.mrb[0].mxu0
      %2383 = vmatprep.mubr.f32.mxu0 0.0
      %2384 = vmatmul.mubr.f32.gmra.mrb[0].mxu0 %v2308
      %v2385 = vpop.f32.mrb[0].mxu0
      %v2386 = vadd.f32 0.0, %v2385
      %v2387 = vpop.f32.mrb[0].mxu0
      %2388 = vdwg.mxu0
      %2389 = vrot.lane.b32.xlu0 %v482, 120
      %v2390 = vpop.permute.xlu0 %2389
      %2391 = vrot.lane.b32.xlu0 %v487, 120
      %v2392 = vpop.permute.xlu0 %2391
      %2393 = vrot.lane.b32.xlu0 %v482, 88
      %v2394 = vpop.permute.xlu0 %2393
      %2395 = vrot.lane.b32.xlu0 %v487, 88
      %v2396 = vpop.permute.xlu0 %2395
      %v2397 = vsel %vm536, %v2390, 0
      %v2399 = vsel %vm536, %v2392, 0
      %v2401 = vsel %vm536, %v2394, 0
      %v2403 = vsel %vm536, %v2396, 0
      %2405 = vmatprep.subr.mxu0 0.0
      %2406 = vmatpush1.xpose.msra.mxu0 %v2401
      %2407 = vmatprep.subr.mxu0 0.0
      %2408 = vmatpush1.xpose.msra.mxu0 %v2403
      %2409 = vmatprep.subr.mxu0 0.0
      %2410 = vmatpush1.xpose.msra.mxu0 0.0
      %2411 = vmatprep.subr.mxu0 0.0
      %2412 = vmatpush1.xpose.msra.mxu0 0.0
      %2413 = vmatprep.subr.mxu0 0.0
      %2414 = vmatpush1.xpose.msra.mxu0 0.0
      %2415 = vmatprep.subr.mxu0 0.0
      %2416 = vmatpush1.xpose.msra.mxu0 0.0
      %2417 = vmatprep.subr.mxu0 0.0
      %2418 = vmatpush1.xpose.msra.mxu0 0.0
      %2419 = vmatprep.subr.mxu0 0.0
      %2420 = vmatpush1.xpose.msra.mxu0 0.0
      %2421 = vmatprep.subr.mxu0 0.0
      %2422 = vmatpush1.xpose.msra.mxu0 0.0
      %2423 = vmatprep.subr.mxu0 0.0
      %2424 = vmatpush1.xpose.msra.mxu0 0.0
      %2425 = vmatprep.subr.mxu0 0.0
      %2426 = vmatpush1.xpose.msra.mxu0 0.0
      %2427 = vmatprep.subr.mxu0 0.0
      %2428 = vmatpush1.xpose.msra.mxu0 0.0
      %2429 = vmatprep.subr.mxu0 0.0
      %2430 = vmatpush1.xpose.msra.mxu0 0.0
      %2431 = vmatprep.subr.mxu0 0.0
      %2432 = vmatpush1.xpose.msra.mxu0 0.0
      %2433 = vmatprep.subr.mxu0 0.0
      %2434 = vmatpush1.xpose.msra.mxu0 0.0
      %2435 = vmatprep.subr.mxu0 0.0
      %2436 = vmatpush1.xpose.msra.mxu0 0.0
      %2437 = vmatprep.subr.mxu0 0.0
      %2438 = vmatpush1.xpose.msra.mxu0 0.0
      %2439 = vmatprep.subr.mxu0 0.0
      %2440 = vmatpush1.xpose.msra.mxu0 0.0
      %2441 = vmatprep.subr.mxu0 0.0
      %2442 = vmatpush1.xpose.msra.mxu0 0.0
      %2443 = vmatprep.subr.mxu0 0.0
      %2444 = vmatpush1.xpose.msra.mxu0 0.0
      %2445 = vmatprep.subr.mxu0 0.0
      %2446 = vmatpush1.xpose.msra.mxu0 0.0
      %2447 = vmatprep.subr.mxu0 0.0
      %2448 = vmatpush1.xpose.msra.mxu0 0.0
      %2449 = vmatprep.subr.mxu0 0.0
      %2450 = vmatpush1.xpose.msra.mxu0 0.0
      %2451 = vmatprep.subr.mxu0 0.0
      %2452 = vmatpush1.xpose.msra.mxu0 0.0
      %2453 = vmatprep.subr.mxu0 0.0
      %2454 = vmatpush1.xpose.msra.mxu0 0.0
      %2455 = vmatprep.subr.mxu0 0.0
      %2456 = vmatpush1.xpose.msra.mxu0 0.0
      %2457 = vmatprep.subr.mxu0 0.0
      %2458 = vmatpush1.xpose.msra.mxu0 0.0
      %2459 = vmatprep.subr.mxu0 0.0
      %2460 = vmatpush1.xpose.msra.mxu0 0.0
      %2461 = vmatprep.subr.mxu0 0.0
      %2462 = vmatpush1.xpose.msra.mxu0 0.0
      %2463 = vmatprep.subr.mxu0 0.0
      %2464 = vmatpush1.xpose.msra.mxu0 0.0
      %2465 = vmatprep.subr.mxu0 0.0
      %2466 = vmatpush1.xpose.msra.mxu0 0.0
      %2467 = vmatprep.subr.mxu0 0.0
      %2468 = vmatpush1.xpose.msra.mxu0 0.0
      %2469 = vmatprep.mubr.f32.mxu0 0.0
      %2470 = vmatmul.mubr.f32.gmra.mrb[0].mxu0 %v2397
      %v2471 = vpop.f32.mrb[0].mxu0
      %v2472 = vadd.f32 0.0, %v2471
      %v2473 = vpop.f32.mrb[0].mxu0
      %2474 = vmatprep.mubr.f32.mxu0 0.0
      %2475 = vmatmul.mubr.f32.gmra.mrb[0].mxu0 %v2399
      %v2476 = vpop.f32.mrb[0].mxu0
      %v2477 = vadd.f32 0.0, %v2476
      %v2478 = vpop.f32.mrb[0].mxu0
      %2479 = vdwg.mxu0
      %2480 = vrot.lane.b32.xlu0 %v492, 120
      %v2481 = vpop.permute.xlu0 %2480
      %2482 = vrot.lane.b32.xlu0 %v497, 120
      %v2483 = vpop.permute.xlu0 %2482
      %2484 = vrot.lane.b32.xlu0 %v492, 88
      %v2485 = vpop.permute.xlu0 %2484
      %2486 = vrot.lane.b32.xlu0 %v497, 88
      %v2487 = vpop.permute.xlu0 %2486
      %v2488 = vsel %vm536, %v2481, 0
      %v2490 = vsel %vm536, %v2483, 0
      %v2492 = vsel %vm536, %v2485, 0
      %v2494 = vsel %vm536, %v2487, 0
      %2496 = vmatprep.subr.mxu0 0.0
      %2497 = vmatpush1.xpose.msra.mxu0 %v2492
      %2498 = vmatprep.subr.mxu0 0.0
      %2499 = vmatpush1.xpose.msra.mxu0 %v2494
      %2500 = vmatprep.subr.mxu0 0.0
      %2501 = vmatpush1.xpose.msra.mxu0 0.0
      %2502 = vmatprep.subr.mxu0 0.0
      %2503 = vmatpush1.xpose.msra.mxu0 0.0
      %2504 = vmatprep.subr.mxu0 0.0
      %2505 = vmatpush1.xpose.msra.mxu0 0.0
      %2506 = vmatprep.subr.mxu0 0.0
      %2507 = vmatpush1.xpose.msra.mxu0 0.0
      %2508 = vmatprep.subr.mxu0 0.0
      %2509 = vmatpush1.xpose.msra.mxu0 0.0
      %2510 = vmatprep.subr.mxu0 0.0
      %2511 = vmatpush1.xpose.msra.mxu0 0.0
      %2512 = vmatprep.subr.mxu0 0.0
      %2513 = vmatpush1.xpose.msra.mxu0 0.0
      %2514 = vmatprep.subr.mxu0 0.0
      %2515 = vmatpush1.xpose.msra.mxu0 0.0
      %2516 = vmatprep.subr.mxu0 0.0
      %2517 = vmatpush1.xpose.msra.mxu0 0.0
      %2518 = vmatprep.subr.mxu0 0.0
      %2519 = vmatpush1.xpose.msra.mxu0 0.0
      %2520 = vmatprep.subr.mxu0 0.0
      %2521 = vmatpush1.xpose.msra.mxu0 0.0
      %2522 = vmatprep.subr.mxu0 0.0
      %2523 = vmatpush1.xpose.msra.mxu0 0.0
      %2524 = vmatprep.subr.mxu0 0.0
      %2525 = vmatpush1.xpose.msra.mxu0 0.0
      %2526 = vmatprep.subr.mxu0 0.0
      %2527 = vmatpush1.xpose.msra.mxu0 0.0
      %2528 = vmatprep.subr.mxu0 0.0
      %2529 = vmatpush1.xpose.msra.mxu0 0.0
      %2530 = vmatprep.subr.mxu0 0.0
      %2531 = vmatpush1.xpose.msra.mxu0 0.0
      %2532 = vmatprep.subr.mxu0 0.0
      %2533 = vmatpush1.xpose.msra.mxu0 0.0
      %2534 = vmatprep.subr.mxu0 0.0
      %2535 = vmatpush1.xpose.msra.mxu0 0.0
      %2536 = vmatprep.subr.mxu0 0.0
      %2537 = vmatpush1.xpose.msra.mxu0 0.0
      %2538 = vmatprep.subr.mxu0 0.0
      %2539 = vmatpush1.xpose.msra.mxu0 0.0
      %2540 = vmatprep.subr.mxu0 0.0
      %2541 = vmatpush1.xpose.msra.mxu0 0.0
      %2542 = vmatprep.subr.mxu0 0.0
      %2543 = vmatpush1.xpose.msra.mxu0 0.0
      %2544 = vmatprep.subr.mxu0 0.0
      %2545 = vmatpush1.xpose.msra.mxu0 0.0
      %2546 = vmatprep.subr.mxu0 0.0
      %2547 = vmatpush1.xpose.msra.mxu0 0.0
      %2548 = vmatprep.subr.mxu0 0.0
      %2549 = vmatpush1.xpose.msra.mxu0 0.0
      %2550 = vmatprep.subr.mxu0 0.0
      %2551 = vmatpush1.xpose.msra.mxu0 0.0
      %2552 = vmatprep.subr.mxu0 0.0
      %2553 = vmatpush1.xpose.msra.mxu0 0.0
      %2554 = vmatprep.subr.mxu0 0.0
      %2555 = vmatpush1.xpose.msra.mxu0 0.0
      %2556 = vmatprep.subr.mxu0 0.0
      %2557 = vmatpush1.xpose.msra.mxu0 0.0
      %2558 = vmatprep.subr.mxu0 0.0
      %2559 = vmatpush1.xpose.msra.mxu0 0.0
      %2560 = vmatprep.mubr.f32.mxu0 0.0
      %2561 = vmatmul.mubr.f32.gmra.mrb[0].mxu0 %v2488
      %v2562 = vpop.f32.mrb[0].mxu0
      %v2563 = vadd.f32 0.0, %v2562
      %v2564 = vpop.f32.mrb[0].mxu0
      %2565 = vmatprep.mubr.f32.mxu0 0.0
      %2566 = vmatmul.mubr.f32.gmra.mrb[0].mxu0 %v2490
      %v2567 = vpop.f32.mrb[0].mxu0
      %v2568 = vadd.f32 0.0, %v2567
      %v2569 = vpop.f32.mrb[0].mxu0
      %2570 = vdwg.mxu0
      %2571 = vrot.lane.b32.xlu0 %v502, 120
      %v2572 = vpop.permute.xlu0 %2571
      %2573 = vrot.lane.b32.xlu0 %v507, 120
      %v2574 = vpop.permute.xlu0 %2573
      %2575 = vrot.lane.b32.xlu0 %v502, 88
      %v2576 = vpop.permute.xlu0 %2575
      %2577 = vrot.lane.b32.xlu0 %v507, 88
      %v2578 = vpop.permute.xlu0 %2577
      %v2579 = vsel %vm536, %v2572, 0
      %v2581 = vsel %vm536, %v2574, 0
      %v2583 = vsel %vm536, %v2576, 0
      %v2585 = vsel %vm536, %v2578, 0
      %2587 = vmatprep.subr.mxu0 0.0
      %2588 = vmatpush1.xpose.msra.mxu0 %v2583
      %2589 = vmatprep.subr.mxu0 0.0
      %2590 = vmatpush1.xpose.msra.mxu0 %v2585
      %2591 = vmatprep.subr.mxu0 0.0
      %2592 = vmatpush1.xpose.msra.mxu0 0.0
      %2593 = vmatprep.subr.mxu0 0.0
      %2594 = vmatpush1.xpose.msra.mxu0 0.0
      %2595 = vmatprep.subr.mxu0 0.0
      %2596 = vmatpush1.xpose.msra.mxu0 0.0
      %2597 = vmatprep.subr.mxu0 0.0
      %2598 = vmatpush1.xpose.msra.mxu0 0.0
      %2599 = vmatprep.subr.mxu0 0.0
      %2600 = vmatpush1.xpose.msra.mxu0 0.0
      %2601 = vmatprep.subr.mxu0 0.0
      %2602 = vmatpush1.xpose.msra.mxu0 0.0
      %2603 = vmatprep.subr.mxu0 0.0
      %2604 = vmatpush1.xpose.msra.mxu0 0.0
      %2605 = vmatprep.subr.mxu0 0.0
      %2606 = vmatpush1.xpose.msra.mxu0 0.0
      %2607 = vmatprep.subr.mxu0 0.0
      %2608 = vmatpush1.xpose.msra.mxu0 0.0
      %2609 = vmatprep.subr.mxu0 0.0
      %2610 = vmatpush1.xpose.msra.mxu0 0.0
      %2611 = vmatprep.subr.mxu0 0.0
      %2612 = vmatpush1.xpose.msra.mxu0 0.0
      %2613 = vmatprep.subr.mxu0 0.0
      %2614 = vmatpush1.xpose.msra.mxu0 0.0
      %2615 = vmatprep.subr.mxu0 0.0
      %2616 = vmatpush1.xpose.msra.mxu0 0.0
      %2617 = vmatprep.subr.mxu0 0.0
      %2618 = vmatpush1.xpose.msra.mxu0 0.0
      %2619 = vmatprep.subr.mxu0 0.0
      %2620 = vmatpush1.xpose.msra.mxu0 0.0
      %2621 = vmatprep.subr.mxu0 0.0
      %2622 = vmatpush1.xpose.msra.mxu0 0.0
      %2623 = vmatprep.subr.mxu0 0.0
      %2624 = vmatpush1.xpose.msra.mxu0 0.0
      %2625 = vmatprep.subr.mxu0 0.0
      %2626 = vmatpush1.xpose.msra.mxu0 0.0
      %2627 = vmatprep.subr.mxu0 0.0
      %2628 = vmatpush1.xpose.msra.mxu0 0.0
      %2629 = vmatprep.subr.mxu0 0.0
      %2630 = vmatpush1.xpose.msra.mxu0 0.0
      %2631 = vmatprep.subr.mxu0 0.0
      %2632 = vmatpush1.xpose.msra.mxu0 0.0
      %2633 = vmatprep.subr.mxu0 0.0
      %2634 = vmatpush1.xpose.msra.mxu0 0.0
      %2635 = vmatprep.subr.mxu0 0.0
      %2636 = vmatpush1.xpose.msra.mxu0 0.0
      %2637 = vmatprep.subr.mxu0 0.0
      %2638 = vmatpush1.xpose.msra.mxu0 0.0
      %2639 = vmatprep.subr.mxu0 0.0
      %2640 = vmatpush1.xpose.msra.mxu0 0.0
      %2641 = vmatprep.subr.mxu0 0.0
      %2642 = vmatpush1.xpose.msra.mxu0 0.0
      %2643 = vmatprep.subr.mxu0 0.0
      %2644 = vmatpush1.xpose.msra.mxu0 0.0
      %2645 = vmatprep.subr.mxu0 0.0
      %2646 = vmatpush1.xpose.msra.mxu0 0.0
      %2647 = vmatprep.subr.mxu0 0.0
      %2648 = vmatpush1.xpose.msra.mxu0 0.0
      %2649 = vmatprep.subr.mxu0 0.0
      %2650 = vmatpush1.xpose.msra.mxu0 0.0
      %2651 = vmatprep.mubr.f32.mxu0 0.0
      %2652 = vmatmul.mubr.f32.gmra.mrb[0].mxu0 %v2579
      %v2653 = vpop.f32.mrb[0].mxu0
      %v2654 = vadd.f32 0.0, %v2653
      %v2655 = vpop.f32.mrb[0].mxu0
      %2656 = vmatprep.mubr.f32.mxu0 0.0
      %2657 = vmatmul.mubr.f32.gmra.mrb[0].mxu0 %v2581
      %v2658 = vpop.f32.mrb[0].mxu0
      %v2659 = vadd.f32 0.0, %v2658
      %v2660 = vpop.f32.mrb[0].mxu0
      %2661 = vdwg.mxu0
      %2662 = vrot.lane.b32.xlu0 %v512, 120
      %v2663 = vpop.permute.xlu0 %2662
      %2664 = vrot.lane.b32.xlu0 %v517, 120
      %v2665 = vpop.permute.xlu0 %2664
      %2666 = vrot.lane.b32.xlu0 %v512, 88
      %v2667 = vpop.permute.xlu0 %2666
      %2668 = vrot.lane.b32.xlu0 %v517, 88
      %v2669 = vpop.permute.xlu0 %2668
      %v2670 = vsel %vm536, %v2663, 0
      %v2672 = vsel %vm536, %v2665, 0
      %v2674 = vsel %vm536, %v2667, 0
      %v2676 = vsel %vm536, %v2669, 0
      %2678 = vmatprep.subr.mxu0 0.0
      %2679 = vmatpush1.xpose.msra.mxu0 %v2674
      %2680 = vmatprep.subr.mxu0 0.0
      %2681 = vmatpush1.xpose.msra.mxu0 %v2676
      %2682 = vmatprep.subr.mxu0 0.0
      %2683 = vmatpush1.xpose.msra.mxu0 0.0
      %2684 = vmatprep.subr.mxu0 0.0
      %2685 = vmatpush1.xpose.msra.mxu0 0.0
      %2686 = vmatprep.subr.mxu0 0.0
      %2687 = vmatpush1.xpose.msra.mxu0 0.0
      %2688 = vmatprep.subr.mxu0 0.0
      %2689 = vmatpush1.xpose.msra.mxu0 0.0
      %2690 = vmatprep.subr.mxu0 0.0
      %2691 = vmatpush1.xpose.msra.mxu0 0.0
      %2692 = vmatprep.subr.mxu0 0.0
      %2693 = vmatpush1.xpose.msra.mxu0 0.0
      %2694 = vmatprep.subr.mxu0 0.0
      %2695 = vmatpush1.xpose.msra.mxu0 0.0
      %2696 = vmatprep.subr.mxu0 0.0
      %2697 = vmatpush1.xpose.msra.mxu0 0.0
      %2698 = vmatprep.subr.mxu0 0.0
      %2699 = vmatpush1.xpose.msra.mxu0 0.0
      %2700 = vmatprep.subr.mxu0 0.0
      %2701 = vmatpush1.xpose.msra.mxu0 0.0
      %2702 = vmatprep.subr.mxu0 0.0
      %2703 = vmatpush1.xpose.msra.mxu0 0.0
      %2704 = vmatprep.subr.mxu0 0.0
      %2705 = vmatpush1.xpose.msra.mxu0 0.0
      %2706 = vmatprep.subr.mxu0 0.0
      %2707 = vmatpush1.xpose.msra.mxu0 0.0
      %2708 = vmatprep.subr.mxu0 0.0
      %2709 = vmatpush1.xpose.msra.mxu0 0.0
      %2710 = vmatprep.subr.mxu0 0.0
      %2711 = vmatpush1.xpose.msra.mxu0 0.0
      %2712 = vmatprep.subr.mxu0 0.0
      %2713 = vmatpush1.xpose.msra.mxu0 0.0
      %2714 = vmatprep.subr.mxu0 0.0
      %2715 = vmatpush1.xpose.msra.mxu0 0.0
      %2716 = vmatprep.subr.mxu0 0.0
      %2717 = vmatpush1.xpose.msra.mxu0 0.0
      %2718 = vmatprep.subr.mxu0 0.0
      %2719 = vmatpush1.xpose.msra.mxu0 0.0
      %2720 = vmatprep.subr.mxu0 0.0
      %2721 = vmatpush1.xpose.msra.mxu0 0.0
      %2722 = vmatprep.subr.mxu0 0.0
      %2723 = vmatpush1.xpose.msra.mxu0 0.0
      %2724 = vmatprep.subr.mxu0 0.0
      %2725 = vmatpush1.xpose.msra.mxu0 0.0
      %2726 = vmatprep.subr.mxu0 0.0
      %2727 = vmatpush1.xpose.msra.mxu0 0.0
      %2728 = vmatprep.subr.mxu0 0.0
      %2729 = vmatpush1.xpose.msra.mxu0 0.0
      %2730 = vmatprep.subr.mxu0 0.0
      %2731 = vmatpush1.xpose.msra.mxu0 0.0
      %2732 = vmatprep.subr.mxu0 0.0
      %2733 = vmatpush1.xpose.msra.mxu0 0.0
      %2734 = vmatprep.subr.mxu0 0.0
      %2735 = vmatpush1.xpose.msra.mxu0 0.0
      %2736 = vmatprep.subr.mxu0 0.0
      %2737 = vmatpush1.xpose.msra.mxu0 0.0
      %2738 = vmatprep.subr.mxu0 0.0
      %2739 = vmatpush1.xpose.msra.mxu0 0.0
      %2740 = vmatprep.subr.mxu0 0.0
      %2741 = vmatpush1.xpose.msra.mxu0 0.0
      %2742 = vmatprep.mubr.f32.mxu0 0.0
      %2743 = vmatmul.mubr.f32.gmra.mrb[0].mxu0 %v2670
      %v2744 = vpop.f32.mrb[0].mxu0
      %v2745 = vadd.f32 0.0, %v2744
      %v2746 = vpop.f32.mrb[0].mxu0
      %2747 = vmatprep.mubr.f32.mxu0 0.0
      %2748 = vmatmul.mubr.f32.gmra.mrb[0].mxu0 %v2672
      %v2749 = vpop.f32.mrb[0].mxu0
      %v2750 = vadd.f32 0.0, %v2749
      %v2751 = vpop.f32.mrb[0].mxu0
      %2752 = vdwg.mxu0
      %2753 = vrot.lane.b32.xlu0 %v522, 120
      %v2754 = vpop.permute.xlu0 %2753
      %2755 = vrot.lane.b32.xlu0 %v527, 120
      %v2756 = vpop.permute.xlu0 %2755
      %2757 = vrot.lane.b32.xlu0 %v522, 88
      %v2758 = vpop.permute.xlu0 %2757
      %2759 = vrot.lane.b32.xlu0 %v527, 88
      %v2760 = vpop.permute.xlu0 %2759
      %v2761 = vsel %vm536, %v2754, 0
      %v2763 = vsel %vm536, %v2756, 0
      %v2765 = vsel %vm536, %v2758, 0
      %v2767 = vsel %vm536, %v2760, 0
      %2769 = vmatprep.subr.mxu0 0.0
      %2770 = vmatpush1.xpose.msra.mxu0 %v2765
      %2771 = vmatprep.subr.mxu0 0.0
      %2772 = vmatpush1.xpose.msra.mxu0 %v2767
      %2773 = vmatprep.subr.mxu0 0.0
      %2774 = vmatpush1.xpose.msra.mxu0 0.0
      %2775 = vmatprep.subr.mxu0 0.0
      %2776 = vmatpush1.xpose.msra.mxu0 0.0
      %2777 = vmatprep.subr.mxu0 0.0
      %2778 = vmatpush1.xpose.msra.mxu0 0.0
      %2779 = vmatprep.subr.mxu0 0.0
      %2780 = vmatpush1.xpose.msra.mxu0 0.0
      %2781 = vmatprep.subr.mxu0 0.0
      %2782 = vmatpush1.xpose.msra.mxu0 0.0
      %2783 = vmatprep.subr.mxu0 0.0
      %2784 = vmatpush1.xpose.msra.mxu0 0.0
      %2785 = vmatprep.subr.mxu0 0.0
      %2786 = vmatpush1.xpose.msra.mxu0 0.0
      %2787 = vmatprep.subr.mxu0 0.0
      %2788 = vmatpush1.xpose.msra.mxu0 0.0
      %2789 = vmatprep.subr.mxu0 0.0
      %2790 = vmatpush1.xpose.msra.mxu0 0.0
      %2791 = vmatprep.subr.mxu0 0.0
      %2792 = vmatpush1.xpose.msra.mxu0 0.0
      %2793 = vmatprep.subr.mxu0 0.0
      %2794 = vmatpush1.xpose.msra.mxu0 0.0
      %2795 = vmatprep.subr.mxu0 0.0
      %2796 = vmatpush1.xpose.msra.mxu0 0.0
      %2797 = vmatprep.subr.mxu0 0.0
      %2798 = vmatpush1.xpose.msra.mxu0 0.0
      %2799 = vmatprep.subr.mxu0 0.0
      %2800 = vmatpush1.xpose.msra.mxu0 0.0
      %2801 = vmatprep.subr.mxu0 0.0
      %2802 = vmatpush1.xpose.msra.mxu0 0.0
      %2803 = vmatprep.subr.mxu0 0.0
      %2804 = vmatpush1.xpose.msra.mxu0 0.0
      %2805 = vmatprep.subr.mxu0 0.0
      %2806 = vmatpush1.xpose.msra.mxu0 0.0
      %2807 = vmatprep.subr.mxu0 0.0
      %2808 = vmatpush1.xpose.msra.mxu0 0.0
      %2809 = vmatprep.subr.mxu0 0.0
      %2810 = vmatpush1.xpose.msra.mxu0 0.0
      %2811 = vmatprep.subr.mxu0 0.0
      %2812 = vmatpush1.xpose.msra.mxu0 0.0
      %2813 = vmatprep.subr.mxu0 0.0
      %2814 = vmatpush1.xpose.msra.mxu0 0.0
      %2815 = vmatprep.subr.mxu0 0.0
      %2816 = vmatpush1.xpose.msra.mxu0 0.0
      %2817 = vmatprep.subr.mxu0 0.0
      %2818 = vmatpush1.xpose.msra.mxu0 0.0
      %2819 = vmatprep.subr.mxu0 0.0
      %2820 = vmatpush1.xpose.msra.mxu0 0.0
      %2821 = vmatprep.subr.mxu0 0.0
      %2822 = vmatpush1.xpose.msra.mxu0 0.0
      %2823 = vmatprep.subr.mxu0 0.0
      %2824 = vmatpush1.xpose.msra.mxu0 0.0
      %2825 = vmatprep.subr.mxu0 0.0
      %2826 = vmatpush1.xpose.msra.mxu0 0.0
      %2827 = vmatprep.subr.mxu0 0.0
      %2828 = vmatpush1.xpose.msra.mxu0 0.0
      %2829 = vmatprep.subr.mxu0 0.0
      %2830 = vmatpush1.xpose.msra.mxu0 0.0
      %2831 = vmatprep.subr.mxu0 0.0
      %2832 = vmatpush1.xpose.msra.mxu0 0.0
      %2833 = vmatprep.mubr.f32.mxu0 0.0
      %2834 = vmatmul.mubr.f32.gmra.mrb[0].mxu0 %v2761
      %v2835 = vpop.f32.mrb[0].mxu0
      %v2836 = vadd.f32 0.0, %v2835
      %v2837 = vpop.f32.mrb[0].mxu0
      %2838 = vmatprep.mubr.f32.mxu0 0.0
      %2839 = vmatmul.mubr.f32.gmra.mrb[0].mxu0 %v2763
      %v2840 = vpop.f32.mrb[0].mxu0
      %v2841 = vadd.f32 0.0, %v2840
      %v2842 = vpop.f32.mrb[0].mxu0
      %2843 = vdwg.mxu0
      %v2844 = vsel %vm1243, %v2199, -inf
      %2845 = vmax.xlane.f32.xlu0 %v2844
      %v2846 = vpop.xlane.xlu0 %2845
      %v2847 = vsel %vm1243, %v2204, -inf
      %2848 = vmax.xlane.f32.xlu0 %v2847
      %v2849 = vpop.xlane.xlu0 %2848
      %v2850 = vsel %vm1243, %v2290, -inf
      %2851 = vmax.xlane.f32.xlu0 %v2850
      %v2852 = vpop.xlane.xlu0 %2851
      %v2853 = vsel %vm1243, %v2295, -inf
      %2854 = vmax.xlane.f32.xlu0 %v2853
      %v2855 = vpop.xlane.xlu0 %2854
      %v2856 = vsel %vm1243, %v2381, -inf
      %2857 = vmax.xlane.f32.xlu0 %v2856
      %v2858 = vpop.xlane.xlu0 %2857
      %v2859 = vsel %vm1243, %v2386, -inf
      %2860 = vmax.xlane.f32.xlu0 %v2859
      %v2861 = vpop.xlane.xlu0 %2860
      %v2862 = vsel %vm1243, %v2472, -inf
      %2863 = vmax.xlane.f32.xlu0 %v2862
      %v2864 = vpop.xlane.xlu0 %2863
      %v2865 = vsel %vm1243, %v2477, -inf
      %2866 = vmax.xlane.f32.xlu0 %v2865
      %v2867 = vpop.xlane.xlu0 %2866
      %v2868 = vsel %vm1243, %v2563, -inf
      %2869 = vmax.xlane.f32.xlu0 %v2868
      %v2870 = vpop.xlane.xlu0 %2869
      %v2871 = vsel %vm1243, %v2568, -inf
      %2872 = vmax.xlane.f32.xlu0 %v2871
      %v2873 = vpop.xlane.xlu0 %2872
      %v2874 = vsel %vm1243, %v2654, -inf
      %2875 = vmax.xlane.f32.xlu0 %v2874
      %v2876 = vpop.xlane.xlu0 %2875
      %v2877 = vsel %vm1243, %v2659, -inf
      %2878 = vmax.xlane.f32.xlu0 %v2877
      %v2879 = vpop.xlane.xlu0 %2878
      %v2880 = vsel %vm1243, %v2745, -inf
      %2881 = vmax.xlane.f32.xlu0 %v2880
      %v2882 = vpop.xlane.xlu0 %2881
      %v2883 = vsel %vm1243, %v2750, -inf
      %2884 = vmax.xlane.f32.xlu0 %v2883
      %v2885 = vpop.xlane.xlu0 %2884
      %v2886 = vsel %vm1243, %v2836, -inf
      %2887 = vmax.xlane.f32.xlu0 %v2886
      %v2888 = vpop.xlane.xlu0 %2887
      %v2889 = vsel %vm1243, %v2841, -inf
      %2890 = vmax.xlane.f32.xlu0 %v2889
      %v2891 = vpop.xlane.xlu0 %2890
      %v2892 = vsub.f32 %v2199, %v2846
      %v2893 = vsub.f32 %v2204, %v2849
      %v2894 = vsub.f32 %v2290, %v2852
      %v2895 = vsub.f32 %v2295, %v2855
      %v2896 = vsub.f32 %v2381, %v2858
      %v2897 = vsub.f32 %v2386, %v2861
      %v2898 = vsub.f32 %v2472, %v2864
      %v2899 = vsub.f32 %v2477, %v2867
      %v2900 = vsub.f32 %v2563, %v2870
      %v2901 = vsub.f32 %v2568, %v2873
      %v2902 = vsub.f32 %v2654, %v2876
      %v2903 = vsub.f32 %v2659, %v2879
      %v2904 = vsub.f32 %v2745, %v2882
      %v2905 = vsub.f32 %v2750, %v2885
      %v2906 = vsub.f32 %v2836, %v2888
      %v2907 = vsub.f32 %v2841, %v2891
      %v2908 = vmul.f32 %v2892, 1.442695
      %v2909 = vpow.pop %v2908
      %v2910 = vmul.f32 %v2893, 1.442695
      %v2911 = vpow.pop %v2910
      %v2912 = vmul.f32 %v2894, 1.442695
      %v2913 = vpow.pop %v2912
      %v2914 = vmul.f32 %v2895, 1.442695
      %v2915 = vpow.pop %v2914
      %v2916 = vmul.f32 %v2896, 1.442695
      %v2917 = vpow.pop %v2916
      %v2918 = vmul.f32 %v2897, 1.442695
      %v2919 = vpow.pop %v2918
      %v2920 = vmul.f32 %v2898, 1.442695
      %v2921 = vpow.pop %v2920
      %v2922 = vmul.f32 %v2899, 1.442695
      %v2923 = vpow.pop %v2922
      %v2924 = vmul.f32 %v2900, 1.442695
      %v2925 = vpow.pop %v2924
      %v2926 = vmul.f32 %v2901, 1.442695
      %v2927 = vpow.pop %v2926
      %v2928 = vmul.f32 %v2902, 1.442695
      %v2929 = vpow.pop %v2928
      %v2930 = vmul.f32 %v2903, 1.442695
      %v2931 = vpow.pop %v2930
      %v2932 = vmul.f32 %v2904, 1.442695
      %v2933 = vpow.pop %v2932
      %v2934 = vmul.f32 %v2905, 1.442695
      %v2935 = vpow.pop %v2934
      %v2936 = vmul.f32 %v2906, 1.442695
      %v2937 = vpow.pop %v2936
      %v2938 = vmul.f32 %v2907, 1.442695
      %v2939 = vpow.pop %v2938
      %v2940 = vsel %vm1243, %v2909, 0.0
      %2941 = vadd.xlane.f32.xlu0 %v2940
      %v2942 = vpop.xlane.xlu0 %2941
      %v2943 = vsel %vm1243, %v2911, 0.0
      %2944 = vadd.xlane.f32.xlu0 %v2943
      %v2945 = vpop.xlane.xlu0 %2944
      %v2946 = vsel %vm1243, %v2913, 0.0
      %2947 = vadd.xlane.f32.xlu0 %v2946
      %v2948 = vpop.xlane.xlu0 %2947
      %v2949 = vsel %vm1243, %v2915, 0.0
      %2950 = vadd.xlane.f32.xlu0 %v2949
      %v2951 = vpop.xlane.xlu0 %2950
      %v2952 = vsel %vm1243, %v2917, 0.0
      %2953 = vadd.xlane.f32.xlu0 %v2952
      %v2954 = vpop.xlane.xlu0 %2953
      %v2955 = vsel %vm1243, %v2919, 0.0
      %2956 = vadd.xlane.f32.xlu0 %v2955
      %v2957 = vpop.xlane.xlu0 %2956
      %v2958 = vsel %vm1243, %v2921, 0.0
      %2959 = vadd.xlane.f32.xlu0 %v2958
      %v2960 = vpop.xlane.xlu0 %2959
      %v2961 = vsel %vm1243, %v2923, 0.0
      %2962 = vadd.xlane.f32.xlu0 %v2961
      %v2963 = vpop.xlane.xlu0 %2962
      %v2964 = vsel %vm1243, %v2925, 0.0
      %2965 = vadd.xlane.f32.xlu0 %v2964
      %v2966 = vpop.xlane.xlu0 %2965
      %v2967 = vsel %vm1243, %v2927, 0.0
      %2968 = vadd.xlane.f32.xlu0 %v2967
      %v2969 = vpop.xlane.xlu0 %2968
      %v2970 = vsel %vm1243, %v2929, 0.0
      %2971 = vadd.xlane.f32.xlu0 %v2970
      %v2972 = vpop.xlane.xlu0 %2971
      %v2973 = vsel %vm1243, %v2931, 0.0
      %2974 = vadd.xlane.f32.xlu0 %v2973
      %v2975 = vpop.xlane.xlu0 %2974
      %v2976 = vsel %vm1243, %v2933, 0.0
      %2977 = vadd.xlane.f32.xlu0 %v2976
      %v2978 = vpop.xlane.xlu0 %2977
      %v2979 = vsel %vm1243, %v2935, 0.0
      %2980 = vadd.xlane.f32.xlu0 %v2979
      %v2981 = vpop.xlane.xlu0 %2980
      %v2982 = vsel %vm1243, %v2937, 0.0
      %2983 = vadd.xlane.f32.xlu0 %v2982
      %v2984 = vpop.xlane.xlu0 %2983
      %v2985 = vsel %vm1243, %v2939, 0.0
      %2986 = vadd.xlane.f32.xlu0 %v2985
      %v2987 = vpop.xlane.xlu0 %2986
      %v2988 = vrcp.pop %v2942
      %v2989 = vrcp.pop %v2945
      %v2990 = vrcp.pop %v2948
      %v2991 = vrcp.pop %v2951
      %v2992 = vrcp.pop %v2954
      %v2993 = vrcp.pop %v2957
      %v2994 = vrcp.pop %v2960
      %v2995 = vrcp.pop %v2963
      %v2996 = vrcp.pop %v2966
      %v2997 = vrcp.pop %v2969
      %v2998 = vrcp.pop %v2972
      %v2999 = vrcp.pop %v2975
      %v3000 = vrcp.pop %v2978
      %v3001 = vrcp.pop %v2981
      %v3002 = vrcp.pop %v2984
      %v3003 = vrcp.pop %v2987
      %v3004 = vmul.f32 %v2909, %v2988
      %v3005 = vmul.f32 %v2911, %v2989
      %v3006 = vmul.f32 %v2913, %v2990
      %v3007 = vmul.f32 %v2915, %v2991
      %v3008 = vmul.f32 %v2917, %v2992
      %v3009 = vmul.f32 %v2919, %v2993
      %v3010 = vmul.f32 %v2921, %v2994
      %v3011 = vmul.f32 %v2923, %v2995
      %v3012 = vmul.f32 %v2925, %v2996
      %v3013 = vmul.f32 %v2927, %v2997
      %v3014 = vmul.f32 %v2929, %v2998
      %v3015 = vmul.f32 %v2931, %v2999
      %v3016 = vmul.f32 %v2933, %v3000
      %v3017 = vmul.f32 %v2935, %v3001
      %v3018 = vmul.f32 %v2937, %v3002
      %v3019 = vmul.f32 %v2939, %v3003
      %3020 = vrot.lane.b32.xlu0 %v452, 56
      %v3021 = vpop.permute.xlu0 %3020
      %3022 = vrot.lane.b32.xlu0 %v457, 56
      %v3023 = vpop.permute.xlu0 %3022
      %v3027 = vsel %vm1243, %v3004, 0
      %v3030 = vsel %vm1243, %v3005, 0
      %3032 = vmatprep.subr.mxu0 0.0
      %3033 = vmatpush1.msra.mxu0 %v3021
      %3034 = vmatprep.subr.mxu0 0.0
      %3035 = vmatpush1.msra.mxu0 %v3023
      %3036 = vmatprep.subr.mxu0 0.0
      %3037 = vmatpush1.msra.mxu0 0.0
      %3038 = vmatprep.subr.mxu0 0.0
      %3039 = vmatpush1.msra.mxu0 0.0
      %3040 = vmatprep.subr.mxu0 0.0
      %3041 = vmatpush1.msra.mxu0 0.0
      %3042 = vmatprep.subr.mxu0 0.0
      %3043 = vmatpush1.msra.mxu0 0.0
      %3044 = vmatprep.subr.mxu0 0.0
      %3045 = vmatpush1.msra.mxu0 0.0
      %3046 = vmatprep.subr.mxu0 0.0
      %3047 = vmatpush1.msra.mxu0 0.0
      %3048 = vmatprep.subr.mxu0 0.0
      %3049 = vmatpush1.msra.mxu0 0.0
      %3050 = vmatprep.subr.mxu0 0.0
      %3051 = vmatpush1.msra.mxu0 0.0
      %3052 = vmatprep.subr.mxu0 0.0
      %3053 = vmatpush1.msra.mxu0 0.0
      %3054 = vmatprep.subr.mxu0 0.0
      %3055 = vmatpush1.msra.mxu0 0.0
      %3056 = vmatprep.subr.mxu0 0.0
      %3057 = vmatpush1.msra.mxu0 0.0
      %3058 = vmatprep.subr.mxu0 0.0
      %3059 = vmatpush1.msra.mxu0 0.0
      %3060 = vmatprep.subr.mxu0 0.0
      %3061 = vmatpush1.msra.mxu0 0.0
      %3062 = vmatprep.subr.mxu0 0.0
      %3063 = vmatpush1.msra.mxu0 0.0
      %3064 = vmatprep.subr.mxu0 0.0
      %3065 = vmatpush1.msra.mxu0 0.0
      %3066 = vmatprep.subr.mxu0 0.0
      %3067 = vmatpush1.msra.mxu0 0.0
      %3068 = vmatprep.subr.mxu0 0.0
      %3069 = vmatpush1.msra.mxu0 0.0
      %3070 = vmatprep.subr.mxu0 0.0
      %3071 = vmatpush1.msra.mxu0 0.0
      %3072 = vmatprep.subr.mxu0 0.0
      %3073 = vmatpush1.msra.mxu0 0.0
      %3074 = vmatprep.subr.mxu0 0.0
      %3075 = vmatpush1.msra.mxu0 0.0
      %3076 = vmatprep.subr.mxu0 0.0
      %3077 = vmatpush1.msra.mxu0 0.0
      %3078 = vmatprep.subr.mxu0 0.0
      %3079 = vmatpush1.msra.mxu0 0.0
      %3080 = vmatprep.subr.mxu0 0.0
      %3081 = vmatpush1.msra.mxu0 0.0
      %3082 = vmatprep.subr.mxu0 0.0
      %3083 = vmatpush1.msra.mxu0 0.0
      %3084 = vmatprep.subr.mxu0 0.0
      %3085 = vmatpush1.msra.mxu0 0.0
      %3086 = vmatprep.subr.mxu0 0.0
      %3087 = vmatpush1.msra.mxu0 0.0
      %3088 = vmatprep.subr.mxu0 0.0
      %3089 = vmatpush1.msra.mxu0 0.0
      %3090 = vmatprep.subr.mxu0 0.0
      %3091 = vmatpush1.msra.mxu0 0.0
      %3092 = vmatprep.subr.mxu0 0.0
      %3093 = vmatpush1.msra.mxu0 0.0
      %3094 = vmatprep.subr.mxu0 0.0
      %3095 = vmatpush1.msra.mxu0 0.0
      %3096 = vmatprep.mubr.f32.mxu0 0.0
      %3097 = vmatmul.mubr.f32.gmra.mrb[0].mxu0 %v3027
      %v3098 = vpop.f32.mrb[0].mxu0
      %v3099 = vadd.f32 0.0, %v3098
      %v3100 = vpop.f32.mrb[0].mxu0
      %3101 = vmatprep.mubr.f32.mxu0 0.0
      %3102 = vmatmul.mubr.f32.gmra.mrb[0].mxu0 %v3030
      %v3103 = vpop.f32.mrb[0].mxu0
      %v3104 = vadd.f32 0.0, %v3103
      %v3105 = vpop.f32.mrb[0].mxu0
      %3106 = vdwg.mxu0
      %3107 = vrot.lane.b32.xlu0 %v462, 56
      %v3108 = vpop.permute.xlu0 %3107
      %3109 = vrot.lane.b32.xlu0 %v467, 56
      %v3110 = vpop.permute.xlu0 %3109
      %v3114 = vsel %vm1243, %v3006, 0
      %v3117 = vsel %vm1243, %v3007, 0
      %3119 = vmatprep.subr.mxu0 0.0
      %3120 = vmatpush1.msra.mxu0 %v3108
      %3121 = vmatprep.subr.mxu0 0.0
      %3122 = vmatpush1.msra.mxu0 %v3110
      %3123 = vmatprep.subr.mxu0 0.0
      %3124 = vmatpush1.msra.mxu0 0.0
      %3125 = vmatprep.subr.mxu0 0.0
      %3126 = vmatpush1.msra.mxu0 0.0
      %3127 = vmatprep.subr.mxu0 0.0
      %3128 = vmatpush1.msra.mxu0 0.0
      %3129 = vmatprep.subr.mxu0 0.0
      %3130 = vmatpush1.msra.mxu0 0.0
      %3131 = vmatprep.subr.mxu0 0.0
      %3132 = vmatpush1.msra.mxu0 0.0
      %3133 = vmatprep.subr.mxu0 0.0
      %3134 = vmatpush1.msra.mxu0 0.0
      %3135 = vmatprep.subr.mxu0 0.0
      %3136 = vmatpush1.msra.mxu0 0.0
      %3137 = vmatprep.subr.mxu0 0.0
      %3138 = vmatpush1.msra.mxu0 0.0
      %3139 = vmatprep.subr.mxu0 0.0
      %3140 = vmatpush1.msra.mxu0 0.0
      %3141 = vmatprep.subr.mxu0 0.0
      %3142 = vmatpush1.msra.mxu0 0.0
      %3143 = vmatprep.subr.mxu0 0.0
      %3144 = vmatpush1.msra.mxu0 0.0
      %3145 = vmatprep.subr.mxu0 0.0
      %3146 = vmatpush1.msra.mxu0 0.0
      %3147 = vmatprep.subr.mxu0 0.0
      %3148 = vmatpush1.msra.mxu0 0.0
      %3149 = vmatprep.subr.mxu0 0.0
      %3150 = vmatpush1.msra.mxu0 0.0
      %3151 = vmatprep.subr.mxu0 0.0
      %3152 = vmatpush1.msra.mxu0 0.0
      %3153 = vmatprep.subr.mxu0 0.0
      %3154 = vmatpush1.msra.mxu0 0.0
      %3155 = vmatprep.subr.mxu0 0.0
      %3156 = vmatpush1.msra.mxu0 0.0
      %3157 = vmatprep.subr.mxu0 0.0
      %3158 = vmatpush1.msra.mxu0 0.0
      %3159 = vmatprep.subr.mxu0 0.0
      %3160 = vmatpush1.msra.mxu0 0.0
      %3161 = vmatprep.subr.mxu0 0.0
      %3162 = vmatpush1.msra.mxu0 0.0
      %3163 = vmatprep.subr.mxu0 0.0
      %3164 = vmatpush1.msra.mxu0 0.0
      %3165 = vmatprep.subr.mxu0 0.0
      %3166 = vmatpush1.msra.mxu0 0.0
      %3167 = vmatprep.subr.mxu0 0.0
      %3168 = vmatpush1.msra.mxu0 0.0
      %3169 = vmatprep.subr.mxu0 0.0
      %3170 = vmatpush1.msra.mxu0 0.0
      %3171 = vmatprep.subr.mxu0 0.0
      %3172 = vmatpush1.msra.mxu0 0.0
      %3173 = vmatprep.subr.mxu0 0.0
      %3174 = vmatpush1.msra.mxu0 0.0
      %3175 = vmatprep.subr.mxu0 0.0
      %3176 = vmatpush1.msra.mxu0 0.0
      %3177 = vmatprep.subr.mxu0 0.0
      %3178 = vmatpush1.msra.mxu0 0.0
      %3179 = vmatprep.subr.mxu0 0.0
      %3180 = vmatpush1.msra.mxu0 0.0
      %3181 = vmatprep.subr.mxu0 0.0
      %3182 = vmatpush1.msra.mxu0 0.0
      %3183 = vmatprep.mubr.f32.mxu0 0.0
      %3184 = vmatmul.mubr.f32.gmra.mrb[0].mxu0 %v3114
      %v3185 = vpop.f32.mrb[0].mxu0
      %v3186 = vadd.f32 0.0, %v3185
      %v3187 = vpop.f32.mrb[0].mxu0
      %3188 = vmatprep.mubr.f32.mxu0 0.0
      %3189 = vmatmul.mubr.f32.gmra.mrb[0].mxu0 %v3117
      %v3190 = vpop.f32.mrb[0].mxu0
      %v3191 = vadd.f32 0.0, %v3190
      %v3192 = vpop.f32.mrb[0].mxu0
      %3193 = vdwg.mxu0
      %3194 = vrot.lane.b32.xlu0 %v472, 56
      %v3195 = vpop.permute.xlu0 %3194
      %3196 = vrot.lane.b32.xlu0 %v477, 56
      %v3197 = vpop.permute.xlu0 %3196
      %v3201 = vsel %vm1243, %v3008, 0
      %v3204 = vsel %vm1243, %v3009, 0
      %3206 = vmatprep.subr.mxu0 0.0
      %3207 = vmatpush1.msra.mxu0 %v3195
      %3208 = vmatprep.subr.mxu0 0.0
      %3209 = vmatpush1.msra.mxu0 %v3197
      %3210 = vmatprep.subr.mxu0 0.0
      %3211 = vmatpush1.msra.mxu0 0.0
      %3212 = vmatprep.subr.mxu0 0.0
      %3213 = vmatpush1.msra.mxu0 0.0
      %3214 = vmatprep.subr.mxu0 0.0
      %3215 = vmatpush1.msra.mxu0 0.0
      %3216 = vmatprep.subr.mxu0 0.0
      %3217 = vmatpush1.msra.mxu0 0.0
      %3218 = vmatprep.subr.mxu0 0.0
      %3219 = vmatpush1.msra.mxu0 0.0
      %3220 = vmatprep.subr.mxu0 0.0
      %3221 = vmatpush1.msra.mxu0 0.0
      %3222 = vmatprep.subr.mxu0 0.0
      %3223 = vmatpush1.msra.mxu0 0.0
      %3224 = vmatprep.subr.mxu0 0.0
      %3225 = vmatpush1.msra.mxu0 0.0
      %3226 = vmatprep.subr.mxu0 0.0
      %3227 = vmatpush1.msra.mxu0 0.0
      %3228 = vmatprep.subr.mxu0 0.0
      %3229 = vmatpush1.msra.mxu0 0.0
      %3230 = vmatprep.subr.mxu0 0.0
      %3231 = vmatpush1.msra.mxu0 0.0
      %3232 = vmatprep.subr.mxu0 0.0
      %3233 = vmatpush1.msra.mxu0 0.0
      %3234 = vmatprep.subr.mxu0 0.0
      %3235 = vmatpush1.msra.mxu0 0.0
      %3236 = vmatprep.subr.mxu0 0.0
      %3237 = vmatpush1.msra.mxu0 0.0
      %3238 = vmatprep.subr.mxu0 0.0
      %3239 = vmatpush1.msra.mxu0 0.0
      %3240 = vmatprep.subr.mxu0 0.0
      %3241 = vmatpush1.msra.mxu0 0.0
      %3242 = vmatprep.subr.mxu0 0.0
      %3243 = vmatpush1.msra.mxu0 0.0
      %3244 = vmatprep.subr.mxu0 0.0
      %3245 = vmatpush1.msra.mxu0 0.0
      %3246 = vmatprep.subr.mxu0 0.0
      %3247 = vmatpush1.msra.mxu0 0.0
      %3248 = vmatprep.subr.mxu0 0.0
      %3249 = vmatpush1.msra.mxu0 0.0
      %3250 = vmatprep.subr.mxu0 0.0
      %3251 = vmatpush1.msra.mxu0 0.0
      %3252 = vmatprep.subr.mxu0 0.0
      %3253 = vmatpush1.msra.mxu0 0.0
      %3254 = vmatprep.subr.mxu0 0.0
      %3255 = vmatpush1.msra.mxu0 0.0
      %3256 = vmatprep.subr.mxu0 0.0
      %3257 = vmatpush1.msra.mxu0 0.0
      %3258 = vmatprep.subr.mxu0 0.0
      %3259 = vmatpush1.msra.mxu0 0.0
      %3260 = vmatprep.subr.mxu0 0.0
      %3261 = vmatpush1.msra.mxu0 0.0
      %3262 = vmatprep.subr.mxu0 0.0
      %3263 = vmatpush1.msra.mxu0 0.0
      %3264 = vmatprep.subr.mxu0 0.0
      %3265 = vmatpush1.msra.mxu0 0.0
      %3266 = vmatprep.subr.mxu0 0.0
      %3267 = vmatpush1.msra.mxu0 0.0
      %3268 = vmatprep.subr.mxu0 0.0
      %3269 = vmatpush1.msra.mxu0 0.0
      %3270 = vmatprep.mubr.f32.mxu0 0.0
      %3271 = vmatmul.mubr.f32.gmra.mrb[0].mxu0 %v3201
      %v3272 = vpop.f32.mrb[0].mxu0
      %v3273 = vadd.f32 0.0, %v3272
      %v3274 = vpop.f32.mrb[0].mxu0
      %3275 = vmatprep.mubr.f32.mxu0 0.0
      %3276 = vmatmul.mubr.f32.gmra.mrb[0].mxu0 %v3204
      %v3277 = vpop.f32.mrb[0].mxu0
      %v3278 = vadd.f32 0.0, %v3277
      %v3279 = vpop.f32.mrb[0].mxu0
      %3280 = vdwg.mxu0
      %3281 = vrot.lane.b32.xlu0 %v482, 56
      %v3282 = vpop.permute.xlu0 %3281
      %3283 = vrot.lane.b32.xlu0 %v487, 56
      %v3284 = vpop.permute.xlu0 %3283
      %v3288 = vsel %vm1243, %v3010, 0
      %v3291 = vsel %vm1243, %v3011, 0
      %3293 = vmatprep.subr.mxu0 0.0
      %3294 = vmatpush1.msra.mxu0 %v3282
      %3295 = vmatprep.subr.mxu0 0.0
      %3296 = vmatpush1.msra.mxu0 %v3284
      %3297 = vmatprep.subr.mxu0 0.0
      %3298 = vmatpush1.msra.mxu0 0.0
      %3299 = vmatprep.subr.mxu0 0.0
      %3300 = vmatpush1.msra.mxu0 0.0
      %3301 = vmatprep.subr.mxu0 0.0
      %3302 = vmatpush1.msra.mxu0 0.0
      %3303 = vmatprep.subr.mxu0 0.0
      %3304 = vmatpush1.msra.mxu0 0.0
      %3305 = vmatprep.subr.mxu0 0.0
      %3306 = vmatpush1.msra.mxu0 0.0
      %3307 = vmatprep.subr.mxu0 0.0
      %3308 = vmatpush1.msra.mxu0 0.0
      %3309 = vmatprep.subr.mxu0 0.0
      %3310 = vmatpush1.msra.mxu0 0.0
      %3311 = vmatprep.subr.mxu0 0.0
      %3312 = vmatpush1.msra.mxu0 0.0
      %3313 = vmatprep.subr.mxu0 0.0
      %3314 = vmatpush1.msra.mxu0 0.0
      %3315 = vmatprep.subr.mxu0 0.0
      %3316 = vmatpush1.msra.mxu0 0.0
      %3317 = vmatprep.subr.mxu0 0.0
      %3318 = vmatpush1.msra.mxu0 0.0
      %3319 = vmatprep.subr.mxu0 0.0
      %3320 = vmatpush1.msra.mxu0 0.0
      %3321 = vmatprep.subr.mxu0 0.0
      %3322 = vmatpush1.msra.mxu0 0.0
      %3323 = vmatprep.subr.mxu0 0.0
      %3324 = vmatpush1.msra.mxu0 0.0
      %3325 = vmatprep.subr.mxu0 0.0
      %3326 = vmatpush1.msra.mxu0 0.0
      %3327 = vmatprep.subr.mxu0 0.0
      %3328 = vmatpush1.msra.mxu0 0.0
      %3329 = vmatprep.subr.mxu0 0.0
      %3330 = vmatpush1.msra.mxu0 0.0
      %3331 = vmatprep.subr.mxu0 0.0
      %3332 = vmatpush1.msra.mxu0 0.0
      %3333 = vmatprep.subr.mxu0 0.0
      %3334 = vmatpush1.msra.mxu0 0.0
      %3335 = vmatprep.subr.mxu0 0.0
      %3336 = vmatpush1.msra.mxu0 0.0
      %3337 = vmatprep.subr.mxu0 0.0
      %3338 = vmatpush1.msra.mxu0 0.0
      %3339 = vmatprep.subr.mxu0 0.0
      %3340 = vmatpush1.msra.mxu0 0.0
      %3341 = vmatprep.subr.mxu0 0.0
      %3342 = vmatpush1.msra.mxu0 0.0
      %3343 = vmatprep.subr.mxu0 0.0
      %3344 = vmatpush1.msra.mxu0 0.0
      %3345 = vmatprep.subr.mxu0 0.0
      %3346 = vmatpush1.msra.mxu0 0.0
      %3347 = vmatprep.subr.mxu0 0.0
      %3348 = vmatpush1.msra.mxu0 0.0
      %3349 = vmatprep.subr.mxu0 0.0
      %3350 = vmatpush1.msra.mxu0 0.0
      %3351 = vmatprep.subr.mxu0 0.0
      %3352 = vmatpush1.msra.mxu0 0.0
      %3353 = vmatprep.subr.mxu0 0.0
      %3354 = vmatpush1.msra.mxu0 0.0
      %3355 = vmatprep.subr.mxu0 0.0
      %3356 = vmatpush1.msra.mxu0 0.0
      %3357 = vmatprep.mubr.f32.mxu0 0.0
      %3358 = vmatmul.mubr.f32.gmra.mrb[0].mxu0 %v3288
      %v3359 = vpop.f32.mrb[0].mxu0
      %v3360 = vadd.f32 0.0, %v3359
      %v3361 = vpop.f32.mrb[0].mxu0
      %3362 = vmatprep.mubr.f32.mxu0 0.0
      %3363 = vmatmul.mubr.f32.gmra.mrb[0].mxu0 %v3291
      %v3364 = vpop.f32.mrb[0].mxu0
      %v3365 = vadd.f32 0.0, %v3364
      %v3366 = vpop.f32.mrb[0].mxu0
      %3367 = vdwg.mxu0
      %3368 = vrot.lane.b32.xlu0 %v492, 56
      %v3369 = vpop.permute.xlu0 %3368
      %3370 = vrot.lane.b32.xlu0 %v497, 56
      %v3371 = vpop.permute.xlu0 %3370
      %v3375 = vsel %vm1243, %v3012, 0
      %v3378 = vsel %vm1243, %v3013, 0
      %3380 = vmatprep.subr.mxu0 0.0
      %3381 = vmatpush1.msra.mxu0 %v3369
      %3382 = vmatprep.subr.mxu0 0.0
      %3383 = vmatpush1.msra.mxu0 %v3371
      %3384 = vmatprep.subr.mxu0 0.0
      %3385 = vmatpush1.msra.mxu0 0.0
      %3386 = vmatprep.subr.mxu0 0.0
      %3387 = vmatpush1.msra.mxu0 0.0
      %3388 = vmatprep.subr.mxu0 0.0
      %3389 = vmatpush1.msra.mxu0 0.0
      %3390 = vmatprep.subr.mxu0 0.0
      %3391 = vmatpush1.msra.mxu0 0.0
      %3392 = vmatprep.subr.mxu0 0.0
      %3393 = vmatpush1.msra.mxu0 0.0
      %3394 = vmatprep.subr.mxu0 0.0
      %3395 = vmatpush1.msra.mxu0 0.0
      %3396 = vmatprep.subr.mxu0 0.0
      %3397 = vmatpush1.msra.mxu0 0.0
      %3398 = vmatprep.subr.mxu0 0.0
      %3399 = vmatpush1.msra.mxu0 0.0
      %3400 = vmatprep.subr.mxu0 0.0
      %3401 = vmatpush1.msra.mxu0 0.0
      %3402 = vmatprep.subr.mxu0 0.0
      %3403 = vmatpush1.msra.mxu0 0.0
      %3404 = vmatprep.subr.mxu0 0.0
      %3405 = vmatpush1.msra.mxu0 0.0
      %3406 = vmatprep.subr.mxu0 0.0
      %3407 = vmatpush1.msra.mxu0 0.0
      %3408 = vmatprep.subr.mxu0 0.0
      %3409 = vmatpush1.msra.mxu0 0.0
      %3410 = vmatprep.subr.mxu0 0.0
      %3411 = vmatpush1.msra.mxu0 0.0
      %3412 = vmatprep.subr.mxu0 0.0
      %3413 = vmatpush1.msra.mxu0 0.0
      %3414 = vmatprep.subr.mxu0 0.0
      %3415 = vmatpush1.msra.mxu0 0.0
      %3416 = vmatprep.subr.mxu0 0.0
      %3417 = vmatpush1.msra.mxu0 0.0
      %3418 = vmatprep.subr.mxu0 0.0
      %3419 = vmatpush1.msra.mxu0 0.0
      %3420 = vmatprep.subr.mxu0 0.0
      %3421 = vmatpush1.msra.mxu0 0.0
      %3422 = vmatprep.subr.mxu0 0.0
      %3423 = vmatpush1.msra.mxu0 0.0
      %3424 = vmatprep.subr.mxu0 0.0
      %3425 = vmatpush1.msra.mxu0 0.0
      %3426 = vmatprep.subr.mxu0 0.0
      %3427 = vmatpush1.msra.mxu0 0.0
      %3428 = vmatprep.subr.mxu0 0.0
      %3429 = vmatpush1.msra.mxu0 0.0
      %3430 = vmatprep.subr.mxu0 0.0
      %3431 = vmatpush1.msra.mxu0 0.0
      %3432 = vmatprep.subr.mxu0 0.0
      %3433 = vmatpush1.msra.mxu0 0.0
      %3434 = vmatprep.subr.mxu0 0.0
      %3435 = vmatpush1.msra.mxu0 0.0
      %3436 = vmatprep.subr.mxu0 0.0
      %3437 = vmatpush1.msra.mxu0 0.0
      %3438 = vmatprep.subr.mxu0 0.0
      %3439 = vmatpush1.msra.mxu0 0.0
      %3440 = vmatprep.subr.mxu0 0.0
      %3441 = vmatpush1.msra.mxu0 0.0
      %3442 = vmatprep.subr.mxu0 0.0
      %3443 = vmatpush1.msra.mxu0 0.0
      %3444 = vmatprep.mubr.f32.mxu0 0.0
      %3445 = vmatmul.mubr.f32.gmra.mrb[0].mxu0 %v3375
      %v3446 = vpop.f32.mrb[0].mxu0
      %v3447 = vadd.f32 0.0, %v3446
      %v3448 = vpop.f32.mrb[0].mxu0
      %3449 = vmatprep.mubr.f32.mxu0 0.0
      %3450 = vmatmul.mubr.f32.gmra.mrb[0].mxu0 %v3378
      %v3451 = vpop.f32.mrb[0].mxu0
      %v3452 = vadd.f32 0.0, %v3451
      %v3453 = vpop.f32.mrb[0].mxu0
      %3454 = vdwg.mxu0
      %3455 = vrot.lane.b32.xlu0 %v502, 56
      %v3456 = vpop.permute.xlu0 %3455
      %3457 = vrot.lane.b32.xlu0 %v507, 56
      %v3458 = vpop.permute.xlu0 %3457
      %v3462 = vsel %vm1243, %v3014, 0
      %v3465 = vsel %vm1243, %v3015, 0
      %3467 = vmatprep.subr.mxu0 0.0
      %3468 = vmatpush1.msra.mxu0 %v3456
      %3469 = vmatprep.subr.mxu0 0.0
      %3470 = vmatpush1.msra.mxu0 %v3458
      %3471 = vmatprep.subr.mxu0 0.0
      %3472 = vmatpush1.msra.mxu0 0.0
      %3473 = vmatprep.subr.mxu0 0.0
      %3474 = vmatpush1.msra.mxu0 0.0
      %3475 = vmatprep.subr.mxu0 0.0
      %3476 = vmatpush1.msra.mxu0 0.0
      %3477 = vmatprep.subr.mxu0 0.0
      %3478 = vmatpush1.msra.mxu0 0.0
      %3479 = vmatprep.subr.mxu0 0.0
      %3480 = vmatpush1.msra.mxu0 0.0
      %3481 = vmatprep.subr.mxu0 0.0
      %3482 = vmatpush1.msra.mxu0 0.0
      %3483 = vmatprep.subr.mxu0 0.0
      %3484 = vmatpush1.msra.mxu0 0.0
      %3485 = vmatprep.subr.mxu0 0.0
      %3486 = vmatpush1.msra.mxu0 0.0
      %3487 = vmatprep.subr.mxu0 0.0
      %3488 = vmatpush1.msra.mxu0 0.0
      %3489 = vmatprep.subr.mxu0 0.0
      %3490 = vmatpush1.msra.mxu0 0.0
      %3491 = vmatprep.subr.mxu0 0.0
      %3492 = vmatpush1.msra.mxu0 0.0
      %3493 = vmatprep.subr.mxu0 0.0
      %3494 = vmatpush1.msra.mxu0 0.0
      %3495 = vmatprep.subr.mxu0 0.0
      %3496 = vmatpush1.msra.mxu0 0.0
      %3497 = vmatprep.subr.mxu0 0.0
      %3498 = vmatpush1.msra.mxu0 0.0
      %3499 = vmatprep.subr.mxu0 0.0
      %3500 = vmatpush1.msra.mxu0 0.0
      %3501 = vmatprep.subr.mxu0 0.0
      %3502 = vmatpush1.msra.mxu0 0.0
      %3503 = vmatprep.subr.mxu0 0.0
      %3504 = vmatpush1.msra.mxu0 0.0
      %3505 = vmatprep.subr.mxu0 0.0
      %3506 = vmatpush1.msra.mxu0 0.0
      %3507 = vmatprep.subr.mxu0 0.0
      %3508 = vmatpush1.msra.mxu0 0.0
      %3509 = vmatprep.subr.mxu0 0.0
      %3510 = vmatpush1.msra.mxu0 0.0
      %3511 = vmatprep.subr.mxu0 0.0
      %3512 = vmatpush1.msra.mxu0 0.0
      %3513 = vmatprep.subr.mxu0 0.0
      %3514 = vmatpush1.msra.mxu0 0.0
      %3515 = vmatprep.subr.mxu0 0.0
      %3516 = vmatpush1.msra.mxu0 0.0
      %3517 = vmatprep.subr.mxu0 0.0
      %3518 = vmatpush1.msra.mxu0 0.0
      %3519 = vmatprep.subr.mxu0 0.0
      %3520 = vmatpush1.msra.mxu0 0.0
      %3521 = vmatprep.subr.mxu0 0.0
      %3522 = vmatpush1.msra.mxu0 0.0
      %3523 = vmatprep.subr.mxu0 0.0
      %3524 = vmatpush1.msra.mxu0 0.0
      %3525 = vmatprep.subr.mxu0 0.0
      %3526 = vmatpush1.msra.mxu0 0.0
      %3527 = vmatprep.subr.mxu0 0.0
      %3528 = vmatpush1.msra.mxu0 0.0
      %3529 = vmatprep.subr.mxu0 0.0
      %3530 = vmatpush1.msra.mxu0 0.0
      %3531 = vmatprep.mubr.f32.mxu0 0.0
      %3532 = vmatmul.mubr.f32.gmra.mrb[0].mxu0 %v3462
      %v3533 = vpop.f32.mrb[0].mxu0
      %v3534 = vadd.f32 0.0, %v3533
      %v3535 = vpop.f32.mrb[0].mxu0
      %3536 = vmatprep.mubr.f32.mxu0 0.0
      %3537 = vmatmul.mubr.f32.gmra.mrb[0].mxu0 %v3465
      %v3538 = vpop.f32.mrb[0].mxu0
      %v3539 = vadd.f32 0.0, %v3538
      %v3540 = vpop.f32.mrb[0].mxu0
      %3541 = vdwg.mxu0
      %3542 = vrot.lane.b32.xlu0 %v512, 56
      %v3543 = vpop.permute.xlu0 %3542
      %3544 = vrot.lane.b32.xlu0 %v517, 56
      %v3545 = vpop.permute.xlu0 %3544
      %v3549 = vsel %vm1243, %v3016, 0
      %v3552 = vsel %vm1243, %v3017, 0
      %3554 = vmatprep.subr.mxu0 0.0
      %3555 = vmatpush1.msra.mxu0 %v3543
      %3556 = vmatprep.subr.mxu0 0.0
      %3557 = vmatpush1.msra.mxu0 %v3545
      %3558 = vmatprep.subr.mxu0 0.0
      %3559 = vmatpush1.msra.mxu0 0.0
      %3560 = vmatprep.subr.mxu0 0.0
      %3561 = vmatpush1.msra.mxu0 0.0
      %3562 = vmatprep.subr.mxu0 0.0
      %3563 = vmatpush1.msra.mxu0 0.0
      %3564 = vmatprep.subr.mxu0 0.0
      %3565 = vmatpush1.msra.mxu0 0.0
      %3566 = vmatprep.subr.mxu0 0.0
      %3567 = vmatpush1.msra.mxu0 0.0
      %3568 = vmatprep.subr.mxu0 0.0
      %3569 = vmatpush1.msra.mxu0 0.0
      %3570 = vmatprep.subr.mxu0 0.0
      %3571 = vmatpush1.msra.mxu0 0.0
      %3572 = vmatprep.subr.mxu0 0.0
      %3573 = vmatpush1.msra.mxu0 0.0
      %3574 = vmatprep.subr.mxu0 0.0
      %3575 = vmatpush1.msra.mxu0 0.0
      %3576 = vmatprep.subr.mxu0 0.0
      %3577 = vmatpush1.msra.mxu0 0.0
      %3578 = vmatprep.subr.mxu0 0.0
      %3579 = vmatpush1.msra.mxu0 0.0
      %3580 = vmatprep.subr.mxu0 0.0
      %3581 = vmatpush1.msra.mxu0 0.0
      %3582 = vmatprep.subr.mxu0 0.0
      %3583 = vmatpush1.msra.mxu0 0.0
      %3584 = vmatprep.subr.mxu0 0.0
      %3585 = vmatpush1.msra.mxu0 0.0
      %3586 = vmatprep.subr.mxu0 0.0
      %3587 = vmatpush1.msra.mxu0 0.0
      %3588 = vmatprep.subr.mxu0 0.0
      %3589 = vmatpush1.msra.mxu0 0.0
      %3590 = vmatprep.subr.mxu0 0.0
      %3591 = vmatpush1.msra.mxu0 0.0
      %3592 = vmatprep.subr.mxu0 0.0
      %3593 = vmatpush1.msra.mxu0 0.0
      %3594 = vmatprep.subr.mxu0 0.0
      %3595 = vmatpush1.msra.mxu0 0.0
      %3596 = vmatprep.subr.mxu0 0.0
      %3597 = vmatpush1.msra.mxu0 0.0
      %3598 = vmatprep.subr.mxu0 0.0
      %3599 = vmatpush1.msra.mxu0 0.0
      %3600 = vmatprep.subr.mxu0 0.0
      %3601 = vmatpush1.msra.mxu0 0.0
      %3602 = vmatprep.subr.mxu0 0.0
      %3603 = vmatpush1.msra.mxu0 0.0
      %3604 = vmatprep.subr.mxu0 0.0
      %3605 = vmatpush1.msra.mxu0 0.0
      %3606 = vmatprep.subr.mxu0 0.0
      %3607 = vmatpush1.msra.mxu0 0.0
      %3608 = vmatprep.subr.mxu0 0.0
      %3609 = vmatpush1.msra.mxu0 0.0
      %3610 = vmatprep.subr.mxu0 0.0
      %3611 = vmatpush1.msra.mxu0 0.0
      %3612 = vmatprep.subr.mxu0 0.0
      %3613 = vmatpush1.msra.mxu0 0.0
      %3614 = vmatprep.subr.mxu0 0.0
      %3615 = vmatpush1.msra.mxu0 0.0
      %3616 = vmatprep.subr.mxu0 0.0
      %3617 = vmatpush1.msra.mxu0 0.0
      %3618 = vmatprep.mubr.f32.mxu0 0.0
      %3619 = vmatmul.mubr.f32.gmra.mrb[0].mxu0 %v3549
      %v3620 = vpop.f32.mrb[0].mxu0
      %v3621 = vadd.f32 0.0, %v3620
      %v3622 = vpop.f32.mrb[0].mxu0
      %3623 = vmatprep.mubr.f32.mxu0 0.0
      %3624 = vmatmul.mubr.f32.gmra.mrb[0].mxu0 %v3552
      %v3625 = vpop.f32.mrb[0].mxu0
      %v3626 = vadd.f32 0.0, %v3625
      %v3627 = vpop.f32.mrb[0].mxu0
      %3628 = vdwg.mxu0
      %3629 = vrot.lane.b32.xlu0 %v522, 56
      %v3630 = vpop.permute.xlu0 %3629
      %3631 = vrot.lane.b32.xlu0 %v527, 56
      %v3632 = vpop.permute.xlu0 %3631
      %v3636 = vsel %vm1243, %v3018, 0
      %v3639 = vsel %vm1243, %v3019, 0
      %3641 = vmatprep.subr.mxu0 0.0
      %3642 = vmatpush1.msra.mxu0 %v3630
      %3643 = vmatprep.subr.mxu0 0.0
      %3644 = vmatpush1.msra.mxu0 %v3632
      %3645 = vmatprep.subr.mxu0 0.0
      %3646 = vmatpush1.msra.mxu0 0.0
      %3647 = vmatprep.subr.mxu0 0.0
      %3648 = vmatpush1.msra.mxu0 0.0
      %3649 = vmatprep.subr.mxu0 0.0
      %3650 = vmatpush1.msra.mxu0 0.0
      %3651 = vmatprep.subr.mxu0 0.0
      %3652 = vmatpush1.msra.mxu0 0.0
      %3653 = vmatprep.subr.mxu0 0.0
      %3654 = vmatpush1.msra.mxu0 0.0
      %3655 = vmatprep.subr.mxu0 0.0
      %3656 = vmatpush1.msra.mxu0 0.0
      %3657 = vmatprep.subr.mxu0 0.0
      %3658 = vmatpush1.msra.mxu0 0.0
      %3659 = vmatprep.subr.mxu0 0.0
      %3660 = vmatpush1.msra.mxu0 0.0
      %3661 = vmatprep.subr.mxu0 0.0
      %3662 = vmatpush1.msra.mxu0 0.0
      %3663 = vmatprep.subr.mxu0 0.0
      %3664 = vmatpush1.msra.mxu0 0.0
      %3665 = vmatprep.subr.mxu0 0.0
      %3666 = vmatpush1.msra.mxu0 0.0
      %3667 = vmatprep.subr.mxu0 0.0
      %3668 = vmatpush1.msra.mxu0 0.0
      %3669 = vmatprep.subr.mxu0 0.0
      %3670 = vmatpush1.msra.mxu0 0.0
      %3671 = vmatprep.subr.mxu0 0.0
      %3672 = vmatpush1.msra.mxu0 0.0
      %3673 = vmatprep.subr.mxu0 0.0
      %3674 = vmatpush1.msra.mxu0 0.0
      %3675 = vmatprep.subr.mxu0 0.0
      %3676 = vmatpush1.msra.mxu0 0.0
      %3677 = vmatprep.subr.mxu0 0.0
      %3678 = vmatpush1.msra.mxu0 0.0
      %3679 = vmatprep.subr.mxu0 0.0
      %3680 = vmatpush1.msra.mxu0 0.0
      %3681 = vmatprep.subr.mxu0 0.0
      %3682 = vmatpush1.msra.mxu0 0.0
      %3683 = vmatprep.subr.mxu0 0.0
      %3684 = vmatpush1.msra.mxu0 0.0
      %3685 = vmatprep.subr.mxu0 0.0
      %3686 = vmatpush1.msra.mxu0 0.0
      %3687 = vmatprep.subr.mxu0 0.0
      %3688 = vmatpush1.msra.mxu0 0.0
      %3689 = vmatprep.subr.mxu0 0.0
      %3690 = vmatpush1.msra.mxu0 0.0
      %3691 = vmatprep.subr.mxu0 0.0
      %3692 = vmatpush1.msra.mxu0 0.0
      %3693 = vmatprep.subr.mxu0 0.0
      %3694 = vmatpush1.msra.mxu0 0.0
      %3695 = vmatprep.subr.mxu0 0.0
      %3696 = vmatpush1.msra.mxu0 0.0
      %3697 = vmatprep.subr.mxu0 0.0
      %3698 = vmatpush1.msra.mxu0 0.0
      %3699 = vmatprep.subr.mxu0 0.0
      %3700 = vmatpush1.msra.mxu0 0.0
      %3701 = vmatprep.subr.mxu0 0.0
      %3702 = vmatpush1.msra.mxu0 0.0
      %3703 = vmatprep.subr.mxu0 0.0
      %3704 = vmatpush1.msra.mxu0 0.0
      %3705 = vmatprep.mubr.f32.mxu0 0.0
      %3706 = vmatmul.mubr.f32.gmra.mrb[0].mxu0 %v3636
      %v3707 = vpop.f32.mrb[0].mxu0
      %v3708 = vadd.f32 0.0, %v3707
      %v3709 = vpop.f32.mrb[0].mxu0
      %3710 = vmatprep.mubr.f32.mxu0 0.0
      %3711 = vmatmul.mubr.f32.gmra.mrb[0].mxu0 %v3639
      %v3712 = vpop.f32.mrb[0].mxu0
      %v3713 = vadd.f32 0.0, %v3712
      %v3714 = vpop.f32.mrb[0].mxu0
      %3715 = vdwg.mxu0
      %3716 = vrot.lane.b32.xlu0 %v452, 112
      %v3717 = vpop.permute.xlu0 %3716
      %3718 = vrot.lane.b32.xlu0 %v457, 112
      %v3719 = vpop.permute.xlu0 %3718
      %3720 = vrot.lane.b32.xlu0 %v452, 80
      %v3721 = vpop.permute.xlu0 %3720
      %3722 = vrot.lane.b32.xlu0 %v457, 80
      %v3723 = vpop.permute.xlu0 %3722
      %v3724 = vsel %vm536, %v3717, 0
      %v3726 = vsel %vm536, %v3719, 0
      %v3728 = vsel %vm536, %v3721, 0
      %v3730 = vsel %vm536, %v3723, 0
      %3732 = vmatprep.subr.mxu0 0.0
      %3733 = vmatpush1.xpose.msra.mxu0 %v3728
      %3734 = vmatprep.subr.mxu0 0.0
      %3735 = vmatpush1.xpose.msra.mxu0 %v3730
      %3736 = vmatprep.subr.mxu0 0.0
      %3737 = vmatpush1.xpose.msra.mxu0 0.0
      %3738 = vmatprep.subr.mxu0 0.0
      %3739 = vmatpush1.xpose.msra.mxu0 0.0
      %3740 = vmatprep.subr.mxu0 0.0
      %3741 = vmatpush1.xpose.msra.mxu0 0.0
      %3742 = vmatprep.subr.mxu0 0.0
      %3743 = vmatpush1.xpose.msra.mxu0 0.0
      %3744 = vmatprep.subr.mxu0 0.0
      %3745 = vmatpush1.xpose.msra.mxu0 0.0
      %3746 = vmatprep.subr.mxu0 0.0
      %3747 = vmatpush1.xpose.msra.mxu0 0.0
      %3748 = vmatprep.subr.mxu0 0.0
      %3749 = vmatpush1.xpose.msra.mxu0 0.0
      %3750 = vmatprep.subr.mxu0 0.0
      %3751 = vmatpush1.xpose.msra.mxu0 0.0
      %3752 = vmatprep.subr.mxu0 0.0
      %3753 = vmatpush1.xpose.msra.mxu0 0.0
      %3754 = vmatprep.subr.mxu0 0.0
      %3755 = vmatpush1.xpose.msra.mxu0 0.0
      %3756 = vmatprep.subr.mxu0 0.0
      %3757 = vmatpush1.xpose.msra.mxu0 0.0
      %3758 = vmatprep.subr.mxu0 0.0
      %3759 = vmatpush1.xpose.msra.mxu0 0.0
      %3760 = vmatprep.subr.mxu0 0.0
      %3761 = vmatpush1.xpose.msra.mxu0 0.0
      %3762 = vmatprep.subr.mxu0 0.0
      %3763 = vmatpush1.xpose.msra.mxu0 0.0
      %3764 = vmatprep.subr.mxu0 0.0
      %3765 = vmatpush1.xpose.msra.mxu0 0.0
      %3766 = vmatprep.subr.mxu0 0.0
      %3767 = vmatpush1.xpose.msra.mxu0 0.0
      %3768 = vmatprep.subr.mxu0 0.0
      %3769 = vmatpush1.xpose.msra.mxu0 0.0
      %3770 = vmatprep.subr.mxu0 0.0
      %3771 = vmatpush1.xpose.msra.mxu0 0.0
      %3772 = vmatprep.subr.mxu0 0.0
      %3773 = vmatpush1.xpose.msra.mxu0 0.0
      %3774 = vmatprep.subr.mxu0 0.0
      %3775 = vmatpush1.xpose.msra.mxu0 0.0
      %3776 = vmatprep.subr.mxu0 0.0
      %3777 = vmatpush1.xpose.msra.mxu0 0.0
      %3778 = vmatprep.subr.mxu0 0.0
      %3779 = vmatpush1.xpose.msra.mxu0 0.0
      %3780 = vmatprep.subr.mxu0 0.0
      %3781 = vmatpush1.xpose.msra.mxu0 0.0
      %3782 = vmatprep.subr.mxu0 0.0
      %3783 = vmatpush1.xpose.msra.mxu0 0.0
      %3784 = vmatprep.subr.mxu0 0.0
      %3785 = vmatpush1.xpose.msra.mxu0 0.0
      %3786 = vmatprep.subr.mxu0 0.0
      %3787 = vmatpush1.xpose.msra.mxu0 0.0
      %3788 = vmatprep.subr.mxu0 0.0
      %3789 = vmatpush1.xpose.msra.mxu0 0.0
      %3790 = vmatprep.subr.mxu0 0.0
      %3791 = vmatpush1.xpose.msra.mxu0 0.0
      %3792 = vmatprep.subr.mxu0 0.0
      %3793 = vmatpush1.xpose.msra.mxu0 0.0
      %3794 = vmatprep.subr.mxu0 0.0
      %3795 = vmatpush1.xpose.msra.mxu0 0.0
      %3796 = vmatprep.mubr.f32.mxu0 0.0
      %3797 = vmatmul.mubr.f32.gmra.mrb[0].mxu0 %v3724
      %v3798 = vpop.f32.mrb[0].mxu0
      %v3799 = vadd.f32 0.0, %v3798
      %v3800 = vpop.f32.mrb[0].mxu0
      %3801 = vmatprep.mubr.f32.mxu0 0.0
      %3802 = vmatmul.mubr.f32.gmra.mrb[0].mxu0 %v3726
      %v3803 = vpop.f32.mrb[0].mxu0
      %v3804 = vadd.f32 0.0, %v3803
      %v3805 = vpop.f32.mrb[0].mxu0
      %3806 = vdwg.mxu0
      %3807 = vrot.lane.b32.xlu0 %v462, 112
      %v3808 = vpop.permute.xlu0 %3807
      %3809 = vrot.lane.b32.xlu0 %v467, 112
      %v3810 = vpop.permute.xlu0 %3809
      %3811 = vrot.lane.b32.xlu0 %v462, 80
      %v3812 = vpop.permute.xlu0 %3811
      %3813 = vrot.lane.b32.xlu0 %v467, 80
      %v3814 = vpop.permute.xlu0 %3813
      %v3815 = vsel %vm536, %v3808, 0
      %v3817 = vsel %vm536, %v3810, 0
      %v3819 = vsel %vm536, %v3812, 0
      %v3821 = vsel %vm536, %v3814, 0
      %3823 = vmatprep.subr.mxu0 0.0
      %3824 = vmatpush1.xpose.msra.mxu0 %v3819
      %3825 = vmatprep.subr.mxu0 0.0
      %3826 = vmatpush1.xpose.msra.mxu0 %v3821
      %3827 = vmatprep.subr.mxu0 0.0
      %3828 = vmatpush1.xpose.msra.mxu0 0.0
      %3829 = vmatprep.subr.mxu0 0.0
      %3830 = vmatpush1.xpose.msra.mxu0 0.0
      %3831 = vmatprep.subr.mxu0 0.0
      %3832 = vmatpush1.xpose.msra.mxu0 0.0
      %3833 = vmatprep.subr.mxu0 0.0
      %3834 = vmatpush1.xpose.msra.mxu0 0.0
      %3835 = vmatprep.subr.mxu0 0.0
      %3836 = vmatpush1.xpose.msra.mxu0 0.0
      %3837 = vmatprep.subr.mxu0 0.0
      %3838 = vmatpush1.xpose.msra.mxu0 0.0
      %3839 = vmatprep.subr.mxu0 0.0
      %3840 = vmatpush1.xpose.msra.mxu0 0.0
      %3841 = vmatprep.subr.mxu0 0.0
      %3842 = vmatpush1.xpose.msra.mxu0 0.0
      %3843 = vmatprep.subr.mxu0 0.0
      %3844 = vmatpush1.xpose.msra.mxu0 0.0
      %3845 = vmatprep.subr.mxu0 0.0
      %3846 = vmatpush1.xpose.msra.mxu0 0.0
      %3847 = vmatprep.subr.mxu0 0.0
      %3848 = vmatpush1.xpose.msra.mxu0 0.0
      %3849 = vmatprep.subr.mxu0 0.0
      %3850 = vmatpush1.xpose.msra.mxu0 0.0
      %3851 = vmatprep.subr.mxu0 0.0
      %3852 = vmatpush1.xpose.msra.mxu0 0.0
      %3853 = vmatprep.subr.mxu0 0.0
      %3854 = vmatpush1.xpose.msra.mxu0 0.0
      %3855 = vmatprep.subr.mxu0 0.0
      %3856 = vmatpush1.xpose.msra.mxu0 0.0
      %3857 = vmatprep.subr.mxu0 0.0
      %3858 = vmatpush1.xpose.msra.mxu0 0.0
      %3859 = vmatprep.subr.mxu0 0.0
      %3860 = vmatpush1.xpose.msra.mxu0 0.0
      %3861 = vmatprep.subr.mxu0 0.0
      %3862 = vmatpush1.xpose.msra.mxu0 0.0
      %3863 = vmatprep.subr.mxu0 0.0
      %3864 = vmatpush1.xpose.msra.mxu0 0.0
      %3865 = vmatprep.subr.mxu0 0.0
      %3866 = vmatpush1.xpose.msra.mxu0 0.0
      %3867 = vmatprep.subr.mxu0 0.0
      %3868 = vmatpush1.xpose.msra.mxu0 0.0
      %3869 = vmatprep.subr.mxu0 0.0
      %3870 = vmatpush1.xpose.msra.mxu0 0.0
      %3871 = vmatprep.subr.mxu0 0.0
      %3872 = vmatpush1.xpose.msra.mxu0 0.0
      %3873 = vmatprep.subr.mxu0 0.0
      %3874 = vmatpush1.xpose.msra.mxu0 0.0
      %3875 = vmatprep.subr.mxu0 0.0
      %3876 = vmatpush1.xpose.msra.mxu0 0.0
      %3877 = vmatprep.subr.mxu0 0.0
      %3878 = vmatpush1.xpose.msra.mxu0 0.0
      %3879 = vmatprep.subr.mxu0 0.0
      %3880 = vmatpush1.xpose.msra.mxu0 0.0
      %3881 = vmatprep.subr.mxu0 0.0
      %3882 = vmatpush1.xpose.msra.mxu0 0.0
      %3883 = vmatprep.subr.mxu0 0.0
      %3884 = vmatpush1.xpose.msra.mxu0 0.0
      %3885 = vmatprep.subr.mxu0 0.0
      %3886 = vmatpush1.xpose.msra.mxu0 0.0
      %3887 = vmatprep.mubr.f32.mxu0 0.0
      %3888 = vmatmul.mubr.f32.gmra.mrb[0].mxu0 %v3815
      %v3889 = vpop.f32.mrb[0].mxu0
      %v3890 = vadd.f32 0.0, %v3889
      %v3891 = vpop.f32.mrb[0].mxu0
      %3892 = vmatprep.mubr.f32.mxu0 0.0
      %3893 = vmatmul.mubr.f32.gmra.mrb[0].mxu0 %v3817
      %v3894 = vpop.f32.mrb[0].mxu0
      %v3895 = vadd.f32 0.0, %v3894
      %v3896 = vpop.f32.mrb[0].mxu0
      %3897 = vdwg.mxu0
      %3898 = vrot.lane.b32.xlu0 %v472, 112
      %v3899 = vpop.permute.xlu0 %3898
      %3900 = vrot.lane.b32.xlu0 %v477, 112
      %v3901 = vpop.permute.xlu0 %3900
      %3902 = vrot.lane.b32.xlu0 %v472, 80
      %v3903 = vpop.permute.xlu0 %3902
      %3904 = vrot.lane.b32.xlu0 %v477, 80
      %v3905 = vpop.permute.xlu0 %3904
      %v3906 = vsel %vm536, %v3899, 0
      %v3908 = vsel %vm536, %v3901, 0
      %v3910 = vsel %vm536, %v3903, 0
      %v3912 = vsel %vm536, %v3905, 0
      %3914 = vmatprep.subr.mxu0 0.0
      %3915 = vmatpush1.xpose.msra.mxu0 %v3910
      %3916 = vmatprep.subr.mxu0 0.0
      %3917 = vmatpush1.xpose.msra.mxu0 %v3912
      %3918 = vmatprep.subr.mxu0 0.0
      %3919 = vmatpush1.xpose.msra.mxu0 0.0
      %3920 = vmatprep.subr.mxu0 0.0
      %3921 = vmatpush1.xpose.msra.mxu0 0.0
      %3922 = vmatprep.subr.mxu0 0.0
      %3923 = vmatpush1.xpose.msra.mxu0 0.0
      %3924 = vmatprep.subr.mxu0 0.0
      %3925 = vmatpush1.xpose.msra.mxu0 0.0
      %3926 = vmatprep.subr.mxu0 0.0
      %3927 = vmatpush1.xpose.msra.mxu0 0.0
      %3928 = vmatprep.subr.mxu0 0.0
      %3929 = vmatpush1.xpose.msra.mxu0 0.0
      %3930 = vmatprep.subr.mxu0 0.0
      %3931 = vmatpush1.xpose.msra.mxu0 0.0
      %3932 = vmatprep.subr.mxu0 0.0
      %3933 = vmatpush1.xpose.msra.mxu0 0.0
      %3934 = vmatprep.subr.mxu0 0.0
      %3935 = vmatpush1.xpose.msra.mxu0 0.0
      %3936 = vmatprep.subr.mxu0 0.0
      %3937 = vmatpush1.xpose.msra.mxu0 0.0
      %3938 = vmatprep.subr.mxu0 0.0
      %3939 = vmatpush1.xpose.msra.mxu0 0.0
      %3940 = vmatprep.subr.mxu0 0.0
      %3941 = vmatpush1.xpose.msra.mxu0 0.0
      %3942 = vmatprep.subr.mxu0 0.0
      %3943 = vmatpush1.xpose.msra.mxu0 0.0
      %3944 = vmatprep.subr.mxu0 0.0
      %3945 = vmatpush1.xpose.msra.mxu0 0.0
      %3946 = vmatprep.subr.mxu0 0.0
      %3947 = vmatpush1.xpose.msra.mxu0 0.0
      %3948 = vmatprep.subr.mxu0 0.0
      %3949 = vmatpush1.xpose.msra.mxu0 0.0
      %3950 = vmatprep.subr.mxu0 0.0
      %3951 = vmatpush1.xpose.msra.mxu0 0.0
      %3952 = vmatprep.subr.mxu0 0.0
      %3953 = vmatpush1.xpose.msra.mxu0 0.0
      %3954 = vmatprep.subr.mxu0 0.0
      %3955 = vmatpush1.xpose.msra.mxu0 0.0
      %3956 = vmatprep.subr.mxu0 0.0
      %3957 = vmatpush1.xpose.msra.mxu0 0.0
      %3958 = vmatprep.subr.mxu0 0.0
      %3959 = vmatpush1.xpose.msra.mxu0 0.0
      %3960 = vmatprep.subr.mxu0 0.0
      %3961 = vmatpush1.xpose.msra.mxu0 0.0
      %3962 = vmatprep.subr.mxu0 0.0
      %3963 = vmatpush1.xpose.msra.mxu0 0.0
      %3964 = vmatprep.subr.mxu0 0.0
      %3965 = vmatpush1.xpose.msra.mxu0 0.0
      %3966 = vmatprep.subr.mxu0 0.0
      %3967 = vmatpush1.xpose.msra.mxu0 0.0
      %3968 = vmatprep.subr.mxu0 0.0
      %3969 = vmatpush1.xpose.msra.mxu0 0.0
      %3970 = vmatprep.subr.mxu0 0.0
      %3971 = vmatpush1.xpose.msra.mxu0 0.0
      %3972 = vmatprep.subr.mxu0 0.0
      %3973 = vmatpush1.xpose.msra.mxu0 0.0
      %3974 = vmatprep.subr.mxu0 0.0
      %3975 = vmatpush1.xpose.msra.mxu0 0.0
      %3976 = vmatprep.subr.mxu0 0.0
      %3977 = vmatpush1.xpose.msra.mxu0 0.0
      %3978 = vmatprep.mubr.f32.mxu0 0.0
      %3979 = vmatmul.mubr.f32.gmra.mrb[0].mxu0 %v3906
      %v3980 = vpop.f32.mrb[0].mxu0
      %v3981 = vadd.f32 0.0, %v3980
      %v3982 = vpop.f32.mrb[0].mxu0
      %3983 = vmatprep.mubr.f32.mxu0 0.0
      %3984 = vmatmul.mubr.f32.gmra.mrb[0].mxu0 %v3908
      %v3985 = vpop.f32.mrb[0].mxu0
      %v3986 = vadd.f32 0.0, %v3985
      %v3987 = vpop.f32.mrb[0].mxu0
      %3988 = vdwg.mxu0
      %3989 = vrot.lane.b32.xlu0 %v482, 112
      %v3990 = vpop.permute.xlu0 %3989
      %3991 = vrot.lane.b32.xlu0 %v487, 112
      %v3992 = vpop.permute.xlu0 %3991
      %3993 = vrot.lane.b32.xlu0 %v482, 80
      %v3994 = vpop.permute.xlu0 %3993
      %3995 = vrot.lane.b32.xlu0 %v487, 80
      %v3996 = vpop.permute.xlu0 %3995
      %v3997 = vsel %vm536, %v3990, 0
      %v3999 = vsel %vm536, %v3992, 0
      %v4001 = vsel %vm536, %v3994, 0
      %v4003 = vsel %vm536, %v3996, 0
      %4005 = vmatprep.subr.mxu0 0.0
      %4006 = vmatpush1.xpose.msra.mxu0 %v4001
      %4007 = vmatprep.subr.mxu0 0.0
      %4008 = vmatpush1.xpose.msra.mxu0 %v4003
      %4009 = vmatprep.subr.mxu0 0.0
      %4010 = vmatpush1.xpose.msra.mxu0 0.0
      %4011 = vmatprep.subr.mxu0 0.0
      %4012 = vmatpush1.xpose.msra.mxu0 0.0
      %4013 = vmatprep.subr.mxu0 0.0
      %4014 = vmatpush1.xpose.msra.mxu0 0.0
      %4015 = vmatprep.subr.mxu0 0.0
      %4016 = vmatpush1.xpose.msra.mxu0 0.0
      %4017 = vmatprep.subr.mxu0 0.0
      %4018 = vmatpush1.xpose.msra.mxu0 0.0
      %4019 = vmatprep.subr.mxu0 0.0
      %4020 = vmatpush1.xpose.msra.mxu0 0.0
      %4021 = vmatprep.subr.mxu0 0.0
      %4022 = vmatpush1.xpose.msra.mxu0 0.0
      %4023 = vmatprep.subr.mxu0 0.0
      %4024 = vmatpush1.xpose.msra.mxu0 0.0
      %4025 = vmatprep.subr.mxu0 0.0
      %4026 = vmatpush1.xpose.msra.mxu0 0.0
      %4027 = vmatprep.subr.mxu0 0.0
      %4028 = vmatpush1.xpose.msra.mxu0 0.0
      %4029 = vmatprep.subr.mxu0 0.0
      %4030 = vmatpush1.xpose.msra.mxu0 0.0
      %4031 = vmatprep.subr.mxu0 0.0
      %4032 = vmatpush1.xpose.msra.mxu0 0.0
      %4033 = vmatprep.subr.mxu0 0.0
      %4034 = vmatpush1.xpose.msra.mxu0 0.0
      %4035 = vmatprep.subr.mxu0 0.0
      %4036 = vmatpush1.xpose.msra.mxu0 0.0
      %4037 = vmatprep.subr.mxu0 0.0
      %4038 = vmatpush1.xpose.msra.mxu0 0.0
      %4039 = vmatprep.subr.mxu0 0.0
      %4040 = vmatpush1.xpose.msra.mxu0 0.0
      %4041 = vmatprep.subr.mxu0 0.0
      %4042 = vmatpush1.xpose.msra.mxu0 0.0
      %4043 = vmatprep.subr.mxu0 0.0
      %4044 = vmatpush1.xpose.msra.mxu0 0.0
      %4045 = vmatprep.subr.mxu0 0.0
      %4046 = vmatpush1.xpose.msra.mxu0 0.0
      %4047 = vmatprep.subr.mxu0 0.0
      %4048 = vmatpush1.xpose.msra.mxu0 0.0
      %4049 = vmatprep.subr.mxu0 0.0
      %4050 = vmatpush1.xpose.msra.mxu0 0.0
      %4051 = vmatprep.subr.mxu0 0.0
      %4052 = vmatpush1.xpose.msra.mxu0 0.0
      %4053 = vmatprep.subr.mxu0 0.0
      %4054 = vmatpush1.xpose.msra.mxu0 0.0
      %4055 = vmatprep.subr.mxu0 0.0
      %4056 = vmatpush1.xpose.msra.mxu0 0.0
      %4057 = vmatprep.subr.mxu0 0.0
      %4058 = vmatpush1.xpose.msra.mxu0 0.0
      %4059 = vmatprep.subr.mxu0 0.0
      %4060 = vmatpush1.xpose.msra.mxu0 0.0
      %4061 = vmatprep.subr.mxu0 0.0
      %4062 = vmatpush1.xpose.msra.mxu0 0.0
      %4063 = vmatprep.subr.mxu0 0.0
      %4064 = vmatpush1.xpose.msra.mxu0 0.0
      %4065 = vmatprep.subr.mxu0 0.0
      %4066 = vmatpush1.xpose.msra.mxu0 0.0
      %4067 = vmatprep.subr.mxu0 0.0
      %4068 = vmatpush1.xpose.msra.mxu0 0.0
      %4069 = vmatprep.mubr.f32.mxu0 0.0
      %4070 = vmatmul.mubr.f32.gmra.mrb[0].mxu0 %v3997
      %v4071 = vpop.f32.mrb[0].mxu0
      %v4072 = vadd.f32 0.0, %v4071
      %v4073 = vpop.f32.mrb[0].mxu0
      %4074 = vmatprep.mubr.f32.mxu0 0.0
      %4075 = vmatmul.mubr.f32.gmra.mrb[0].mxu0 %v3999
      %v4076 = vpop.f32.mrb[0].mxu0
      %v4077 = vadd.f32 0.0, %v4076
      %v4078 = vpop.f32.mrb[0].mxu0
      %4079 = vdwg.mxu0
      %4080 = vrot.lane.b32.xlu0 %v492, 112
      %v4081 = vpop.permute.xlu0 %4080
      %4082 = vrot.lane.b32.xlu0 %v497, 112
      %v4083 = vpop.permute.xlu0 %4082
      %4084 = vrot.lane.b32.xlu0 %v492, 80
      %v4085 = vpop.permute.xlu0 %4084
      %4086 = vrot.lane.b32.xlu0 %v497, 80
      %v4087 = vpop.permute.xlu0 %4086
      %v4088 = vsel %vm536, %v4081, 0
      %v4090 = vsel %vm536, %v4083, 0
      %v4092 = vsel %vm536, %v4085, 0
      %v4094 = vsel %vm536, %v4087, 0
      %4096 = vmatprep.subr.mxu0 0.0
      %4097 = vmatpush1.xpose.msra.mxu0 %v4092
      %4098 = vmatprep.subr.mxu0 0.0
      %4099 = vmatpush1.xpose.msra.mxu0 %v4094
      %4100 = vmatprep.subr.mxu0 0.0
      %4101 = vmatpush1.xpose.msra.mxu0 0.0
      %4102 = vmatprep.subr.mxu0 0.0
      %4103 = vmatpush1.xpose.msra.mxu0 0.0
      %4104 = vmatprep.subr.mxu0 0.0
      %4105 = vmatpush1.xpose.msra.mxu0 0.0
      %4106 = vmatprep.subr.mxu0 0.0
      %4107 = vmatpush1.xpose.msra.mxu0 0.0
      %4108 = vmatprep.subr.mxu0 0.0
      %4109 = vmatpush1.xpose.msra.mxu0 0.0
      %4110 = vmatprep.subr.mxu0 0.0
      %4111 = vmatpush1.xpose.msra.mxu0 0.0
      %4112 = vmatprep.subr.mxu0 0.0
      %4113 = vmatpush1.xpose.msra.mxu0 0.0
      %4114 = vmatprep.subr.mxu0 0.0
      %4115 = vmatpush1.xpose.msra.mxu0 0.0
      %4116 = vmatprep.subr.mxu0 0.0
      %4117 = vmatpush1.xpose.msra.mxu0 0.0
      %4118 = vmatprep.subr.mxu0 0.0
      %4119 = vmatpush1.xpose.msra.mxu0 0.0
      %4120 = vmatprep.subr.mxu0 0.0
      %4121 = vmatpush1.xpose.msra.mxu0 0.0
      %4122 = vmatprep.subr.mxu0 0.0
      %4123 = vmatpush1.xpose.msra.mxu0 0.0
      %4124 = vmatprep.subr.mxu0 0.0
      %4125 = vmatpush1.xpose.msra.mxu0 0.0
      %4126 = vmatprep.subr.mxu0 0.0
      %4127 = vmatpush1.xpose.msra.mxu0 0.0
      %4128 = vmatprep.subr.mxu0 0.0
      %4129 = vmatpush1.xpose.msra.mxu0 0.0
      %4130 = vmatprep.subr.mxu0 0.0
      %4131 = vmatpush1.xpose.msra.mxu0 0.0
      %4132 = vmatprep.subr.mxu0 0.0
      %4133 = vmatpush1.xpose.msra.mxu0 0.0
      %4134 = vmatprep.subr.mxu0 0.0
      %4135 = vmatpush1.xpose.msra.mxu0 0.0
      %4136 = vmatprep.subr.mxu0 0.0
      %4137 = vmatpush1.xpose.msra.mxu0 0.0
      %4138 = vmatprep.subr.mxu0 0.0
      %4139 = vmatpush1.xpose.msra.mxu0 0.0
      %4140 = vmatprep.subr.mxu0 0.0
      %4141 = vmatpush1.xpose.msra.mxu0 0.0
      %4142 = vmatprep.subr.mxu0 0.0
      %4143 = vmatpush1.xpose.msra.mxu0 0.0
      %4144 = vmatprep.subr.mxu0 0.0
      %4145 = vmatpush1.xpose.msra.mxu0 0.0
      %4146 = vmatprep.subr.mxu0 0.0
      %4147 = vmatpush1.xpose.msra.mxu0 0.0
      %4148 = vmatprep.subr.mxu0 0.0
      %4149 = vmatpush1.xpose.msra.mxu0 0.0
      %4150 = vmatprep.subr.mxu0 0.0
      %4151 = vmatpush1.xpose.msra.mxu0 0.0
      %4152 = vmatprep.subr.mxu0 0.0
      %4153 = vmatpush1.xpose.msra.mxu0 0.0
      %4154 = vmatprep.subr.mxu0 0.0
      %4155 = vmatpush1.xpose.msra.mxu0 0.0
      %4156 = vmatprep.subr.mxu0 0.0
      %4157 = vmatpush1.xpose.msra.mxu0 0.0
      %4158 = vmatprep.subr.mxu0 0.0
      %4159 = vmatpush1.xpose.msra.mxu0 0.0
      %4160 = vmatprep.mubr.f32.mxu0 0.0
      %4161 = vmatmul.mubr.f32.gmra.mrb[0].mxu0 %v4088
      %v4162 = vpop.f32.mrb[0].mxu0
      %v4163 = vadd.f32 0.0, %v4162
      %v4164 = vpop.f32.mrb[0].mxu0
      %4165 = vmatprep.mubr.f32.mxu0 0.0
      %4166 = vmatmul.mubr.f32.gmra.mrb[0].mxu0 %v4090
      %v4167 = vpop.f32.mrb[0].mxu0
      %v4168 = vadd.f32 0.0, %v4167
      %v4169 = vpop.f32.mrb[0].mxu0
      %4170 = vdwg.mxu0
      %4171 = vrot.lane.b32.xlu0 %v502, 112
      %v4172 = vpop.permute.xlu0 %4171
      %4173 = vrot.lane.b32.xlu0 %v507, 112
      %v4174 = vpop.permute.xlu0 %4173
      %4175 = vrot.lane.b32.xlu0 %v502, 80
      %v4176 = vpop.permute.xlu0 %4175
      %4177 = vrot.lane.b32.xlu0 %v507, 80
      %v4178 = vpop.permute.xlu0 %4177
      %v4179 = vsel %vm536, %v4172, 0
      %v4181 = vsel %vm536, %v4174, 0
      %v4183 = vsel %vm536, %v4176, 0
      %v4185 = vsel %vm536, %v4178, 0
      %4187 = vmatprep.subr.mxu0 0.0
      %4188 = vmatpush1.xpose.msra.mxu0 %v4183
      %4189 = vmatprep.subr.mxu0 0.0
      %4190 = vmatpush1.xpose.msra.mxu0 %v4185
      %4191 = vmatprep.subr.mxu0 0.0
      %4192 = vmatpush1.xpose.msra.mxu0 0.0
      %4193 = vmatprep.subr.mxu0 0.0
      %4194 = vmatpush1.xpose.msra.mxu0 0.0
      %4195 = vmatprep.subr.mxu0 0.0
      %4196 = vmatpush1.xpose.msra.mxu0 0.0
      %4197 = vmatprep.subr.mxu0 0.0
      %4198 = vmatpush1.xpose.msra.mxu0 0.0
      %4199 = vmatprep.subr.mxu0 0.0
      %4200 = vmatpush1.xpose.msra.mxu0 0.0
      %4201 = vmatprep.subr.mxu0 0.0
      %4202 = vmatpush1.xpose.msra.mxu0 0.0
      %4203 = vmatprep.subr.mxu0 0.0
      %4204 = vmatpush1.xpose.msra.mxu0 0.0
      %4205 = vmatprep.subr.mxu0 0.0
      %4206 = vmatpush1.xpose.msra.mxu0 0.0
      %4207 = vmatprep.subr.mxu0 0.0
      %4208 = vmatpush1.xpose.msra.mxu0 0.0
      %4209 = vmatprep.subr.mxu0 0.0
      %4210 = vmatpush1.xpose.msra.mxu0 0.0
      %4211 = vmatprep.subr.mxu0 0.0
      %4212 = vmatpush1.xpose.msra.mxu0 0.0
      %4213 = vmatprep.subr.mxu0 0.0
      %4214 = vmatpush1.xpose.msra.mxu0 0.0
      %4215 = vmatprep.subr.mxu0 0.0
      %4216 = vmatpush1.xpose.msra.mxu0 0.0
      %4217 = vmatprep.subr.mxu0 0.0
      %4218 = vmatpush1.xpose.msra.mxu0 0.0
      %4219 = vmatprep.subr.mxu0 0.0
      %4220 = vmatpush1.xpose.msra.mxu0 0.0
      %4221 = vmatprep.subr.mxu0 0.0
      %4222 = vmatpush1.xpose.msra.mxu0 0.0
      %4223 = vmatprep.subr.mxu0 0.0
      %4224 = vmatpush1.xpose.msra.mxu0 0.0
      %4225 = vmatprep.subr.mxu0 0.0
      %4226 = vmatpush1.xpose.msra.mxu0 0.0
      %4227 = vmatprep.subr.mxu0 0.0
      %4228 = vmatpush1.xpose.msra.mxu0 0.0
      %4229 = vmatprep.subr.mxu0 0.0
      %4230 = vmatpush1.xpose.msra.mxu0 0.0
      %4231 = vmatprep.subr.mxu0 0.0
      %4232 = vmatpush1.xpose.msra.mxu0 0.0
      %4233 = vmatprep.subr.mxu0 0.0
      %4234 = vmatpush1.xpose.msra.mxu0 0.0
      %4235 = vmatprep.subr.mxu0 0.0
      %4236 = vmatpush1.xpose.msra.mxu0 0.0
      %4237 = vmatprep.subr.mxu0 0.0
      %4238 = vmatpush1.xpose.msra.mxu0 0.0
      %4239 = vmatprep.subr.mxu0 0.0
      %4240 = vmatpush1.xpose.msra.mxu0 0.0
      %4241 = vmatprep.subr.mxu0 0.0
      %4242 = vmatpush1.xpose.msra.mxu0 0.0
      %4243 = vmatprep.subr.mxu0 0.0
      %4244 = vmatpush1.xpose.msra.mxu0 0.0
      %4245 = vmatprep.subr.mxu0 0.0
      %4246 = vmatpush1.xpose.msra.mxu0 0.0
      %4247 = vmatprep.subr.mxu0 0.0
      %4248 = vmatpush1.xpose.msra.mxu0 0.0
      %4249 = vmatprep.subr.mxu0 0.0
      %4250 = vmatpush1.xpose.msra.mxu0 0.0
      %4251 = vmatprep.mubr.f32.mxu0 0.0
      %4252 = vmatmul.mubr.f32.gmra.mrb[0].mxu0 %v4179
      %v4253 = vpop.f32.mrb[0].mxu0
      %v4254 = vadd.f32 0.0, %v4253
      %v4255 = vpop.f32.mrb[0].mxu0
      %4256 = vmatprep.mubr.f32.mxu0 0.0
      %4257 = vmatmul.mubr.f32.gmra.mrb[0].mxu0 %v4181
      %v4258 = vpop.f32.mrb[0].mxu0
      %v4259 = vadd.f32 0.0, %v4258
      %v4260 = vpop.f32.mrb[0].mxu0
      %4261 = vdwg.mxu0
      %4262 = vrot.lane.b32.xlu0 %v512, 112
      %v4263 = vpop.permute.xlu0 %4262
      %4264 = vrot.lane.b32.xlu0 %v517, 112
      %v4265 = vpop.permute.xlu0 %4264
      %4266 = vrot.lane.b32.xlu0 %v512, 80
      %v4267 = vpop.permute.xlu0 %4266
      %4268 = vrot.lane.b32.xlu0 %v517, 80
      %v4269 = vpop.permute.xlu0 %4268
      %v4270 = vsel %vm536, %v4263, 0
      %v4272 = vsel %vm536, %v4265, 0
      %v4274 = vsel %vm536, %v4267, 0
      %v4276 = vsel %vm536, %v4269, 0
      %4278 = vmatprep.subr.mxu0 0.0
      %4279 = vmatpush1.xpose.msra.mxu0 %v4274
      %4280 = vmatprep.subr.mxu0 0.0
      %4281 = vmatpush1.xpose.msra.mxu0 %v4276
      %4282 = vmatprep.subr.mxu0 0.0
      %4283 = vmatpush1.xpose.msra.mxu0 0.0
      %4284 = vmatprep.subr.mxu0 0.0
      %4285 = vmatpush1.xpose.msra.mxu0 0.0
      %4286 = vmatprep.subr.mxu0 0.0
      %4287 = vmatpush1.xpose.msra.mxu0 0.0
      %4288 = vmatprep.subr.mxu0 0.0
      %4289 = vmatpush1.xpose.msra.mxu0 0.0
      %4290 = vmatprep.subr.mxu0 0.0
      %4291 = vmatpush1.xpose.msra.mxu0 0.0
      %4292 = vmatprep.subr.mxu0 0.0
      %4293 = vmatpush1.xpose.msra.mxu0 0.0
      %4294 = vmatprep.subr.mxu0 0.0
      %4295 = vmatpush1.xpose.msra.mxu0 0.0
      %4296 = vmatprep.subr.mxu0 0.0
      %4297 = vmatpush1.xpose.msra.mxu0 0.0
      %4298 = vmatprep.subr.mxu0 0.0
      %4299 = vmatpush1.xpose.msra.mxu0 0.0
      %4300 = vmatprep.subr.mxu0 0.0
      %4301 = vmatpush1.xpose.msra.mxu0 0.0
      %4302 = vmatprep.subr.mxu0 0.0
      %4303 = vmatpush1.xpose.msra.mxu0 0.0
      %4304 = vmatprep.subr.mxu0 0.0
      %4305 = vmatpush1.xpose.msra.mxu0 0.0
      %4306 = vmatprep.subr.mxu0 0.0
      %4307 = vmatpush1.xpose.msra.mxu0 0.0
      %4308 = vmatprep.subr.mxu0 0.0
      %4309 = vmatpush1.xpose.msra.mxu0 0.0
      %4310 = vmatprep.subr.mxu0 0.0
      %4311 = vmatpush1.xpose.msra.mxu0 0.0
      %4312 = vmatprep.subr.mxu0 0.0
      %4313 = vmatpush1.xpose.msra.mxu0 0.0
      %4314 = vmatprep.subr.mxu0 0.0
      %4315 = vmatpush1.xpose.msra.mxu0 0.0
      %4316 = vmatprep.subr.mxu0 0.0
      %4317 = vmatpush1.xpose.msra.mxu0 0.0
      %4318 = vmatprep.subr.mxu0 0.0
      %4319 = vmatpush1.xpose.msra.mxu0 0.0
      %4320 = vmatprep.subr.mxu0 0.0
      %4321 = vmatpush1.xpose.msra.mxu0 0.0
      %4322 = vmatprep.subr.mxu0 0.0
      %4323 = vmatpush1.xpose.msra.mxu0 0.0
      %4324 = vmatprep.subr.mxu0 0.0
      %4325 = vmatpush1.xpose.msra.mxu0 0.0
      %4326 = vmatprep.subr.mxu0 0.0
      %4327 = vmatpush1.xpose.msra.mxu0 0.0
      %4328 = vmatprep.subr.mxu0 0.0
      %4329 = vmatpush1.xpose.msra.mxu0 0.0
      %4330 = vmatprep.subr.mxu0 0.0
      %4331 = vmatpush1.xpose.msra.mxu0 0.0
      %4332 = vmatprep.subr.mxu0 0.0
      %4333 = vmatpush1.xpose.msra.mxu0 0.0
      %4334 = vmatprep.subr.mxu0 0.0
      %4335 = vmatpush1.xpose.msra.mxu0 0.0
      %4336 = vmatprep.subr.mxu0 0.0
      %4337 = vmatpush1.xpose.msra.mxu0 0.0
      %4338 = vmatprep.subr.mxu0 0.0
      %4339 = vmatpush1.xpose.msra.mxu0 0.0
      %4340 = vmatprep.subr.mxu0 0.0
      %4341 = vmatpush1.xpose.msra.mxu0 0.0
      %4342 = vmatprep.mubr.f32.mxu0 0.0
      %4343 = vmatmul.mubr.f32.gmra.mrb[0].mxu0 %v4270
      %v4344 = vpop.f32.mrb[0].mxu0
      %v4345 = vadd.f32 0.0, %v4344
      %v4346 = vpop.f32.mrb[0].mxu0
      %4347 = vmatprep.mubr.f32.mxu0 0.0
      %4348 = vmatmul.mubr.f32.gmra.mrb[0].mxu0 %v4272
      %v4349 = vpop.f32.mrb[0].mxu0
      %v4350 = vadd.f32 0.0, %v4349
      %v4351 = vpop.f32.mrb[0].mxu0
      %4352 = vdwg.mxu0
      %4353 = vrot.lane.b32.xlu0 %v522, 112
      %v4354 = vpop.permute.xlu0 %4353
      %4355 = vrot.lane.b32.xlu0 %v527, 112
      %v4356 = vpop.permute.xlu0 %4355
      %4357 = vrot.lane.b32.xlu0 %v522, 80
      %v4358 = vpop.permute.xlu0 %4357
      %4359 = vrot.lane.b32.xlu0 %v527, 80
      %v4360 = vpop.permute.xlu0 %4359
      %v4361 = vsel %vm536, %v4354, 0
      %v4363 = vsel %vm536, %v4356, 0
      %v4365 = vsel %vm536, %v4358, 0
      %v4367 = vsel %vm536, %v4360, 0
      %4369 = vmatprep.subr.mxu0 0.0
      %4370 = vmatpush1.xpose.msra.mxu0 %v4365
      %4371 = vmatprep.subr.mxu0 0.0
      %4372 = vmatpush1.xpose.msra.mxu0 %v4367
      %4373 = vmatprep.subr.mxu0 0.0
      %4374 = vmatpush1.xpose.msra.mxu0 0.0
      %4375 = vmatprep.subr.mxu0 0.0
      %4376 = vmatpush1.xpose.msra.mxu0 0.0
      %4377 = vmatprep.subr.mxu0 0.0
      %4378 = vmatpush1.xpose.msra.mxu0 0.0
      %4379 = vmatprep.subr.mxu0 0.0
      %4380 = vmatpush1.xpose.msra.mxu0 0.0
      %4381 = vmatprep.subr.mxu0 0.0
      %4382 = vmatpush1.xpose.msra.mxu0 0.0
      %4383 = vmatprep.subr.mxu0 0.0
      %4384 = vmatpush1.xpose.msra.mxu0 0.0
      %4385 = vmatprep.subr.mxu0 0.0
      %4386 = vmatpush1.xpose.msra.mxu0 0.0
      %4387 = vmatprep.subr.mxu0 0.0
      %4388 = vmatpush1.xpose.msra.mxu0 0.0
      %4389 = vmatprep.subr.mxu0 0.0
      %4390 = vmatpush1.xpose.msra.mxu0 0.0
      %4391 = vmatprep.subr.mxu0 0.0
      %4392 = vmatpush1.xpose.msra.mxu0 0.0
      %4393 = vmatprep.subr.mxu0 0.0
      %4394 = vmatpush1.xpose.msra.mxu0 0.0
      %4395 = vmatprep.subr.mxu0 0.0
      %4396 = vmatpush1.xpose.msra.mxu0 0.0
      %4397 = vmatprep.subr.mxu0 0.0
      %4398 = vmatpush1.xpose.msra.mxu0 0.0
      %4399 = vmatprep.subr.mxu0 0.0
      %4400 = vmatpush1.xpose.msra.mxu0 0.0
      %4401 = vmatprep.subr.mxu0 0.0
      %4402 = vmatpush1.xpose.msra.mxu0 0.0
      %4403 = vmatprep.subr.mxu0 0.0
      %4404 = vmatpush1.xpose.msra.mxu0 0.0
      %4405 = vmatprep.subr.mxu0 0.0
      %4406 = vmatpush1.xpose.msra.mxu0 0.0
      %4407 = vmatprep.subr.mxu0 0.0
      %4408 = vmatpush1.xpose.msra.mxu0 0.0
      %4409 = vmatprep.subr.mxu0 0.0
      %4410 = vmatpush1.xpose.msra.mxu0 0.0
      %4411 = vmatprep.subr.mxu0 0.0
      %4412 = vmatpush1.xpose.msra.mxu0 0.0
      %4413 = vmatprep.subr.mxu0 0.0
      %4414 = vmatpush1.xpose.msra.mxu0 0.0
      %4415 = vmatprep.subr.mxu0 0.0
      %4416 = vmatpush1.xpose.msra.mxu0 0.0
      %4417 = vmatprep.subr.mxu0 0.0
      %4418 = vmatpush1.xpose.msra.mxu0 0.0
      %4419 = vmatprep.subr.mxu0 0.0
      %4420 = vmatpush1.xpose.msra.mxu0 0.0
      %4421 = vmatprep.subr.mxu0 0.0
      %4422 = vmatpush1.xpose.msra.mxu0 0.0
      %4423 = vmatprep.subr.mxu0 0.0
      %4424 = vmatpush1.xpose.msra.mxu0 0.0
      %4425 = vmatprep.subr.mxu0 0.0
      %4426 = vmatpush1.xpose.msra.mxu0 0.0
      %4427 = vmatprep.subr.mxu0 0.0
      %4428 = vmatpush1.xpose.msra.mxu0 0.0
      %4429 = vmatprep.subr.mxu0 0.0
      %4430 = vmatpush1.xpose.msra.mxu0 0.0
      %4431 = vmatprep.subr.mxu0 0.0
      %4432 = vmatpush1.xpose.msra.mxu0 0.0
      %4433 = vmatprep.mubr.f32.mxu0 0.0
      %4434 = vmatmul.mubr.f32.gmra.mrb[0].mxu0 %v4361
      %v4435 = vpop.f32.mrb[0].mxu0
      %v4436 = vadd.f32 0.0, %v4435
      %v4437 = vpop.f32.mrb[0].mxu0
      %4438 = vmatprep.mubr.f32.mxu0 0.0
      %4439 = vmatmul.mubr.f32.gmra.mrb[0].mxu0 %v4363
      %v4440 = vpop.f32.mrb[0].mxu0
      %v4441 = vadd.f32 0.0, %v4440
      %v4442 = vpop.f32.mrb[0].mxu0
      %4443 = vdwg.mxu0
      %v4444 = vsel %vm1243, %v3799, -inf
      %4445 = vmax.xlane.f32.xlu0 %v4444
      %v4446 = vpop.xlane.xlu0 %4445
      %v4447 = vsel %vm1243, %v3804, -inf
      %4448 = vmax.xlane.f32.xlu0 %v4447
      %v4449 = vpop.xlane.xlu0 %4448
      %v4450 = vsel %vm1243, %v3890, -inf
      %4451 = vmax.xlane.f32.xlu0 %v4450
      %v4452 = vpop.xlane.xlu0 %4451
      %v4453 = vsel %vm1243, %v3895, -inf
      %4454 = vmax.xlane.f32.xlu0 %v4453
      %v4455 = vpop.xlane.xlu0 %4454
      %v4456 = vsel %vm1243, %v3981, -inf
      %4457 = vmax.xlane.f32.xlu0 %v4456
      %v4458 = vpop.xlane.xlu0 %4457
      %v4459 = vsel %vm1243, %v3986, -inf
      %4460 = vmax.xlane.f32.xlu0 %v4459
      %v4461 = vpop.xlane.xlu0 %4460
      %v4462 = vsel %vm1243, %v4072, -inf
      %4463 = vmax.xlane.f32.xlu0 %v4462
      %v4464 = vpop.xlane.xlu0 %4463
      %v4465 = vsel %vm1243, %v4077, -inf
      %4466 = vmax.xlane.f32.xlu0 %v4465
      %v4467 = vpop.xlane.xlu0 %4466
      %v4468 = vsel %vm1243, %v4163, -inf
      %4469 = vmax.xlane.f32.xlu0 %v4468
      %v4470 = vpop.xlane.xlu0 %4469
      %v4471 = vsel %vm1243, %v4168, -inf
      %4472 = vmax.xlane.f32.xlu0 %v4471
      %v4473 = vpop.xlane.xlu0 %4472
      %v4474 = vsel %vm1243, %v4254, -inf
      %4475 = vmax.xlane.f32.xlu0 %v4474
      %v4476 = vpop.xlane.xlu0 %4475
      %v4477 = vsel %vm1243, %v4259, -inf
      %4478 = vmax.xlane.f32.xlu0 %v4477
      %v4479 = vpop.xlane.xlu0 %4478
      %v4480 = vsel %vm1243, %v4345, -inf
      %4481 = vmax.xlane.f32.xlu0 %v4480
      %v4482 = vpop.xlane.xlu0 %4481
      %v4483 = vsel %vm1243, %v4350, -inf
      %4484 = vmax.xlane.f32.xlu0 %v4483
      %v4485 = vpop.xlane.xlu0 %4484
      %v4486 = vsel %vm1243, %v4436, -inf
      %4487 = vmax.xlane.f32.xlu0 %v4486
      %v4488 = vpop.xlane.xlu0 %4487
      %v4489 = vsel %vm1243, %v4441, -inf
      %4490 = vmax.xlane.f32.xlu0 %v4489
      %v4491 = vpop.xlane.xlu0 %4490
      %v4492 = vsub.f32 %v3799, %v4446
      %v4493 = vsub.f32 %v3804, %v4449
      %v4494 = vsub.f32 %v3890, %v4452
      %v4495 = vsub.f32 %v3895, %v4455
      %v4496 = vsub.f32 %v3981, %v4458
      %v4497 = vsub.f32 %v3986, %v4461
      %v4498 = vsub.f32 %v4072, %v4464
      %v4499 = vsub.f32 %v4077, %v4467
      %v4500 = vsub.f32 %v4163, %v4470
      %v4501 = vsub.f32 %v4168, %v4473
      %v4502 = vsub.f32 %v4254, %v4476
      %v4503 = vsub.f32 %v4259, %v4479
      %v4504 = vsub.f32 %v4345, %v4482
      %v4505 = vsub.f32 %v4350, %v4485
      %v4506 = vsub.f32 %v4436, %v4488
      %v4507 = vsub.f32 %v4441, %v4491
      %v4508 = vmul.f32 %v4492, 1.442695
      %v4509 = vpow.pop %v4508
      %v4510 = vmul.f32 %v4493, 1.442695
      %v4511 = vpow.pop %v4510
      %v4512 = vmul.f32 %v4494, 1.442695
      %v4513 = vpow.pop %v4512
      %v4514 = vmul.f32 %v4495, 1.442695
      %v4515 = vpow.pop %v4514
      %v4516 = vmul.f32 %v4496, 1.442695
      %v4517 = vpow.pop %v4516
      %v4518 = vmul.f32 %v4497, 1.442695
      %v4519 = vpow.pop %v4518
      %v4520 = vmul.f32 %v4498, 1.442695
      %v4521 = vpow.pop %v4520
      %v4522 = vmul.f32 %v4499, 1.442695
      %v4523 = vpow.pop %v4522
      %v4524 = vmul.f32 %v4500, 1.442695
      %v4525 = vpow.pop %v4524
      %v4526 = vmul.f32 %v4501, 1.442695
      %v4527 = vpow.pop %v4526
      %v4528 = vmul.f32 %v4502, 1.442695
      %v4529 = vpow.pop %v4528
      %v4530 = vmul.f32 %v4503, 1.442695
      %v4531 = vpow.pop %v4530
      %v4532 = vmul.f32 %v4504, 1.442695
      %v4533 = vpow.pop %v4532
      %v4534 = vmul.f32 %v4505, 1.442695
      %v4535 = vpow.pop %v4534
      %v4536 = vmul.f32 %v4506, 1.442695
      %v4537 = vpow.pop %v4536
      %v4538 = vmul.f32 %v4507, 1.442695
      %v4539 = vpow.pop %v4538
      %v4540 = vsel %vm1243, %v4509, 0.0
      %4541 = vadd.xlane.f32.xlu0 %v4540
      %v4542 = vpop.xlane.xlu0 %4541
      %v4543 = vsel %vm1243, %v4511, 0.0
      %4544 = vadd.xlane.f32.xlu0 %v4543
      %v4545 = vpop.xlane.xlu0 %4544
      %v4546 = vsel %vm1243, %v4513, 0.0
      %4547 = vadd.xlane.f32.xlu0 %v4546
      %v4548 = vpop.xlane.xlu0 %4547
      %v4549 = vsel %vm1243, %v4515, 0.0
      %4550 = vadd.xlane.f32.xlu0 %v4549
      %v4551 = vpop.xlane.xlu0 %4550
      %v4552 = vsel %vm1243, %v4517, 0.0
      %4553 = vadd.xlane.f32.xlu0 %v4552
      %v4554 = vpop.xlane.xlu0 %4553
      %v4555 = vsel %vm1243, %v4519, 0.0
      %4556 = vadd.xlane.f32.xlu0 %v4555
      %v4557 = vpop.xlane.xlu0 %4556
      %v4558 = vsel %vm1243, %v4521, 0.0
      %4559 = vadd.xlane.f32.xlu0 %v4558
      %v4560 = vpop.xlane.xlu0 %4559
      %v4561 = vsel %vm1243, %v4523, 0.0
      %4562 = vadd.xlane.f32.xlu0 %v4561
      %v4563 = vpop.xlane.xlu0 %4562
      %v4564 = vsel %vm1243, %v4525, 0.0
      %4565 = vadd.xlane.f32.xlu0 %v4564
      %v4566 = vpop.xlane.xlu0 %4565
      %v4567 = vsel %vm1243, %v4527, 0.0
      %4568 = vadd.xlane.f32.xlu0 %v4567
      %v4569 = vpop.xlane.xlu0 %4568
      %v4570 = vsel %vm1243, %v4529, 0.0
      %4571 = vadd.xlane.f32.xlu0 %v4570
      %v4572 = vpop.xlane.xlu0 %4571
      %v4573 = vsel %vm1243, %v4531, 0.0
      %4574 = vadd.xlane.f32.xlu0 %v4573
      %v4575 = vpop.xlane.xlu0 %4574
      %v4576 = vsel %vm1243, %v4533, 0.0
      %4577 = vadd.xlane.f32.xlu0 %v4576
      %v4578 = vpop.xlane.xlu0 %4577
      %v4579 = vsel %vm1243, %v4535, 0.0
      %4580 = vadd.xlane.f32.xlu0 %v4579
      %v4581 = vpop.xlane.xlu0 %4580
      %v4582 = vsel %vm1243, %v4537, 0.0
      %4583 = vadd.xlane.f32.xlu0 %v4582
      %v4584 = vpop.xlane.xlu0 %4583
      %v4585 = vsel %vm1243, %v4539, 0.0
      %4586 = vadd.xlane.f32.xlu0 %v4585
      %v4587 = vpop.xlane.xlu0 %4586
      %v4588 = vrcp.pop %v4542
      %v4589 = vrcp.pop %v4545
      %v4590 = vrcp.pop %v4548
      %v4591 = vrcp.pop %v4551
      %v4592 = vrcp.pop %v4554
      %v4593 = vrcp.pop %v4557
      %v4594 = vrcp.pop %v4560
      %v4595 = vrcp.pop %v4563
      %v4596 = vrcp.pop %v4566
      %v4597 = vrcp.pop %v4569
      %v4598 = vrcp.pop %v4572
      %v4599 = vrcp.pop %v4575
      %v4600 = vrcp.pop %v4578
      %v4601 = vrcp.pop %v4581
      %v4602 = vrcp.pop %v4584
      %v4603 = vrcp.pop %v4587
      %v4604 = vmul.f32 %v4509, %v4588
      %v4605 = vmul.f32 %v4511, %v4589
      %v4606 = vmul.f32 %v4513, %v4590
      %v4607 = vmul.f32 %v4515, %v4591
      %v4608 = vmul.f32 %v4517, %v4592
      %v4609 = vmul.f32 %v4519, %v4593
      %v4610 = vmul.f32 %v4521, %v4594
      %v4611 = vmul.f32 %v4523, %v4595
      %v4612 = vmul.f32 %v4525, %v4596
      %v4613 = vmul.f32 %v4527, %v4597
      %v4614 = vmul.f32 %v4529, %v4598
      %v4615 = vmul.f32 %v4531, %v4599
      %v4616 = vmul.f32 %v4533, %v4600
      %v4617 = vmul.f32 %v4535, %v4601
      %v4618 = vmul.f32 %v4537, %v4602
      %v4619 = vmul.f32 %v4539, %v4603
      %4620 = vrot.lane.b32.xlu0 %v452, 48
      %v4621 = vpop.permute.xlu0 %4620
      %4622 = vrot.lane.b32.xlu0 %v457, 48
      %v4623 = vpop.permute.xlu0 %4622
      %v4627 = vsel %vm1243, %v4604, 0
      %v4630 = vsel %vm1243, %v4605, 0
      %4632 = vmatprep.subr.mxu0 0.0
      %4633 = vmatpush1.msra.mxu0 %v4621
      %4634 = vmatprep.subr.mxu0 0.0
      %4635 = vmatpush1.msra.mxu0 %v4623
      %4636 = vmatprep.subr.mxu0 0.0
      %4637 = vmatpush1.msra.mxu0 0.0
      %4638 = vmatprep.subr.mxu0 0.0
      %4639 = vmatpush1.msra.mxu0 0.0
      %4640 = vmatprep.subr.mxu0 0.0
      %4641 = vmatpush1.msra.mxu0 0.0
      %4642 = vmatprep.subr.mxu0 0.0
      %4643 = vmatpush1.msra.mxu0 0.0
      %4644 = vmatprep.subr.mxu0 0.0
      %4645 = vmatpush1.msra.mxu0 0.0
      %4646 = vmatprep.subr.mxu0 0.0
      %4647 = vmatpush1.msra.mxu0 0.0
      %4648 = vmatprep.subr.mxu0 0.0
      %4649 = vmatpush1.msra.mxu0 0.0
      %4650 = vmatprep.subr.mxu0 0.0
      %4651 = vmatpush1.msra.mxu0 0.0
      %4652 = vmatprep.subr.mxu0 0.0
      %4653 = vmatpush1.msra.mxu0 0.0
      %4654 = vmatprep.subr.mxu0 0.0
      %4655 = vmatpush1.msra.mxu0 0.0
      %4656 = vmatprep.subr.mxu0 0.0
      %4657 = vmatpush1.msra.mxu0 0.0
      %4658 = vmatprep.subr.mxu0 0.0
      %4659 = vmatpush1.msra.mxu0 0.0
      %4660 = vmatprep.subr.mxu0 0.0
      %4661 = vmatpush1.msra.mxu0 0.0
      %4662 = vmatprep.subr.mxu0 0.0
      %4663 = vmatpush1.msra.mxu0 0.0
      %4664 = vmatprep.subr.mxu0 0.0
      %4665 = vmatpush1.msra.mxu0 0.0
      %4666 = vmatprep.subr.mxu0 0.0
      %4667 = vmatpush1.msra.mxu0 0.0
      %4668 = vmatprep.subr.mxu0 0.0
      %4669 = vmatpush1.msra.mxu0 0.0
      %4670 = vmatprep.subr.mxu0 0.0
      %4671 = vmatpush1.msra.mxu0 0.0
      %4672 = vmatprep.subr.mxu0 0.0
      %4673 = vmatpush1.msra.mxu0 0.0
      %4674 = vmatprep.subr.mxu0 0.0
      %4675 = vmatpush1.msra.mxu0 0.0
      %4676 = vmatprep.subr.mxu0 0.0
      %4677 = vmatpush1.msra.mxu0 0.0
      %4678 = vmatprep.subr.mxu0 0.0
      %4679 = vmatpush1.msra.mxu0 0.0
      %4680 = vmatprep.subr.mxu0 0.0
      %4681 = vmatpush1.msra.mxu0 0.0
      %4682 = vmatprep.subr.mxu0 0.0
      %4683 = vmatpush1.msra.mxu0 0.0
      %4684 = vmatprep.subr.mxu0 0.0
      %4685 = vmatpush1.msra.mxu0 0.0
      %4686 = vmatprep.subr.mxu0 0.0
      %4687 = vmatpush1.msra.mxu0 0.0
      %4688 = vmatprep.subr.mxu0 0.0
      %4689 = vmatpush1.msra.mxu0 0.0
      %4690 = vmatprep.subr.mxu0 0.0
      %4691 = vmatpush1.msra.mxu0 0.0
      %4692 = vmatprep.subr.mxu0 0.0
      %4693 = vmatpush1.msra.mxu0 0.0
      %4694 = vmatprep.subr.mxu0 0.0
      %4695 = vmatpush1.msra.mxu0 0.0
      %4696 = vmatprep.mubr.f32.mxu0 0.0
      %4697 = vmatmul.mubr.f32.gmra.mrb[0].mxu0 %v4627
      %v4698 = vpop.f32.mrb[0].mxu0
      %v4699 = vadd.f32 0.0, %v4698
      %v4700 = vpop.f32.mrb[0].mxu0
      %4701 = vmatprep.mubr.f32.mxu0 0.0
      %4702 = vmatmul.mubr.f32.gmra.mrb[0].mxu0 %v4630
      %v4703 = vpop.f32.mrb[0].mxu0
      %v4704 = vadd.f32 0.0, %v4703
      %v4705 = vpop.f32.mrb[0].mxu0
      %4706 = vdwg.mxu0
      %4707 = vrot.lane.b32.xlu0 %v462, 48
      %v4708 = vpop.permute.xlu0 %4707
      %4709 = vrot.lane.b32.xlu0 %v467, 48
      %v4710 = vpop.permute.xlu0 %4709
      %v4714 = vsel %vm1243, %v4606, 0
      %v4717 = vsel %vm1243, %v4607, 0
      %4719 = vmatprep.subr.mxu0 0.0
      %4720 = vmatpush1.msra.mxu0 %v4708
      %4721 = vmatprep.subr.mxu0 0.0
      %4722 = vmatpush1.msra.mxu0 %v4710
      %4723 = vmatprep.subr.mxu0 0.0
      %4724 = vmatpush1.msra.mxu0 0.0
      %4725 = vmatprep.subr.mxu0 0.0
      %4726 = vmatpush1.msra.mxu0 0.0
      %4727 = vmatprep.subr.mxu0 0.0
      %4728 = vmatpush1.msra.mxu0 0.0
      %4729 = vmatprep.subr.mxu0 0.0
      %4730 = vmatpush1.msra.mxu0 0.0
      %4731 = vmatprep.subr.mxu0 0.0
      %4732 = vmatpush1.msra.mxu0 0.0
      %4733 = vmatprep.subr.mxu0 0.0
      %4734 = vmatpush1.msra.mxu0 0.0
      %4735 = vmatprep.subr.mxu0 0.0
      %4736 = vmatpush1.msra.mxu0 0.0
      %4737 = vmatprep.subr.mxu0 0.0
      %4738 = vmatpush1.msra.mxu0 0.0
      %4739 = vmatprep.subr.mxu0 0.0
      %4740 = vmatpush1.msra.mxu0 0.0
      %4741 = vmatprep.subr.mxu0 0.0
      %4742 = vmatpush1.msra.mxu0 0.0
      %4743 = vmatprep.subr.mxu0 0.0
      %4744 = vmatpush1.msra.mxu0 0.0
      %4745 = vmatprep.subr.mxu0 0.0
      %4746 = vmatpush1.msra.mxu0 0.0
      %4747 = vmatprep.subr.mxu0 0.0
      %4748 = vmatpush1.msra.mxu0 0.0
      %4749 = vmatprep.subr.mxu0 0.0
      %4750 = vmatpush1.msra.mxu0 0.0
      %4751 = vmatprep.subr.mxu0 0.0
      %4752 = vmatpush1.msra.mxu0 0.0
      %4753 = vmatprep.subr.mxu0 0.0
      %4754 = vmatpush1.msra.mxu0 0.0
      %4755 = vmatprep.subr.mxu0 0.0
      %4756 = vmatpush1.msra.mxu0 0.0
      %4757 = vmatprep.subr.mxu0 0.0
      %4758 = vmatpush1.msra.mxu0 0.0
      %4759 = vmatprep.subr.mxu0 0.0
      %4760 = vmatpush1.msra.mxu0 0.0
      %4761 = vmatprep.subr.mxu0 0.0
      %4762 = vmatpush1.msra.mxu0 0.0
      %4763 = vmatprep.subr.mxu0 0.0
      %4764 = vmatpush1.msra.mxu0 0.0
      %4765 = vmatprep.subr.mxu0 0.0
      %4766 = vmatpush1.msra.mxu0 0.0
      %4767 = vmatprep.subr.mxu0 0.0
      %4768 = vmatpush1.msra.mxu0 0.0
      %4769 = vmatprep.subr.mxu0 0.0
      %4770 = vmatpush1.msra.mxu0 0.0
      %4771 = vmatprep.subr.mxu0 0.0
      %4772 = vmatpush1.msra.mxu0 0.0
      %4773 = vmatprep.subr.mxu0 0.0
      %4774 = vmatpush1.msra.mxu0 0.0
      %4775 = vmatprep.subr.mxu0 0.0
      %4776 = vmatpush1.msra.mxu0 0.0
      %4777 = vmatprep.subr.mxu0 0.0
      %4778 = vmatpush1.msra.mxu0 0.0
      %4779 = vmatprep.subr.mxu0 0.0
      %4780 = vmatpush1.msra.mxu0 0.0
      %4781 = vmatprep.subr.mxu0 0.0
      %4782 = vmatpush1.msra.mxu0 0.0
      %4783 = vmatprep.mubr.f32.mxu0 0.0
      %4784 = vmatmul.mubr.f32.gmra.mrb[0].mxu0 %v4714
      %v4785 = vpop.f32.mrb[0].mxu0
      %v4786 = vadd.f32 0.0, %v4785
      %v4787 = vpop.f32.mrb[0].mxu0
      %4788 = vmatprep.mubr.f32.mxu0 0.0
      %4789 = vmatmul.mubr.f32.gmra.mrb[0].mxu0 %v4717
      %v4790 = vpop.f32.mrb[0].mxu0
      %v4791 = vadd.f32 0.0, %v4790
      %v4792 = vpop.f32.mrb[0].mxu0
      %4793 = vdwg.mxu0
      %4794 = vrot.lane.b32.xlu0 %v472, 48
      %v4795 = vpop.permute.xlu0 %4794
      %4796 = vrot.lane.b32.xlu0 %v477, 48
      %v4797 = vpop.permute.xlu0 %4796
      %v4801 = vsel %vm1243, %v4608, 0
      %v4804 = vsel %vm1243, %v4609, 0
      %4806 = vmatprep.subr.mxu0 0.0
      %4807 = vmatpush1.msra.mxu0 %v4795
      %4808 = vmatprep.subr.mxu0 0.0
      %4809 = vmatpush1.msra.mxu0 %v4797
      %4810 = vmatprep.subr.mxu0 0.0
      %4811 = vmatpush1.msra.mxu0 0.0
      %4812 = vmatprep.subr.mxu0 0.0
      %4813 = vmatpush1.msra.mxu0 0.0
      %4814 = vmatprep.subr.mxu0 0.0
      %4815 = vmatpush1.msra.mxu0 0.0
      %4816 = vmatprep.subr.mxu0 0.0
      %4817 = vmatpush1.msra.mxu0 0.0
      %4818 = vmatprep.subr.mxu0 0.0
      %4819 = vmatpush1.msra.mxu0 0.0
      %4820 = vmatprep.subr.mxu0 0.0
      %4821 = vmatpush1.msra.mxu0 0.0
      %4822 = vmatprep.subr.mxu0 0.0
      %4823 = vmatpush1.msra.mxu0 0.0
      %4824 = vmatprep.subr.mxu0 0.0
      %4825 = vmatpush1.msra.mxu0 0.0
      %4826 = vmatprep.subr.mxu0 0.0
      %4827 = vmatpush1.msra.mxu0 0.0
      %4828 = vmatprep.subr.mxu0 0.0
      %4829 = vmatpush1.msra.mxu0 0.0
      %4830 = vmatprep.subr.mxu0 0.0
      %4831 = vmatpush1.msra.mxu0 0.0
      %4832 = vmatprep.subr.mxu0 0.0
      %4833 = vmatpush1.msra.mxu0 0.0
      %4834 = vmatprep.subr.mxu0 0.0
      %4835 = vmatpush1.msra.mxu0 0.0
      %4836 = vmatprep.subr.mxu0 0.0
      %4837 = vmatpush1.msra.mxu0 0.0
      %4838 = vmatprep.subr.mxu0 0.0
      %4839 = vmatpush1.msra.mxu0 0.0
      %4840 = vmatprep.subr.mxu0 0.0
      %4841 = vmatpush1.msra.mxu0 0.0
      %4842 = vmatprep.subr.mxu0 0.0
      %4843 = vmatpush1.msra.mxu0 0.0
      %4844 = vmatprep.subr.mxu0 0.0
      %4845 = vmatpush1.msra.mxu0 0.0
      %4846 = vmatprep.subr.mxu0 0.0
      %4847 = vmatpush1.msra.mxu0 0.0
      %4848 = vmatprep.subr.mxu0 0.0
      %4849 = vmatpush1.msra.mxu0 0.0
      %4850 = vmatprep.subr.mxu0 0.0
      %4851 = vmatpush1.msra.mxu0 0.0
      %4852 = vmatprep.subr.mxu0 0.0
      %4853 = vmatpush1.msra.mxu0 0.0
      %4854 = vmatprep.subr.mxu0 0.0
      %4855 = vmatpush1.msra.mxu0 0.0
      %4856 = vmatprep.subr.mxu0 0.0
      %4857 = vmatpush1.msra.mxu0 0.0
      %4858 = vmatprep.subr.mxu0 0.0
      %4859 = vmatpush1.msra.mxu0 0.0
      %4860 = vmatprep.subr.mxu0 0.0
      %4861 = vmatpush1.msra.mxu0 0.0
      %4862 = vmatprep.subr.mxu0 0.0
      %4863 = vmatpush1.msra.mxu0 0.0
      %4864 = vmatprep.subr.mxu0 0.0
      %4865 = vmatpush1.msra.mxu0 0.0
      %4866 = vmatprep.subr.mxu0 0.0
      %4867 = vmatpush1.msra.mxu0 0.0
      %4868 = vmatprep.subr.mxu0 0.0
      %4869 = vmatpush1.msra.mxu0 0.0
      %4870 = vmatprep.mubr.f32.mxu0 0.0
      %4871 = vmatmul.mubr.f32.gmra.mrb[0].mxu0 %v4801
      %v4872 = vpop.f32.mrb[0].mxu0
      %v4873 = vadd.f32 0.0, %v4872
      %v4874 = vpop.f32.mrb[0].mxu0
      %4875 = vmatprep.mubr.f32.mxu0 0.0
      %4876 = vmatmul.mubr.f32.gmra.mrb[0].mxu0 %v4804
      %v4877 = vpop.f32.mrb[0].mxu0
      %v4878 = vadd.f32 0.0, %v4877
      %v4879 = vpop.f32.mrb[0].mxu0
      %4880 = vdwg.mxu0
      %4881 = vrot.lane.b32.xlu0 %v482, 48
      %v4882 = vpop.permute.xlu0 %4881
      %4883 = vrot.lane.b32.xlu0 %v487, 48
      %v4884 = vpop.permute.xlu0 %4883
      %v4888 = vsel %vm1243, %v4610, 0
      %v4891 = vsel %vm1243, %v4611, 0
      %4893 = vmatprep.subr.mxu0 0.0
      %4894 = vmatpush1.msra.mxu0 %v4882
      %4895 = vmatprep.subr.mxu0 0.0
      %4896 = vmatpush1.msra.mxu0 %v4884
      %4897 = vmatprep.subr.mxu0 0.0
      %4898 = vmatpush1.msra.mxu0 0.0
      %4899 = vmatprep.subr.mxu0 0.0
      %4900 = vmatpush1.msra.mxu0 0.0
      %4901 = vmatprep.subr.mxu0 0.0
      %4902 = vmatpush1.msra.mxu0 0.0
      %4903 = vmatprep.subr.mxu0 0.0
      %4904 = vmatpush1.msra.mxu0 0.0
      %4905 = vmatprep.subr.mxu0 0.0
      %4906 = vmatpush1.msra.mxu0 0.0
      %4907 = vmatprep.subr.mxu0 0.0
      %4908 = vmatpush1.msra.mxu0 0.0
      %4909 = vmatprep.subr.mxu0 0.0
      %4910 = vmatpush1.msra.mxu0 0.0
      %4911 = vmatprep.subr.mxu0 0.0
      %4912 = vmatpush1.msra.mxu0 0.0
      %4913 = vmatprep.subr.mxu0 0.0
      %4914 = vmatpush1.msra.mxu0 0.0
      %4915 = vmatprep.subr.mxu0 0.0
      %4916 = vmatpush1.msra.mxu0 0.0
      %4917 = vmatprep.subr.mxu0 0.0
      %4918 = vmatpush1.msra.mxu0 0.0
      %4919 = vmatprep.subr.mxu0 0.0
      %4920 = vmatpush1.msra.mxu0 0.0
      %4921 = vmatprep.subr.mxu0 0.0
      %4922 = vmatpush1.msra.mxu0 0.0
      %4923 = vmatprep.subr.mxu0 0.0
      %4924 = vmatpush1.msra.mxu0 0.0
      %4925 = vmatprep.subr.mxu0 0.0
      %4926 = vmatpush1.msra.mxu0 0.0
      %4927 = vmatprep.subr.mxu0 0.0
      %4928 = vmatpush1.msra.mxu0 0.0
      %4929 = vmatprep.subr.mxu0 0.0
      %4930 = vmatpush1.msra.mxu0 0.0
      %4931 = vmatprep.subr.mxu0 0.0
      %4932 = vmatpush1.msra.mxu0 0.0
      %4933 = vmatprep.subr.mxu0 0.0
      %4934 = vmatpush1.msra.mxu0 0.0
      %4935 = vmatprep.subr.mxu0 0.0
      %4936 = vmatpush1.msra.mxu0 0.0
      %4937 = vmatprep.subr.mxu0 0.0
      %4938 = vmatpush1.msra.mxu0 0.0
      %4939 = vmatprep.subr.mxu0 0.0
      %4940 = vmatpush1.msra.mxu0 0.0
      %4941 = vmatprep.subr.mxu0 0.0
      %4942 = vmatpush1.msra.mxu0 0.0
      %4943 = vmatprep.subr.mxu0 0.0
      %4944 = vmatpush1.msra.mxu0 0.0
      %4945 = vmatprep.subr.mxu0 0.0
      %4946 = vmatpush1.msra.mxu0 0.0
      %4947 = vmatprep.subr.mxu0 0.0
      %4948 = vmatpush1.msra.mxu0 0.0
      %4949 = vmatprep.subr.mxu0 0.0
      %4950 = vmatpush1.msra.mxu0 0.0
      %4951 = vmatprep.subr.mxu0 0.0
      %4952 = vmatpush1.msra.mxu0 0.0
      %4953 = vmatprep.subr.mxu0 0.0
      %4954 = vmatpush1.msra.mxu0 0.0
      %4955 = vmatprep.subr.mxu0 0.0
      %4956 = vmatpush1.msra.mxu0 0.0
      %4957 = vmatprep.mubr.f32.mxu0 0.0
      %4958 = vmatmul.mubr.f32.gmra.mrb[0].mxu0 %v4888
      %v4959 = vpop.f32.mrb[0].mxu0
      %v4960 = vadd.f32 0.0, %v4959
      %v4961 = vpop.f32.mrb[0].mxu0
      %4962 = vmatprep.mubr.f32.mxu0 0.0
      %4963 = vmatmul.mubr.f32.gmra.mrb[0].mxu0 %v4891
      %v4964 = vpop.f32.mrb[0].mxu0
      %v4965 = vadd.f32 0.0, %v4964
      %v4966 = vpop.f32.mrb[0].mxu0
      %4967 = vdwg.mxu0
      %4968 = vrot.lane.b32.xlu0 %v492, 48
      %v4969 = vpop.permute.xlu0 %4968
      %4970 = vrot.lane.b32.xlu0 %v497, 48
      %v4971 = vpop.permute.xlu0 %4970
      %v4975 = vsel %vm1243, %v4612, 0
      %v4978 = vsel %vm1243, %v4613, 0
      %4980 = vmatprep.subr.mxu0 0.0
      %4981 = vmatpush1.msra.mxu0 %v4969
      %4982 = vmatprep.subr.mxu0 0.0
      %4983 = vmatpush1.msra.mxu0 %v4971
      %4984 = vmatprep.subr.mxu0 0.0
      %4985 = vmatpush1.msra.mxu0 0.0
      %4986 = vmatprep.subr.mxu0 0.0
      %4987 = vmatpush1.msra.mxu0 0.0
      %4988 = vmatprep.subr.mxu0 0.0
      %4989 = vmatpush1.msra.mxu0 0.0
      %4990 = vmatprep.subr.mxu0 0.0
      %4991 = vmatpush1.msra.mxu0 0.0
      %4992 = vmatprep.subr.mxu0 0.0
      %4993 = vmatpush1.msra.mxu0 0.0
      %4994 = vmatprep.subr.mxu0 0.0
      %4995 = vmatpush1.msra.mxu0 0.0
      %4996 = vmatprep.subr.mxu0 0.0
      %4997 = vmatpush1.msra.mxu0 0.0
      %4998 = vmatprep.subr.mxu0 0.0
      %4999 = vmatpush1.msra.mxu0 0.0
      %5000 = vmatprep.subr.mxu0 0.0
      %5001 = vmatpush1.msra.mxu0 0.0
      %5002 = vmatprep.subr.mxu0 0.0
      %5003 = vmatpush1.msra.mxu0 0.0
      %5004 = vmatprep.subr.mxu0 0.0
      %5005 = vmatpush1.msra.mxu0 0.0
      %5006 = vmatprep.subr.mxu0 0.0
      %5007 = vmatpush1.msra.mxu0 0.0
      %5008 = vmatprep.subr.mxu0 0.0
      %5009 = vmatpush1.msra.mxu0 0.0
      %5010 = vmatprep.subr.mxu0 0.0
      %5011 = vmatpush1.msra.mxu0 0.0
      %5012 = vmatprep.subr.mxu0 0.0
      %5013 = vmatpush1.msra.mxu0 0.0
      %5014 = vmatprep.subr.mxu0 0.0
      %5015 = vmatpush1.msra.mxu0 0.0
      %5016 = vmatprep.subr.mxu0 0.0
      %5017 = vmatpush1.msra.mxu0 0.0
      %5018 = vmatprep.subr.mxu0 0.0
      %5019 = vmatpush1.msra.mxu0 0.0
      %5020 = vmatprep.subr.mxu0 0.0
      %5021 = vmatpush1.msra.mxu0 0.0
      %5022 = vmatprep.subr.mxu0 0.0
      %5023 = vmatpush1.msra.mxu0 0.0
      %5024 = vmatprep.subr.mxu0 0.0
      %5025 = vmatpush1.msra.mxu0 0.0
      %5026 = vmatprep.subr.mxu0 0.0
      %5027 = vmatpush1.msra.mxu0 0.0
      %5028 = vmatprep.subr.mxu0 0.0
      %5029 = vmatpush1.msra.mxu0 0.0
      %5030 = vmatprep.subr.mxu0 0.0
      %5031 = vmatpush1.msra.mxu0 0.0
      %5032 = vmatprep.subr.mxu0 0.0
      %5033 = vmatpush1.msra.mxu0 0.0
      %5034 = vmatprep.subr.mxu0 0.0
      %5035 = vmatpush1.msra.mxu0 0.0
      %5036 = vmatprep.subr.mxu0 0.0
      %5037 = vmatpush1.msra.mxu0 0.0
      %5038 = vmatprep.subr.mxu0 0.0
      %5039 = vmatpush1.msra.mxu0 0.0
      %5040 = vmatprep.subr.mxu0 0.0
      %5041 = vmatpush1.msra.mxu0 0.0
      %5042 = vmatprep.subr.mxu0 0.0
      %5043 = vmatpush1.msra.mxu0 0.0
      %5044 = vmatprep.mubr.f32.mxu0 0.0
      %5045 = vmatmul.mubr.f32.gmra.mrb[0].mxu0 %v4975
      %v5046 = vpop.f32.mrb[0].mxu0
      %v5047 = vadd.f32 0.0, %v5046
      %v5048 = vpop.f32.mrb[0].mxu0
      %5049 = vmatprep.mubr.f32.mxu0 0.0
      %5050 = vmatmul.mubr.f32.gmra.mrb[0].mxu0 %v4978
      %v5051 = vpop.f32.mrb[0].mxu0
      %v5052 = vadd.f32 0.0, %v5051
      %v5053 = vpop.f32.mrb[0].mxu0
      %5054 = vdwg.mxu0
      %5055 = vrot.lane.b32.xlu0 %v502, 48
      %v5056 = vpop.permute.xlu0 %5055
      %5057 = vrot.lane.b32.xlu0 %v507, 48
      %v5058 = vpop.permute.xlu0 %5057
      %v5062 = vsel %vm1243, %v4614, 0
      %v5065 = vsel %vm1243, %v4615, 0
      %5067 = vmatprep.subr.mxu0 0.0
      %5068 = vmatpush1.msra.mxu0 %v5056
      %5069 = vmatprep.subr.mxu0 0.0
      %5070 = vmatpush1.msra.mxu0 %v5058
      %5071 = vmatprep.subr.mxu0 0.0
      %5072 = vmatpush1.msra.mxu0 0.0
      %5073 = vmatprep.subr.mxu0 0.0
      %5074 = vmatpush1.msra.mxu0 0.0
      %5075 = vmatprep.subr.mxu0 0.0
      %5076 = vmatpush1.msra.mxu0 0.0
      %5077 = vmatprep.subr.mxu0 0.0
      %5078 = vmatpush1.msra.mxu0 0.0
      %5079 = vmatprep.subr.mxu0 0.0
      %5080 = vmatpush1.msra.mxu0 0.0
      %5081 = vmatprep.subr.mxu0 0.0
      %5082 = vmatpush1.msra.mxu0 0.0
      %5083 = vmatprep.subr.mxu0 0.0
      %5084 = vmatpush1.msra.mxu0 0.0
      %5085 = vmatprep.subr.mxu0 0.0
      %5086 = vmatpush1.msra.mxu0 0.0
      %5087 = vmatprep.subr.mxu0 0.0
      %5088 = vmatpush1.msra.mxu0 0.0
      %5089 = vmatprep.subr.mxu0 0.0
      %5090 = vmatpush1.msra.mxu0 0.0
      %5091 = vmatprep.subr.mxu0 0.0
      %5092 = vmatpush1.msra.mxu0 0.0
      %5093 = vmatprep.subr.mxu0 0.0
      %5094 = vmatpush1.msra.mxu0 0.0
      %5095 = vmatprep.subr.mxu0 0.0
      %5096 = vmatpush1.msra.mxu0 0.0
      %5097 = vmatprep.subr.mxu0 0.0
      %5098 = vmatpush1.msra.mxu0 0.0
      %5099 = vmatprep.subr.mxu0 0.0
      %5100 = vmatpush1.msra.mxu0 0.0
      %5101 = vmatprep.subr.mxu0 0.0
      %5102 = vmatpush1.msra.mxu0 0.0
      %5103 = vmatprep.subr.mxu0 0.0
      %5104 = vmatpush1.msra.mxu0 0.0
      %5105 = vmatprep.subr.mxu0 0.0
      %5106 = vmatpush1.msra.mxu0 0.0
      %5107 = vmatprep.subr.mxu0 0.0
      %5108 = vmatpush1.msra.mxu0 0.0
      %5109 = vmatprep.subr.mxu0 0.0
      %5110 = vmatpush1.msra.mxu0 0.0
      %5111 = vmatprep.subr.mxu0 0.0
      %5112 = vmatpush1.msra.mxu0 0.0
      %5113 = vmatprep.subr.mxu0 0.0
      %5114 = vmatpush1.msra.mxu0 0.0
      %5115 = vmatprep.subr.mxu0 0.0
      %5116 = vmatpush1.msra.mxu0 0.0
      %5117 = vmatprep.subr.mxu0 0.0
      %5118 = vmatpush1.msra.mxu0 0.0
      %5119 = vmatprep.subr.mxu0 0.0
      %5120 = vmatpush1.msra.mxu0 0.0
      %5121 = vmatprep.subr.mxu0 0.0
      %5122 = vmatpush1.msra.mxu0 0.0
      %5123 = vmatprep.subr.mxu0 0.0
      %5124 = vmatpush1.msra.mxu0 0.0
      %5125 = vmatprep.subr.mxu0 0.0
      %5126 = vmatpush1.msra.mxu0 0.0
      %5127 = vmatprep.subr.mxu0 0.0
      %5128 = vmatpush1.msra.mxu0 0.0
      %5129 = vmatprep.subr.mxu0 0.0
      %5130 = vmatpush1.msra.mxu0 0.0
      %5131 = vmatprep.mubr.f32.mxu0 0.0
      %5132 = vmatmul.mubr.f32.gmra.mrb[0].mxu0 %v5062
      %v5133 = vpop.f32.mrb[0].mxu0
      %v5134 = vadd.f32 0.0, %v5133
      %v5135 = vpop.f32.mrb[0].mxu0
      %5136 = vmatprep.mubr.f32.mxu0 0.0
      %5137 = vmatmul.mubr.f32.gmra.mrb[0].mxu0 %v5065
      %v5138 = vpop.f32.mrb[0].mxu0
      %v5139 = vadd.f32 0.0, %v5138
      %v5140 = vpop.f32.mrb[0].mxu0
      %5141 = vdwg.mxu0
      %5142 = vrot.lane.b32.xlu0 %v512, 48
      %v5143 = vpop.permute.xlu0 %5142
      %5144 = vrot.lane.b32.xlu0 %v517, 48
      %v5145 = vpop.permute.xlu0 %5144
      %v5149 = vsel %vm1243, %v4616, 0
      %v5152 = vsel %vm1243, %v4617, 0
      %5154 = vmatprep.subr.mxu0 0.0
      %5155 = vmatpush1.msra.mxu0 %v5143
      %5156 = vmatprep.subr.mxu0 0.0
      %5157 = vmatpush1.msra.mxu0 %v5145
      %5158 = vmatprep.subr.mxu0 0.0
      %5159 = vmatpush1.msra.mxu0 0.0
      %5160 = vmatprep.subr.mxu0 0.0
      %5161 = vmatpush1.msra.mxu0 0.0
      %5162 = vmatprep.subr.mxu0 0.0
      %5163 = vmatpush1.msra.mxu0 0.0
      %5164 = vmatprep.subr.mxu0 0.0
      %5165 = vmatpush1.msra.mxu0 0.0
      %5166 = vmatprep.subr.mxu0 0.0
      %5167 = vmatpush1.msra.mxu0 0.0
      %5168 = vmatprep.subr.mxu0 0.0
      %5169 = vmatpush1.msra.mxu0 0.0
      %5170 = vmatprep.subr.mxu0 0.0
      %5171 = vmatpush1.msra.mxu0 0.0
      %5172 = vmatprep.subr.mxu0 0.0
      %5173 = vmatpush1.msra.mxu0 0.0
      %5174 = vmatprep.subr.mxu0 0.0
      %5175 = vmatpush1.msra.mxu0 0.0
      %5176 = vmatprep.subr.mxu0 0.0
      %5177 = vmatpush1.msra.mxu0 0.0
      %5178 = vmatprep.subr.mxu0 0.0
      %5179 = vmatpush1.msra.mxu0 0.0
      %5180 = vmatprep.subr.mxu0 0.0
      %5181 = vmatpush1.msra.mxu0 0.0
      %5182 = vmatprep.subr.mxu0 0.0
      %5183 = vmatpush1.msra.mxu0 0.0
      %5184 = vmatprep.subr.mxu0 0.0
      %5185 = vmatpush1.msra.mxu0 0.0
      %5186 = vmatprep.subr.mxu0 0.0
      %5187 = vmatpush1.msra.mxu0 0.0
      %5188 = vmatprep.subr.mxu0 0.0
      %5189 = vmatpush1.msra.mxu0 0.0
      %5190 = vmatprep.subr.mxu0 0.0
      %5191 = vmatpush1.msra.mxu0 0.0
      %5192 = vmatprep.subr.mxu0 0.0
      %5193 = vmatpush1.msra.mxu0 0.0
      %5194 = vmatprep.subr.mxu0 0.0
      %5195 = vmatpush1.msra.mxu0 0.0
      %5196 = vmatprep.subr.mxu0 0.0
      %5197 = vmatpush1.msra.mxu0 0.0
      %5198 = vmatprep.subr.mxu0 0.0
      %5199 = vmatpush1.msra.mxu0 0.0
      %5200 = vmatprep.subr.mxu0 0.0
      %5201 = vmatpush1.msra.mxu0 0.0
      %5202 = vmatprep.subr.mxu0 0.0
      %5203 = vmatpush1.msra.mxu0 0.0
      %5204 = vmatprep.subr.mxu0 0.0
      %5205 = vmatpush1.msra.mxu0 0.0
      %5206 = vmatprep.subr.mxu0 0.0
      %5207 = vmatpush1.msra.mxu0 0.0
      %5208 = vmatprep.subr.mxu0 0.0
      %5209 = vmatpush1.msra.mxu0 0.0
      %5210 = vmatprep.subr.mxu0 0.0
      %5211 = vmatpush1.msra.mxu0 0.0
      %5212 = vmatprep.subr.mxu0 0.0
      %5213 = vmatpush1.msra.mxu0 0.0
      %5214 = vmatprep.subr.mxu0 0.0
      %5215 = vmatpush1.msra.mxu0 0.0
      %5216 = vmatprep.subr.mxu0 0.0
      %5217 = vmatpush1.msra.mxu0 0.0
      %5218 = vmatprep.mubr.f32.mxu0 0.0
      %5219 = vmatmul.mubr.f32.gmra.mrb[0].mxu0 %v5149
      %v5220 = vpop.f32.mrb[0].mxu0
      %v5221 = vadd.f32 0.0, %v5220
      %v5222 = vpop.f32.mrb[0].mxu0
      %5223 = vmatprep.mubr.f32.mxu0 0.0
      %5224 = vmatmul.mubr.f32.gmra.mrb[0].mxu0 %v5152
      %v5225 = vpop.f32.mrb[0].mxu0
      %v5226 = vadd.f32 0.0, %v5225
      %v5227 = vpop.f32.mrb[0].mxu0
      %5228 = vdwg.mxu0
      %5229 = vrot.lane.b32.xlu0 %v522, 48
      %v5230 = vpop.permute.xlu0 %5229
      %5231 = vrot.lane.b32.xlu0 %v527, 48
      %v5232 = vpop.permute.xlu0 %5231
      %v5236 = vsel %vm1243, %v4618, 0
      %v5239 = vsel %vm1243, %v4619, 0
      %5241 = vmatprep.subr.mxu0 0.0
      %5242 = vmatpush1.msra.mxu0 %v5230
      %5243 = vmatprep.subr.mxu0 0.0
      %5244 = vmatpush1.msra.mxu0 %v5232
      %5245 = vmatprep.subr.mxu0 0.0
      %5246 = vmatpush1.msra.mxu0 0.0
      %5247 = vmatprep.subr.mxu0 0.0
      %5248 = vmatpush1.msra.mxu0 0.0
      %5249 = vmatprep.subr.mxu0 0.0
      %5250 = vmatpush1.msra.mxu0 0.0
      %5251 = vmatprep.subr.mxu0 0.0
      %5252 = vmatpush1.msra.mxu0 0.0
      %5253 = vmatprep.subr.mxu0 0.0
      %5254 = vmatpush1.msra.mxu0 0.0
      %5255 = vmatprep.subr.mxu0 0.0
      %5256 = vmatpush1.msra.mxu0 0.0
      %5257 = vmatprep.subr.mxu0 0.0
      %5258 = vmatpush1.msra.mxu0 0.0
      %5259 = vmatprep.subr.mxu0 0.0
      %5260 = vmatpush1.msra.mxu0 0.0
      %5261 = vmatprep.subr.mxu0 0.0
      %5262 = vmatpush1.msra.mxu0 0.0
      %5263 = vmatprep.subr.mxu0 0.0
      %5264 = vmatpush1.msra.mxu0 0.0
      %5265 = vmatprep.subr.mxu0 0.0
      %5266 = vmatpush1.msra.mxu0 0.0
      %5267 = vmatprep.subr.mxu0 0.0
      %5268 = vmatpush1.msra.mxu0 0.0
      %5269 = vmatprep.subr.mxu0 0.0
      %5270 = vmatpush1.msra.mxu0 0.0
      %5271 = vmatprep.subr.mxu0 0.0
      %5272 = vmatpush1.msra.mxu0 0.0
      %5273 = vmatprep.subr.mxu0 0.0
      %5274 = vmatpush1.msra.mxu0 0.0
      %5275 = vmatprep.subr.mxu0 0.0
      %5276 = vmatpush1.msra.mxu0 0.0
      %5277 = vmatprep.subr.mxu0 0.0
      %5278 = vmatpush1.msra.mxu0 0.0
      %5279 = vmatprep.subr.mxu0 0.0
      %5280 = vmatpush1.msra.mxu0 0.0
      %5281 = vmatprep.subr.mxu0 0.0
      %5282 = vmatpush1.msra.mxu0 0.0
      %5283 = vmatprep.subr.mxu0 0.0
      %5284 = vmatpush1.msra.mxu0 0.0
      %5285 = vmatprep.subr.mxu0 0.0
      %5286 = vmatpush1.msra.mxu0 0.0
      %5287 = vmatprep.subr.mxu0 0.0
      %5288 = vmatpush1.msra.mxu0 0.0
      %5289 = vmatprep.subr.mxu0 0.0
      %5290 = vmatpush1.msra.mxu0 0.0
      %5291 = vmatprep.subr.mxu0 0.0
      %5292 = vmatpush1.msra.mxu0 0.0
      %5293 = vmatprep.subr.mxu0 0.0
      %5294 = vmatpush1.msra.mxu0 0.0
      %5295 = vmatprep.subr.mxu0 0.0
      %5296 = vmatpush1.msra.mxu0 0.0
      %5297 = vmatprep.subr.mxu0 0.0
      %5298 = vmatpush1.msra.mxu0 0.0
      %5299 = vmatprep.subr.mxu0 0.0
      %5300 = vmatpush1.msra.mxu0 0.0
      %5301 = vmatprep.subr.mxu0 0.0
      %5302 = vmatpush1.msra.mxu0 0.0
      %5303 = vmatprep.subr.mxu0 0.0
      %5304 = vmatpush1.msra.mxu0 0.0
      %5305 = vmatprep.mubr.f32.mxu0 0.0
      %5306 = vmatmul.mubr.f32.gmra.mrb[0].mxu0 %v5236
      %v5307 = vpop.f32.mrb[0].mxu0
      %v5308 = vadd.f32 0.0, %v5307
      %v5309 = vpop.f32.mrb[0].mxu0
      %5310 = vmatprep.mubr.f32.mxu0 0.0
      %5311 = vmatmul.mubr.f32.gmra.mrb[0].mxu0 %v5239
      %v5312 = vpop.f32.mrb[0].mxu0
      %v5313 = vadd.f32 0.0, %v5312
      %v5314 = vpop.f32.mrb[0].mxu0
      %5315 = vdwg.mxu0
      %5316 = vrot.lane.b32.xlu0 %v452, 104
      %v5317 = vpop.permute.xlu0 %5316
      %5318 = vrot.lane.b32.xlu0 %v457, 104
      %v5319 = vpop.permute.xlu0 %5318
      %5320 = vrot.lane.b32.xlu0 %v452, 72
      %v5321 = vpop.permute.xlu0 %5320
      %5322 = vrot.lane.b32.xlu0 %v457, 72
      %v5323 = vpop.permute.xlu0 %5322
      %v5324 = vsel %vm536, %v5317, 0
      %v5326 = vsel %vm536, %v5319, 0
      %v5328 = vsel %vm536, %v5321, 0
      %v5330 = vsel %vm536, %v5323, 0
      %5332 = vmatprep.subr.mxu0 0.0
      %5333 = vmatpush1.xpose.msra.mxu0 %v5328
      %5334 = vmatprep.subr.mxu0 0.0
      %5335 = vmatpush1.xpose.msra.mxu0 %v5330
      %5336 = vmatprep.subr.mxu0 0.0
      %5337 = vmatpush1.xpose.msra.mxu0 0.0
      %5338 = vmatprep.subr.mxu0 0.0
      %5339 = vmatpush1.xpose.msra.mxu0 0.0
      %5340 = vmatprep.subr.mxu0 0.0
      %5341 = vmatpush1.xpose.msra.mxu0 0.0
      %5342 = vmatprep.subr.mxu0 0.0
      %5343 = vmatpush1.xpose.msra.mxu0 0.0
      %5344 = vmatprep.subr.mxu0 0.0
      %5345 = vmatpush1.xpose.msra.mxu0 0.0
      %5346 = vmatprep.subr.mxu0 0.0
      %5347 = vmatpush1.xpose.msra.mxu0 0.0
      %5348 = vmatprep.subr.mxu0 0.0
      %5349 = vmatpush1.xpose.msra.mxu0 0.0
      %5350 = vmatprep.subr.mxu0 0.0
      %5351 = vmatpush1.xpose.msra.mxu0 0.0
      %5352 = vmatprep.subr.mxu0 0.0
      %5353 = vmatpush1.xpose.msra.mxu0 0.0
      %5354 = vmatprep.subr.mxu0 0.0
      %5355 = vmatpush1.xpose.msra.mxu0 0.0
      %5356 = vmatprep.subr.mxu0 0.0
      %5357 = vmatpush1.xpose.msra.mxu0 0.0
      %5358 = vmatprep.subr.mxu0 0.0
      %5359 = vmatpush1.xpose.msra.mxu0 0.0
      %5360 = vmatprep.subr.mxu0 0.0
      %5361 = vmatpush1.xpose.msra.mxu0 0.0
      %5362 = vmatprep.subr.mxu0 0.0
      %5363 = vmatpush1.xpose.msra.mxu0 0.0
      %5364 = vmatprep.subr.mxu0 0.0
      %5365 = vmatpush1.xpose.msra.mxu0 0.0
      %5366 = vmatprep.subr.mxu0 0.0
      %5367 = vmatpush1.xpose.msra.mxu0 0.0
      %5368 = vmatprep.subr.mxu0 0.0
      %5369 = vmatpush1.xpose.msra.mxu0 0.0
      %5370 = vmatprep.subr.mxu0 0.0
      %5371 = vmatpush1.xpose.msra.mxu0 0.0
      %5372 = vmatprep.subr.mxu0 0.0
      %5373 = vmatpush1.xpose.msra.mxu0 0.0
      %5374 = vmatprep.subr.mxu0 0.0
      %5375 = vmatpush1.xpose.msra.mxu0 0.0
      %5376 = vmatprep.subr.mxu0 0.0
      %5377 = vmatpush1.xpose.msra.mxu0 0.0
      %5378 = vmatprep.subr.mxu0 0.0
      %5379 = vmatpush1.xpose.msra.mxu0 0.0
      %5380 = vmatprep.subr.mxu0 0.0
      %5381 = vmatpush1.xpose.msra.mxu0 0.0
      %5382 = vmatprep.subr.mxu0 0.0
      %5383 = vmatpush1.xpose.msra.mxu0 0.0
      %5384 = vmatprep.subr.mxu0 0.0
      %5385 = vmatpush1.xpose.msra.mxu0 0.0
      %5386 = vmatprep.subr.mxu0 0.0
      %5387 = vmatpush1.xpose.msra.mxu0 0.0
      %5388 = vmatprep.subr.mxu0 0.0
      %5389 = vmatpush1.xpose.msra.mxu0 0.0
      %5390 = vmatprep.subr.mxu0 0.0
      %5391 = vmatpush1.xpose.msra.mxu0 0.0
      %5392 = vmatprep.subr.mxu0 0.0
      %5393 = vmatpush1.xpose.msra.mxu0 0.0
      %5394 = vmatprep.subr.mxu0 0.0
      %5395 = vmatpush1.xpose.msra.mxu0 0.0
      %5396 = vmatprep.mubr.f32.mxu0 0.0
      %5397 = vmatmul.mubr.f32.gmra.mrb[0].mxu0 %v5324
      %v5398 = vpop.f32.mrb[0].mxu0
      %v5399 = vadd.f32 0.0, %v5398
      %v5400 = vpop.f32.mrb[0].mxu0
      %5401 = vmatprep.mubr.f32.mxu0 0.0
      %5402 = vmatmul.mubr.f32.gmra.mrb[0].mxu0 %v5326
      %v5403 = vpop.f32.mrb[0].mxu0
      %v5404 = vadd.f32 0.0, %v5403
      %v5405 = vpop.f32.mrb[0].mxu0
      %5406 = vdwg.mxu0
      %5407 = vrot.lane.b32.xlu0 %v462, 104
      %v5408 = vpop.permute.xlu0 %5407
      %5409 = vrot.lane.b32.xlu0 %v467, 104
      %v5410 = vpop.permute.xlu0 %5409
      %5411 = vrot.lane.b32.xlu0 %v462, 72
      %v5412 = vpop.permute.xlu0 %5411
      %5413 = vrot.lane.b32.xlu0 %v467, 72
      %v5414 = vpop.permute.xlu0 %5413
      %v5415 = vsel %vm536, %v5408, 0
      %v5417 = vsel %vm536, %v5410, 0
      %v5419 = vsel %vm536, %v5412, 0
      %v5421 = vsel %vm536, %v5414, 0
      %5423 = vmatprep.subr.mxu0 0.0
      %5424 = vmatpush1.xpose.msra.mxu0 %v5419
      %5425 = vmatprep.subr.mxu0 0.0
      %5426 = vmatpush1.xpose.msra.mxu0 %v5421
      %5427 = vmatprep.subr.mxu0 0.0
      %5428 = vmatpush1.xpose.msra.mxu0 0.0
      %5429 = vmatprep.subr.mxu0 0.0
      %5430 = vmatpush1.xpose.msra.mxu0 0.0
      %5431 = vmatprep.subr.mxu0 0.0
      %5432 = vmatpush1.xpose.msra.mxu0 0.0
      %5433 = vmatprep.subr.mxu0 0.0
      %5434 = vmatpush1.xpose.msra.mxu0 0.0
      %5435 = vmatprep.subr.mxu0 0.0
      %5436 = vmatpush1.xpose.msra.mxu0 0.0
      %5437 = vmatprep.subr.mxu0 0.0
      %5438 = vmatpush1.xpose.msra.mxu0 0.0
      %5439 = vmatprep.subr.mxu0 0.0
      %5440 = vmatpush1.xpose.msra.mxu0 0.0
      %5441 = vmatprep.subr.mxu0 0.0
      %5442 = vmatpush1.xpose.msra.mxu0 0.0
      %5443 = vmatprep.subr.mxu0 0.0
      %5444 = vmatpush1.xpose.msra.mxu0 0.0
      %5445 = vmatprep.subr.mxu0 0.0
      %5446 = vmatpush1.xpose.msra.mxu0 0.0
      %5447 = vmatprep.subr.mxu0 0.0
      %5448 = vmatpush1.xpose.msra.mxu0 0.0
      %5449 = vmatprep.subr.mxu0 0.0
      %5450 = vmatpush1.xpose.msra.mxu0 0.0
      %5451 = vmatprep.subr.mxu0 0.0
      %5452 = vmatpush1.xpose.msra.mxu0 0.0
      %5453 = vmatprep.subr.mxu0 0.0
      %5454 = vmatpush1.xpose.msra.mxu0 0.0
      %5455 = vmatprep.subr.mxu0 0.0
      %5456 = vmatpush1.xpose.msra.mxu0 0.0
      %5457 = vmatprep.subr.mxu0 0.0
      %5458 = vmatpush1.xpose.msra.mxu0 0.0
      %5459 = vmatprep.subr.mxu0 0.0
      %5460 = vmatpush1.xpose.msra.mxu0 0.0
      %5461 = vmatprep.subr.mxu0 0.0
      %5462 = vmatpush1.xpose.msra.mxu0 0.0
      %5463 = vmatprep.subr.mxu0 0.0
      %5464 = vmatpush1.xpose.msra.mxu0 0.0
      %5465 = vmatprep.subr.mxu0 0.0
      %5466 = vmatpush1.xpose.msra.mxu0 0.0
      %5467 = vmatprep.subr.mxu0 0.0
      %5468 = vmatpush1.xpose.msra.mxu0 0.0
      %5469 = vmatprep.subr.mxu0 0.0
      %5470 = vmatpush1.xpose.msra.mxu0 0.0
      %5471 = vmatprep.subr.mxu0 0.0
      %5472 = vmatpush1.xpose.msra.mxu0 0.0
      %5473 = vmatprep.subr.mxu0 0.0
      %5474 = vmatpush1.xpose.msra.mxu0 0.0
      %5475 = vmatprep.subr.mxu0 0.0
      %5476 = vmatpush1.xpose.msra.mxu0 0.0
      %5477 = vmatprep.subr.mxu0 0.0
      %5478 = vmatpush1.xpose.msra.mxu0 0.0
      %5479 = vmatprep.subr.mxu0 0.0
      %5480 = vmatpush1.xpose.msra.mxu0 0.0
      %5481 = vmatprep.subr.mxu0 0.0
      %5482 = vmatpush1.xpose.msra.mxu0 0.0
      %5483 = vmatprep.subr.mxu0 0.0
      %5484 = vmatpush1.xpose.msra.mxu0 0.0
      %5485 = vmatprep.subr.mxu0 0.0
      %5486 = vmatpush1.xpose.msra.mxu0 0.0
      %5487 = vmatprep.mubr.f32.mxu0 0.0
      %5488 = vmatmul.mubr.f32.gmra.mrb[0].mxu0 %v5415
      %v5489 = vpop.f32.mrb[0].mxu0
      %v5490 = vadd.f32 0.0, %v5489
      %v5491 = vpop.f32.mrb[0].mxu0
      %5492 = vmatprep.mubr.f32.mxu0 0.0
      %5493 = vmatmul.mubr.f32.gmra.mrb[0].mxu0 %v5417
      %v5494 = vpop.f32.mrb[0].mxu0
      %v5495 = vadd.f32 0.0, %v5494
      %v5496 = vpop.f32.mrb[0].mxu0
      %5497 = vdwg.mxu0
      %5498 = vrot.lane.b32.xlu0 %v472, 104
      %v5499 = vpop.permute.xlu0 %5498
      %5500 = vrot.lane.b32.xlu0 %v477, 104
      %v5501 = vpop.permute.xlu0 %5500
      %5502 = vrot.lane.b32.xlu0 %v472, 72
      %v5503 = vpop.permute.xlu0 %5502
      %5504 = vrot.lane.b32.xlu0 %v477, 72
      %v5505 = vpop.permute.xlu0 %5504
      %v5506 = vsel %vm536, %v5499, 0
      %v5508 = vsel %vm536, %v5501, 0
      %v5510 = vsel %vm536, %v5503, 0
      %v5512 = vsel %vm536, %v5505, 0
      %5514 = vmatprep.subr.mxu0 0.0
      %5515 = vmatpush1.xpose.msra.mxu0 %v5510
      %5516 = vmatprep.subr.mxu0 0.0
      %5517 = vmatpush1.xpose.msra.mxu0 %v5512
      %5518 = vmatprep.subr.mxu0 0.0
      %5519 = vmatpush1.xpose.msra.mxu0 0.0
      %5520 = vmatprep.subr.mxu0 0.0
      %5521 = vmatpush1.xpose.msra.mxu0 0.0
      %5522 = vmatprep.subr.mxu0 0.0
      %5523 = vmatpush1.xpose.msra.mxu0 0.0
      %5524 = vmatprep.subr.mxu0 0.0
      %5525 = vmatpush1.xpose.msra.mxu0 0.0
      %5526 = vmatprep.subr.mxu0 0.0
      %5527 = vmatpush1.xpose.msra.mxu0 0.0
      %5528 = vmatprep.subr.mxu0 0.0
      %5529 = vmatpush1.xpose.msra.mxu0 0.0
      %5530 = vmatprep.subr.mxu0 0.0
      %5531 = vmatpush1.xpose.msra.mxu0 0.0
      %5532 = vmatprep.subr.mxu0 0.0
      %5533 = vmatpush1.xpose.msra.mxu0 0.0
      %5534 = vmatprep.subr.mxu0 0.0
      %5535 = vmatpush1.xpose.msra.mxu0 0.0
      %5536 = vmatprep.subr.mxu0 0.0
      %5537 = vmatpush1.xpose.msra.mxu0 0.0
      %5538 = vmatprep.subr.mxu0 0.0
      %5539 = vmatpush1.xpose.msra.mxu0 0.0
      %5540 = vmatprep.subr.mxu0 0.0
      %5541 = vmatpush1.xpose.msra.mxu0 0.0
      %5542 = vmatprep.subr.mxu0 0.0
      %5543 = vmatpush1.xpose.msra.mxu0 0.0
      %5544 = vmatprep.subr.mxu0 0.0
      %5545 = vmatpush1.xpose.msra.mxu0 0.0
      %5546 = vmatprep.subr.mxu0 0.0
      %5547 = vmatpush1.xpose.msra.mxu0 0.0
      %5548 = vmatprep.subr.mxu0 0.0
      %5549 = vmatpush1.xpose.msra.mxu0 0.0
      %5550 = vmatprep.subr.mxu0 0.0
      %5551 = vmatpush1.xpose.msra.mxu0 0.0
      %5552 = vmatprep.subr.mxu0 0.0
      %5553 = vmatpush1.xpose.msra.mxu0 0.0
      %5554 = vmatprep.subr.mxu0 0.0
      %5555 = vmatpush1.xpose.msra.mxu0 0.0
      %5556 = vmatprep.subr.mxu0 0.0
      %5557 = vmatpush1.xpose.msra.mxu0 0.0
      %5558 = vmatprep.subr.mxu0 0.0
      %5559 = vmatpush1.xpose.msra.mxu0 0.0
      %5560 = vmatprep.subr.mxu0 0.0
      %5561 = vmatpush1.xpose.msra.mxu0 0.0
      %5562 = vmatprep.subr.mxu0 0.0
      %5563 = vmatpush1.xpose.msra.mxu0 0.0
      %5564 = vmatprep.subr.mxu0 0.0
      %5565 = vmatpush1.xpose.msra.mxu0 0.0
      %5566 = vmatprep.subr.mxu0 0.0
      %5567 = vmatpush1.xpose.msra.mxu0 0.0
      %5568 = vmatprep.subr.mxu0 0.0
      %5569 = vmatpush1.xpose.msra.mxu0 0.0
      %5570 = vmatprep.subr.mxu0 0.0
      %5571 = vmatpush1.xpose.msra.mxu0 0.0
      %5572 = vmatprep.subr.mxu0 0.0
      %5573 = vmatpush1.xpose.msra.mxu0 0.0
      %5574 = vmatprep.subr.mxu0 0.0
      %5575 = vmatpush1.xpose.msra.mxu0 0.0
      %5576 = vmatprep.subr.mxu0 0.0
      %5577 = vmatpush1.xpose.msra.mxu0 0.0
      %5578 = vmatprep.mubr.f32.mxu0 0.0
      %5579 = vmatmul.mubr.f32.gmra.mrb[0].mxu0 %v5506
      %v5580 = vpop.f32.mrb[0].mxu0
      %v5581 = vadd.f32 0.0, %v5580
      %v5582 = vpop.f32.mrb[0].mxu0
      %5583 = vmatprep.mubr.f32.mxu0 0.0
      %5584 = vmatmul.mubr.f32.gmra.mrb[0].mxu0 %v5508
      %v5585 = vpop.f32.mrb[0].mxu0
      %v5586 = vadd.f32 0.0, %v5585
      %v5587 = vpop.f32.mrb[0].mxu0
      %5588 = vdwg.mxu0
      %5589 = vrot.lane.b32.xlu0 %v482, 104
      %v5590 = vpop.permute.xlu0 %5589
      %5591 = vrot.lane.b32.xlu0 %v487, 104
      %v5592 = vpop.permute.xlu0 %5591
      %5593 = vrot.lane.b32.xlu0 %v482, 72
      %v5594 = vpop.permute.xlu0 %5593
      %5595 = vrot.lane.b32.xlu0 %v487, 72
      %v5596 = vpop.permute.xlu0 %5595
      %v5597 = vsel %vm536, %v5590, 0
      %v5599 = vsel %vm536, %v5592, 0
      %v5601 = vsel %vm536, %v5594, 0
      %v5603 = vsel %vm536, %v5596, 0
      %5605 = vmatprep.subr.mxu0 0.0
      %5606 = vmatpush1.xpose.msra.mxu0 %v5601
      %5607 = vmatprep.subr.mxu0 0.0
      %5608 = vmatpush1.xpose.msra.mxu0 %v5603
      %5609 = vmatprep.subr.mxu0 0.0
      %5610 = vmatpush1.xpose.msra.mxu0 0.0
      %5611 = vmatprep.subr.mxu0 0.0
      %5612 = vmatpush1.xpose.msra.mxu0 0.0
      %5613 = vmatprep.subr.mxu0 0.0
      %5614 = vmatpush1.xpose.msra.mxu0 0.0
      %5615 = vmatprep.subr.mxu0 0.0
      %5616 = vmatpush1.xpose.msra.mxu0 0.0
      %5617 = vmatprep.subr.mxu0 0.0
      %5618 = vmatpush1.xpose.msra.mxu0 0.0
      %5619 = vmatprep.subr.mxu0 0.0
      %5620 = vmatpush1.xpose.msra.mxu0 0.0
      %5621 = vmatprep.subr.mxu0 0.0
      %5622 = vmatpush1.xpose.msra.mxu0 0.0
      %5623 = vmatprep.subr.mxu0 0.0
      %5624 = vmatpush1.xpose.msra.mxu0 0.0
      %5625 = vmatprep.subr.mxu0 0.0
      %5626 = vmatpush1.xpose.msra.mxu0 0.0
      %5627 = vmatprep.subr.mxu0 0.0
      %5628 = vmatpush1.xpose.msra.mxu0 0.0
      %5629 = vmatprep.subr.mxu0 0.0
      %5630 = vmatpush1.xpose.msra.mxu0 0.0
      %5631 = vmatprep.subr.mxu0 0.0
      %5632 = vmatpush1.xpose.msra.mxu0 0.0
      %5633 = vmatprep.subr.mxu0 0.0
      %5634 = vmatpush1.xpose.msra.mxu0 0.0
      %5635 = vmatprep.subr.mxu0 0.0
      %5636 = vmatpush1.xpose.msra.mxu0 0.0
      %5637 = vmatprep.subr.mxu0 0.0
      %5638 = vmatpush1.xpose.msra.mxu0 0.0
      %5639 = vmatprep.subr.mxu0 0.0
      %5640 = vmatpush1.xpose.msra.mxu0 0.0
      %5641 = vmatprep.subr.mxu0 0.0
      %5642 = vmatpush1.xpose.msra.mxu0 0.0
      %5643 = vmatprep.subr.mxu0 0.0
      %5644 = vmatpush1.xpose.msra.mxu0 0.0
      %5645 = vmatprep.subr.mxu0 0.0
      %5646 = vmatpush1.xpose.msra.mxu0 0.0
      %5647 = vmatprep.subr.mxu0 0.0
      %5648 = vmatpush1.xpose.msra.mxu0 0.0
      %5649 = vmatprep.subr.mxu0 0.0
      %5650 = vmatpush1.xpose.msra.mxu0 0.0
      %5651 = vmatprep.subr.mxu0 0.0
      %5652 = vmatpush1.xpose.msra.mxu0 0.0
      %5653 = vmatprep.subr.mxu0 0.0
      %5654 = vmatpush1.xpose.msra.mxu0 0.0
      %5655 = vmatprep.subr.mxu0 0.0
      %5656 = vmatpush1.xpose.msra.mxu0 0.0
      %5657 = vmatprep.subr.mxu0 0.0
      %5658 = vmatpush1.xpose.msra.mxu0 0.0
      %5659 = vmatprep.subr.mxu0 0.0
      %5660 = vmatpush1.xpose.msra.mxu0 0.0
      %5661 = vmatprep.subr.mxu0 0.0
      %5662 = vmatpush1.xpose.msra.mxu0 0.0
      %5663 = vmatprep.subr.mxu0 0.0
      %5664 = vmatpush1.xpose.msra.mxu0 0.0
      %5665 = vmatprep.subr.mxu0 0.0
      %5666 = vmatpush1.xpose.msra.mxu0 0.0
      %5667 = vmatprep.subr.mxu0 0.0
      %5668 = vmatpush1.xpose.msra.mxu0 0.0
      %5669 = vmatprep.mubr.f32.mxu0 0.0
      %5670 = vmatmul.mubr.f32.gmra.mrb[0].mxu0 %v5597
      %v5671 = vpop.f32.mrb[0].mxu0
      %v5672 = vadd.f32 0.0, %v5671
      %v5673 = vpop.f32.mrb[0].mxu0
      %5674 = vmatprep.mubr.f32.mxu0 0.0
      %5675 = vmatmul.mubr.f32.gmra.mrb[0].mxu0 %v5599
      %v5676 = vpop.f32.mrb[0].mxu0
      %v5677 = vadd.f32 0.0, %v5676
      %v5678 = vpop.f32.mrb[0].mxu0
      %5679 = vdwg.mxu0
      %5680 = vrot.lane.b32.xlu0 %v492, 104
      %v5681 = vpop.permute.xlu0 %5680
      %5682 = vrot.lane.b32.xlu0 %v497, 104
      %v5683 = vpop.permute.xlu0 %5682
      %5684 = vrot.lane.b32.xlu0 %v492, 72
      %v5685 = vpop.permute.xlu0 %5684
      %5686 = vrot.lane.b32.xlu0 %v497, 72
      %v5687 = vpop.permute.xlu0 %5686
      %v5688 = vsel %vm536, %v5681, 0
      %v5690 = vsel %vm536, %v5683, 0
      %v5692 = vsel %vm536, %v5685, 0
      %v5694 = vsel %vm536, %v5687, 0
      %5696 = vmatprep.subr.mxu0 0.0
      %5697 = vmatpush1.xpose.msra.mxu0 %v5692
      %5698 = vmatprep.subr.mxu0 0.0
      %5699 = vmatpush1.xpose.msra.mxu0 %v5694
      %5700 = vmatprep.subr.mxu0 0.0
      %5701 = vmatpush1.xpose.msra.mxu0 0.0
      %5702 = vmatprep.subr.mxu0 0.0
      %5703 = vmatpush1.xpose.msra.mxu0 0.0
      %5704 = vmatprep.subr.mxu0 0.0
      %5705 = vmatpush1.xpose.msra.mxu0 0.0
      %5706 = vmatprep.subr.mxu0 0.0
      %5707 = vmatpush1.xpose.msra.mxu0 0.0
      %5708 = vmatprep.subr.mxu0 0.0
      %5709 = vmatpush1.xpose.msra.mxu0 0.0
      %5710 = vmatprep.subr.mxu0 0.0
      %5711 = vmatpush1.xpose.msra.mxu0 0.0
      %5712 = vmatprep.subr.mxu0 0.0
      %5713 = vmatpush1.xpose.msra.mxu0 0.0
      %5714 = vmatprep.subr.mxu0 0.0
      %5715 = vmatpush1.xpose.msra.mxu0 0.0
      %5716 = vmatprep.subr.mxu0 0.0
      %5717 = vmatpush1.xpose.msra.mxu0 0.0
      %5718 = vmatprep.subr.mxu0 0.0
      %5719 = vmatpush1.xpose.msra.mxu0 0.0
      %5720 = vmatprep.subr.mxu0 0.0
      %5721 = vmatpush1.xpose.msra.mxu0 0.0
      %5722 = vmatprep.subr.mxu0 0.0
      %5723 = vmatpush1.xpose.msra.mxu0 0.0
      %5724 = vmatprep.subr.mxu0 0.0
      %5725 = vmatpush1.xpose.msra.mxu0 0.0
      %5726 = vmatprep.subr.mxu0 0.0
      %5727 = vmatpush1.xpose.msra.mxu0 0.0
      %5728 = vmatprep.subr.mxu0 0.0
      %5729 = vmatpush1.xpose.msra.mxu0 0.0
      %5730 = vmatprep.subr.mxu0 0.0
      %5731 = vmatpush1.xpose.msra.mxu0 0.0
      %5732 = vmatprep.subr.mxu0 0.0
      %5733 = vmatpush1.xpose.msra.mxu0 0.0
      %5734 = vmatprep.subr.mxu0 0.0
      %5735 = vmatpush1.xpose.msra.mxu0 0.0
      %5736 = vmatprep.subr.mxu0 0.0
      %5737 = vmatpush1.xpose.msra.mxu0 0.0
      %5738 = vmatprep.subr.mxu0 0.0
      %5739 = vmatpush1.xpose.msra.mxu0 0.0
      %5740 = vmatprep.subr.mxu0 0.0
      %5741 = vmatpush1.xpose.msra.mxu0 0.0
      %5742 = vmatprep.subr.mxu0 0.0
      %5743 = vmatpush1.xpose.msra.mxu0 0.0
      %5744 = vmatprep.subr.mxu0 0.0
      %5745 = vmatpush1.xpose.msra.mxu0 0.0
      %5746 = vmatprep.subr.mxu0 0.0
      %5747 = vmatpush1.xpose.msra.mxu0 0.0
      %5748 = vmatprep.subr.mxu0 0.0
      %5749 = vmatpush1.xpose.msra.mxu0 0.0
      %5750 = vmatprep.subr.mxu0 0.0
      %5751 = vmatpush1.xpose.msra.mxu0 0.0
      %5752 = vmatprep.subr.mxu0 0.0
      %5753 = vmatpush1.xpose.msra.mxu0 0.0
      %5754 = vmatprep.subr.mxu0 0.0
      %5755 = vmatpush1.xpose.msra.mxu0 0.0
      %5756 = vmatprep.subr.mxu0 0.0
      %5757 = vmatpush1.xpose.msra.mxu0 0.0
      %5758 = vmatprep.subr.mxu0 0.0
      %5759 = vmatpush1.xpose.msra.mxu0 0.0
      %5760 = vmatprep.mubr.f32.mxu0 0.0
      %5761 = vmatmul.mubr.f32.gmra.mrb[0].mxu0 %v5688
      %v5762 = vpop.f32.mrb[0].mxu0
      %v5763 = vadd.f32 0.0, %v5762
      %v5764 = vpop.f32.mrb[0].mxu0
      %5765 = vmatprep.mubr.f32.mxu0 0.0
      %5766 = vmatmul.mubr.f32.gmra.mrb[0].mxu0 %v5690
      %v5767 = vpop.f32.mrb[0].mxu0
      %v5768 = vadd.f32 0.0, %v5767
      %v5769 = vpop.f32.mrb[0].mxu0
      %5770 = vdwg.mxu0
      %5771 = vrot.lane.b32.xlu0 %v502, 104
      %v5772 = vpop.permute.xlu0 %5771
      %5773 = vrot.lane.b32.xlu0 %v507, 104
      %v5774 = vpop.permute.xlu0 %5773
      %5775 = vrot.lane.b32.xlu0 %v502, 72
      %v5776 = vpop.permute.xlu0 %5775
      %5777 = vrot.lane.b32.xlu0 %v507, 72
      %v5778 = vpop.permute.xlu0 %5777
      %v5779 = vsel %vm536, %v5772, 0
      %v5781 = vsel %vm536, %v5774, 0
      %v5783 = vsel %vm536, %v5776, 0
      %v5785 = vsel %vm536, %v5778, 0
      %5787 = vmatprep.subr.mxu0 0.0
      %5788 = vmatpush1.xpose.msra.mxu0 %v5783
      %5789 = vmatprep.subr.mxu0 0.0
      %5790 = vmatpush1.xpose.msra.mxu0 %v5785
      %5791 = vmatprep.subr.mxu0 0.0
      %5792 = vmatpush1.xpose.msra.mxu0 0.0
      %5793 = vmatprep.subr.mxu0 0.0
      %5794 = vmatpush1.xpose.msra.mxu0 0.0
      %5795 = vmatprep.subr.mxu0 0.0
      %5796 = vmatpush1.xpose.msra.mxu0 0.0
      %5797 = vmatprep.subr.mxu0 0.0
      %5798 = vmatpush1.xpose.msra.mxu0 0.0
      %5799 = vmatprep.subr.mxu0 0.0
      %5800 = vmatpush1.xpose.msra.mxu0 0.0
      %5801 = vmatprep.subr.mxu0 0.0
      %5802 = vmatpush1.xpose.msra.mxu0 0.0
      %5803 = vmatprep.subr.mxu0 0.0
      %5804 = vmatpush1.xpose.msra.mxu0 0.0
      %5805 = vmatprep.subr.mxu0 0.0
      %5806 = vmatpush1.xpose.msra.mxu0 0.0
      %5807 = vmatprep.subr.mxu0 0.0
      %5808 = vmatpush1.xpose.msra.mxu0 0.0
      %5809 = vmatprep.subr.mxu0 0.0
      %5810 = vmatpush1.xpose.msra.mxu0 0.0
      %5811 = vmatprep.subr.mxu0 0.0
      %5812 = vmatpush1.xpose.msra.mxu0 0.0
      %5813 = vmatprep.subr.mxu0 0.0
      %5814 = vmatpush1.xpose.msra.mxu0 0.0
      %5815 = vmatprep.subr.mxu0 0.0
      %5816 = vmatpush1.xpose.msra.mxu0 0.0
      %5817 = vmatprep.subr.mxu0 0.0
      %5818 = vmatpush1.xpose.msra.mxu0 0.0
      %5819 = vmatprep.subr.mxu0 0.0
      %5820 = vmatpush1.xpose.msra.mxu0 0.0
      %5821 = vmatprep.subr.mxu0 0.0
      %5822 = vmatpush1.xpose.msra.mxu0 0.0
      %5823 = vmatprep.subr.mxu0 0.0
      %5824 = vmatpush1.xpose.msra.mxu0 0.0
      %5825 = vmatprep.subr.mxu0 0.0
      %5826 = vmatpush1.xpose.msra.mxu0 0.0
      %5827 = vmatprep.subr.mxu0 0.0
      %5828 = vmatpush1.xpose.msra.mxu0 0.0
      %5829 = vmatprep.subr.mxu0 0.0
      %5830 = vmatpush1.xpose.msra.mxu0 0.0
      %5831 = vmatprep.subr.mxu0 0.0
      %5832 = vmatpush1.xpose.msra.mxu0 0.0
      %5833 = vmatprep.subr.mxu0 0.0
      %5834 = vmatpush1.xpose.msra.mxu0 0.0
      %5835 = vmatprep.subr.mxu0 0.0
      %5836 = vmatpush1.xpose.msra.mxu0 0.0
      %5837 = vmatprep.subr.mxu0 0.0
      %5838 = vmatpush1.xpose.msra.mxu0 0.0
      %5839 = vmatprep.subr.mxu0 0.0
      %5840 = vmatpush1.xpose.msra.mxu0 0.0
      %5841 = vmatprep.subr.mxu0 0.0
      %5842 = vmatpush1.xpose.msra.mxu0 0.0
      %5843 = vmatprep.subr.mxu0 0.0
      %5844 = vmatpush1.xpose.msra.mxu0 0.0
      %5845 = vmatprep.subr.mxu0 0.0
      %5846 = vmatpush1.xpose.msra.mxu0 0.0
      %5847 = vmatprep.subr.mxu0 0.0
      %5848 = vmatpush1.xpose.msra.mxu0 0.0
      %5849 = vmatprep.subr.mxu0 0.0
      %5850 = vmatpush1.xpose.msra.mxu0 0.0
      %5851 = vmatprep.mubr.f32.mxu0 0.0
      %5852 = vmatmul.mubr.f32.gmra.mrb[0].mxu0 %v5779
      %v5853 = vpop.f32.mrb[0].mxu0
      %v5854 = vadd.f32 0.0, %v5853
      %v5855 = vpop.f32.mrb[0].mxu0
      %5856 = vmatprep.mubr.f32.mxu0 0.0
      %5857 = vmatmul.mubr.f32.gmra.mrb[0].mxu0 %v5781
      %v5858 = vpop.f32.mrb[0].mxu0
      %v5859 = vadd.f32 0.0, %v5858
      %v5860 = vpop.f32.mrb[0].mxu0
      %5861 = vdwg.mxu0
      %5862 = vrot.lane.b32.xlu0 %v512, 104
      %v5863 = vpop.permute.xlu0 %5862
      %5864 = vrot.lane.b32.xlu0 %v517, 104
      %v5865 = vpop.permute.xlu0 %5864
      %5866 = vrot.lane.b32.xlu0 %v512, 72
      %v5867 = vpop.permute.xlu0 %5866
      %5868 = vrot.lane.b32.xlu0 %v517, 72
      %v5869 = vpop.permute.xlu0 %5868
      %v5870 = vsel %vm536, %v5863, 0
      %v5872 = vsel %vm536, %v5865, 0
      %v5874 = vsel %vm536, %v5867, 0
      %v5876 = vsel %vm536, %v5869, 0
      %5878 = vmatprep.subr.mxu0 0.0
      %5879 = vmatpush1.xpose.msra.mxu0 %v5874
      %5880 = vmatprep.subr.mxu0 0.0
      %5881 = vmatpush1.xpose.msra.mxu0 %v5876
      %5882 = vmatprep.subr.mxu0 0.0
      %5883 = vmatpush1.xpose.msra.mxu0 0.0
      %5884 = vmatprep.subr.mxu0 0.0
      %5885 = vmatpush1.xpose.msra.mxu0 0.0
      %5886 = vmatprep.subr.mxu0 0.0
      %5887 = vmatpush1.xpose.msra.mxu0 0.0
      %5888 = vmatprep.subr.mxu0 0.0
      %5889 = vmatpush1.xpose.msra.mxu0 0.0
      %5890 = vmatprep.subr.mxu0 0.0
      %5891 = vmatpush1.xpose.msra.mxu0 0.0
      %5892 = vmatprep.subr.mxu0 0.0
      %5893 = vmatpush1.xpose.msra.mxu0 0.0
      %5894 = vmatprep.subr.mxu0 0.0
      %5895 = vmatpush1.xpose.msra.mxu0 0.0
      %5896 = vmatprep.subr.mxu0 0.0
      %5897 = vmatpush1.xpose.msra.mxu0 0.0
      %5898 = vmatprep.subr.mxu0 0.0
      %5899 = vmatpush1.xpose.msra.mxu0 0.0
      %5900 = vmatprep.subr.mxu0 0.0
      %5901 = vmatpush1.xpose.msra.mxu0 0.0
      %5902 = vmatprep.subr.mxu0 0.0
      %5903 = vmatpush1.xpose.msra.mxu0 0.0
      %5904 = vmatprep.subr.mxu0 0.0
      %5905 = vmatpush1.xpose.msra.mxu0 0.0
      %5906 = vmatprep.subr.mxu0 0.0
      %5907 = vmatpush1.xpose.msra.mxu0 0.0
      %5908 = vmatprep.subr.mxu0 0.0
      %5909 = vmatpush1.xpose.msra.mxu0 0.0
      %5910 = vmatprep.subr.mxu0 0.0
      %5911 = vmatpush1.xpose.msra.mxu0 0.0
      %5912 = vmatprep.subr.mxu0 0.0
      %5913 = vmatpush1.xpose.msra.mxu0 0.0
      %5914 = vmatprep.subr.mxu0 0.0
      %5915 = vmatpush1.xpose.msra.mxu0 0.0
      %5916 = vmatprep.subr.mxu0 0.0
      %5917 = vmatpush1.xpose.msra.mxu0 0.0
      %5918 = vmatprep.subr.mxu0 0.0
      %5919 = vmatpush1.xpose.msra.mxu0 0.0
      %5920 = vmatprep.subr.mxu0 0.0
      %5921 = vmatpush1.xpose.msra.mxu0 0.0
      %5922 = vmatprep.subr.mxu0 0.0
      %5923 = vmatpush1.xpose.msra.mxu0 0.0
      %5924 = vmatprep.subr.mxu0 0.0
      %5925 = vmatpush1.xpose.msra.mxu0 0.0
      %5926 = vmatprep.subr.mxu0 0.0
      %5927 = vmatpush1.xpose.msra.mxu0 0.0
      %5928 = vmatprep.subr.mxu0 0.0
      %5929 = vmatpush1.xpose.msra.mxu0 0.0
      %5930 = vmatprep.subr.mxu0 0.0
      %5931 = vmatpush1.xpose.msra.mxu0 0.0
      %5932 = vmatprep.subr.mxu0 0.0
      %5933 = vmatpush1.xpose.msra.mxu0 0.0
      %5934 = vmatprep.subr.mxu0 0.0
      %5935 = vmatpush1.xpose.msra.mxu0 0.0
      %5936 = vmatprep.subr.mxu0 0.0
      %5937 = vmatpush1.xpose.msra.mxu0 0.0
      %5938 = vmatprep.subr.mxu0 0.0
      %5939 = vmatpush1.xpose.msra.mxu0 0.0
      %5940 = vmatprep.subr.mxu0 0.0
      %5941 = vmatpush1.xpose.msra.mxu0 0.0
      %5942 = vmatprep.mubr.f32.mxu0 0.0
      %5943 = vmatmul.mubr.f32.gmra.mrb[0].mxu0 %v5870
      %v5944 = vpop.f32.mrb[0].mxu0
      %v5945 = vadd.f32 0.0, %v5944
      %v5946 = vpop.f32.mrb[0].mxu0
      %5947 = vmatprep.mubr.f32.mxu0 0.0
      %5948 = vmatmul.mubr.f32.gmra.mrb[0].mxu0 %v5872
      %v5949 = vpop.f32.mrb[0].mxu0
      %v5950 = vadd.f32 0.0, %v5949
      %v5951 = vpop.f32.mrb[0].mxu0
      %5952 = vdwg.mxu0
      %5953 = vrot.lane.b32.xlu0 %v522, 104
      %v5954 = vpop.permute.xlu0 %5953
      %5955 = vrot.lane.b32.xlu0 %v527, 104
      %v5956 = vpop.permute.xlu0 %5955
      %5957 = vrot.lane.b32.xlu0 %v522, 72
      %v5958 = vpop.permute.xlu0 %5957
      %5959 = vrot.lane.b32.xlu0 %v527, 72
      %v5960 = vpop.permute.xlu0 %5959
      %v5961 = vsel %vm536, %v5954, 0
      %v5963 = vsel %vm536, %v5956, 0
      %v5965 = vsel %vm536, %v5958, 0
      %v5967 = vsel %vm536, %v5960, 0
      %5969 = vmatprep.subr.mxu0 0.0
      %5970 = vmatpush1.xpose.msra.mxu0 %v5965
      %5971 = vmatprep.subr.mxu0 0.0
      %5972 = vmatpush1.xpose.msra.mxu0 %v5967
      %5973 = vmatprep.subr.mxu0 0.0
      %5974 = vmatpush1.xpose.msra.mxu0 0.0
      %5975 = vmatprep.subr.mxu0 0.0
      %5976 = vmatpush1.xpose.msra.mxu0 0.0
      %5977 = vmatprep.subr.mxu0 0.0
      %5978 = vmatpush1.xpose.msra.mxu0 0.0
      %5979 = vmatprep.subr.mxu0 0.0
      %5980 = vmatpush1.xpose.msra.mxu0 0.0
      %5981 = vmatprep.subr.mxu0 0.0
      %5982 = vmatpush1.xpose.msra.mxu0 0.0
      %5983 = vmatprep.subr.mxu0 0.0
      %5984 = vmatpush1.xpose.msra.mxu0 0.0
      %5985 = vmatprep.subr.mxu0 0.0
      %5986 = vmatpush1.xpose.msra.mxu0 0.0
      %5987 = vmatprep.subr.mxu0 0.0
      %5988 = vmatpush1.xpose.msra.mxu0 0.0
      %5989 = vmatprep.subr.mxu0 0.0
      %5990 = vmatpush1.xpose.msra.mxu0 0.0
      %5991 = vmatprep.subr.mxu0 0.0
      %5992 = vmatpush1.xpose.msra.mxu0 0.0
      %5993 = vmatprep.subr.mxu0 0.0
      %5994 = vmatpush1.xpose.msra.mxu0 0.0
      %5995 = vmatprep.subr.mxu0 0.0
      %5996 = vmatpush1.xpose.msra.mxu0 0.0
      %5997 = vmatprep.subr.mxu0 0.0
      %5998 = vmatpush1.xpose.msra.mxu0 0.0
      %5999 = vmatprep.subr.mxu0 0.0
      %6000 = vmatpush1.xpose.msra.mxu0 0.0
      %6001 = vmatprep.subr.mxu0 0.0
      %6002 = vmatpush1.xpose.msra.mxu0 0.0
      %6003 = vmatprep.subr.mxu0 0.0
      %6004 = vmatpush1.xpose.msra.mxu0 0.0
      %6005 = vmatprep.subr.mxu0 0.0
      %6006 = vmatpush1.xpose.msra.mxu0 0.0
      %6007 = vmatprep.subr.mxu0 0.0
      %6008 = vmatpush1.xpose.msra.mxu0 0.0
      %6009 = vmatprep.subr.mxu0 0.0
      %6010 = vmatpush1.xpose.msra.mxu0 0.0
      %6011 = vmatprep.subr.mxu0 0.0
      %6012 = vmatpush1.xpose.msra.mxu0 0.0
      %6013 = vmatprep.subr.mxu0 0.0
      %6014 = vmatpush1.xpose.msra.mxu0 0.0
      %6015 = vmatprep.subr.mxu0 0.0
      %6016 = vmatpush1.xpose.msra.mxu0 0.0
      %6017 = vmatprep.subr.mxu0 0.0
      %6018 = vmatpush1.xpose.msra.mxu0 0.0
      %6019 = vmatprep.subr.mxu0 0.0
      %6020 = vmatpush1.xpose.msra.mxu0 0.0
      %6021 = vmatprep.subr.mxu0 0.0
      %6022 = vmatpush1.xpose.msra.mxu0 0.0
      %6023 = vmatprep.subr.mxu0 0.0
      %6024 = vmatpush1.xpose.msra.mxu0 0.0
      %6025 = vmatprep.subr.mxu0 0.0
      %6026 = vmatpush1.xpose.msra.mxu0 0.0
      %6027 = vmatprep.subr.mxu0 0.0
      %6028 = vmatpush1.xpose.msra.mxu0 0.0
      %6029 = vmatprep.subr.mxu0 0.0
      %6030 = vmatpush1.xpose.msra.mxu0 0.0
      %6031 = vmatprep.subr.mxu0 0.0
      %6032 = vmatpush1.xpose.msra.mxu0 0.0
      %6033 = vmatprep.mubr.f32.mxu0 0.0
      %6034 = vmatmul.mubr.f32.gmra.mrb[0].mxu0 %v5961
      %v6035 = vpop.f32.mrb[0].mxu0
      %v6036 = vadd.f32 0.0, %v6035
      %v6037 = vpop.f32.mrb[0].mxu0
      %6038 = vmatprep.mubr.f32.mxu0 0.0
      %6039 = vmatmul.mubr.f32.gmra.mrb[0].mxu0 %v5963
      %v6040 = vpop.f32.mrb[0].mxu0
      %v6041 = vadd.f32 0.0, %v6040
      %v6042 = vpop.f32.mrb[0].mxu0
      %6043 = vdwg.mxu0
      %v6044 = vsel %vm1243, %v5399, -inf
      %6045 = vmax.xlane.f32.xlu0 %v6044
      %v6046 = vpop.xlane.xlu0 %6045
      %v6047 = vsel %vm1243, %v5404, -inf
      %6048 = vmax.xlane.f32.xlu0 %v6047
      %v6049 = vpop.xlane.xlu0 %6048
      %v6050 = vsel %vm1243, %v5490, -inf
      %6051 = vmax.xlane.f32.xlu0 %v6050
      %v6052 = vpop.xlane.xlu0 %6051
      %v6053 = vsel %vm1243, %v5495, -inf
      %6054 = vmax.xlane.f32.xlu0 %v6053
      %v6055 = vpop.xlane.xlu0 %6054
      %v6056 = vsel %vm1243, %v5581, -inf
      %6057 = vmax.xlane.f32.xlu0 %v6056
      %v6058 = vpop.xlane.xlu0 %6057
      %v6059 = vsel %vm1243, %v5586, -inf
      %6060 = vmax.xlane.f32.xlu0 %v6059
      %v6061 = vpop.xlane.xlu0 %6060
      %v6062 = vsel %vm1243, %v5672, -inf
      %6063 = vmax.xlane.f32.xlu0 %v6062
      %v6064 = vpop.xlane.xlu0 %6063
      %v6065 = vsel %vm1243, %v5677, -inf
      %6066 = vmax.xlane.f32.xlu0 %v6065
      %v6067 = vpop.xlane.xlu0 %6066
      %v6068 = vsel %vm1243, %v5763, -inf
      %6069 = vmax.xlane.f32.xlu0 %v6068
      %v6070 = vpop.xlane.xlu0 %6069
      %v6071 = vsel %vm1243, %v5768, -inf
      %6072 = vmax.xlane.f32.xlu0 %v6071
      %v6073 = vpop.xlane.xlu0 %6072
      %v6074 = vsel %vm1243, %v5854, -inf
      %6075 = vmax.xlane.f32.xlu0 %v6074
      %v6076 = vpop.xlane.xlu0 %6075
      %v6077 = vsel %vm1243, %v5859, -inf
      %6078 = vmax.xlane.f32.xlu0 %v6077
      %v6079 = vpop.xlane.xlu0 %6078
      %v6080 = vsel %vm1243, %v5945, -inf
      %6081 = vmax.xlane.f32.xlu0 %v6080
      %v6082 = vpop.xlane.xlu0 %6081
      %v6083 = vsel %vm1243, %v5950, -inf
      %6084 = vmax.xlane.f32.xlu0 %v6083
      %v6085 = vpop.xlane.xlu0 %6084
      %v6086 = vsel %vm1243, %v6036, -inf
      %6087 = vmax.xlane.f32.xlu0 %v6086
      %v6088 = vpop.xlane.xlu0 %6087
      %v6089 = vsel %vm1243, %v6041, -inf
      %6090 = vmax.xlane.f32.xlu0 %v6089
      %v6091 = vpop.xlane.xlu0 %6090
      %v6092 = vsub.f32 %v5399, %v6046
      %v6093 = vsub.f32 %v5404, %v6049
      %v6094 = vsub.f32 %v5490, %v6052
      %v6095 = vsub.f32 %v5495, %v6055
      %v6096 = vsub.f32 %v5581, %v6058
      %v6097 = vsub.f32 %v5586, %v6061
      %v6098 = vsub.f32 %v5672, %v6064
      %v6099 = vsub.f32 %v5677, %v6067
      %v6100 = vsub.f32 %v5763, %v6070
      %v6101 = vsub.f32 %v5768, %v6073
      %v6102 = vsub.f32 %v5854, %v6076
      %v6103 = vsub.f32 %v5859, %v6079
      %v6104 = vsub.f32 %v5945, %v6082
      %v6105 = vsub.f32 %v5950, %v6085
      %v6106 = vsub.f32 %v6036, %v6088
      %v6107 = vsub.f32 %v6041, %v6091
      %v6108 = vmul.f32 %v6092, 1.442695
      %v6109 = vpow.pop %v6108
      %v6110 = vmul.f32 %v6093, 1.442695
      %v6111 = vpow.pop %v6110
      %v6112 = vmul.f32 %v6094, 1.442695
      %v6113 = vpow.pop %v6112
      %v6114 = vmul.f32 %v6095, 1.442695
      %v6115 = vpow.pop %v6114
      %v6116 = vmul.f32 %v6096, 1.442695
      %v6117 = vpow.pop %v6116
      %v6118 = vmul.f32 %v6097, 1.442695
      %v6119 = vpow.pop %v6118
      %v6120 = vmul.f32 %v6098, 1.442695
      %v6121 = vpow.pop %v6120
      %v6122 = vmul.f32 %v6099, 1.442695
      %v6123 = vpow.pop %v6122
      %v6124 = vmul.f32 %v6100, 1.442695
      %v6125 = vpow.pop %v6124
      %v6126 = vmul.f32 %v6101, 1.442695
      %v6127 = vpow.pop %v6126
      %v6128 = vmul.f32 %v6102, 1.442695
      %v6129 = vpow.pop %v6128
      %v6130 = vmul.f32 %v6103, 1.442695
      %v6131 = vpow.pop %v6130
      %v6132 = vmul.f32 %v6104, 1.442695
      %v6133 = vpow.pop %v6132
      %v6134 = vmul.f32 %v6105, 1.442695
      %v6135 = vpow.pop %v6134
      %v6136 = vmul.f32 %v6106, 1.442695
      %v6137 = vpow.pop %v6136
      %v6138 = vmul.f32 %v6107, 1.442695
      %v6139 = vpow.pop %v6138
      %v6140 = vsel %vm1243, %v6109, 0.0
      %6141 = vadd.xlane.f32.xlu0 %v6140
      %v6142 = vpop.xlane.xlu0 %6141
      %v6143 = vsel %vm1243, %v6111, 0.0
      %6144 = vadd.xlane.f32.xlu0 %v6143
      %v6145 = vpop.xlane.xlu0 %6144
      %v6146 = vsel %vm1243, %v6113, 0.0
      %6147 = vadd.xlane.f32.xlu0 %v6146
      %v6148 = vpop.xlane.xlu0 %6147
      %v6149 = vsel %vm1243, %v6115, 0.0
      %6150 = vadd.xlane.f32.xlu0 %v6149
      %v6151 = vpop.xlane.xlu0 %6150
      %v6152 = vsel %vm1243, %v6117, 0.0
      %6153 = vadd.xlane.f32.xlu0 %v6152
      %v6154 = vpop.xlane.xlu0 %6153
      %v6155 = vsel %vm1243, %v6119, 0.0
      %6156 = vadd.xlane.f32.xlu0 %v6155
      %v6157 = vpop.xlane.xlu0 %6156
      %v6158 = vsel %vm1243, %v6121, 0.0
      %6159 = vadd.xlane.f32.xlu0 %v6158
      %v6160 = vpop.xlane.xlu0 %6159
      %v6161 = vsel %vm1243, %v6123, 0.0
      %6162 = vadd.xlane.f32.xlu0 %v6161
      %v6163 = vpop.xlane.xlu0 %6162
      %v6164 = vsel %vm1243, %v6125, 0.0
      %6165 = vadd.xlane.f32.xlu0 %v6164
      %v6166 = vpop.xlane.xlu0 %6165
      %v6167 = vsel %vm1243, %v6127, 0.0
      %6168 = vadd.xlane.f32.xlu0 %v6167
      %v6169 = vpop.xlane.xlu0 %6168
      %v6170 = vsel %vm1243, %v6129, 0.0
      %6171 = vadd.xlane.f32.xlu0 %v6170
      %v6172 = vpop.xlane.xlu0 %6171
      %v6173 = vsel %vm1243, %v6131, 0.0
      %6174 = vadd.xlane.f32.xlu0 %v6173
      %v6175 = vpop.xlane.xlu0 %6174
      %v6176 = vsel %vm1243, %v6133, 0.0
      %6177 = vadd.xlane.f32.xlu0 %v6176
      %v6178 = vpop.xlane.xlu0 %6177
      %v6179 = vsel %vm1243, %v6135, 0.0
      %6180 = vadd.xlane.f32.xlu0 %v6179
      %v6181 = vpop.xlane.xlu0 %6180
      %v6182 = vsel %vm1243, %v6137, 0.0
      %6183 = vadd.xlane.f32.xlu0 %v6182
      %v6184 = vpop.xlane.xlu0 %6183
      %v6185 = vsel %vm1243, %v6139, 0.0
      %6186 = vadd.xlane.f32.xlu0 %v6185
      %v6187 = vpop.xlane.xlu0 %6186
      %v6188 = vrcp.pop %v6142
      %v6189 = vrcp.pop %v6145
      %v6190 = vrcp.pop %v6148
      %v6191 = vrcp.pop %v6151
      %v6192 = vrcp.pop %v6154
      %v6193 = vrcp.pop %v6157
      %v6194 = vrcp.pop %v6160
      %v6195 = vrcp.pop %v6163
      %v6196 = vrcp.pop %v6166
      %v6197 = vrcp.pop %v6169
      %v6198 = vrcp.pop %v6172
      %v6199 = vrcp.pop %v6175
      %v6200 = vrcp.pop %v6178
      %v6201 = vrcp.pop %v6181
      %v6202 = vrcp.pop %v6184
      %v6203 = vrcp.pop %v6187
      %v6204 = vmul.f32 %v6109, %v6188
      %v6205 = vmul.f32 %v6111, %v6189
      %v6206 = vmul.f32 %v6113, %v6190
      %v6207 = vmul.f32 %v6115, %v6191
      %v6208 = vmul.f32 %v6117, %v6192
      %v6209 = vmul.f32 %v6119, %v6193
      %v6210 = vmul.f32 %v6121, %v6194
      %v6211 = vmul.f32 %v6123, %v6195
      %v6212 = vmul.f32 %v6125, %v6196
      %v6213 = vmul.f32 %v6127, %v6197
      %v6214 = vmul.f32 %v6129, %v6198
      %v6215 = vmul.f32 %v6131, %v6199
      %v6216 = vmul.f32 %v6133, %v6200
      %v6217 = vmul.f32 %v6135, %v6201
      %v6218 = vmul.f32 %v6137, %v6202
      %v6219 = vmul.f32 %v6139, %v6203
      %6220 = vrot.lane.b32.xlu0 %v452, 40
      %v6221 = vpop.permute.xlu0 %6220
      %6222 = vrot.lane.b32.xlu0 %v457, 40
      %v6223 = vpop.permute.xlu0 %6222
      %v6227 = vsel %vm1243, %v6204, 0
      %v6230 = vsel %vm1243, %v6205, 0
      %6232 = vmatprep.subr.mxu0 0.0
      %6233 = vmatpush1.msra.mxu0 %v6221
      %6234 = vmatprep.subr.mxu0 0.0
      %6235 = vmatpush1.msra.mxu0 %v6223
      %6236 = vmatprep.subr.mxu0 0.0
      %6237 = vmatpush1.msra.mxu0 0.0
      %6238 = vmatprep.subr.mxu0 0.0
      %6239 = vmatpush1.msra.mxu0 0.0
      %6240 = vmatprep.subr.mxu0 0.0
      %6241 = vmatpush1.msra.mxu0 0.0
      %6242 = vmatprep.subr.mxu0 0.0
      %6243 = vmatpush1.msra.mxu0 0.0
      %6244 = vmatprep.subr.mxu0 0.0
      %6245 = vmatpush1.msra.mxu0 0.0
      %6246 = vmatprep.subr.mxu0 0.0
      %6247 = vmatpush1.msra.mxu0 0.0
      %6248 = vmatprep.subr.mxu0 0.0
      %6249 = vmatpush1.msra.mxu0 0.0
      %6250 = vmatprep.subr.mxu0 0.0
      %6251 = vmatpush1.msra.mxu0 0.0
      %6252 = vmatprep.subr.mxu0 0.0
      %6253 = vmatpush1.msra.mxu0 0.0
      %6254 = vmatprep.subr.mxu0 0.0
      %6255 = vmatpush1.msra.mxu0 0.0
      %6256 = vmatprep.subr.mxu0 0.0
      %6257 = vmatpush1.msra.mxu0 0.0
      %6258 = vmatprep.subr.mxu0 0.0
      %6259 = vmatpush1.msra.mxu0 0.0
      %6260 = vmatprep.subr.mxu0 0.0
      %6261 = vmatpush1.msra.mxu0 0.0
      %6262 = vmatprep.subr.mxu0 0.0
      %6263 = vmatpush1.msra.mxu0 0.0
      %6264 = vmatprep.subr.mxu0 0.0
      %6265 = vmatpush1.msra.mxu0 0.0
      %6266 = vmatprep.subr.mxu0 0.0
      %6267 = vmatpush1.msra.mxu0 0.0
      %6268 = vmatprep.subr.mxu0 0.0
      %6269 = vmatpush1.msra.mxu0 0.0
      %6270 = vmatprep.subr.mxu0 0.0
      %6271 = vmatpush1.msra.mxu0 0.0
      %6272 = vmatprep.subr.mxu0 0.0
      %6273 = vmatpush1.msra.mxu0 0.0
      %6274 = vmatprep.subr.mxu0 0.0
      %6275 = vmatpush1.msra.mxu0 0.0
      %6276 = vmatprep.subr.mxu0 0.0
      %6277 = vmatpush1.msra.mxu0 0.0
      %6278 = vmatprep.subr.mxu0 0.0
      %6279 = vmatpush1.msra.mxu0 0.0
      %6280 = vmatprep.subr.mxu0 0.0
      %6281 = vmatpush1.msra.mxu0 0.0
      %6282 = vmatprep.subr.mxu0 0.0
      %6283 = vmatpush1.msra.mxu0 0.0
      %6284 = vmatprep.subr.mxu0 0.0
      %6285 = vmatpush1.msra.mxu0 0.0
      %6286 = vmatprep.subr.mxu0 0.0
      %6287 = vmatpush1.msra.mxu0 0.0
      %6288 = vmatprep.subr.mxu0 0.0
      %6289 = vmatpush1.msra.mxu0 0.0
      %6290 = vmatprep.subr.mxu0 0.0
      %6291 = vmatpush1.msra.mxu0 0.0
      %6292 = vmatprep.subr.mxu0 0.0
      %6293 = vmatpush1.msra.mxu0 0.0
      %6294 = vmatprep.subr.mxu0 0.0
      %6295 = vmatpush1.msra.mxu0 0.0
      %6296 = vmatprep.mubr.f32.mxu0 0.0
      %6297 = vmatmul.mubr.f32.gmra.mrb[0].mxu0 %v6227
      %v6298 = vpop.f32.mrb[0].mxu0
      %v6299 = vadd.f32 0.0, %v6298
      %v6300 = vpop.f32.mrb[0].mxu0
      %6301 = vmatprep.mubr.f32.mxu0 0.0
      %6302 = vmatmul.mubr.f32.gmra.mrb[0].mxu0 %v6230
      %v6303 = vpop.f32.mrb[0].mxu0
      %v6304 = vadd.f32 0.0, %v6303
      %v6305 = vpop.f32.mrb[0].mxu0
      %6306 = vdwg.mxu0
      %6307 = vrot.lane.b32.xlu0 %v462, 40
      %v6308 = vpop.permute.xlu0 %6307
      %6309 = vrot.lane.b32.xlu0 %v467, 40
      %v6310 = vpop.permute.xlu0 %6309
      %v6314 = vsel %vm1243, %v6206, 0
      %v6317 = vsel %vm1243, %v6207, 0
      %6319 = vmatprep.subr.mxu0 0.0
      %6320 = vmatpush1.msra.mxu0 %v6308
      %6321 = vmatprep.subr.mxu0 0.0
      %6322 = vmatpush1.msra.mxu0 %v6310
      %6323 = vmatprep.subr.mxu0 0.0
      %6324 = vmatpush1.msra.mxu0 0.0
      %6325 = vmatprep.subr.mxu0 0.0
      %6326 = vmatpush1.msra.mxu0 0.0
      %6327 = vmatprep.subr.mxu0 0.0
      %6328 = vmatpush1.msra.mxu0 0.0
      %6329 = vmatprep.subr.mxu0 0.0
      %6330 = vmatpush1.msra.mxu0 0.0
      %6331 = vmatprep.subr.mxu0 0.0
      %6332 = vmatpush1.msra.mxu0 0.0
      %6333 = vmatprep.subr.mxu0 0.0
      %6334 = vmatpush1.msra.mxu0 0.0
      %6335 = vmatprep.subr.mxu0 0.0
      %6336 = vmatpush1.msra.mxu0 0.0
      %6337 = vmatprep.subr.mxu0 0.0
      %6338 = vmatpush1.msra.mxu0 0.0
      %6339 = vmatprep.subr.mxu0 0.0
      %6340 = vmatpush1.msra.mxu0 0.0
      %6341 = vmatprep.subr.mxu0 0.0
      %6342 = vmatpush1.msra.mxu0 0.0
      %6343 = vmatprep.subr.mxu0 0.0
      %6344 = vmatpush1.msra.mxu0 0.0
      %6345 = vmatprep.subr.mxu0 0.0
      %6346 = vmatpush1.msra.mxu0 0.0
      %6347 = vmatprep.subr.mxu0 0.0
      %6348 = vmatpush1.msra.mxu0 0.0
      %6349 = vmatprep.subr.mxu0 0.0
      %6350 = vmatpush1.msra.mxu0 0.0
      %6351 = vmatprep.subr.mxu0 0.0
      %6352 = vmatpush1.msra.mxu0 0.0
      %6353 = vmatprep.subr.mxu0 0.0
      %6354 = vmatpush1.msra.mxu0 0.0
      %6355 = vmatprep.subr.mxu0 0.0
      %6356 = vmatpush1.msra.mxu0 0.0
      %6357 = vmatprep.subr.mxu0 0.0
      %6358 = vmatpush1.msra.mxu0 0.0
      %6359 = vmatprep.subr.mxu0 0.0
      %6360 = vmatpush1.msra.mxu0 0.0
      %6361 = vmatprep.subr.mxu0 0.0
      %6362 = vmatpush1.msra.mxu0 0.0
      %6363 = vmatprep.subr.mxu0 0.0
      %6364 = vmatpush1.msra.mxu0 0.0
      %6365 = vmatprep.subr.mxu0 0.0
      %6366 = vmatpush1.msra.mxu0 0.0
      %6367 = vmatprep.subr.mxu0 0.0
      %6368 = vmatpush1.msra.mxu0 0.0
      %6369 = vmatprep.subr.mxu0 0.0
      %6370 = vmatpush1.msra.mxu0 0.0
      %6371 = vmatprep.subr.mxu0 0.0
      %6372 = vmatpush1.msra.mxu0 0.0
      %6373 = vmatprep.subr.mxu0 0.0
      %6374 = vmatpush1.msra.mxu0 0.0
      %6375 = vmatprep.subr.mxu0 0.0
      %6376 = vmatpush1.msra.mxu0 0.0
      %6377 = vmatprep.subr.mxu0 0.0
      %6378 = vmatpush1.msra.mxu0 0.0
      %6379 = vmatprep.subr.mxu0 0.0
      %6380 = vmatpush1.msra.mxu0 0.0
      %6381 = vmatprep.subr.mxu0 0.0
      %6382 = vmatpush1.msra.mxu0 0.0
      %6383 = vmatprep.mubr.f32.mxu0 0.0
      %6384 = vmatmul.mubr.f32.gmra.mrb[0].mxu0 %v6314
      %v6385 = vpop.f32.mrb[0].mxu0
      %v6386 = vadd.f32 0.0, %v6385
      %v6387 = vpop.f32.mrb[0].mxu0
      %6388 = vmatprep.mubr.f32.mxu0 0.0
      %6389 = vmatmul.mubr.f32.gmra.mrb[0].mxu0 %v6317
      %v6390 = vpop.f32.mrb[0].mxu0
      %v6391 = vadd.f32 0.0, %v6390
      %v6392 = vpop.f32.mrb[0].mxu0
      %6393 = vdwg.mxu0
      %6394 = vrot.lane.b32.xlu0 %v472, 40
      %v6395 = vpop.permute.xlu0 %6394
      %6396 = vrot.lane.b32.xlu0 %v477, 40
      %v6397 = vpop.permute.xlu0 %6396
      %v6401 = vsel %vm1243, %v6208, 0
      %v6404 = vsel %vm1243, %v6209, 0
      %6406 = vmatprep.subr.mxu0 0.0
      %6407 = vmatpush1.msra.mxu0 %v6395
      %6408 = vmatprep.subr.mxu0 0.0
      %6409 = vmatpush1.msra.mxu0 %v6397
      %6410 = vmatprep.subr.mxu0 0.0
      %6411 = vmatpush1.msra.mxu0 0.0
      %6412 = vmatprep.subr.mxu0 0.0
      %6413 = vmatpush1.msra.mxu0 0.0
      %6414 = vmatprep.subr.mxu0 0.0
      %6415 = vmatpush1.msra.mxu0 0.0
      %6416 = vmatprep.subr.mxu0 0.0
      %6417 = vmatpush1.msra.mxu0 0.0
      %6418 = vmatprep.subr.mxu0 0.0
      %6419 = vmatpush1.msra.mxu0 0.0
      %6420 = vmatprep.subr.mxu0 0.0
      %6421 = vmatpush1.msra.mxu0 0.0
      %6422 = vmatprep.subr.mxu0 0.0
      %6423 = vmatpush1.msra.mxu0 0.0
      %6424 = vmatprep.subr.mxu0 0.0
      %6425 = vmatpush1.msra.mxu0 0.0
      %6426 = vmatprep.subr.mxu0 0.0
      %6427 = vmatpush1.msra.mxu0 0.0
      %6428 = vmatprep.subr.mxu0 0.0
      %6429 = vmatpush1.msra.mxu0 0.0
      %6430 = vmatprep.subr.mxu0 0.0
      %6431 = vmatpush1.msra.mxu0 0.0
      %6432 = vmatprep.subr.mxu0 0.0
      %6433 = vmatpush1.msra.mxu0 0.0
      %6434 = vmatprep.subr.mxu0 0.0
      %6435 = vmatpush1.msra.mxu0 0.0
      %6436 = vmatprep.subr.mxu0 0.0
      %6437 = vmatpush1.msra.mxu0 0.0
      %6438 = vmatprep.subr.mxu0 0.0
      %6439 = vmatpush1.msra.mxu0 0.0
      %6440 = vmatprep.subr.mxu0 0.0
      %6441 = vmatpush1.msra.mxu0 0.0
      %6442 = vmatprep.subr.mxu0 0.0
      %6443 = vmatpush1.msra.mxu0 0.0
      %6444 = vmatprep.subr.mxu0 0.0
      %6445 = vmatpush1.msra.mxu0 0.0
      %6446 = vmatprep.subr.mxu0 0.0
      %6447 = vmatpush1.msra.mxu0 0.0
      %6448 = vmatprep.subr.mxu0 0.0
      %6449 = vmatpush1.msra.mxu0 0.0
      %6450 = vmatprep.subr.mxu0 0.0
      %6451 = vmatpush1.msra.mxu0 0.0
      %6452 = vmatprep.subr.mxu0 0.0
      %6453 = vmatpush1.msra.mxu0 0.0
      %6454 = vmatprep.subr.mxu0 0.0
      %6455 = vmatpush1.msra.mxu0 0.0
      %6456 = vmatprep.subr.mxu0 0.0
      %6457 = vmatpush1.msra.mxu0 0.0
      %6458 = vmatprep.subr.mxu0 0.0
      %6459 = vmatpush1.msra.mxu0 0.0
      %6460 = vmatprep.subr.mxu0 0.0
      %6461 = vmatpush1.msra.mxu0 0.0
      %6462 = vmatprep.subr.mxu0 0.0
      %6463 = vmatpush1.msra.mxu0 0.0
      %6464 = vmatprep.subr.mxu0 0.0
      %6465 = vmatpush1.msra.mxu0 0.0
      %6466 = vmatprep.subr.mxu0 0.0
      %6467 = vmatpush1.msra.mxu0 0.0
      %6468 = vmatprep.subr.mxu0 0.0
      %6469 = vmatpush1.msra.mxu0 0.0
      %6470 = vmatprep.mubr.f32.mxu0 0.0
      %6471 = vmatmul.mubr.f32.gmra.mrb[0].mxu0 %v6401
      %v6472 = vpop.f32.mrb[0].mxu0
      %v6473 = vadd.f32 0.0, %v6472
      %v6474 = vpop.f32.mrb[0].mxu0
      %6475 = vmatprep.mubr.f32.mxu0 0.0
      %6476 = vmatmul.mubr.f32.gmra.mrb[0].mxu0 %v6404
      %v6477 = vpop.f32.mrb[0].mxu0
      %v6478 = vadd.f32 0.0, %v6477
      %v6479 = vpop.f32.mrb[0].mxu0
      %6480 = vdwg.mxu0
      %6481 = vrot.lane.b32.xlu0 %v482, 40
      %v6482 = vpop.permute.xlu0 %6481
      %6483 = vrot.lane.b32.xlu0 %v487, 40
      %v6484 = vpop.permute.xlu0 %6483
      %v6488 = vsel %vm1243, %v6210, 0
      %v6491 = vsel %vm1243, %v6211, 0
      %6493 = vmatprep.subr.mxu0 0.0
      %6494 = vmatpush1.msra.mxu0 %v6482
      %6495 = vmatprep.subr.mxu0 0.0
      %6496 = vmatpush1.msra.mxu0 %v6484
      %6497 = vmatprep.subr.mxu0 0.0
      %6498 = vmatpush1.msra.mxu0 0.0
      %6499 = vmatprep.subr.mxu0 0.0
      %6500 = vmatpush1.msra.mxu0 0.0
      %6501 = vmatprep.subr.mxu0 0.0
      %6502 = vmatpush1.msra.mxu0 0.0
      %6503 = vmatprep.subr.mxu0 0.0
      %6504 = vmatpush1.msra.mxu0 0.0
      %6505 = vmatprep.subr.mxu0 0.0
      %6506 = vmatpush1.msra.mxu0 0.0
      %6507 = vmatprep.subr.mxu0 0.0
      %6508 = vmatpush1.msra.mxu0 0.0
      %6509 = vmatprep.subr.mxu0 0.0
      %6510 = vmatpush1.msra.mxu0 0.0
      %6511 = vmatprep.subr.mxu0 0.0
      %6512 = vmatpush1.msra.mxu0 0.0
      %6513 = vmatprep.subr.mxu0 0.0
      %6514 = vmatpush1.msra.mxu0 0.0
      %6515 = vmatprep.subr.mxu0 0.0
      %6516 = vmatpush1.msra.mxu0 0.0
      %6517 = vmatprep.subr.mxu0 0.0
      %6518 = vmatpush1.msra.mxu0 0.0
      %6519 = vmatprep.subr.mxu0 0.0
      %6520 = vmatpush1.msra.mxu0 0.0
      %6521 = vmatprep.subr.mxu0 0.0
      %6522 = vmatpush1.msra.mxu0 0.0
      %6523 = vmatprep.subr.mxu0 0.0
      %6524 = vmatpush1.msra.mxu0 0.0
      %6525 = vmatprep.subr.mxu0 0.0
      %6526 = vmatpush1.msra.mxu0 0.0
      %6527 = vmatprep.subr.mxu0 0.0
      %6528 = vmatpush1.msra.mxu0 0.0
      %6529 = vmatprep.subr.mxu0 0.0
      %6530 = vmatpush1.msra.mxu0 0.0
      %6531 = vmatprep.subr.mxu0 0.0
      %6532 = vmatpush1.msra.mxu0 0.0
      %6533 = vmatprep.subr.mxu0 0.0
      %6534 = vmatpush1.msra.mxu0 0.0
      %6535 = vmatprep.subr.mxu0 0.0
      %6536 = vmatpush1.msra.mxu0 0.0
      %6537 = vmatprep.subr.mxu0 0.0
      %6538 = vmatpush1.msra.mxu0 0.0
      %6539 = vmatprep.subr.mxu0 0.0
      %6540 = vmatpush1.msra.mxu0 0.0
      %6541 = vmatprep.subr.mxu0 0.0
      %6542 = vmatpush1.msra.mxu0 0.0
      %6543 = vmatprep.subr.mxu0 0.0
      %6544 = vmatpush1.msra.mxu0 0.0
      %6545 = vmatprep.subr.mxu0 0.0
      %6546 = vmatpush1.msra.mxu0 0.0
      %6547 = vmatprep.subr.mxu0 0.0
      %6548 = vmatpush1.msra.mxu0 0.0
      %6549 = vmatprep.subr.mxu0 0.0
      %6550 = vmatpush1.msra.mxu0 0.0
      %6551 = vmatprep.subr.mxu0 0.0
      %6552 = vmatpush1.msra.mxu0 0.0
      %6553 = vmatprep.subr.mxu0 0.0
      %6554 = vmatpush1.msra.mxu0 0.0
      %6555 = vmatprep.subr.mxu0 0.0
      %6556 = vmatpush1.msra.mxu0 0.0
      %6557 = vmatprep.mubr.f32.mxu0 0.0
      %6558 = vmatmul.mubr.f32.gmra.mrb[0].mxu0 %v6488
      %v6559 = vpop.f32.mrb[0].mxu0
      %v6560 = vadd.f32 0.0, %v6559
      %v6561 = vpop.f32.mrb[0].mxu0
      %6562 = vmatprep.mubr.f32.mxu0 0.0
      %6563 = vmatmul.mubr.f32.gmra.mrb[0].mxu0 %v6491
      %v6564 = vpop.f32.mrb[0].mxu0
      %v6565 = vadd.f32 0.0, %v6564
      %v6566 = vpop.f32.mrb[0].mxu0
      %6567 = vdwg.mxu0
      %6568 = vrot.lane.b32.xlu0 %v492, 40
      %v6569 = vpop.permute.xlu0 %6568
      %6570 = vrot.lane.b32.xlu0 %v497, 40
      %v6571 = vpop.permute.xlu0 %6570
      %v6575 = vsel %vm1243, %v6212, 0
      %v6578 = vsel %vm1243, %v6213, 0
      %6580 = vmatprep.subr.mxu0 0.0
      %6581 = vmatpush1.msra.mxu0 %v6569
      %6582 = vmatprep.subr.mxu0 0.0
      %6583 = vmatpush1.msra.mxu0 %v6571
      %6584 = vmatprep.subr.mxu0 0.0
      %6585 = vmatpush1.msra.mxu0 0.0
      %6586 = vmatprep.subr.mxu0 0.0
      %6587 = vmatpush1.msra.mxu0 0.0
      %6588 = vmatprep.subr.mxu0 0.0
      %6589 = vmatpush1.msra.mxu0 0.0
      %6590 = vmatprep.subr.mxu0 0.0
      %6591 = vmatpush1.msra.mxu0 0.0
      %6592 = vmatprep.subr.mxu0 0.0
      %6593 = vmatpush1.msra.mxu0 0.0
      %6594 = vmatprep.subr.mxu0 0.0
      %6595 = vmatpush1.msra.mxu0 0.0
      %6596 = vmatprep.subr.mxu0 0.0
      %6597 = vmatpush1.msra.mxu0 0.0
      %6598 = vmatprep.subr.mxu0 0.0
      %6599 = vmatpush1.msra.mxu0 0.0
      %6600 = vmatprep.subr.mxu0 0.0
      %6601 = vmatpush1.msra.mxu0 0.0
      %6602 = vmatprep.subr.mxu0 0.0
      %6603 = vmatpush1.msra.mxu0 0.0
      %6604 = vmatprep.subr.mxu0 0.0
      %6605 = vmatpush1.msra.mxu0 0.0
      %6606 = vmatprep.subr.mxu0 0.0
      %6607 = vmatpush1.msra.mxu0 0.0
      %6608 = vmatprep.subr.mxu0 0.0
      %6609 = vmatpush1.msra.mxu0 0.0
      %6610 = vmatprep.subr.mxu0 0.0
      %6611 = vmatpush1.msra.mxu0 0.0
      %6612 = vmatprep.subr.mxu0 0.0
      %6613 = vmatpush1.msra.mxu0 0.0
      %6614 = vmatprep.subr.mxu0 0.0
      %6615 = vmatpush1.msra.mxu0 0.0
      %6616 = vmatprep.subr.mxu0 0.0
      %6617 = vmatpush1.msra.mxu0 0.0
      %6618 = vmatprep.subr.mxu0 0.0
      %6619 = vmatpush1.msra.mxu0 0.0
      %6620 = vmatprep.subr.mxu0 0.0
      %6621 = vmatpush1.msra.mxu0 0.0
      %6622 = vmatprep.subr.mxu0 0.0
      %6623 = vmatpush1.msra.mxu0 0.0
      %6624 = vmatprep.subr.mxu0 0.0
      %6625 = vmatpush1.msra.mxu0 0.0
      %6626 = vmatprep.subr.mxu0 0.0
      %6627 = vmatpush1.msra.mxu0 0.0
      %6628 = vmatprep.subr.mxu0 0.0
      %6629 = vmatpush1.msra.mxu0 0.0
      %6630 = vmatprep.subr.mxu0 0.0
      %6631 = vmatpush1.msra.mxu0 0.0
      %6632 = vmatprep.subr.mxu0 0.0
      %6633 = vmatpush1.msra.mxu0 0.0
      %6634 = vmatprep.subr.mxu0 0.0
      %6635 = vmatpush1.msra.mxu0 0.0
      %6636 = vmatprep.subr.mxu0 0.0
      %6637 = vmatpush1.msra.mxu0 0.0
      %6638 = vmatprep.subr.mxu0 0.0
      %6639 = vmatpush1.msra.mxu0 0.0
      %6640 = vmatprep.subr.mxu0 0.0
      %6641 = vmatpush1.msra.mxu0 0.0
      %6642 = vmatprep.subr.mxu0 0.0
      %6643 = vmatpush1.msra.mxu0 0.0
      %6644 = vmatprep.mubr.f32.mxu0 0.0
      %6645 = vmatmul.mubr.f32.gmra.mrb[0].mxu0 %v6575
      %v6646 = vpop.f32.mrb[0].mxu0
      %v6647 = vadd.f32 0.0, %v6646
      %v6648 = vpop.f32.mrb[0].mxu0
      %6649 = vmatprep.mubr.f32.mxu0 0.0
      %6650 = vmatmul.mubr.f32.gmra.mrb[0].mxu0 %v6578
      %v6651 = vpop.f32.mrb[0].mxu0
      %v6652 = vadd.f32 0.0, %v6651
      %v6653 = vpop.f32.mrb[0].mxu0
      %6654 = vdwg.mxu0
      %6655 = vrot.lane.b32.xlu0 %v502, 40
      %v6656 = vpop.permute.xlu0 %6655
      %6657 = vrot.lane.b32.xlu0 %v507, 40
      %v6658 = vpop.permute.xlu0 %6657
      %v6662 = vsel %vm1243, %v6214, 0
      %v6665 = vsel %vm1243, %v6215, 0
      %6667 = vmatprep.subr.mxu0 0.0
      %6668 = vmatpush1.msra.mxu0 %v6656
      %6669 = vmatprep.subr.mxu0 0.0
      %6670 = vmatpush1.msra.mxu0 %v6658
      %6671 = vmatprep.subr.mxu0 0.0
      %6672 = vmatpush1.msra.mxu0 0.0
      %6673 = vmatprep.subr.mxu0 0.0
      %6674 = vmatpush1.msra.mxu0 0.0
      %6675 = vmatprep.subr.mxu0 0.0
      %6676 = vmatpush1.msra.mxu0 0.0
      %6677 = vmatprep.subr.mxu0 0.0
      %6678 = vmatpush1.msra.mxu0 0.0
      %6679 = vmatprep.subr.mxu0 0.0
      %6680 = vmatpush1.msra.mxu0 0.0
      %6681 = vmatprep.subr.mxu0 0.0
      %6682 = vmatpush1.msra.mxu0 0.0
      %6683 = vmatprep.subr.mxu0 0.0
      %6684 = vmatpush1.msra.mxu0 0.0
      %6685 = vmatprep.subr.mxu0 0.0
      %6686 = vmatpush1.msra.mxu0 0.0
      %6687 = vmatprep.subr.mxu0 0.0
      %6688 = vmatpush1.msra.mxu0 0.0
      %6689 = vmatprep.subr.mxu0 0.0
      %6690 = vmatpush1.msra.mxu0 0.0
      %6691 = vmatprep.subr.mxu0 0.0
      %6692 = vmatpush1.msra.mxu0 0.0
      %6693 = vmatprep.subr.mxu0 0.0
      %6694 = vmatpush1.msra.mxu0 0.0
      %6695 = vmatprep.subr.mxu0 0.0
      %6696 = vmatpush1.msra.mxu0 0.0
      %6697 = vmatprep.subr.mxu0 0.0
      %6698 = vmatpush1.msra.mxu0 0.0
      %6699 = vmatprep.subr.mxu0 0.0
      %6700 = vmatpush1.msra.mxu0 0.0
      %6701 = vmatprep.subr.mxu0 0.0
      %6702 = vmatpush1.msra.mxu0 0.0
      %6703 = vmatprep.subr.mxu0 0.0
      %6704 = vmatpush1.msra.mxu0 0.0
      %6705 = vmatprep.subr.mxu0 0.0
      %6706 = vmatpush1.msra.mxu0 0.0
      %6707 = vmatprep.subr.mxu0 0.0
      %6708 = vmatpush1.msra.mxu0 0.0
      %6709 = vmatprep.subr.mxu0 0.0
      %6710 = vmatpush1.msra.mxu0 0.0
      %6711 = vmatprep.subr.mxu0 0.0
      %6712 = vmatpush1.msra.mxu0 0.0
      %6713 = vmatprep.subr.mxu0 0.0
      %6714 = vmatpush1.msra.mxu0 0.0
      %6715 = vmatprep.subr.mxu0 0.0
      %6716 = vmatpush1.msra.mxu0 0.0
      %6717 = vmatprep.subr.mxu0 0.0
      %6718 = vmatpush1.msra.mxu0 0.0
      %6719 = vmatprep.subr.mxu0 0.0
      %6720 = vmatpush1.msra.mxu0 0.0
      %6721 = vmatprep.subr.mxu0 0.0
      %6722 = vmatpush1.msra.mxu0 0.0
      %6723 = vmatprep.subr.mxu0 0.0
      %6724 = vmatpush1.msra.mxu0 0.0
      %6725 = vmatprep.subr.mxu0 0.0
      %6726 = vmatpush1.msra.mxu0 0.0
      %6727 = vmatprep.subr.mxu0 0.0
      %6728 = vmatpush1.msra.mxu0 0.0
      %6729 = vmatprep.subr.mxu0 0.0
      %6730 = vmatpush1.msra.mxu0 0.0
      %6731 = vmatprep.mubr.f32.mxu0 0.0
      %6732 = vmatmul.mubr.f32.gmra.mrb[0].mxu0 %v6662
      %v6733 = vpop.f32.mrb[0].mxu0
      %v6734 = vadd.f32 0.0, %v6733
      %v6735 = vpop.f32.mrb[0].mxu0
      %6736 = vmatprep.mubr.f32.mxu0 0.0
      %6737 = vmatmul.mubr.f32.gmra.mrb[0].mxu0 %v6665
      %v6738 = vpop.f32.mrb[0].mxu0
      %v6739 = vadd.f32 0.0, %v6738
      %v6740 = vpop.f32.mrb[0].mxu0
      %6741 = vdwg.mxu0
      %6742 = vrot.lane.b32.xlu0 %v512, 40
      %v6743 = vpop.permute.xlu0 %6742
      %6744 = vrot.lane.b32.xlu0 %v517, 40
      %v6745 = vpop.permute.xlu0 %6744
      %v6749 = vsel %vm1243, %v6216, 0
      %v6752 = vsel %vm1243, %v6217, 0
      %6754 = vmatprep.subr.mxu0 0.0
      %6755 = vmatpush1.msra.mxu0 %v6743
      %6756 = vmatprep.subr.mxu0 0.0
      %6757 = vmatpush1.msra.mxu0 %v6745
      %6758 = vmatprep.subr.mxu0 0.0
      %6759 = vmatpush1.msra.mxu0 0.0
      %6760 = vmatprep.subr.mxu0 0.0
      %6761 = vmatpush1.msra.mxu0 0.0
      %6762 = vmatprep.subr.mxu0 0.0
      %6763 = vmatpush1.msra.mxu0 0.0
      %6764 = vmatprep.subr.mxu0 0.0
      %6765 = vmatpush1.msra.mxu0 0.0
      %6766 = vmatprep.subr.mxu0 0.0
      %6767 = vmatpush1.msra.mxu0 0.0
      %6768 = vmatprep.subr.mxu0 0.0
      %6769 = vmatpush1.msra.mxu0 0.0
      %6770 = vmatprep.subr.mxu0 0.0
      %6771 = vmatpush1.msra.mxu0 0.0
      %6772 = vmatprep.subr.mxu0 0.0
      %6773 = vmatpush1.msra.mxu0 0.0
      %6774 = vmatprep.subr.mxu0 0.0
      %6775 = vmatpush1.msra.mxu0 0.0
      %6776 = vmatprep.subr.mxu0 0.0
      %6777 = vmatpush1.msra.mxu0 0.0
      %6778 = vmatprep.subr.mxu0 0.0
      %6779 = vmatpush1.msra.mxu0 0.0
      %6780 = vmatprep.subr.mxu0 0.0
      %6781 = vmatpush1.msra.mxu0 0.0
      %6782 = vmatprep.subr.mxu0 0.0
      %6783 = vmatpush1.msra.mxu0 0.0
      %6784 = vmatprep.subr.mxu0 0.0
      %6785 = vmatpush1.msra.mxu0 0.0
      %6786 = vmatprep.subr.mxu0 0.0
      %6787 = vmatpush1.msra.mxu0 0.0
      %6788 = vmatprep.subr.mxu0 0.0
      %6789 = vmatpush1.msra.mxu0 0.0
      %6790 = vmatprep.subr.mxu0 0.0
      %6791 = vmatpush1.msra.mxu0 0.0
      %6792 = vmatprep.subr.mxu0 0.0
      %6793 = vmatpush1.msra.mxu0 0.0
      %6794 = vmatprep.subr.mxu0 0.0
      %6795 = vmatpush1.msra.mxu0 0.0
      %6796 = vmatprep.subr.mxu0 0.0
      %6797 = vmatpush1.msra.mxu0 0.0
      %6798 = vmatprep.subr.mxu0 0.0
      %6799 = vmatpush1.msra.mxu0 0.0
      %6800 = vmatprep.subr.mxu0 0.0
      %6801 = vmatpush1.msra.mxu0 0.0
      %6802 = vmatprep.subr.mxu0 0.0
      %6803 = vmatpush1.msra.mxu0 0.0
      %6804 = vmatprep.subr.mxu0 0.0
      %6805 = vmatpush1.msra.mxu0 0.0
      %6806 = vmatprep.subr.mxu0 0.0
      %6807 = vmatpush1.msra.mxu0 0.0
      %6808 = vmatprep.subr.mxu0 0.0
      %6809 = vmatpush1.msra.mxu0 0.0
      %6810 = vmatprep.subr.mxu0 0.0
      %6811 = vmatpush1.msra.mxu0 0.0
      %6812 = vmatprep.subr.mxu0 0.0
      %6813 = vmatpush1.msra.mxu0 0.0
      %6814 = vmatprep.subr.mxu0 0.0
      %6815 = vmatpush1.msra.mxu0 0.0
      %6816 = vmatprep.subr.mxu0 0.0
      %6817 = vmatpush1.msra.mxu0 0.0
      %6818 = vmatprep.mubr.f32.mxu0 0.0
      %6819 = vmatmul.mubr.f32.gmra.mrb[0].mxu0 %v6749
      %v6820 = vpop.f32.mrb[0].mxu0
      %v6821 = vadd.f32 0.0, %v6820
      %v6822 = vpop.f32.mrb[0].mxu0
      %6823 = vmatprep.mubr.f32.mxu0 0.0
      %6824 = vmatmul.mubr.f32.gmra.mrb[0].mxu0 %v6752
      %v6825 = vpop.f32.mrb[0].mxu0
      %v6826 = vadd.f32 0.0, %v6825
      %v6827 = vpop.f32.mrb[0].mxu0
      %6828 = vdwg.mxu0
      %6829 = vrot.lane.b32.xlu0 %v522, 40
      %v6830 = vpop.permute.xlu0 %6829
      %6831 = vrot.lane.b32.xlu0 %v527, 40
      %v6832 = vpop.permute.xlu0 %6831
      %v6836 = vsel %vm1243, %v6218, 0
      %v6839 = vsel %vm1243, %v6219, 0
      %6841 = vmatprep.subr.mxu0 0.0
      %6842 = vmatpush1.msra.mxu0 %v6830
      %6843 = vmatprep.subr.mxu0 0.0
      %6844 = vmatpush1.msra.mxu0 %v6832
      %6845 = vmatprep.subr.mxu0 0.0
      %6846 = vmatpush1.msra.mxu0 0.0
      %6847 = vmatprep.subr.mxu0 0.0
      %6848 = vmatpush1.msra.mxu0 0.0
      %6849 = vmatprep.subr.mxu0 0.0
      %6850 = vmatpush1.msra.mxu0 0.0
      %6851 = vmatprep.subr.mxu0 0.0
      %6852 = vmatpush1.msra.mxu0 0.0
      %6853 = vmatprep.subr.mxu0 0.0
      %6854 = vmatpush1.msra.mxu0 0.0
      %6855 = vmatprep.subr.mxu0 0.0
      %6856 = vmatpush1.msra.mxu0 0.0
      %6857 = vmatprep.subr.mxu0 0.0
      %6858 = vmatpush1.msra.mxu0 0.0
      %6859 = vmatprep.subr.mxu0 0.0
      %6860 = vmatpush1.msra.mxu0 0.0
      %6861 = vmatprep.subr.mxu0 0.0
      %6862 = vmatpush1.msra.mxu0 0.0
      %6863 = vmatprep.subr.mxu0 0.0
      %6864 = vmatpush1.msra.mxu0 0.0
      %6865 = vmatprep.subr.mxu0 0.0
      %6866 = vmatpush1.msra.mxu0 0.0
      %6867 = vmatprep.subr.mxu0 0.0
      %6868 = vmatpush1.msra.mxu0 0.0
      %6869 = vmatprep.subr.mxu0 0.0
      %6870 = vmatpush1.msra.mxu0 0.0
      %6871 = vmatprep.subr.mxu0 0.0
      %6872 = vmatpush1.msra.mxu0 0.0
      %6873 = vmatprep.subr.mxu0 0.0
      %6874 = vmatpush1.msra.mxu0 0.0
      %6875 = vmatprep.subr.mxu0 0.0
      %6876 = vmatpush1.msra.mxu0 0.0
      %6877 = vmatprep.subr.mxu0 0.0
      %6878 = vmatpush1.msra.mxu0 0.0
      %6879 = vmatprep.subr.mxu0 0.0
      %6880 = vmatpush1.msra.mxu0 0.0
      %6881 = vmatprep.subr.mxu0 0.0
      %6882 = vmatpush1.msra.mxu0 0.0
      %6883 = vmatprep.subr.mxu0 0.0
      %6884 = vmatpush1.msra.mxu0 0.0
      %6885 = vmatprep.subr.mxu0 0.0
      %6886 = vmatpush1.msra.mxu0 0.0
      %6887 = vmatprep.subr.mxu0 0.0
      %6888 = vmatpush1.msra.mxu0 0.0
      %6889 = vmatprep.subr.mxu0 0.0
      %6890 = vmatpush1.msra.mxu0 0.0
      %6891 = vmatprep.subr.mxu0 0.0
      %6892 = vmatpush1.msra.mxu0 0.0
      %6893 = vmatprep.subr.mxu0 0.0
      %6894 = vmatpush1.msra.mxu0 0.0
      %6895 = vmatprep.subr.mxu0 0.0
      %6896 = vmatpush1.msra.mxu0 0.0
      %6897 = vmatprep.subr.mxu0 0.0
      %6898 = vmatpush1.msra.mxu0 0.0
      %6899 = vmatprep.subr.mxu0 0.0
      %6900 = vmatpush1.msra.mxu0 0.0
      %6901 = vmatprep.subr.mxu0 0.0
      %6902 = vmatpush1.msra.mxu0 0.0
      %6903 = vmatprep.subr.mxu0 0.0
      %6904 = vmatpush1.msra.mxu0 0.0
      %6905 = vmatprep.mubr.f32.mxu0 0.0
      %6906 = vmatmul.mubr.f32.gmra.mrb[0].mxu0 %v6836
      %v6907 = vpop.f32.mrb[0].mxu0
      %v6908 = vadd.f32 0.0, %v6907
      %v6909 = vpop.f32.mrb[0].mxu0
      %6910 = vmatprep.mubr.f32.mxu0 0.0
      %6911 = vmatmul.mubr.f32.gmra.mrb[0].mxu0 %v6839
      %v6912 = vpop.f32.mrb[0].mxu0
      %v6913 = vadd.f32 0.0, %v6912
      %v6914 = vpop.f32.mrb[0].mxu0
      %6915 = vdwg.mxu0
      %v6916 = vld [vmem:[%s3] sm:$0xff]
      %v6917 = vld [vmem:[%s3 + $0x8] sm:$0xff]
      %vm6918 = vcmask 523264
      %v6920 = vsel %vm6918, %v6916, 0
      %v6923 = vsel %vm6918, %v6917, 0
      %6925 = vmatprep.subr.mxu0 0.0
      %6926 = vmatpush1.msra.mxu0 %v1499
      %6927 = vmatprep.subr.mxu0 0.0
      %6928 = vmatpush1.msra.mxu0 %v1504
      %6929 = vmatprep.subr.mxu0 0.0
      %6930 = vmatpush1.msra.mxu0 %v3099
      %6931 = vmatprep.subr.mxu0 0.0
      %6932 = vmatpush1.msra.mxu0 %v3104
      %6933 = vmatprep.subr.mxu0 0.0
      %6934 = vmatpush1.msra.mxu0 %v4699
      %6935 = vmatprep.subr.mxu0 0.0
      %6936 = vmatpush1.msra.mxu0 %v4704
      %6937 = vmatprep.subr.mxu0 0.0
      %6938 = vmatpush1.msra.mxu0 %v6299
      %6939 = vmatprep.subr.mxu0 0.0
      %6940 = vmatpush1.msra.mxu0 %v6304
      %6941 = vmatprep.subr.mxu0 0.0
      %6942 = vmatpush1.msra.mxu0 0.0
      %6943 = vmatprep.subr.mxu0 0.0
      %6944 = vmatpush1.msra.mxu0 0.0
      %6945 = vmatprep.subr.mxu0 0.0
      %6946 = vmatpush1.msra.mxu0 0.0
      %6947 = vmatprep.subr.mxu0 0.0
      %6948 = vmatpush1.msra.mxu0 0.0
      %6949 = vmatprep.subr.mxu0 0.0
      %6950 = vmatpush1.msra.mxu0 0.0
      %6951 = vmatprep.subr.mxu0 0.0
      %6952 = vmatpush1.msra.mxu0 0.0
      %6953 = vmatprep.subr.mxu0 0.0
      %6954 = vmatpush1.msra.mxu0 0.0
      %6955 = vmatprep.subr.mxu0 0.0
      %6956 = vmatpush1.msra.mxu0 0.0
      %6957 = vmatprep.subr.mxu0 0.0
      %6958 = vmatpush1.msra.mxu0 0.0
      %6959 = vmatprep.subr.mxu0 0.0
      %6960 = vmatpush1.msra.mxu0 0.0
      %6961 = vmatprep.subr.mxu0 0.0
      %6962 = vmatpush1.msra.mxu0 0.0
      %6963 = vmatprep.subr.mxu0 0.0
      %6964 = vmatpush1.msra.mxu0 0.0
      %6965 = vmatprep.subr.mxu0 0.0
      %6966 = vmatpush1.msra.mxu0 0.0
      %6967 = vmatprep.subr.mxu0 0.0
      %6968 = vmatpush1.msra.mxu0 0.0
      %6969 = vmatprep.subr.mxu0 0.0
      %6970 = vmatpush1.msra.mxu0 0.0
      %6971 = vmatprep.subr.mxu0 0.0
      %6972 = vmatpush1.msra.mxu0 0.0
      %6973 = vmatprep.subr.mxu0 0.0
      %6974 = vmatpush1.msra.mxu0 0.0
      %6975 = vmatprep.subr.mxu0 0.0
      %6976 = vmatpush1.msra.mxu0 0.0
      %6977 = vmatprep.subr.mxu0 0.0
      %6978 = vmatpush1.msra.mxu0 0.0
      %6979 = vmatprep.subr.mxu0 0.0
      %6980 = vmatpush1.msra.mxu0 0.0
      %6981 = vmatprep.subr.mxu0 0.0
      %6982 = vmatpush1.msra.mxu0 0.0
      %6983 = vmatprep.subr.mxu0 0.0
      %6984 = vmatpush1.msra.mxu0 0.0
      %6985 = vmatprep.subr.mxu0 0.0
      %6986 = vmatpush1.msra.mxu0 0.0
      %6987 = vmatprep.subr.mxu0 0.0
      %6988 = vmatpush1.msra.mxu0 0.0
      %6989 = vmatprep.mubr.f32.mxu0 0.0
      %6990 = vmatmul.mubr.f32.gmra.mrb[0].mxu0 %v6920
      %v6991 = vpop.f32.mrb[0].mxu0
      %v6992 = vadd.f32 0.0, %v6991
      %v6993 = vpop.f32.mrb[0].mxu0
      %6994 = vmatprep.mubr.f32.mxu0 0.0
      %6995 = vmatmul.mubr.f32.gmra.mrb[0].mxu0 %v6923
      %v6996 = vpop.f32.mrb[0].mxu0
      %v6997 = vadd.f32 0.0, %v6996
      %v6998 = vpop.f32.mrb[0].mxu0
      %6999 = vdwg.mxu0
      %7000 = vmatprep.subr.mxu0 0.0
      %7001 = vmatpush1.msra.mxu0 %v1586
      %7002 = vmatprep.subr.mxu0 0.0
      %7003 = vmatpush1.msra.mxu0 %v1591
      %7004 = vmatprep.subr.mxu0 0.0
      %7005 = vmatpush1.msra.mxu0 %v3186
      %7006 = vmatprep.subr.mxu0 0.0
      %7007 = vmatpush1.msra.mxu0 %v3191
      %7008 = vmatprep.subr.mxu0 0.0
      %7009 = vmatpush1.msra.mxu0 %v4786
      %7010 = vmatprep.subr.mxu0 0.0
      %7011 = vmatpush1.msra.mxu0 %v4791
      %7012 = vmatprep.subr.mxu0 0.0
      %7013 = vmatpush1.msra.mxu0 %v6386
      %7014 = vmatprep.subr.mxu0 0.0
      %7015 = vmatpush1.msra.mxu0 %v6391
      %7016 = vmatprep.subr.mxu0 0.0
      %7017 = vmatpush1.msra.mxu0 0.0
      %7018 = vmatprep.subr.mxu0 0.0
      %7019 = vmatpush1.msra.mxu0 0.0
      %7020 = vmatprep.subr.mxu0 0.0
      %7021 = vmatpush1.msra.mxu0 0.0
      %7022 = vmatprep.subr.mxu0 0.0
      %7023 = vmatpush1.msra.mxu0 0.0
      %7024 = vmatprep.subr.mxu0 0.0
      %7025 = vmatpush1.msra.mxu0 0.0
      %7026 = vmatprep.subr.mxu0 0.0
      %7027 = vmatpush1.msra.mxu0 0.0
      %7028 = vmatprep.subr.mxu0 0.0
      %7029 = vmatpush1.msra.mxu0 0.0
      %7030 = vmatprep.subr.mxu0 0.0
      %7031 = vmatpush1.msra.mxu0 0.0
      %7032 = vmatprep.subr.mxu0 0.0
      %7033 = vmatpush1.msra.mxu0 0.0
      %7034 = vmatprep.subr.mxu0 0.0
      %7035 = vmatpush1.msra.mxu0 0.0
      %7036 = vmatprep.subr.mxu0 0.0
      %7037 = vmatpush1.msra.mxu0 0.0
      %7038 = vmatprep.subr.mxu0 0.0
      %7039 = vmatpush1.msra.mxu0 0.0
      %7040 = vmatprep.subr.mxu0 0.0
      %7041 = vmatpush1.msra.mxu0 0.0
      %7042 = vmatprep.subr.mxu0 0.0
      %7043 = vmatpush1.msra.mxu0 0.0
      %7044 = vmatprep.subr.mxu0 0.0
      %7045 = vmatpush1.msra.mxu0 0.0
      %7046 = vmatprep.subr.mxu0 0.0
      %7047 = vmatpush1.msra.mxu0 0.0
      %7048 = vmatprep.subr.mxu0 0.0
      %7049 = vmatpush1.msra.mxu0 0.0
      %7050 = vmatprep.subr.mxu0 0.0
      %7051 = vmatpush1.msra.mxu0 0.0
      %7052 = vmatprep.subr.mxu0 0.0
      %7053 = vmatpush1.msra.mxu0 0.0
      %7054 = vmatprep.subr.mxu0 0.0
      %7055 = vmatpush1.msra.mxu0 0.0
      %7056 = vmatprep.subr.mxu0 0.0
      %7057 = vmatpush1.msra.mxu0 0.0
      %7058 = vmatprep.subr.mxu0 0.0
      %7059 = vmatpush1.msra.mxu0 0.0
      %7060 = vmatprep.subr.mxu0 0.0
      %7061 = vmatpush1.msra.mxu0 0.0
      %7062 = vmatprep.subr.mxu0 0.0
      %7063 = vmatpush1.msra.mxu0 0.0
      %7064 = vmatprep.mubr.f32.mxu0 0.0
      %7065 = vmatmul.mubr.f32.gmra.mrb[0].mxu0 %v6920
      %v7066 = vpop.f32.mrb[0].mxu0
      %v7067 = vadd.f32 0.0, %v7066
      %v7068 = vpop.f32.mrb[0].mxu0
      %7069 = vmatprep.mubr.f32.mxu0 0.0
      %7070 = vmatmul.mubr.f32.gmra.mrb[0].mxu0 %v6923
      %v7071 = vpop.f32.mrb[0].mxu0
      %v7072 = vadd.f32 0.0, %v7071
      %v7073 = vpop.f32.mrb[0].mxu0
      %7074 = vdwg.mxu0
      %7075 = vmatprep.subr.mxu0 0.0
      %7076 = vmatpush1.msra.mxu0 %v1673
      %7077 = vmatprep.subr.mxu0 0.0
      %7078 = vmatpush1.msra.mxu0 %v1678
      %7079 = vmatprep.subr.mxu0 0.0
      %7080 = vmatpush1.msra.mxu0 %v3273
      %7081 = vmatprep.subr.mxu0 0.0
      %7082 = vmatpush1.msra.mxu0 %v3278
      %7083 = vmatprep.subr.mxu0 0.0
      %7084 = vmatpush1.msra.mxu0 %v4873
      %7085 = vmatprep.subr.mxu0 0.0
      %7086 = vmatpush1.msra.mxu0 %v4878
      %7087 = vmatprep.subr.mxu0 0.0
      %7088 = vmatpush1.msra.mxu0 %v6473
      %7089 = vmatprep.subr.mxu0 0.0
      %7090 = vmatpush1.msra.mxu0 %v6478
      %7091 = vmatprep.subr.mxu0 0.0
      %7092 = vmatpush1.msra.mxu0 0.0
      %7093 = vmatprep.subr.mxu0 0.0
      %7094 = vmatpush1.msra.mxu0 0.0
      %7095 = vmatprep.subr.mxu0 0.0
      %7096 = vmatpush1.msra.mxu0 0.0
      %7097 = vmatprep.subr.mxu0 0.0
      %7098 = vmatpush1.msra.mxu0 0.0
      %7099 = vmatprep.subr.mxu0 0.0
      %7100 = vmatpush1.msra.mxu0 0.0
      %7101 = vmatprep.subr.mxu0 0.0
      %7102 = vmatpush1.msra.mxu0 0.0
      %7103 = vmatprep.subr.mxu0 0.0
      %7104 = vmatpush1.msra.mxu0 0.0
      %7105 = vmatprep.subr.mxu0 0.0
      %7106 = vmatpush1.msra.mxu0 0.0
      %7107 = vmatprep.subr.mxu0 0.0
      %7108 = vmatpush1.msra.mxu0 0.0
      %7109 = vmatprep.subr.mxu0 0.0
      %7110 = vmatpush1.msra.mxu0 0.0
      %7111 = vmatprep.subr.mxu0 0.0
      %7112 = vmatpush1.msra.mxu0 0.0
      %7113 = vmatprep.subr.mxu0 0.0
      %7114 = vmatpush1.msra.mxu0 0.0
      %7115 = vmatprep.subr.mxu0 0.0
      %7116 = vmatpush1.msra.mxu0 0.0
      %7117 = vmatprep.subr.mxu0 0.0
      %7118 = vmatpush1.msra.mxu0 0.0
      %7119 = vmatprep.subr.mxu0 0.0
      %7120 = vmatpush1.msra.mxu0 0.0
      %7121 = vmatprep.subr.mxu0 0.0
      %7122 = vmatpush1.msra.mxu0 0.0
      %7123 = vmatprep.subr.mxu0 0.0
      %7124 = vmatpush1.msra.mxu0 0.0
      %7125 = vmatprep.subr.mxu0 0.0
      %7126 = vmatpush1.msra.mxu0 0.0
      %7127 = vmatprep.subr.mxu0 0.0
      %7128 = vmatpush1.msra.mxu0 0.0
      %7129 = vmatprep.subr.mxu0 0.0
      %7130 = vmatpush1.msra.mxu0 0.0
      %7131 = vmatprep.subr.mxu0 0.0
      %7132 = vmatpush1.msra.mxu0 0.0
      %7133 = vmatprep.subr.mxu0 0.0
      %7134 = vmatpush1.msra.mxu0 0.0
      %7135 = vmatprep.subr.mxu0 0.0
      %7136 = vmatpush1.msra.mxu0 0.0
      %7137 = vmatprep.subr.mxu0 0.0
      %7138 = vmatpush1.msra.mxu0 0.0
      %7139 = vmatprep.mubr.f32.mxu0 0.0
      %7140 = vmatmul.mubr.f32.gmra.mrb[0].mxu0 %v6920
      %v7141 = vpop.f32.mrb[0].mxu0
      %v7142 = vadd.f32 0.0, %v7141
      %v7143 = vpop.f32.mrb[0].mxu0
      %7144 = vmatprep.mubr.f32.mxu0 0.0
      %7145 = vmatmul.mubr.f32.gmra.mrb[0].mxu0 %v6923
      %v7146 = vpop.f32.mrb[0].mxu0
      %v7147 = vadd.f32 0.0, %v7146
      %v7148 = vpop.f32.mrb[0].mxu0
      %7149 = vdwg.mxu0
      %7150 = vmatprep.subr.mxu0 0.0
      %7151 = vmatpush1.msra.mxu0 %v1760
      %7152 = vmatprep.subr.mxu0 0.0
      %7153 = vmatpush1.msra.mxu0 %v1765
      %7154 = vmatprep.subr.mxu0 0.0
      %7155 = vmatpush1.msra.mxu0 %v3360
      %7156 = vmatprep.subr.mxu0 0.0
      %7157 = vmatpush1.msra.mxu0 %v3365
      %7158 = vmatprep.subr.mxu0 0.0
      %7159 = vmatpush1.msra.mxu0 %v4960
      %7160 = vmatprep.subr.mxu0 0.0
      %7161 = vmatpush1.msra.mxu0 %v4965
      %7162 = vmatprep.subr.mxu0 0.0
      %7163 = vmatpush1.msra.mxu0 %v6560
      %7164 = vmatprep.subr.mxu0 0.0
      %7165 = vmatpush1.msra.mxu0 %v6565
      %7166 = vmatprep.subr.mxu0 0.0
      %7167 = vmatpush1.msra.mxu0 0.0
      %7168 = vmatprep.subr.mxu0 0.0
      %7169 = vmatpush1.msra.mxu0 0.0
      %7170 = vmatprep.subr.mxu0 0.0
      %7171 = vmatpush1.msra.mxu0 0.0
      %7172 = vmatprep.subr.mxu0 0.0
      %7173 = vmatpush1.msra.mxu0 0.0
      %7174 = vmatprep.subr.mxu0 0.0
      %7175 = vmatpush1.msra.mxu0 0.0
      %7176 = vmatprep.subr.mxu0 0.0
      %7177 = vmatpush1.msra.mxu0 0.0
      %7178 = vmatprep.subr.mxu0 0.0
      %7179 = vmatpush1.msra.mxu0 0.0
      %7180 = vmatprep.subr.mxu0 0.0
      %7181 = vmatpush1.msra.mxu0 0.0
      %7182 = vmatprep.subr.mxu0 0.0
      %7183 = vmatpush1.msra.mxu0 0.0
      %7184 = vmatprep.subr.mxu0 0.0
      %7185 = vmatpush1.msra.mxu0 0.0
      %7186 = vmatprep.subr.mxu0 0.0
      %7187 = vmatpush1.msra.mxu0 0.0
      %7188 = vmatprep.subr.mxu0 0.0
      %7189 = vmatpush1.msra.mxu0 0.0
      %7190 = vmatprep.subr.mxu0 0.0
      %7191 = vmatpush1.msra.mxu0 0.0
      %7192 = vmatprep.subr.mxu0 0.0
      %7193 = vmatpush1.msra.mxu0 0.0
      %7194 = vmatprep.subr.mxu0 0.0
      %7195 = vmatpush1.msra.mxu0 0.0
      %7196 = vmatprep.subr.mxu0 0.0
      %7197 = vmatpush1.msra.mxu0 0.0
      %7198 = vmatprep.subr.mxu0 0.0
      %7199 = vmatpush1.msra.mxu0 0.0
      %7200 = vmatprep.subr.mxu0 0.0
      %7201 = vmatpush1.msra.mxu0 0.0
      %7202 = vmatprep.subr.mxu0 0.0
      %7203 = vmatpush1.msra.mxu0 0.0
      %7204 = vmatprep.subr.mxu0 0.0
      %7205 = vmatpush1.msra.mxu0 0.0
      %7206 = vmatprep.subr.mxu0 0.0
      %7207 = vmatpush1.msra.mxu0 0.0
      %7208 = vmatprep.subr.mxu0 0.0
      %7209 = vmatpush1.msra.mxu0 0.0
      %7210 = vmatprep.subr.mxu0 0.0
      %7211 = vmatpush1.msra.mxu0 0.0
      %7212 = vmatprep.subr.mxu0 0.0
      %7213 = vmatpush1.msra.mxu0 0.0
      %7214 = vmatprep.mubr.f32.mxu0 0.0
      %7215 = vmatmul.mubr.f32.gmra.mrb[0].mxu0 %v6920
      %v7216 = vpop.f32.mrb[0].mxu0
      %v7217 = vadd.f32 0.0, %v7216
      %v7218 = vpop.f32.mrb[0].mxu0
      %7219 = vmatprep.mubr.f32.mxu0 0.0
      %7220 = vmatmul.mubr.f32.gmra.mrb[0].mxu0 %v6923
      %v7221 = vpop.f32.mrb[0].mxu0
      %v7222 = vadd.f32 0.0, %v7221
      %v7223 = vpop.f32.mrb[0].mxu0
      %7224 = vdwg.mxu0
      %7225 = vmatprep.subr.mxu0 0.0
      %7226 = vmatpush1.msra.mxu0 %v1847
      %7227 = vmatprep.subr.mxu0 0.0
      %7228 = vmatpush1.msra.mxu0 %v1852
      %7229 = vmatprep.subr.mxu0 0.0
      %7230 = vmatpush1.msra.mxu0 %v3447
      %7231 = vmatprep.subr.mxu0 0.0
      %7232 = vmatpush1.msra.mxu0 %v3452
      %7233 = vmatprep.subr.mxu0 0.0
      %7234 = vmatpush1.msra.mxu0 %v5047
      %7235 = vmatprep.subr.mxu0 0.0
      %7236 = vmatpush1.msra.mxu0 %v5052
      %7237 = vmatprep.subr.mxu0 0.0
      %7238 = vmatpush1.msra.mxu0 %v6647
      %7239 = vmatprep.subr.mxu0 0.0
      %7240 = vmatpush1.msra.mxu0 %v6652
      %7241 = vmatprep.subr.mxu0 0.0
      %7242 = vmatpush1.msra.mxu0 0.0
      %7243 = vmatprep.subr.mxu0 0.0
      %7244 = vmatpush1.msra.mxu0 0.0
      %7245 = vmatprep.subr.mxu0 0.0
      %7246 = vmatpush1.msra.mxu0 0.0
      %7247 = vmatprep.subr.mxu0 0.0
      %7248 = vmatpush1.msra.mxu0 0.0
      %7249 = vmatprep.subr.mxu0 0.0
      %7250 = vmatpush1.msra.mxu0 0.0
      %7251 = vmatprep.subr.mxu0 0.0
      %7252 = vmatpush1.msra.mxu0 0.0
      %7253 = vmatprep.subr.mxu0 0.0
      %7254 = vmatpush1.msra.mxu0 0.0
      %7255 = vmatprep.subr.mxu0 0.0
      %7256 = vmatpush1.msra.mxu0 0.0
      %7257 = vmatprep.subr.mxu0 0.0
      %7258 = vmatpush1.msra.mxu0 0.0
      %7259 = vmatprep.subr.mxu0 0.0
      %7260 = vmatpush1.msra.mxu0 0.0
      %7261 = vmatprep.subr.mxu0 0.0
      %7262 = vmatpush1.msra.mxu0 0.0
      %7263 = vmatprep.subr.mxu0 0.0
      %7264 = vmatpush1.msra.mxu0 0.0
      %7265 = vmatprep.subr.mxu0 0.0
      %7266 = vmatpush1.msra.mxu0 0.0
      %7267 = vmatprep.subr.mxu0 0.0
      %7268 = vmatpush1.msra.mxu0 0.0
      %7269 = vmatprep.subr.mxu0 0.0
      %7270 = vmatpush1.msra.mxu0 0.0
      %7271 = vmatprep.subr.mxu0 0.0
      %7272 = vmatpush1.msra.mxu0 0.0
      %7273 = vmatprep.subr.mxu0 0.0
      %7274 = vmatpush1.msra.mxu0 0.0
      %7275 = vmatprep.subr.mxu0 0.0
      %7276 = vmatpush1.msra.mxu0 0.0
      %7277 = vmatprep.subr.mxu0 0.0
      %7278 = vmatpush1.msra.mxu0 0.0
      %7279 = vmatprep.subr.mxu0 0.0
      %7280 = vmatpush1.msra.mxu0 0.0
      %7281 = vmatprep.subr.mxu0 0.0
      %7282 = vmatpush1.msra.mxu0 0.0
      %7283 = vmatprep.subr.mxu0 0.0
      %7284 = vmatpush1.msra.mxu0 0.0
      %7285 = vmatprep.subr.mxu0 0.0
      %7286 = vmatpush1.msra.mxu0 0.0
      %7287 = vmatprep.subr.mxu0 0.0
      %7288 = vmatpush1.msra.mxu0 0.0
      %7289 = vmatprep.mubr.f32.mxu0 0.0
      %7290 = vmatmul.mubr.f32.gmra.mrb[0].mxu0 %v6920
      %v7291 = vpop.f32.mrb[0].mxu0
      %v7292 = vadd.f32 0.0, %v7291
      %v7293 = vpop.f32.mrb[0].mxu0
      %7294 = vmatprep.mubr.f32.mxu0 0.0
      %7295 = vmatmul.mubr.f32.gmra.mrb[0].mxu0 %v6923
      %v7296 = vpop.f32.mrb[0].mxu0
      %v7297 = vadd.f32 0.0, %v7296
      %v7298 = vpop.f32.mrb[0].mxu0
      %7299 = vdwg.mxu0
      %7300 = vmatprep.subr.mxu0 0.0
      %7301 = vmatpush1.msra.mxu0 %v1934
      %7302 = vmatprep.subr.mxu0 0.0
      %7303 = vmatpush1.msra.mxu0 %v1939
      %7304 = vmatprep.subr.mxu0 0.0
      %7305 = vmatpush1.msra.mxu0 %v3534
      %7306 = vmatprep.subr.mxu0 0.0
      %7307 = vmatpush1.msra.mxu0 %v3539
      %7308 = vmatprep.subr.mxu0 0.0
      %7309 = vmatpush1.msra.mxu0 %v5134
      %7310 = vmatprep.subr.mxu0 0.0
      %7311 = vmatpush1.msra.mxu0 %v5139
      %7312 = vmatprep.subr.mxu0 0.0
      %7313 = vmatpush1.msra.mxu0 %v6734
      %7314 = vmatprep.subr.mxu0 0.0
      %7315 = vmatpush1.msra.mxu0 %v6739
      %7316 = vmatprep.subr.mxu0 0.0
      %7317 = vmatpush1.msra.mxu0 0.0
      %7318 = vmatprep.subr.mxu0 0.0
      %7319 = vmatpush1.msra.mxu0 0.0
      %7320 = vmatprep.subr.mxu0 0.0
      %7321 = vmatpush1.msra.mxu0 0.0
      %7322 = vmatprep.subr.mxu0 0.0
      %7323 = vmatpush1.msra.mxu0 0.0
      %7324 = vmatprep.subr.mxu0 0.0
      %7325 = vmatpush1.msra.mxu0 0.0
      %7326 = vmatprep.subr.mxu0 0.0
      %7327 = vmatpush1.msra.mxu0 0.0
      %7328 = vmatprep.subr.mxu0 0.0
      %7329 = vmatpush1.msra.mxu0 0.0
      %7330 = vmatprep.subr.mxu0 0.0
      %7331 = vmatpush1.msra.mxu0 0.0
      %7332 = vmatprep.subr.mxu0 0.0
      %7333 = vmatpush1.msra.mxu0 0.0
      %7334 = vmatprep.subr.mxu0 0.0
      %7335 = vmatpush1.msra.mxu0 0.0
      %7336 = vmatprep.subr.mxu0 0.0
      %7337 = vmatpush1.msra.mxu0 0.0
      %7338 = vmatprep.subr.mxu0 0.0
      %7339 = vmatpush1.msra.mxu0 0.0
      %7340 = vmatprep.subr.mxu0 0.0
      %7341 = vmatpush1.msra.mxu0 0.0
      %7342 = vmatprep.subr.mxu0 0.0
      %7343 = vmatpush1.msra.mxu0 0.0
      %7344 = vmatprep.subr.mxu0 0.0
      %7345 = vmatpush1.msra.mxu0 0.0
      %7346 = vmatprep.subr.mxu0 0.0
      %7347 = vmatpush1.msra.mxu0 0.0
      %7348 = vmatprep.subr.mxu0 0.0
      %7349 = vmatpush1.msra.mxu0 0.0
      %7350 = vmatprep.subr.mxu0 0.0
      %7351 = vmatpush1.msra.mxu0 0.0
      %7352 = vmatprep.subr.mxu0 0.0
      %7353 = vmatpush1.msra.mxu0 0.0
      %7354 = vmatprep.subr.mxu0 0.0
      %7355 = vmatpush1.msra.mxu0 0.0
      %7356 = vmatprep.subr.mxu0 0.0
      %7357 = vmatpush1.msra.mxu0 0.0
      %7358 = vmatprep.subr.mxu0 0.0
      %7359 = vmatpush1.msra.mxu0 0.0
      %7360 = vmatprep.subr.mxu0 0.0
      %7361 = vmatpush1.msra.mxu0 0.0
      %7362 = vmatprep.subr.mxu0 0.0
      %7363 = vmatpush1.msra.mxu0 0.0
      %7364 = vmatprep.mubr.f32.mxu0 0.0
      %7365 = vmatmul.mubr.f32.gmra.mrb[0].mxu0 %v6920
      %v7366 = vpop.f32.mrb[0].mxu0
      %v7367 = vadd.f32 0.0, %v7366
      %v7368 = vpop.f32.mrb[0].mxu0
      %7369 = vmatprep.mubr.f32.mxu0 0.0
      %7370 = vmatmul.mubr.f32.gmra.mrb[0].mxu0 %v6923
      %v7371 = vpop.f32.mrb[0].mxu0
      %v7372 = vadd.f32 0.0, %v7371
      %v7373 = vpop.f32.mrb[0].mxu0
      %7374 = vdwg.mxu0
      %7375 = vmatprep.subr.mxu0 0.0
      %7376 = vmatpush1.msra.mxu0 %v2021
      %7377 = vmatprep.subr.mxu0 0.0
      %7378 = vmatpush1.msra.mxu0 %v2026
      %7379 = vmatprep.subr.mxu0 0.0
      %7380 = vmatpush1.msra.mxu0 %v3621
      %7381 = vmatprep.subr.mxu0 0.0
      %7382 = vmatpush1.msra.mxu0 %v3626
      %7383 = vmatprep.subr.mxu0 0.0
      %7384 = vmatpush1.msra.mxu0 %v5221
      %7385 = vmatprep.subr.mxu0 0.0
      %7386 = vmatpush1.msra.mxu0 %v5226
      %7387 = vmatprep.subr.mxu0 0.0
      %7388 = vmatpush1.msra.mxu0 %v6821
      %7389 = vmatprep.subr.mxu0 0.0
      %7390 = vmatpush1.msra.mxu0 %v6826
      %7391 = vmatprep.subr.mxu0 0.0
      %7392 = vmatpush1.msra.mxu0 0.0
      %7393 = vmatprep.subr.mxu0 0.0
      %7394 = vmatpush1.msra.mxu0 0.0
      %7395 = vmatprep.subr.mxu0 0.0
      %7396 = vmatpush1.msra.mxu0 0.0
      %7397 = vmatprep.subr.mxu0 0.0
      %7398 = vmatpush1.msra.mxu0 0.0
      %7399 = vmatprep.subr.mxu0 0.0
      %7400 = vmatpush1.msra.mxu0 0.0
      %7401 = vmatprep.subr.mxu0 0.0
      %7402 = vmatpush1.msra.mxu0 0.0
      %7403 = vmatprep.subr.mxu0 0.0
      %7404 = vmatpush1.msra.mxu0 0.0
      %7405 = vmatprep.subr.mxu0 0.0
      %7406 = vmatpush1.msra.mxu0 0.0
      %7407 = vmatprep.subr.mxu0 0.0
      %7408 = vmatpush1.msra.mxu0 0.0
      %7409 = vmatprep.subr.mxu0 0.0
      %7410 = vmatpush1.msra.mxu0 0.0
      %7411 = vmatprep.subr.mxu0 0.0
      %7412 = vmatpush1.msra.mxu0 0.0
      %7413 = vmatprep.subr.mxu0 0.0
      %7414 = vmatpush1.msra.mxu0 0.0
      %7415 = vmatprep.subr.mxu0 0.0
      %7416 = vmatpush1.msra.mxu0 0.0
      %7417 = vmatprep.subr.mxu0 0.0
      %7418 = vmatpush1.msra.mxu0 0.0
      %7419 = vmatprep.subr.mxu0 0.0
      %7420 = vmatpush1.msra.mxu0 0.0
      %7421 = vmatprep.subr.mxu0 0.0
      %7422 = vmatpush1.msra.mxu0 0.0
      %7423 = vmatprep.subr.mxu0 0.0
      %7424 = vmatpush1.msra.mxu0 0.0
      %7425 = vmatprep.subr.mxu0 0.0
      %7426 = vmatpush1.msra.mxu0 0.0
      %7427 = vmatprep.subr.mxu0 0.0
      %7428 = vmatpush1.msra.mxu0 0.0
      %7429 = vmatprep.subr.mxu0 0.0
      %7430 = vmatpush1.msra.mxu0 0.0
      %7431 = vmatprep.subr.mxu0 0.0
      %7432 = vmatpush1.msra.mxu0 0.0
      %7433 = vmatprep.subr.mxu0 0.0
      %7434 = vmatpush1.msra.mxu0 0.0
      %7435 = vmatprep.subr.mxu0 0.0
      %7436 = vmatpush1.msra.mxu0 0.0
      %7437 = vmatprep.subr.mxu0 0.0
      %7438 = vmatpush1.msra.mxu0 0.0
      %7439 = vmatprep.mubr.f32.mxu0 0.0
      %7440 = vmatmul.mubr.f32.gmra.mrb[0].mxu0 %v6920
      %v7441 = vpop.f32.mrb[0].mxu0
      %v7442 = vadd.f32 0.0, %v7441
      %v7443 = vpop.f32.mrb[0].mxu0
      %7444 = vmatprep.mubr.f32.mxu0 0.0
      %7445 = vmatmul.mubr.f32.gmra.mrb[0].mxu0 %v6923
      %v7446 = vpop.f32.mrb[0].mxu0
      %v7447 = vadd.f32 0.0, %v7446
      %v7448 = vpop.f32.mrb[0].mxu0
      %7449 = vdwg.mxu0
      %7450 = vmatprep.subr.mxu0 0.0
      %7451 = vmatpush1.msra.mxu0 %v2108
      %7452 = vmatprep.subr.mxu0 0.0
      %7453 = vmatpush1.msra.mxu0 %v2113
      %7454 = vmatprep.subr.mxu0 0.0
      %7455 = vmatpush1.msra.mxu0 %v3708
      %7456 = vmatprep.subr.mxu0 0.0
      %7457 = vmatpush1.msra.mxu0 %v3713
      %7458 = vmatprep.subr.mxu0 0.0
      %7459 = vmatpush1.msra.mxu0 %v5308
      %7460 = vmatprep.subr.mxu0 0.0
      %7461 = vmatpush1.msra.mxu0 %v5313
      %7462 = vmatprep.subr.mxu0 0.0
      %7463 = vmatpush1.msra.mxu0 %v6908
      %7464 = vmatprep.subr.mxu0 0.0
      %7465 = vmatpush1.msra.mxu0 %v6913
      %7466 = vmatprep.subr.mxu0 0.0
      %7467 = vmatpush1.msra.mxu0 0.0
      %7468 = vmatprep.subr.mxu0 0.0
      %7469 = vmatpush1.msra.mxu0 0.0
      %7470 = vmatprep.subr.mxu0 0.0
      %7471 = vmatpush1.msra.mxu0 0.0
      %7472 = vmatprep.subr.mxu0 0.0
      %7473 = vmatpush1.msra.mxu0 0.0
      %7474 = vmatprep.subr.mxu0 0.0
      %7475 = vmatpush1.msra.mxu0 0.0
      %7476 = vmatprep.subr.mxu0 0.0
      %7477 = vmatpush1.msra.mxu0 0.0
      %7478 = vmatprep.subr.mxu0 0.0
      %7479 = vmatpush1.msra.mxu0 0.0
      %7480 = vmatprep.subr.mxu0 0.0
      %7481 = vmatpush1.msra.mxu0 0.0
      %7482 = vmatprep.subr.mxu0 0.0
      %7483 = vmatpush1.msra.mxu0 0.0
      %7484 = vmatprep.subr.mxu0 0.0
      %7485 = vmatpush1.msra.mxu0 0.0
      %7486 = vmatprep.subr.mxu0 0.0
      %7487 = vmatpush1.msra.mxu0 0.0
      %7488 = vmatprep.subr.mxu0 0.0
      %7489 = vmatpush1.msra.mxu0 0.0
      %7490 = vmatprep.subr.mxu0 0.0
      %7491 = vmatpush1.msra.mxu0 0.0
      %7492 = vmatprep.subr.mxu0 0.0
      %7493 = vmatpush1.msra.mxu0 0.0
      %7494 = vmatprep.subr.mxu0 0.0
      %7495 = vmatpush1.msra.mxu0 0.0
      %7496 = vmatprep.subr.mxu0 0.0
      %7497 = vmatpush1.msra.mxu0 0.0
      %7498 = vmatprep.subr.mxu0 0.0
      %7499 = vmatpush1.msra.mxu0 0.0
      %7500 = vmatprep.subr.mxu0 0.0
      %7501 = vmatpush1.msra.mxu0 0.0
      %7502 = vmatprep.subr.mxu0 0.0
      %7503 = vmatpush1.msra.mxu0 0.0
      %7504 = vmatprep.subr.mxu0 0.0
      %7505 = vmatpush1.msra.mxu0 0.0
      %7506 = vmatprep.subr.mxu0 0.0
      %7507 = vmatpush1.msra.mxu0 0.0
      %7508 = vmatprep.subr.mxu0 0.0
      %7509 = vmatpush1.msra.mxu0 0.0
      %7510 = vmatprep.subr.mxu0 0.0
      %7511 = vmatpush1.msra.mxu0 0.0
      %7512 = vmatprep.subr.mxu0 0.0
      %7513 = vmatpush1.msra.mxu0 0.0
      %7514 = vmatprep.mubr.f32.mxu0 0.0
      %7515 = vmatmul.mubr.f32.gmra.mrb[0].mxu0 %v6920
      %v7516 = vpop.f32.mrb[0].mxu0
      %v7517 = vadd.f32 0.0, %v7516
      %v7518 = vpop.f32.mrb[0].mxu0
      %7519 = vmatprep.mubr.f32.mxu0 0.0
      %7520 = vmatmul.mubr.f32.gmra.mrb[0].mxu0 %v6923
      %v7521 = vpop.f32.mrb[0].mxu0
      %v7522 = vadd.f32 0.0, %v7521
      %v7523 = vpop.f32.mrb[0].mxu0
      %7524 = vdwg.mxu0
      %v7525 = vld [vmem:[%s4] sm:$0xff]
      %s7526 = scalar_lea.vmem %s3, 16
      %v7527 = vld [vmem:[%s7526] sm:$0xff]
      %v7528 = vld [vmem:[%s7526 + $0x8] sm:$0xff]
      %v7530 = vsel %vm6918, %v7527, 0
      %v7533 = vsel %vm6918, %v7528, 0
      %7535 = vmatprep.subr.mxu0 0.0
      %7536 = vmatpush1.msra.mxu0 %v1499
      %7537 = vmatprep.subr.mxu0 0.0
      %7538 = vmatpush1.msra.mxu0 %v1504
      %7539 = vmatprep.subr.mxu0 0.0
      %7540 = vmatpush1.msra.mxu0 %v3099
      %7541 = vmatprep.subr.mxu0 0.0
      %7542 = vmatpush1.msra.mxu0 %v3104
      %7543 = vmatprep.subr.mxu0 0.0
      %7544 = vmatpush1.msra.mxu0 %v4699
      %7545 = vmatprep.subr.mxu0 0.0
      %7546 = vmatpush1.msra.mxu0 %v4704
      %7547 = vmatprep.subr.mxu0 0.0
      %7548 = vmatpush1.msra.mxu0 %v6299
      %7549 = vmatprep.subr.mxu0 0.0
      %7550 = vmatpush1.msra.mxu0 %v6304
      %7551 = vmatprep.subr.mxu0 0.0
      %7552 = vmatpush1.msra.mxu0 0.0
      %7553 = vmatprep.subr.mxu0 0.0
      %7554 = vmatpush1.msra.mxu0 0.0
      %7555 = vmatprep.subr.mxu0 0.0
      %7556 = vmatpush1.msra.mxu0 0.0
      %7557 = vmatprep.subr.mxu0 0.0
      %7558 = vmatpush1.msra.mxu0 0.0
      %7559 = vmatprep.subr.mxu0 0.0
      %7560 = vmatpush1.msra.mxu0 0.0
      %7561 = vmatprep.subr.mxu0 0.0
      %7562 = vmatpush1.msra.mxu0 0.0
      %7563 = vmatprep.subr.mxu0 0.0
      %7564 = vmatpush1.msra.mxu0 0.0
      %7565 = vmatprep.subr.mxu0 0.0
      %7566 = vmatpush1.msra.mxu0 0.0
      %7567 = vmatprep.subr.mxu0 0.0
      %7568 = vmatpush1.msra.mxu0 0.0
      %7569 = vmatprep.subr.mxu0 0.0
      %7570 = vmatpush1.msra.mxu0 0.0
      %7571 = vmatprep.subr.mxu0 0.0
      %7572 = vmatpush1.msra.mxu0 0.0
      %7573 = vmatprep.subr.mxu0 0.0
      %7574 = vmatpush1.msra.mxu0 0.0
      %7575 = vmatprep.subr.mxu0 0.0
      %7576 = vmatpush1.msra.mxu0 0.0
      %7577 = vmatprep.subr.mxu0 0.0
      %7578 = vmatpush1.msra.mxu0 0.0
      %7579 = vmatprep.subr.mxu0 0.0
      %7580 = vmatpush1.msra.mxu0 0.0
      %7581 = vmatprep.subr.mxu0 0.0
      %7582 = vmatpush1.msra.mxu0 0.0
      %7583 = vmatprep.subr.mxu0 0.0
      %7584 = vmatpush1.msra.mxu0 0.0
      %7585 = vmatprep.subr.mxu0 0.0
      %7586 = vmatpush1.msra.mxu0 0.0
      %7587 = vmatprep.subr.mxu0 0.0
      %7588 = vmatpush1.msra.mxu0 0.0
      %7589 = vmatprep.subr.mxu0 0.0
      %7590 = vmatpush1.msra.mxu0 0.0
      %7591 = vmatprep.subr.mxu0 0.0
      %7592 = vmatpush1.msra.mxu0 0.0
      %7593 = vmatprep.subr.mxu0 0.0
      %7594 = vmatpush1.msra.mxu0 0.0
      %7595 = vmatprep.subr.mxu0 0.0
      %7596 = vmatpush1.msra.mxu0 0.0
      %7597 = vmatprep.subr.mxu0 0.0
      %7598 = vmatpush1.msra.mxu0 0.0
      %7599 = vmatprep.mubr.f32.mxu0 0.0
      %7600 = vmatmul.mubr.f32.gmra.mrb[0].mxu0 %v7530
      %v7601 = vpop.f32.mrb[0].mxu0
      %v7602 = vadd.f32 0.0, %v7601
      %v7603 = vpop.f32.mrb[0].mxu0
      %7604 = vmatprep.mubr.f32.mxu0 0.0
      %7605 = vmatmul.mubr.f32.gmra.mrb[0].mxu0 %v7533
      %v7606 = vpop.f32.mrb[0].mxu0
      %v7607 = vadd.f32 0.0, %v7606
      %v7608 = vpop.f32.mrb[0].mxu0
      %7609 = vdwg.mxu0
      %7610 = vmatprep.subr.mxu0 0.0
      %7611 = vmatpush1.msra.mxu0 %v1586
      %7612 = vmatprep.subr.mxu0 0.0
      %7613 = vmatpush1.msra.mxu0 %v1591
      %7614 = vmatprep.subr.mxu0 0.0
      %7615 = vmatpush1.msra.mxu0 %v3186
      %7616 = vmatprep.subr.mxu0 0.0
      %7617 = vmatpush1.msra.mxu0 %v3191
      %7618 = vmatprep.subr.mxu0 0.0
      %7619 = vmatpush1.msra.mxu0 %v4786
      %7620 = vmatprep.subr.mxu0 0.0
      %7621 = vmatpush1.msra.mxu0 %v4791
      %7622 = vmatprep.subr.mxu0 0.0
      %7623 = vmatpush1.msra.mxu0 %v6386
      %7624 = vmatprep.subr.mxu0 0.0
      %7625 = vmatpush1.msra.mxu0 %v6391
      %7626 = vmatprep.subr.mxu0 0.0
      %7627 = vmatpush1.msra.mxu0 0.0
      %7628 = vmatprep.subr.mxu0 0.0
      %7629 = vmatpush1.msra.mxu0 0.0
      %7630 = vmatprep.subr.mxu0 0.0
      %7631 = vmatpush1.msra.mxu0 0.0
      %7632 = vmatprep.subr.mxu0 0.0
      %7633 = vmatpush1.msra.mxu0 0.0
      %7634 = vmatprep.subr.mxu0 0.0
      %7635 = vmatpush1.msra.mxu0 0.0
      %7636 = vmatprep.subr.mxu0 0.0
      %7637 = vmatpush1.msra.mxu0 0.0
      %7638 = vmatprep.subr.mxu0 0.0
      %7639 = vmatpush1.msra.mxu0 0.0
      %7640 = vmatprep.subr.mxu0 0.0
      %7641 = vmatpush1.msra.mxu0 0.0
      %7642 = vmatprep.subr.mxu0 0.0
      %7643 = vmatpush1.msra.mxu0 0.0
      %7644 = vmatprep.subr.mxu0 0.0
      %7645 = vmatpush1.msra.mxu0 0.0
      %7646 = vmatprep.subr.mxu0 0.0
      %7647 = vmatpush1.msra.mxu0 0.0
      %7648 = vmatprep.subr.mxu0 0.0
      %7649 = vmatpush1.msra.mxu0 0.0
      %7650 = vmatprep.subr.mxu0 0.0
      %7651 = vmatpush1.msra.mxu0 0.0
      %7652 = vmatprep.subr.mxu0 0.0
      %7653 = vmatpush1.msra.mxu0 0.0
      %7654 = vmatprep.subr.mxu0 0.0
      %7655 = vmatpush1.msra.mxu0 0.0
      %7656 = vmatprep.subr.mxu0 0.0
      %7657 = vmatpush1.msra.mxu0 0.0
      %7658 = vmatprep.subr.mxu0 0.0
      %7659 = vmatpush1.msra.mxu0 0.0
      %7660 = vmatprep.subr.mxu0 0.0
      %7661 = vmatpush1.msra.mxu0 0.0
      %7662 = vmatprep.subr.mxu0 0.0
      %7663 = vmatpush1.msra.mxu0 0.0
      %7664 = vmatprep.subr.mxu0 0.0
      %7665 = vmatpush1.msra.mxu0 0.0
      %7666 = vmatprep.subr.mxu0 0.0
      %7667 = vmatpush1.msra.mxu0 0.0
      %7668 = vmatprep.subr.mxu0 0.0
      %7669 = vmatpush1.msra.mxu0 0.0
      %7670 = vmatprep.subr.mxu0 0.0
      %7671 = vmatpush1.msra.mxu0 0.0
      %7672 = vmatprep.subr.mxu0 0.0
      %7673 = vmatpush1.msra.mxu0 0.0
      %7674 = vmatprep.mubr.f32.mxu0 0.0
      %7675 = vmatmul.mubr.f32.gmra.mrb[0].mxu0 %v7530
      %v7676 = vpop.f32.mrb[0].mxu0
      %v7677 = vadd.f32 0.0, %v7676
      %v7678 = vpop.f32.mrb[0].mxu0
      %7679 = vmatprep.mubr.f32.mxu0 0.0
      %7680 = vmatmul.mubr.f32.gmra.mrb[0].mxu0 %v7533
      %v7681 = vpop.f32.mrb[0].mxu0
      %v7682 = vadd.f32 0.0, %v7681
      %v7683 = vpop.f32.mrb[0].mxu0
      %7684 = vdwg.mxu0
      %7685 = vmatprep.subr.mxu0 0.0
      %7686 = vmatpush1.msra.mxu0 %v1673
      %7687 = vmatprep.subr.mxu0 0.0
      %7688 = vmatpush1.msra.mxu0 %v1678
      %7689 = vmatprep.subr.mxu0 0.0
      %7690 = vmatpush1.msra.mxu0 %v3273
      %7691 = vmatprep.subr.mxu0 0.0
      %7692 = vmatpush1.msra.mxu0 %v3278
      %7693 = vmatprep.subr.mxu0 0.0
      %7694 = vmatpush1.msra.mxu0 %v4873
      %7695 = vmatprep.subr.mxu0 0.0
      %7696 = vmatpush1.msra.mxu0 %v4878
      %7697 = vmatprep.subr.mxu0 0.0
      %7698 = vmatpush1.msra.mxu0 %v6473
      %7699 = vmatprep.subr.mxu0 0.0
      %7700 = vmatpush1.msra.mxu0 %v6478
      %7701 = vmatprep.subr.mxu0 0.0
      %7702 = vmatpush1.msra.mxu0 0.0
      %7703 = vmatprep.subr.mxu0 0.0
      %7704 = vmatpush1.msra.mxu0 0.0
      %7705 = vmatprep.subr.mxu0 0.0
      %7706 = vmatpush1.msra.mxu0 0.0
      %7707 = vmatprep.subr.mxu0 0.0
      %7708 = vmatpush1.msra.mxu0 0.0
      %7709 = vmatprep.subr.mxu0 0.0
      %7710 = vmatpush1.msra.mxu0 0.0
      %7711 = vmatprep.subr.mxu0 0.0
      %7712 = vmatpush1.msra.mxu0 0.0
      %7713 = vmatprep.subr.mxu0 0.0
      %7714 = vmatpush1.msra.mxu0 0.0
      %7715 = vmatprep.subr.mxu0 0.0
      %7716 = vmatpush1.msra.mxu0 0.0
      %7717 = vmatprep.subr.mxu0 0.0
      %7718 = vmatpush1.msra.mxu0 0.0
      %7719 = vmatprep.subr.mxu0 0.0
      %7720 = vmatpush1.msra.mxu0 0.0
      %7721 = vmatprep.subr.mxu0 0.0
      %7722 = vmatpush1.msra.mxu0 0.0
      %7723 = vmatprep.subr.mxu0 0.0
      %7724 = vmatpush1.msra.mxu0 0.0
      %7725 = vmatprep.subr.mxu0 0.0
      %7726 = vmatpush1.msra.mxu0 0.0
      %7727 = vmatprep.subr.mxu0 0.0
      %7728 = vmatpush1.msra.mxu0 0.0
      %7729 = vmatprep.subr.mxu0 0.0
      %7730 = vmatpush1.msra.mxu0 0.0
      %7731 = vmatprep.subr.mxu0 0.0
      %7732 = vmatpush1.msra.mxu0 0.0
      %7733 = vmatprep.subr.mxu0 0.0
      %7734 = vmatpush1.msra.mxu0 0.0
      %7735 = vmatprep.subr.mxu0 0.0
      %7736 = vmatpush1.msra.mxu0 0.0
      %7737 = vmatprep.subr.mxu0 0.0
      %7738 = vmatpush1.msra.mxu0 0.0
      %7739 = vmatprep.subr.mxu0 0.0
      %7740 = vmatpush1.msra.mxu0 0.0
      %7741 = vmatprep.subr.mxu0 0.0
      %7742 = vmatpush1.msra.mxu0 0.0
      %7743 = vmatprep.subr.mxu0 0.0
      %7744 = vmatpush1.msra.mxu0 0.0
      %7745 = vmatprep.subr.mxu0 0.0
      %7746 = vmatpush1.msra.mxu0 0.0
      %7747 = vmatprep.subr.mxu0 0.0
      %7748 = vmatpush1.msra.mxu0 0.0
      %7749 = vmatprep.mubr.f32.mxu0 0.0
      %7750 = vmatmul.mubr.f32.gmra.mrb[0].mxu0 %v7530
      %v7751 = vpop.f32.mrb[0].mxu0
      %v7752 = vadd.f32 0.0, %v7751
      %v7753 = vpop.f32.mrb[0].mxu0
      %7754 = vmatprep.mubr.f32.mxu0 0.0
      %7755 = vmatmul.mubr.f32.gmra.mrb[0].mxu0 %v7533
      %v7756 = vpop.f32.mrb[0].mxu0
      %v7757 = vadd.f32 0.0, %v7756
      %v7758 = vpop.f32.mrb[0].mxu0
      %7759 = vdwg.mxu0
      %7760 = vmatprep.subr.mxu0 0.0
      %7761 = vmatpush1.msra.mxu0 %v1760
      %7762 = vmatprep.subr.mxu0 0.0
      %7763 = vmatpush1.msra.mxu0 %v1765
      %7764 = vmatprep.subr.mxu0 0.0
      %7765 = vmatpush1.msra.mxu0 %v3360
      %7766 = vmatprep.subr.mxu0 0.0
      %7767 = vmatpush1.msra.mxu0 %v3365
      %7768 = vmatprep.subr.mxu0 0.0
      %7769 = vmatpush1.msra.mxu0 %v4960
      %7770 = vmatprep.subr.mxu0 0.0
      %7771 = vmatpush1.msra.mxu0 %v4965
      %7772 = vmatprep.subr.mxu0 0.0
      %7773 = vmatpush1.msra.mxu0 %v6560
      %7774 = vmatprep.subr.mxu0 0.0
      %7775 = vmatpush1.msra.mxu0 %v6565
      %7776 = vmatprep.subr.mxu0 0.0
      %7777 = vmatpush1.msra.mxu0 0.0
      %7778 = vmatprep.subr.mxu0 0.0
      %7779 = vmatpush1.msra.mxu0 0.0
      %7780 = vmatprep.subr.mxu0 0.0
      %7781 = vmatpush1.msra.mxu0 0.0
      %7782 = vmatprep.subr.mxu0 0.0
      %7783 = vmatpush1.msra.mxu0 0.0
      %7784 = vmatprep.subr.mxu0 0.0
      %7785 = vmatpush1.msra.mxu0 0.0
      %7786 = vmatprep.subr.mxu0 0.0
      %7787 = vmatpush1.msra.mxu0 0.0
      %7788 = vmatprep.subr.mxu0 0.0
      %7789 = vmatpush1.msra.mxu0 0.0
      %7790 = vmatprep.subr.mxu0 0.0
      %7791 = vmatpush1.msra.mxu0 0.0
      %7792 = vmatprep.subr.mxu0 0.0
      %7793 = vmatpush1.msra.mxu0 0.0
      %7794 = vmatprep.subr.mxu0 0.0
      %7795 = vmatpush1.msra.mxu0 0.0
      %7796 = vmatprep.subr.mxu0 0.0
      %7797 = vmatpush1.msra.mxu0 0.0
      %7798 = vmatprep.subr.mxu0 0.0
      %7799 = vmatpush1.msra.mxu0 0.0
      %7800 = vmatprep.subr.mxu0 0.0
      %7801 = vmatpush1.msra.mxu0 0.0
      %7802 = vmatprep.subr.mxu0 0.0
      %7803 = vmatpush1.msra.mxu0 0.0
      %7804 = vmatprep.subr.mxu0 0.0
      %7805 = vmatpush1.msra.mxu0 0.0
      %7806 = vmatprep.subr.mxu0 0.0
      %7807 = vmatpush1.msra.mxu0 0.0
      %7808 = vmatprep.subr.mxu0 0.0
      %7809 = vmatpush1.msra.mxu0 0.0
      %7810 = vmatprep.subr.mxu0 0.0
      %7811 = vmatpush1.msra.mxu0 0.0
      %7812 = vmatprep.subr.mxu0 0.0
      %7813 = vmatpush1.msra.mxu0 0.0
      %7814 = vmatprep.subr.mxu0 0.0
      %7815 = vmatpush1.msra.mxu0 0.0
      %7816 = vmatprep.subr.mxu0 0.0
      %7817 = vmatpush1.msra.mxu0 0.0
      %7818 = vmatprep.subr.mxu0 0.0
      %7819 = vmatpush1.msra.mxu0 0.0
      %7820 = vmatprep.subr.mxu0 0.0
      %7821 = vmatpush1.msra.mxu0 0.0
      %7822 = vmatprep.subr.mxu0 0.0
      %7823 = vmatpush1.msra.mxu0 0.0
      %7824 = vmatprep.mubr.f32.mxu0 0.0
      %7825 = vmatmul.mubr.f32.gmra.mrb[0].mxu0 %v7530
      %v7826 = vpop.f32.mrb[0].mxu0
      %v7827 = vadd.f32 0.0, %v7826
      %v7828 = vpop.f32.mrb[0].mxu0
      %7829 = vmatprep.mubr.f32.mxu0 0.0
      %7830 = vmatmul.mubr.f32.gmra.mrb[0].mxu0 %v7533
      %v7831 = vpop.f32.mrb[0].mxu0
      %v7832 = vadd.f32 0.0, %v7831
      %v7833 = vpop.f32.mrb[0].mxu0
      %7834 = vdwg.mxu0
      %7835 = vmatprep.subr.mxu0 0.0
      %7836 = vmatpush1.msra.mxu0 %v1847
      %7837 = vmatprep.subr.mxu0 0.0
      %7838 = vmatpush1.msra.mxu0 %v1852
      %7839 = vmatprep.subr.mxu0 0.0
      %7840 = vmatpush1.msra.mxu0 %v3447
      %7841 = vmatprep.subr.mxu0 0.0
      %7842 = vmatpush1.msra.mxu0 %v3452
      %7843 = vmatprep.subr.mxu0 0.0
      %7844 = vmatpush1.msra.mxu0 %v5047
      %7845 = vmatprep.subr.mxu0 0.0
      %7846 = vmatpush1.msra.mxu0 %v5052
      %7847 = vmatprep.subr.mxu0 0.0
      %7848 = vmatpush1.msra.mxu0 %v6647
      %7849 = vmatprep.subr.mxu0 0.0
      %7850 = vmatpush1.msra.mxu0 %v6652
      %7851 = vmatprep.subr.mxu0 0.0
      %7852 = vmatpush1.msra.mxu0 0.0
      %7853 = vmatprep.subr.mxu0 0.0
      %7854 = vmatpush1.msra.mxu0 0.0
      %7855 = vmatprep.subr.mxu0 0.0
      %7856 = vmatpush1.msra.mxu0 0.0
      %7857 = vmatprep.subr.mxu0 0.0
      %7858 = vmatpush1.msra.mxu0 0.0
      %7859 = vmatprep.subr.mxu0 0.0
      %7860 = vmatpush1.msra.mxu0 0.0
      %7861 = vmatprep.subr.mxu0 0.0
      %7862 = vmatpush1.msra.mxu0 0.0
      %7863 = vmatprep.subr.mxu0 0.0
      %7864 = vmatpush1.msra.mxu0 0.0
      %7865 = vmatprep.subr.mxu0 0.0
      %7866 = vmatpush1.msra.mxu0 0.0
      %7867 = vmatprep.subr.mxu0 0.0
      %7868 = vmatpush1.msra.mxu0 0.0
      %7869 = vmatprep.subr.mxu0 0.0
      %7870 = vmatpush1.msra.mxu0 0.0
      %7871 = vmatprep.subr.mxu0 0.0
      %7872 = vmatpush1.msra.mxu0 0.0
      %7873 = vmatprep.subr.mxu0 0.0
      %7874 = vmatpush1.msra.mxu0 0.0
      %7875 = vmatprep.subr.mxu0 0.0
      %7876 = vmatpush1.msra.mxu0 0.0
      %7877 = vmatprep.subr.mxu0 0.0
      %7878 = vmatpush1.msra.mxu0 0.0
      %7879 = vmatprep.subr.mxu0 0.0
      %7880 = vmatpush1.msra.mxu0 0.0
      %7881 = vmatprep.subr.mxu0 0.0
      %7882 = vmatpush1.msra.mxu0 0.0
      %7883 = vmatprep.subr.mxu0 0.0
      %7884 = vmatpush1.msra.mxu0 0.0
      %7885 = vmatprep.subr.mxu0 0.0
      %7886 = vmatpush1.msra.mxu0 0.0
      %7887 = vmatprep.subr.mxu0 0.0
      %7888 = vmatpush1.msra.mxu0 0.0
      %7889 = vmatprep.subr.mxu0 0.0
      %7890 = vmatpush1.msra.mxu0 0.0
      %7891 = vmatprep.subr.mxu0 0.0
      %7892 = vmatpush1.msra.mxu0 0.0
      %7893 = vmatprep.subr.mxu0 0.0
      %7894 = vmatpush1.msra.mxu0 0.0
      %7895 = vmatprep.subr.mxu0 0.0
      %7896 = vmatpush1.msra.mxu0 0.0
      %7897 = vmatprep.subr.mxu0 0.0
      %7898 = vmatpush1.msra.mxu0 0.0
      %7899 = vmatprep.mubr.f32.mxu0 0.0
      %7900 = vmatmul.mubr.f32.gmra.mrb[0].mxu0 %v7530
      %v7901 = vpop.f32.mrb[0].mxu0
      %v7902 = vadd.f32 0.0, %v7901
      %v7903 = vpop.f32.mrb[0].mxu0
      %7904 = vmatprep.mubr.f32.mxu0 0.0
      %7905 = vmatmul.mubr.f32.gmra.mrb[0].mxu0 %v7533
      %v7906 = vpop.f32.mrb[0].mxu0
      %v7907 = vadd.f32 0.0, %v7906
      %v7908 = vpop.f32.mrb[0].mxu0
      %7909 = vdwg.mxu0
      %7910 = vmatprep.subr.mxu0 0.0
      %7911 = vmatpush1.msra.mxu0 %v1934
      %7912 = vmatprep.subr.mxu0 0.0
      %7913 = vmatpush1.msra.mxu0 %v1939
      %7914 = vmatprep.subr.mxu0 0.0
      %7915 = vmatpush1.msra.mxu0 %v3534
      %7916 = vmatprep.subr.mxu0 0.0
      %7917 = vmatpush1.msra.mxu0 %v3539
      %7918 = vmatprep.subr.mxu0 0.0
      %7919 = vmatpush1.msra.mxu0 %v5134
      %7920 = vmatprep.subr.mxu0 0.0
      %7921 = vmatpush1.msra.mxu0 %v5139
      %7922 = vmatprep.subr.mxu0 0.0
      %7923 = vmatpush1.msra.mxu0 %v6734
      %7924 = vmatprep.subr.mxu0 0.0
      %7925 = vmatpush1.msra.mxu0 %v6739
      %7926 = vmatprep.subr.mxu0 0.0
      %7927 = vmatpush1.msra.mxu0 0.0
      %7928 = vmatprep.subr.mxu0 0.0
      %7929 = vmatpush1.msra.mxu0 0.0
      %7930 = vmatprep.subr.mxu0 0.0
      %7931 = vmatpush1.msra.mxu0 0.0
      %7932 = vmatprep.subr.mxu0 0.0
      %7933 = vmatpush1.msra.mxu0 0.0
      %7934 = vmatprep.subr.mxu0 0.0
      %7935 = vmatpush1.msra.mxu0 0.0
      %7936 = vmatprep.subr.mxu0 0.0
      %7937 = vmatpush1.msra.mxu0 0.0
      %7938 = vmatprep.subr.mxu0 0.0
      %7939 = vmatpush1.msra.mxu0 0.0
      %7940 = vmatprep.subr.mxu0 0.0
      %7941 = vmatpush1.msra.mxu0 0.0
      %7942 = vmatprep.subr.mxu0 0.0
      %7943 = vmatpush1.msra.mxu0 0.0
      %7944 = vmatprep.subr.mxu0 0.0
      %7945 = vmatpush1.msra.mxu0 0.0
      %7946 = vmatprep.subr.mxu0 0.0
      %7947 = vmatpush1.msra.mxu0 0.0
      %7948 = vmatprep.subr.mxu0 0.0
      %7949 = vmatpush1.msra.mxu0 0.0
      %7950 = vmatprep.subr.mxu0 0.0
      %7951 = vmatpush1.msra.mxu0 0.0
      %7952 = vmatprep.subr.mxu0 0.0
      %7953 = vmatpush1.msra.mxu0 0.0
      %7954 = vmatprep.subr.mxu0 0.0
      %7955 = vmatpush1.msra.mxu0 0.0
      %7956 = vmatprep.subr.mxu0 0.0
      %7957 = vmatpush1.msra.mxu0 0.0
      %7958 = vmatprep.subr.mxu0 0.0
      %7959 = vmatpush1.msra.mxu0 0.0
      %7960 = vmatprep.subr.mxu0 0.0
      %7961 = vmatpush1.msra.mxu0 0.0
      %7962 = vmatprep.subr.mxu0 0.0
      %7963 = vmatpush1.msra.mxu0 0.0
      %7964 = vmatprep.subr.mxu0 0.0
      %7965 = vmatpush1.msra.mxu0 0.0
      %7966 = vmatprep.subr.mxu0 0.0
      %7967 = vmatpush1.msra.mxu0 0.0
      %7968 = vmatprep.subr.mxu0 0.0
      %7969 = vmatpush1.msra.mxu0 0.0
      %7970 = vmatprep.subr.mxu0 0.0
      %7971 = vmatpush1.msra.mxu0 0.0
      %7972 = vmatprep.subr.mxu0 0.0
      %7973 = vmatpush1.msra.mxu0 0.0
      %7974 = vmatprep.mubr.f32.mxu0 0.0
      %7975 = vmatmul.mubr.f32.gmra.mrb[0].mxu0 %v7530
      %v7976 = vpop.f32.mrb[0].mxu0
      %v7977 = vadd.f32 0.0, %v7976
      %v7978 = vpop.f32.mrb[0].mxu0
      %7979 = vmatprep.mubr.f32.mxu0 0.0
      %7980 = vmatmul.mubr.f32.gmra.mrb[0].mxu0 %v7533
      %v7981 = vpop.f32.mrb[0].mxu0
      %v7982 = vadd.f32 0.0, %v7981
      %v7983 = vpop.f32.mrb[0].mxu0
      %7984 = vdwg.mxu0
      %7985 = vmatprep.subr.mxu0 0.0
      %7986 = vmatpush1.msra.mxu0 %v2021
      %7987 = vmatprep.subr.mxu0 0.0
      %7988 = vmatpush1.msra.mxu0 %v2026
      %7989 = vmatprep.subr.mxu0 0.0
      %7990 = vmatpush1.msra.mxu0 %v3621
      %7991 = vmatprep.subr.mxu0 0.0
      %7992 = vmatpush1.msra.mxu0 %v3626
      %7993 = vmatprep.subr.mxu0 0.0
      %7994 = vmatpush1.msra.mxu0 %v5221
      %7995 = vmatprep.subr.mxu0 0.0
      %7996 = vmatpush1.msra.mxu0 %v5226
      %7997 = vmatprep.subr.mxu0 0.0
      %7998 = vmatpush1.msra.mxu0 %v6821
      %7999 = vmatprep.subr.mxu0 0.0
      %8000 = vmatpush1.msra.mxu0 %v6826
      %8001 = vmatprep.subr.mxu0 0.0
      %8002 = vmatpush1.msra.mxu0 0.0
      %8003 = vmatprep.subr.mxu0 0.0
      %8004 = vmatpush1.msra.mxu0 0.0
      %8005 = vmatprep.subr.mxu0 0.0
      %8006 = vmatpush1.msra.mxu0 0.0
      %8007 = vmatprep.subr.mxu0 0.0
      %8008 = vmatpush1.msra.mxu0 0.0
      %8009 = vmatprep.subr.mxu0 0.0
      %8010 = vmatpush1.msra.mxu0 0.0
      %8011 = vmatprep.subr.mxu0 0.0
      %8012 = vmatpush1.msra.mxu0 0.0
      %8013 = vmatprep.subr.mxu0 0.0
      %8014 = vmatpush1.msra.mxu0 0.0
      %8015 = vmatprep.subr.mxu0 0.0
      %8016 = vmatpush1.msra.mxu0 0.0
      %8017 = vmatprep.subr.mxu0 0.0
      %8018 = vmatpush1.msra.mxu0 0.0
      %8019 = vmatprep.subr.mxu0 0.0
      %8020 = vmatpush1.msra.mxu0 0.0
      %8021 = vmatprep.subr.mxu0 0.0
      %8022 = vmatpush1.msra.mxu0 0.0
      %8023 = vmatprep.subr.mxu0 0.0
      %8024 = vmatpush1.msra.mxu0 0.0
      %8025 = vmatprep.subr.mxu0 0.0
      %8026 = vmatpush1.msra.mxu0 0.0
      %8027 = vmatprep.subr.mxu0 0.0
      %8028 = vmatpush1.msra.mxu0 0.0
      %8029 = vmatprep.subr.mxu0 0.0
      %8030 = vmatpush1.msra.mxu0 0.0
      %8031 = vmatprep.subr.mxu0 0.0
      %8032 = vmatpush1.msra.mxu0 0.0
      %8033 = vmatprep.subr.mxu0 0.0
      %8034 = vmatpush1.msra.mxu0 0.0
      %8035 = vmatprep.subr.mxu0 0.0
      %8036 = vmatpush1.msra.mxu0 0.0
      %8037 = vmatprep.subr.mxu0 0.0
      %8038 = vmatpush1.msra.mxu0 0.0
      %8039 = vmatprep.subr.mxu0 0.0
      %8040 = vmatpush1.msra.mxu0 0.0
      %8041 = vmatprep.subr.mxu0 0.0
      %8042 = vmatpush1.msra.mxu0 0.0
      %8043 = vmatprep.subr.mxu0 0.0
      %8044 = vmatpush1.msra.mxu0 0.0
      %8045 = vmatprep.subr.mxu0 0.0
      %8046 = vmatpush1.msra.mxu0 0.0
      %8047 = vmatprep.subr.mxu0 0.0
      %8048 = vmatpush1.msra.mxu0 0.0
      %8049 = vmatprep.mubr.f32.mxu0 0.0
      %8050 = vmatmul.mubr.f32.gmra.mrb[0].mxu0 %v7530
      %v8051 = vpop.f32.mrb[0].mxu0
      %v8052 = vadd.f32 0.0, %v8051
      %v8053 = vpop.f32.mrb[0].mxu0
      %8054 = vmatprep.mubr.f32.mxu0 0.0
      %8055 = vmatmul.mubr.f32.gmra.mrb[0].mxu0 %v7533
      %v8056 = vpop.f32.mrb[0].mxu0
      %v8057 = vadd.f32 0.0, %v8056
      %v8058 = vpop.f32.mrb[0].mxu0
      %8059 = vdwg.mxu0
      %8060 = vmatprep.subr.mxu0 0.0
      %8061 = vmatpush1.msra.mxu0 %v2108
      %8062 = vmatprep.subr.mxu0 0.0
      %8063 = vmatpush1.msra.mxu0 %v2113
      %8064 = vmatprep.subr.mxu0 0.0
      %8065 = vmatpush1.msra.mxu0 %v3708
      %8066 = vmatprep.subr.mxu0 0.0
      %8067 = vmatpush1.msra.mxu0 %v3713
      %8068 = vmatprep.subr.mxu0 0.0
      %8069 = vmatpush1.msra.mxu0 %v5308
      %8070 = vmatprep.subr.mxu0 0.0
      %8071 = vmatpush1.msra.mxu0 %v5313
      %8072 = vmatprep.subr.mxu0 0.0
      %8073 = vmatpush1.msra.mxu0 %v6908
      %8074 = vmatprep.subr.mxu0 0.0
      %8075 = vmatpush1.msra.mxu0 %v6913
      %8076 = vmatprep.subr.mxu0 0.0
      %8077 = vmatpush1.msra.mxu0 0.0
      %8078 = vmatprep.subr.mxu0 0.0
      %8079 = vmatpush1.msra.mxu0 0.0
      %8080 = vmatprep.subr.mxu0 0.0
      %8081 = vmatpush1.msra.mxu0 0.0
      %8082 = vmatprep.subr.mxu0 0.0
      %8083 = vmatpush1.msra.mxu0 0.0
      %8084 = vmatprep.subr.mxu0 0.0
      %8085 = vmatpush1.msra.mxu0 0.0
      %8086 = vmatprep.subr.mxu0 0.0
      %8087 = vmatpush1.msra.mxu0 0.0
      %8088 = vmatprep.subr.mxu0 0.0
      %8089 = vmatpush1.msra.mxu0 0.0
      %8090 = vmatprep.subr.mxu0 0.0
      %8091 = vmatpush1.msra.mxu0 0.0
      %8092 = vmatprep.subr.mxu0 0.0
      %8093 = vmatpush1.msra.mxu0 0.0
      %8094 = vmatprep.subr.mxu0 0.0
      %8095 = vmatpush1.msra.mxu0 0.0
      %8096 = vmatprep.subr.mxu0 0.0
      %8097 = vmatpush1.msra.mxu0 0.0
      %8098 = vmatprep.subr.mxu0 0.0
      %8099 = vmatpush1.msra.mxu0 0.0
      %8100 = vmatprep.subr.mxu0 0.0
      %8101 = vmatpush1.msra.mxu0 0.0
      %8102 = vmatprep.subr.mxu0 0.0
      %8103 = vmatpush1.msra.mxu0 0.0
      %8104 = vmatprep.subr.mxu0 0.0
      %8105 = vmatpush1.msra.mxu0 0.0
      %8106 = vmatprep.subr.mxu0 0.0
      %8107 = vmatpush1.msra.mxu0 0.0
      %8108 = vmatprep.subr.mxu0 0.0
      %8109 = vmatpush1.msra.mxu0 0.0
      %8110 = vmatprep.subr.mxu0 0.0
      %8111 = vmatpush1.msra.mxu0 0.0
      %8112 = vmatprep.subr.mxu0 0.0
      %8113 = vmatpush1.msra.mxu0 0.0
      %8114 = vmatprep.subr.mxu0 0.0
      %8115 = vmatpush1.msra.mxu0 0.0
      %8116 = vmatprep.subr.mxu0 0.0
      %8117 = vmatpush1.msra.mxu0 0.0
      %8118 = vmatprep.subr.mxu0 0.0
      %8119 = vmatpush1.msra.mxu0 0.0
      %8120 = vmatprep.subr.mxu0 0.0
      %8121 = vmatpush1.msra.mxu0 0.0
      %8122 = vmatprep.subr.mxu0 0.0
      %8123 = vmatpush1.msra.mxu0 0.0
      %8124 = vmatprep.mubr.f32.mxu0 0.0
      %8125 = vmatmul.mubr.f32.gmra.mrb[0].mxu0 %v7530
      %v8126 = vpop.f32.mrb[0].mxu0
      %v8127 = vadd.f32 0.0, %v8126
      %v8128 = vpop.f32.mrb[0].mxu0
      %8129 = vmatprep.mubr.f32.mxu0 0.0
      %8130 = vmatmul.mubr.f32.gmra.mrb[0].mxu0 %v7533
      %v8131 = vpop.f32.mrb[0].mxu0
      %v8132 = vadd.f32 0.0, %v8131
      %v8133 = vpop.f32.mrb[0].mxu0
      %8134 = vdwg.mxu0
      %v8135 = vld [vmem:[%s4 + $0x8] sm:$0xff]
      %v8137 = vsel %vm536, %v7602, 0
      %v8140 = vsel %vm536, %v7607, 0
      %v8143 = vsel %vm536, %v7677, 0
      %v8146 = vsel %vm536, %v7682, 0
      %v8149 = vsel %vm536, %v7752, 0
      %v8152 = vsel %vm536, %v7757, 0
      %v8155 = vsel %vm536, %v7827, 0
      %v8158 = vsel %vm536, %v7832, 0
      %v8161 = vsel %vm536, %v7902, 0
      %v8164 = vsel %vm536, %v7907, 0
      %v8167 = vsel %vm536, %v7977, 0
      %v8170 = vsel %vm536, %v7982, 0
      %v8173 = vsel %vm536, %v8052, 0
      %v8176 = vsel %vm536, %v8057, 0
      %v8179 = vsel %vm536, %v8127, 0
      %v8182 = vsel %vm536, %v8132, 0
      %8184 = vmatprep.subr.mxu0 0.0
      %8185 = vmatpush1.msra.mxu0 %v8135
      %8186 = vmatprep.subr.mxu0 0.0
      %8187 = vmatpush1.msra.mxu0 0.0
      %8188 = vmatprep.subr.mxu0 0.0
      %8189 = vmatpush1.msra.mxu0 0.0
      %8190 = vmatprep.subr.mxu0 0.0
      %8191 = vmatpush1.msra.mxu0 0.0
      %8192 = vmatprep.subr.mxu0 0.0
      %8193 = vmatpush1.msra.mxu0 0.0
      %8194 = vmatprep.subr.mxu0 0.0
      %8195 = vmatpush1.msra.mxu0 0.0
      %8196 = vmatprep.subr.mxu0 0.0
      %8197 = vmatpush1.msra.mxu0 0.0
      %8198 = vmatprep.subr.mxu0 0.0
      %8199 = vmatpush1.msra.mxu0 0.0
      %8200 = vmatprep.subr.mxu0 0.0
      %8201 = vmatpush1.msra.mxu0 0.0
      %8202 = vmatprep.subr.mxu0 0.0
      %8203 = vmatpush1.msra.mxu0 0.0
      %8204 = vmatprep.subr.mxu0 0.0
      %8205 = vmatpush1.msra.mxu0 0.0
      %8206 = vmatprep.subr.mxu0 0.0
      %8207 = vmatpush1.msra.mxu0 0.0
      %8208 = vmatprep.subr.mxu0 0.0
      %8209 = vmatpush1.msra.mxu0 0.0
      %8210 = vmatprep.subr.mxu0 0.0
      %8211 = vmatpush1.msra.mxu0 0.0
      %8212 = vmatprep.subr.mxu0 0.0
      %8213 = vmatpush1.msra.mxu0 0.0
      %8214 = vmatprep.subr.mxu0 0.0
      %8215 = vmatpush1.msra.mxu0 0.0
      %8216 = vmatprep.subr.mxu0 0.0
      %8217 = vmatpush1.msra.mxu0 0.0
      %8218 = vmatprep.subr.mxu0 0.0
      %8219 = vmatpush1.msra.mxu0 0.0
      %8220 = vmatprep.subr.mxu0 0.0
      %8221 = vmatpush1.msra.mxu0 0.0
      %8222 = vmatprep.subr.mxu0 0.0
      %8223 = vmatpush1.msra.mxu0 0.0
      %8224 = vmatprep.subr.mxu0 0.0
      %8225 = vmatpush1.msra.mxu0 0.0
      %8226 = vmatprep.subr.mxu0 0.0
      %8227 = vmatpush1.msra.mxu0 0.0
      %8228 = vmatprep.subr.mxu0 0.0
      %8229 = vmatpush1.msra.mxu0 0.0
      %8230 = vmatprep.subr.mxu0 0.0
      %8231 = vmatpush1.msra.mxu0 0.0
      %8232 = vmatprep.subr.mxu0 0.0
      %8233 = vmatpush1.msra.mxu0 0.0
      %8234 = vmatprep.subr.mxu0 0.0
      %8235 = vmatpush1.msra.mxu0 0.0
      %8236 = vmatprep.subr.mxu0 0.0
      %8237 = vmatpush1.msra.mxu0 0.0
      %8238 = vmatprep.subr.mxu0 0.0
      %8239 = vmatpush1.msra.mxu0 0.0
      %8240 = vmatprep.subr.mxu0 0.0
      %8241 = vmatpush1.msra.mxu0 0.0
      %8242 = vmatprep.subr.mxu0 0.0
      %8243 = vmatpush1.msra.mxu0 0.0
      %8244 = vmatprep.subr.mxu0 0.0
      %8245 = vmatpush1.msra.mxu0 0.0
      %8246 = vmatprep.subr.mxu0 0.0
      %8247 = vmatpush1.msra.mxu0 0.0
      %8248 = vmatprep.mubr.f32.mxu0 0.0
      %8249 = vmatmul.mubr.f32.gmra.mrb[0].mxu0 %v8137
      %v8250 = vpop.f32.mrb[0].mxu0
      %v8251 = vadd.f32 0.0, %v8250
      %v8252 = vpop.f32.mrb[0].mxu0
      %8253 = vmatprep.mubr.f32.mxu0 0.0
      %8254 = vmatmul.mubr.f32.gmra.mrb[0].mxu0 %v8140
      %v8255 = vpop.f32.mrb[0].mxu0
      %v8256 = vadd.f32 0.0, %v8255
      %v8257 = vpop.f32.mrb[0].mxu0
      %8258 = vmatprep.mubr.f32.mxu0 0.0
      %8259 = vmatmul.mubr.f32.gmra.mrb[0].mxu0 %v8143
      %v8260 = vpop.f32.mrb[0].mxu0
      %v8261 = vadd.f32 0.0, %v8260
      %v8262 = vpop.f32.mrb[0].mxu0
      %8263 = vmatprep.mubr.f32.mxu0 0.0
      %8264 = vmatmul.mubr.f32.gmra.mrb[0].mxu0 %v8146
      %v8265 = vpop.f32.mrb[0].mxu0
      %v8266 = vadd.f32 0.0, %v8265
      %v8267 = vpop.f32.mrb[0].mxu0
      %8268 = vmatprep.mubr.f32.mxu0 0.0
      %8269 = vmatmul.mubr.f32.gmra.mrb[0].mxu0 %v8149
      %v8270 = vpop.f32.mrb[0].mxu0
      %v8271 = vadd.f32 0.0, %v8270
      %v8272 = vpop.f32.mrb[0].mxu0
      %8273 = vmatprep.mubr.f32.mxu0 0.0
      %8274 = vmatmul.mubr.f32.gmra.mrb[0].mxu0 %v8152
      %v8275 = vpop.f32.mrb[0].mxu0
      %v8276 = vadd.f32 0.0, %v8275
      %v8277 = vpop.f32.mrb[0].mxu0
      %8278 = vmatprep.mubr.f32.mxu0 0.0
      %8279 = vmatmul.mubr.f32.gmra.mrb[0].mxu0 %v8155
      %v8280 = vpop.f32.mrb[0].mxu0
      %v8281 = vadd.f32 0.0, %v8280
      %v8282 = vpop.f32.mrb[0].mxu0
      %8283 = vmatprep.mubr.f32.mxu0 0.0
      %8284 = vmatmul.mubr.f32.gmra.mrb[0].mxu0 %v8158
      %v8285 = vpop.f32.mrb[0].mxu0
      %v8286 = vadd.f32 0.0, %v8285
      %v8287 = vpop.f32.mrb[0].mxu0
      %8288 = vmatprep.mubr.f32.mxu0 0.0
      %8289 = vmatmul.mubr.f32.gmra.mrb[0].mxu0 %v8161
      %v8290 = vpop.f32.mrb[0].mxu0
      %v8291 = vadd.f32 0.0, %v8290
      %v8292 = vpop.f32.mrb[0].mxu0
      %8293 = vmatprep.mubr.f32.mxu0 0.0
      %8294 = vmatmul.mubr.f32.gmra.mrb[0].mxu0 %v8164
      %v8295 = vpop.f32.mrb[0].mxu0
      %v8296 = vadd.f32 0.0, %v8295
      %v8297 = vpop.f32.mrb[0].mxu0
      %8298 = vmatprep.mubr.f32.mxu0 0.0
      %8299 = vmatmul.mubr.f32.gmra.mrb[0].mxu0 %v8167
      %v8300 = vpop.f32.mrb[0].mxu0
      %v8301 = vadd.f32 0.0, %v8300
      %v8302 = vpop.f32.mrb[0].mxu0
      %8303 = vmatprep.mubr.f32.mxu0 0.0
      %8304 = vmatmul.mubr.f32.gmra.mrb[0].mxu0 %v8170
      %v8305 = vpop.f32.mrb[0].mxu0
      %v8306 = vadd.f32 0.0, %v8305
      %v8307 = vpop.f32.mrb[0].mxu0
      %8308 = vmatprep.mubr.f32.mxu0 0.0
      %8309 = vmatmul.mubr.f32.gmra.mrb[0].mxu0 %v8173
      %v8310 = vpop.f32.mrb[0].mxu0
      %v8311 = vadd.f32 0.0, %v8310
      %v8312 = vpop.f32.mrb[0].mxu0
      %8313 = vmatprep.mubr.f32.mxu0 0.0
      %8314 = vmatmul.mubr.f32.gmra.mrb[0].mxu0 %v8176
      %v8315 = vpop.f32.mrb[0].mxu0
      %v8316 = vadd.f32 0.0, %v8315
      %v8317 = vpop.f32.mrb[0].mxu0
      %8318 = vmatprep.mubr.f32.mxu0 0.0
      %8319 = vmatmul.mubr.f32.gmra.mrb[0].mxu0 %v8179
      %v8320 = vpop.f32.mrb[0].mxu0
      %v8321 = vadd.f32 0.0, %v8320
      %v8322 = vpop.f32.mrb[0].mxu0
      %8323 = vmatprep.mubr.f32.mxu0 0.0
      %8324 = vmatmul.mubr.f32.gmra.mrb[0].mxu0 %v8182
      %v8325 = vpop.f32.mrb[0].mxu0
      %v8326 = vadd.f32 0.0, %v8325
      %v8327 = vpop.f32.mrb[0].mxu0
      %8328 = vdwg.mxu0
      %v8330 = vsel %vm536, %v6992, 0
      %v8333 = vsel %vm536, %v6997, 0
      %v8336 = vsel %vm536, %v7067, 0
      %v8339 = vsel %vm536, %v7072, 0
      %v8342 = vsel %vm536, %v7142, 0
      %v8345 = vsel %vm536, %v7147, 0
      %v8348 = vsel %vm536, %v7217, 0
      %v8351 = vsel %vm536, %v7222, 0
      %v8354 = vsel %vm536, %v7292, 0
      %v8357 = vsel %vm536, %v7297, 0
      %v8360 = vsel %vm536, %v7367, 0
      %v8363 = vsel %vm536, %v7372, 0
      %v8366 = vsel %vm536, %v7442, 0
      %v8369 = vsel %vm536, %v7447, 0
      %v8372 = vsel %vm536, %v7517, 0
      %v8375 = vsel %vm536, %v7522, 0
      %8377 = vmatprep.subr.mxu0 0.0
      %8378 = vmatpush1.msra.mxu0 %v7525
      %8379 = vmatprep.subr.mxu0 0.0
      %8380 = vmatpush1.msra.mxu0 0.0
      %8381 = vmatprep.subr.mxu0 0.0
      %8382 = vmatpush1.msra.mxu0 0.0
      %8383 = vmatprep.subr.mxu0 0.0
      %8384 = vmatpush1.msra.mxu0 0.0
      %8385 = vmatprep.subr.mxu0 0.0
      %8386 = vmatpush1.msra.mxu0 0.0
      %8387 = vmatprep.subr.mxu0 0.0
      %8388 = vmatpush1.msra.mxu0 0.0
      %8389 = vmatprep.subr.mxu0 0.0
      %8390 = vmatpush1.msra.mxu0 0.0
      %8391 = vmatprep.subr.mxu0 0.0
      %8392 = vmatpush1.msra.mxu0 0.0
      %8393 = vmatprep.subr.mxu0 0.0
      %8394 = vmatpush1.msra.mxu0 0.0
      %8395 = vmatprep.subr.mxu0 0.0
      %8396 = vmatpush1.msra.mxu0 0.0
      %8397 = vmatprep.subr.mxu0 0.0
      %8398 = vmatpush1.msra.mxu0 0.0
      %8399 = vmatprep.subr.mxu0 0.0
      %8400 = vmatpush1.msra.mxu0 0.0
      %8401 = vmatprep.subr.mxu0 0.0
      %8402 = vmatpush1.msra.mxu0 0.0
      %8403 = vmatprep.subr.mxu0 0.0
      %8404 = vmatpush1.msra.mxu0 0.0
      %8405 = vmatprep.subr.mxu0 0.0
      %8406 = vmatpush1.msra.mxu0 0.0
      %8407 = vmatprep.subr.mxu0 0.0
      %8408 = vmatpush1.msra.mxu0 0.0
      %8409 = vmatprep.subr.mxu0 0.0
      %8410 = vmatpush1.msra.mxu0 0.0
      %8411 = vmatprep.subr.mxu0 0.0
      %8412 = vmatpush1.msra.mxu0 0.0
      %8413 = vmatprep.subr.mxu0 0.0
      %8414 = vmatpush1.msra.mxu0 0.0
      %8415 = vmatprep.subr.mxu0 0.0
      %8416 = vmatpush1.msra.mxu0 0.0
      %8417 = vmatprep.subr.mxu0 0.0
      %8418 = vmatpush1.msra.mxu0 0.0
      %8419 = vmatprep.subr.mxu0 0.0
      %8420 = vmatpush1.msra.mxu0 0.0
      %8421 = vmatprep.subr.mxu0 0.0
      %8422 = vmatpush1.msra.mxu0 0.0
      %8423 = vmatprep.subr.mxu0 0.0
      %8424 = vmatpush1.msra.mxu0 0.0
      %8425 = vmatprep.subr.mxu0 0.0
      %8426 = vmatpush1.msra.mxu0 0.0
      %8427 = vmatprep.subr.mxu0 0.0
      %8428 = vmatpush1.msra.mxu0 0.0
      %8429 = vmatprep.subr.mxu0 0.0
      %8430 = vmatpush1.msra.mxu0 0.0
      %8431 = vmatprep.subr.mxu0 0.0
      %8432 = vmatpush1.msra.mxu0 0.0
      %8433 = vmatprep.subr.mxu0 0.0
      %8434 = vmatpush1.msra.mxu0 0.0
      %8435 = vmatprep.subr.mxu0 0.0
      %8436 = vmatpush1.msra.mxu0 0.0
      %8437 = vmatprep.subr.mxu0 0.0
      %8438 = vmatpush1.msra.mxu0 0.0
      %8439 = vmatprep.subr.mxu0 0.0
      %8440 = vmatpush1.msra.mxu0 0.0
      %8441 = vmatprep.mubr.f32.mxu0 0.0
      %8442 = vmatmul.mubr.f32.gmra.mrb[0].mxu0 %v8330
      %v8443 = vpop.f32.mrb[0].mxu0
      %v8444 = vadd.f32 %v8251, %v8443
      %v8445 = vpop.f32.mrb[0].mxu0
      %8446 = vmatprep.mubr.f32.mxu0 0.0
      %8447 = vmatmul.mubr.f32.gmra.mrb[0].mxu0 %v8333
      %v8448 = vpop.f32.mrb[0].mxu0
      %v8449 = vadd.f32 %v8256, %v8448
      %v8450 = vpop.f32.mrb[0].mxu0
      %8451 = vmatprep.mubr.f32.mxu0 0.0
      %8452 = vmatmul.mubr.f32.gmra.mrb[0].mxu0 %v8336
      %v8453 = vpop.f32.mrb[0].mxu0
      %v8454 = vadd.f32 %v8261, %v8453
      %v8455 = vpop.f32.mrb[0].mxu0
      %8456 = vmatprep.mubr.f32.mxu0 0.0
      %8457 = vmatmul.mubr.f32.gmra.mrb[0].mxu0 %v8339
      %v8458 = vpop.f32.mrb[0].mxu0
      %v8459 = vadd.f32 %v8266, %v8458
      %v8460 = vpop.f32.mrb[0].mxu0
      %8461 = vmatprep.mubr.f32.mxu0 0.0
      %8462 = vmatmul.mubr.f32.gmra.mrb[0].mxu0 %v8342
      %v8463 = vpop.f32.mrb[0].mxu0
      %v8464 = vadd.f32 %v8271, %v8463
      %v8465 = vpop.f32.mrb[0].mxu0
      %8466 = vmatprep.mubr.f32.mxu0 0.0
      %8467 = vmatmul.mubr.f32.gmra.mrb[0].mxu0 %v8345
      %v8468 = vpop.f32.mrb[0].mxu0
      %v8469 = vadd.f32 %v8276, %v8468
      %v8470 = vpop.f32.mrb[0].mxu0
      %8471 = vmatprep.mubr.f32.mxu0 0.0
      %8472 = vmatmul.mubr.f32.gmra.mrb[0].mxu0 %v8348
      %v8473 = vpop.f32.mrb[0].mxu0
      %v8474 = vadd.f32 %v8281, %v8473
      %v8475 = vpop.f32.mrb[0].mxu0
      %8476 = vmatprep.mubr.f32.mxu0 0.0
      %8477 = vmatmul.mubr.f32.gmra.mrb[0].mxu0 %v8351
      %v8478 = vpop.f32.mrb[0].mxu0
      %v8479 = vadd.f32 %v8286, %v8478
      %v8480 = vpop.f32.mrb[0].mxu0
      %8481 = vmatprep.mubr.f32.mxu0 0.0
      %8482 = vmatmul.mubr.f32.gmra.mrb[0].mxu0 %v8354
      %v8483 = vpop.f32.mrb[0].mxu0
      %v8484 = vadd.f32 %v8291, %v8483
      %v8485 = vpop.f32.mrb[0].mxu0
      %8486 = vmatprep.mubr.f32.mxu0 0.0
      %8487 = vmatmul.mubr.f32.gmra.mrb[0].mxu0 %v8357
      %v8488 = vpop.f32.mrb[0].mxu0
      %v8489 = vadd.f32 %v8296, %v8488
      %v8490 = vpop.f32.mrb[0].mxu0
      %8491 = vmatprep.mubr.f32.mxu0 0.0
      %8492 = vmatmul.mubr.f32.gmra.mrb[0].mxu0 %v8360
      %v8493 = vpop.f32.mrb[0].mxu0
      %v8494 = vadd.f32 %v8301, %v8493
      %v8495 = vpop.f32.mrb[0].mxu0
      %8496 = vmatprep.mubr.f32.mxu0 0.0
      %8497 = vmatmul.mubr.f32.gmra.mrb[0].mxu0 %v8363
      %v8498 = vpop.f32.mrb[0].mxu0
      %v8499 = vadd.f32 %v8306, %v8498
      %v8500 = vpop.f32.mrb[0].mxu0
      %8501 = vmatprep.mubr.f32.mxu0 0.0
      %8502 = vmatmul.mubr.f32.gmra.mrb[0].mxu0 %v8366
      %v8503 = vpop.f32.mrb[0].mxu0
      %v8504 = vadd.f32 %v8311, %v8503
      %v8505 = vpop.f32.mrb[0].mxu0
      %8506 = vmatprep.mubr.f32.mxu0 0.0
      %8507 = vmatmul.mubr.f32.gmra.mrb[0].mxu0 %v8369
      %v8508 = vpop.f32.mrb[0].mxu0
      %v8509 = vadd.f32 %v8316, %v8508
      %v8510 = vpop.f32.mrb[0].mxu0
      %8511 = vmatprep.mubr.f32.mxu0 0.0
      %8512 = vmatmul.mubr.f32.gmra.mrb[0].mxu0 %v8372
      %v8513 = vpop.f32.mrb[0].mxu0
      %v8514 = vadd.f32 %v8321, %v8513
      %v8515 = vpop.f32.mrb[0].mxu0
      %8516 = vmatprep.mubr.f32.mxu0 0.0
      %8517 = vmatmul.mubr.f32.gmra.mrb[0].mxu0 %v8375
      %v8518 = vpop.f32.mrb[0].mxu0
      %v8519 = vadd.f32 %v8326, %v8518
      %v8520 = vpop.f32.mrb[0].mxu0
      %8521 = vdwg.mxu0
      %s8522 = scalar_lea.vmem %s3, 32
      %v8523 = vld [vmem:[%s8522] sm:$0xff]
      %v8524 = vld [vmem:[%s8522 + $0x8] sm:$0xff]
      %v8526 = vsel %vm6918, %v8523, 0
      %v8529 = vsel %vm6918, %v8524, 0
      %8531 = vmatprep.subr.mxu0 0.0
      %8532 = vmatpush1.msra.mxu0 %v1499
      %8533 = vmatprep.subr.mxu0 0.0
      %8534 = vmatpush1.msra.mxu0 %v1504
      %8535 = vmatprep.subr.mxu0 0.0
      %8536 = vmatpush1.msra.mxu0 %v3099
      %8537 = vmatprep.subr.mxu0 0.0
      %8538 = vmatpush1.msra.mxu0 %v3104
      %8539 = vmatprep.subr.mxu0 0.0
      %8540 = vmatpush1.msra.mxu0 %v4699
      %8541 = vmatprep.subr.mxu0 0.0
      %8542 = vmatpush1.msra.mxu0 %v4704
      %8543 = vmatprep.subr.mxu0 0.0
      %8544 = vmatpush1.msra.mxu0 %v6299
      %8545 = vmatprep.subr.mxu0 0.0
      %8546 = vmatpush1.msra.mxu0 %v6304
      %8547 = vmatprep.subr.mxu0 0.0
      %8548 = vmatpush1.msra.mxu0 0.0
      %8549 = vmatprep.subr.mxu0 0.0
      %8550 = vmatpush1.msra.mxu0 0.0
      %8551 = vmatprep.subr.mxu0 0.0
      %8552 = vmatpush1.msra.mxu0 0.0
      %8553 = vmatprep.subr.mxu0 0.0
      %8554 = vmatpush1.msra.mxu0 0.0
      %8555 = vmatprep.subr.mxu0 0.0
      %8556 = vmatpush1.msra.mxu0 0.0
      %8557 = vmatprep.subr.mxu0 0.0
      %8558 = vmatpush1.msra.mxu0 0.0
      %8559 = vmatprep.subr.mxu0 0.0
      %8560 = vmatpush1.msra.mxu0 0.0
      %8561 = vmatprep.subr.mxu0 0.0
      %8562 = vmatpush1.msra.mxu0 0.0
      %8563 = vmatprep.subr.mxu0 0.0
      %8564 = vmatpush1.msra.mxu0 0.0
      %8565 = vmatprep.subr.mxu0 0.0
      %8566 = vmatpush1.msra.mxu0 0.0
      %8567 = vmatprep.subr.mxu0 0.0
      %8568 = vmatpush1.msra.mxu0 0.0
      %8569 = vmatprep.subr.mxu0 0.0
      %8570 = vmatpush1.msra.mxu0 0.0
      %8571 = vmatprep.subr.mxu0 0.0
      %8572 = vmatpush1.msra.mxu0 0.0
      %8573 = vmatprep.subr.mxu0 0.0
      %8574 = vmatpush1.msra.mxu0 0.0
      %8575 = vmatprep.subr.mxu0 0.0
      %8576 = vmatpush1.msra.mxu0 0.0
      %8577 = vmatprep.subr.mxu0 0.0
      %8578 = vmatpush1.msra.mxu0 0.0
      %8579 = vmatprep.subr.mxu0 0.0
      %8580 = vmatpush1.msra.mxu0 0.0
      %8581 = vmatprep.subr.mxu0 0.0
      %8582 = vmatpush1.msra.mxu0 0.0
      %8583 = vmatprep.subr.mxu0 0.0
      %8584 = vmatpush1.msra.mxu0 0.0
      %8585 = vmatprep.subr.mxu0 0.0
      %8586 = vmatpush1.msra.mxu0 0.0
      %8587 = vmatprep.subr.mxu0 0.0
      %8588 = vmatpush1.msra.mxu0 0.0
      %8589 = vmatprep.subr.mxu0 0.0
      %8590 = vmatpush1.msra.mxu0 0.0
      %8591 = vmatprep.subr.mxu0 0.0
      %8592 = vmatpush1.msra.mxu0 0.0
      %8593 = vmatprep.subr.mxu0 0.0
      %8594 = vmatpush1.msra.mxu0 0.0
      %8595 = vmatprep.mubr.f32.mxu0 0.0
      %8596 = vmatmul.mubr.f32.gmra.mrb[0].mxu0 %v8526
      %v8597 = vpop.f32.mrb[0].mxu0
      %v8598 = vadd.f32 0.0, %v8597
      %v8599 = vpop.f32.mrb[0].mxu0
      %8600 = vmatprep.mubr.f32.mxu0 0.0
      %8601 = vmatmul.mubr.f32.gmra.mrb[0].mxu0 %v8529
      %v8602 = vpop.f32.mrb[0].mxu0
      %v8603 = vadd.f32 0.0, %v8602
      %v8604 = vpop.f32.mrb[0].mxu0
      %8605 = vdwg.mxu0
      %8606 = vmatprep.subr.mxu0 0.0
      %8607 = vmatpush1.msra.mxu0 %v1586
      %8608 = vmatprep.subr.mxu0 0.0
      %8609 = vmatpush1.msra.mxu0 %v1591
      %8610 = vmatprep.subr.mxu0 0.0
      %8611 = vmatpush1.msra.mxu0 %v3186
      %8612 = vmatprep.subr.mxu0 0.0
      %8613 = vmatpush1.msra.mxu0 %v3191
      %8614 = vmatprep.subr.mxu0 0.0
      %8615 = vmatpush1.msra.mxu0 %v4786
      %8616 = vmatprep.subr.mxu0 0.0
      %8617 = vmatpush1.msra.mxu0 %v4791
      %8618 = vmatprep.subr.mxu0 0.0
      %8619 = vmatpush1.msra.mxu0 %v6386
      %8620 = vmatprep.subr.mxu0 0.0
      %8621 = vmatpush1.msra.mxu0 %v6391
      %8622 = vmatprep.subr.mxu0 0.0
      %8623 = vmatpush1.msra.mxu0 0.0
      %8624 = vmatprep.subr.mxu0 0.0
      %8625 = vmatpush1.msra.mxu0 0.0
      %8626 = vmatprep.subr.mxu0 0.0
      %8627 = vmatpush1.msra.mxu0 0.0
      %8628 = vmatprep.subr.mxu0 0.0
      %8629 = vmatpush1.msra.mxu0 0.0
      %8630 = vmatprep.subr.mxu0 0.0
      %8631 = vmatpush1.msra.mxu0 0.0
      %8632 = vmatprep.subr.mxu0 0.0
      %8633 = vmatpush1.msra.mxu0 0.0
      %8634 = vmatprep.subr.mxu0 0.0
      %8635 = vmatpush1.msra.mxu0 0.0
      %8636 = vmatprep.subr.mxu0 0.0
      %8637 = vmatpush1.msra.mxu0 0.0
      %8638 = vmatprep.subr.mxu0 0.0
      %8639 = vmatpush1.msra.mxu0 0.0
      %8640 = vmatprep.subr.mxu0 0.0
      %8641 = vmatpush1.msra.mxu0 0.0
      %8642 = vmatprep.subr.mxu0 0.0
      %8643 = vmatpush1.msra.mxu0 0.0
      %8644 = vmatprep.subr.mxu0 0.0
      %8645 = vmatpush1.msra.mxu0 0.0
      %8646 = vmatprep.subr.mxu0 0.0
      %8647 = vmatpush1.msra.mxu0 0.0
      %8648 = vmatprep.subr.mxu0 0.0
      %8649 = vmatpush1.msra.mxu0 0.0
      %8650 = vmatprep.subr.mxu0 0.0
      %8651 = vmatpush1.msra.mxu0 0.0
      %8652 = vmatprep.subr.mxu0 0.0
      %8653 = vmatpush1.msra.mxu0 0.0
      %8654 = vmatprep.subr.mxu0 0.0
      %8655 = vmatpush1.msra.mxu0 0.0
      %8656 = vmatprep.subr.mxu0 0.0
      %8657 = vmatpush1.msra.mxu0 0.0
      %8658 = vmatprep.subr.mxu0 0.0
      %8659 = vmatpush1.msra.mxu0 0.0
      %8660 = vmatprep.subr.mxu0 0.0
      %8661 = vmatpush1.msra.mxu0 0.0
      %8662 = vmatprep.subr.mxu0 0.0
      %8663 = vmatpush1.msra.mxu0 0.0
      %8664 = vmatprep.subr.mxu0 0.0
      %8665 = vmatpush1.msra.mxu0 0.0
      %8666 = vmatprep.subr.mxu0 0.0
      %8667 = vmatpush1.msra.mxu0 0.0
      %8668 = vmatprep.subr.mxu0 0.0
      %8669 = vmatpush1.msra.mxu0 0.0
      %8670 = vmatprep.mubr.f32.mxu0 0.0
      %8671 = vmatmul.mubr.f32.gmra.mrb[0].mxu0 %v8526
      %v8672 = vpop.f32.mrb[0].mxu0
      %v8673 = vadd.f32 0.0, %v8672
      %v8674 = vpop.f32.mrb[0].mxu0
      %8675 = vmatprep.mubr.f32.mxu0 0.0
      %8676 = vmatmul.mubr.f32.gmra.mrb[0].mxu0 %v8529
      %v8677 = vpop.f32.mrb[0].mxu0
      %v8678 = vadd.f32 0.0, %v8677
      %v8679 = vpop.f32.mrb[0].mxu0
      %8680 = vdwg.mxu0
      %8681 = vmatprep.subr.mxu0 0.0
      %8682 = vmatpush1.msra.mxu0 %v1673
      %8683 = vmatprep.subr.mxu0 0.0
      %8684 = vmatpush1.msra.mxu0 %v1678
      %8685 = vmatprep.subr.mxu0 0.0
      %8686 = vmatpush1.msra.mxu0 %v3273
      %8687 = vmatprep.subr.mxu0 0.0
      %8688 = vmatpush1.msra.mxu0 %v3278
      %8689 = vmatprep.subr.mxu0 0.0
      %8690 = vmatpush1.msra.mxu0 %v4873
      %8691 = vmatprep.subr.mxu0 0.0
      %8692 = vmatpush1.msra.mxu0 %v4878
      %8693 = vmatprep.subr.mxu0 0.0
      %8694 = vmatpush1.msra.mxu0 %v6473
      %8695 = vmatprep.subr.mxu0 0.0
      %8696 = vmatpush1.msra.mxu0 %v6478
      %8697 = vmatprep.subr.mxu0 0.0
      %8698 = vmatpush1.msra.mxu0 0.0
      %8699 = vmatprep.subr.mxu0 0.0
      %8700 = vmatpush1.msra.mxu0 0.0
      %8701 = vmatprep.subr.mxu0 0.0
      %8702 = vmatpush1.msra.mxu0 0.0
      %8703 = vmatprep.subr.mxu0 0.0
      %8704 = vmatpush1.msra.mxu0 0.0
      %8705 = vmatprep.subr.mxu0 0.0
      %8706 = vmatpush1.msra.mxu0 0.0
      %8707 = vmatprep.subr.mxu0 0.0
      %8708 = vmatpush1.msra.mxu0 0.0
      %8709 = vmatprep.subr.mxu0 0.0
      %8710 = vmatpush1.msra.mxu0 0.0
      %8711 = vmatprep.subr.mxu0 0.0
      %8712 = vmatpush1.msra.mxu0 0.0
      %8713 = vmatprep.subr.mxu0 0.0
      %8714 = vmatpush1.msra.mxu0 0.0
      %8715 = vmatprep.subr.mxu0 0.0
      %8716 = vmatpush1.msra.mxu0 0.0
      %8717 = vmatprep.subr.mxu0 0.0
      %8718 = vmatpush1.msra.mxu0 0.0
      %8719 = vmatprep.subr.mxu0 0.0
      %8720 = vmatpush1.msra.mxu0 0.0
      %8721 = vmatprep.subr.mxu0 0.0
      %8722 = vmatpush1.msra.mxu0 0.0
      %8723 = vmatprep.subr.mxu0 0.0
      %8724 = vmatpush1.msra.mxu0 0.0
      %8725 = vmatprep.subr.mxu0 0.0
      %8726 = vmatpush1.msra.mxu0 0.0
      %8727 = vmatprep.subr.mxu0 0.0
      %8728 = vmatpush1.msra.mxu0 0.0
      %8729 = vmatprep.subr.mxu0 0.0
      %8730 = vmatpush1.msra.mxu0 0.0
      %8731 = vmatprep.subr.mxu0 0.0
      %8732 = vmatpush1.msra.mxu0 0.0
      %8733 = vmatprep.subr.mxu0 0.0
      %8734 = vmatpush1.msra.mxu0 0.0
      %8735 = vmatprep.subr.mxu0 0.0
      %8736 = vmatpush1.msra.mxu0 0.0
      %8737 = vmatprep.subr.mxu0 0.0
      %8738 = vmatpush1.msra.mxu0 0.0
      %8739 = vmatprep.subr.mxu0 0.0
      %8740 = vmatpush1.msra.mxu0 0.0
      %8741 = vmatprep.subr.mxu0 0.0
      %8742 = vmatpush1.msra.mxu0 0.0
      %8743 = vmatprep.subr.mxu0 0.0
      %8744 = vmatpush1.msra.mxu0 0.0
      %8745 = vmatprep.mubr.f32.mxu0 0.0
      %8746 = vmatmul.mubr.f32.gmra.mrb[0].mxu0 %v8526
      %v8747 = vpop.f32.mrb[0].mxu0
      %v8748 = vadd.f32 0.0, %v8747
      %v8749 = vpop.f32.mrb[0].mxu0
      %8750 = vmatprep.mubr.f32.mxu0 0.0
      %8751 = vmatmul.mubr.f32.gmra.mrb[0].mxu0 %v8529
      %v8752 = vpop.f32.mrb[0].mxu0
      %v8753 = vadd.f32 0.0, %v8752
      %v8754 = vpop.f32.mrb[0].mxu0
      %8755 = vdwg.mxu0
      %8756 = vmatprep.subr.mxu0 0.0
      %8757 = vmatpush1.msra.mxu0 %v1760
      %8758 = vmatprep.subr.mxu0 0.0
      %8759 = vmatpush1.msra.mxu0 %v1765
      %8760 = vmatprep.subr.mxu0 0.0
      %8761 = vmatpush1.msra.mxu0 %v3360
      %8762 = vmatprep.subr.mxu0 0.0
      %8763 = vmatpush1.msra.mxu0 %v3365
      %8764 = vmatprep.subr.mxu0 0.0
      %8765 = vmatpush1.msra.mxu0 %v4960
      %8766 = vmatprep.subr.mxu0 0.0
      %8767 = vmatpush1.msra.mxu0 %v4965
      %8768 = vmatprep.subr.mxu0 0.0
      %8769 = vmatpush1.msra.mxu0 %v6560
      %8770 = vmatprep.subr.mxu0 0.0
      %8771 = vmatpush1.msra.mxu0 %v6565
      %8772 = vmatprep.subr.mxu0 0.0
      %8773 = vmatpush1.msra.mxu0 0.0
      %8774 = vmatprep.subr.mxu0 0.0
      %8775 = vmatpush1.msra.mxu0 0.0
      %8776 = vmatprep.subr.mxu0 0.0
      %8777 = vmatpush1.msra.mxu0 0.0
      %8778 = vmatprep.subr.mxu0 0.0
      %8779 = vmatpush1.msra.mxu0 0.0
      %8780 = vmatprep.subr.mxu0 0.0
      %8781 = vmatpush1.msra.mxu0 0.0
      %8782 = vmatprep.subr.mxu0 0.0
      %8783 = vmatpush1.msra.mxu0 0.0
      %8784 = vmatprep.subr.mxu0 0.0
      %8785 = vmatpush1.msra.mxu0 0.0
      %8786 = vmatprep.subr.mxu0 0.0
      %8787 = vmatpush1.msra.mxu0 0.0
      %8788 = vmatprep.subr.mxu0 0.0
      %8789 = vmatpush1.msra.mxu0 0.0
      %8790 = vmatprep.subr.mxu0 0.0
      %8791 = vmatpush1.msra.mxu0 0.0
      %8792 = vmatprep.subr.mxu0 0.0
      %8793 = vmatpush1.msra.mxu0 0.0
      %8794 = vmatprep.subr.mxu0 0.0
      %8795 = vmatpush1.msra.mxu0 0.0
      %8796 = vmatprep.subr.mxu0 0.0
      %8797 = vmatpush1.msra.mxu0 0.0
      %8798 = vmatprep.subr.mxu0 0.0
      %8799 = vmatpush1.msra.mxu0 0.0
      %8800 = vmatprep.subr.mxu0 0.0
      %8801 = vmatpush1.msra.mxu0 0.0
      %8802 = vmatprep.subr.mxu0 0.0
      %8803 = vmatpush1.msra.mxu0 0.0
      %8804 = vmatprep.subr.mxu0 0.0
      %8805 = vmatpush1.msra.mxu0 0.0
      %8806 = vmatprep.subr.mxu0 0.0
      %8807 = vmatpush1.msra.mxu0 0.0
      %8808 = vmatprep.subr.mxu0 0.0
      %8809 = vmatpush1.msra.mxu0 0.0
      %8810 = vmatprep.subr.mxu0 0.0
      %8811 = vmatpush1.msra.mxu0 0.0
      %8812 = vmatprep.subr.mxu0 0.0
      %8813 = vmatpush1.msra.mxu0 0.0
      %8814 = vmatprep.subr.mxu0 0.0
      %8815 = vmatpush1.msra.mxu0 0.0
      %8816 = vmatprep.subr.mxu0 0.0
      %8817 = vmatpush1.msra.mxu0 0.0
      %8818 = vmatprep.subr.mxu0 0.0
      %8819 = vmatpush1.msra.mxu0 0.0
      %8820 = vmatprep.mubr.f32.mxu0 0.0
      %8821 = vmatmul.mubr.f32.gmra.mrb[0].mxu0 %v8526
      %v8822 = vpop.f32.mrb[0].mxu0
      %v8823 = vadd.f32 0.0, %v8822
      %v8824 = vpop.f32.mrb[0].mxu0
      %8825 = vmatprep.mubr.f32.mxu0 0.0
      %8826 = vmatmul.mubr.f32.gmra.mrb[0].mxu0 %v8529
      %v8827 = vpop.f32.mrb[0].mxu0
      %v8828 = vadd.f32 0.0, %v8827
      %v8829 = vpop.f32.mrb[0].mxu0
      %8830 = vdwg.mxu0
      %8831 = vmatprep.subr.mxu0 0.0
      %8832 = vmatpush1.msra.mxu0 %v1847
      %8833 = vmatprep.subr.mxu0 0.0
      %8834 = vmatpush1.msra.mxu0 %v1852
      %8835 = vmatprep.subr.mxu0 0.0
      %8836 = vmatpush1.msra.mxu0 %v3447
      %8837 = vmatprep.subr.mxu0 0.0
      %8838 = vmatpush1.msra.mxu0 %v3452
      %8839 = vmatprep.subr.mxu0 0.0
      %8840 = vmatpush1.msra.mxu0 %v5047
      %8841 = vmatprep.subr.mxu0 0.0
      %8842 = vmatpush1.msra.mxu0 %v5052
      %8843 = vmatprep.subr.mxu0 0.0
      %8844 = vmatpush1.msra.mxu0 %v6647
      %8845 = vmatprep.subr.mxu0 0.0
      %8846 = vmatpush1.msra.mxu0 %v6652
      %8847 = vmatprep.subr.mxu0 0.0
      %8848 = vmatpush1.msra.mxu0 0.0
      %8849 = vmatprep.subr.mxu0 0.0
      %8850 = vmatpush1.msra.mxu0 0.0
      %8851 = vmatprep.subr.mxu0 0.0
      %8852 = vmatpush1.msra.mxu0 0.0
      %8853 = vmatprep.subr.mxu0 0.0
      %8854 = vmatpush1.msra.mxu0 0.0
      %8855 = vmatprep.subr.mxu0 0.0
      %8856 = vmatpush1.msra.mxu0 0.0
      %8857 = vmatprep.subr.mxu0 0.0
      %8858 = vmatpush1.msra.mxu0 0.0
      %8859 = vmatprep.subr.mxu0 0.0
      %8860 = vmatpush1.msra.mxu0 0.0
      %8861 = vmatprep.subr.mxu0 0.0
      %8862 = vmatpush1.msra.mxu0 0.0
      %8863 = vmatprep.subr.mxu0 0.0
      %8864 = vmatpush1.msra.mxu0 0.0
      %8865 = vmatprep.subr.mxu0 0.0
      %8866 = vmatpush1.msra.mxu0 0.0
      %8867 = vmatprep.subr.mxu0 0.0
      %8868 = vmatpush1.msra.mxu0 0.0
      %8869 = vmatprep.subr.mxu0 0.0
      %8870 = vmatpush1.msra.mxu0 0.0
      %8871 = vmatprep.subr.mxu0 0.0
      %8872 = vmatpush1.msra.mxu0 0.0
      %8873 = vmatprep.subr.mxu0 0.0
      %8874 = vmatpush1.msra.mxu0 0.0
      %8875 = vmatprep.subr.mxu0 0.0
      %8876 = vmatpush1.msra.mxu0 0.0
      %8877 = vmatprep.subr.mxu0 0.0
      %8878 = vmatpush1.msra.mxu0 0.0
      %8879 = vmatprep.subr.mxu0 0.0
      %8880 = vmatpush1.msra.mxu0 0.0
      %8881 = vmatprep.subr.mxu0 0.0
      %8882 = vmatpush1.msra.mxu0 0.0
      %8883 = vmatprep.subr.mxu0 0.0
      %8884 = vmatpush1.msra.mxu0 0.0
      %8885 = vmatprep.subr.mxu0 0.0
      %8886 = vmatpush1.msra.mxu0 0.0
      %8887 = vmatprep.subr.mxu0 0.0
      %8888 = vmatpush1.msra.mxu0 0.0
      %8889 = vmatprep.subr.mxu0 0.0
      %8890 = vmatpush1.msra.mxu0 0.0
      %8891 = vmatprep.subr.mxu0 0.0
      %8892 = vmatpush1.msra.mxu0 0.0
      %8893 = vmatprep.subr.mxu0 0.0
      %8894 = vmatpush1.msra.mxu0 0.0
      %8895 = vmatprep.mubr.f32.mxu0 0.0
      %8896 = vmatmul.mubr.f32.gmra.mrb[0].mxu0 %v8526
      %v8897 = vpop.f32.mrb[0].mxu0
      %v8898 = vadd.f32 0.0, %v8897
      %v8899 = vpop.f32.mrb[0].mxu0
      %8900 = vmatprep.mubr.f32.mxu0 0.0
      %8901 = vmatmul.mubr.f32.gmra.mrb[0].mxu0 %v8529
      %v8902 = vpop.f32.mrb[0].mxu0
      %v8903 = vadd.f32 0.0, %v8902
      %v8904 = vpop.f32.mrb[0].mxu0
      %8905 = vdwg.mxu0
      %8906 = vmatprep.subr.mxu0 0.0
      %8907 = vmatpush1.msra.mxu0 %v1934
      %8908 = vmatprep.subr.mxu0 0.0
      %8909 = vmatpush1.msra.mxu0 %v1939
      %8910 = vmatprep.subr.mxu0 0.0
      %8911 = vmatpush1.msra.mxu0 %v3534
      %8912 = vmatprep.subr.mxu0 0.0
      %8913 = vmatpush1.msra.mxu0 %v3539
      %8914 = vmatprep.subr.mxu0 0.0
      %8915 = vmatpush1.msra.mxu0 %v5134
      %8916 = vmatprep.subr.mxu0 0.0
      %8917 = vmatpush1.msra.mxu0 %v5139
      %8918 = vmatprep.subr.mxu0 0.0
      %8919 = vmatpush1.msra.mxu0 %v6734
      %8920 = vmatprep.subr.mxu0 0.0
      %8921 = vmatpush1.msra.mxu0 %v6739
      %8922 = vmatprep.subr.mxu0 0.0
      %8923 = vmatpush1.msra.mxu0 0.0
      %8924 = vmatprep.subr.mxu0 0.0
      %8925 = vmatpush1.msra.mxu0 0.0
      %8926 = vmatprep.subr.mxu0 0.0
      %8927 = vmatpush1.msra.mxu0 0.0
      %8928 = vmatprep.subr.mxu0 0.0
      %8929 = vmatpush1.msra.mxu0 0.0
      %8930 = vmatprep.subr.mxu0 0.0
      %8931 = vmatpush1.msra.mxu0 0.0
      %8932 = vmatprep.subr.mxu0 0.0
      %8933 = vmatpush1.msra.mxu0 0.0
      %8934 = vmatprep.subr.mxu0 0.0
      %8935 = vmatpush1.msra.mxu0 0.0
      %8936 = vmatprep.subr.mxu0 0.0
      %8937 = vmatpush1.msra.mxu0 0.0
      %8938 = vmatprep.subr.mxu0 0.0
      %8939 = vmatpush1.msra.mxu0 0.0
      %8940 = vmatprep.subr.mxu0 0.0
      %8941 = vmatpush1.msra.mxu0 0.0
      %8942 = vmatprep.subr.mxu0 0.0
      %8943 = vmatpush1.msra.mxu0 0.0
      %8944 = vmatprep.subr.mxu0 0.0
      %8945 = vmatpush1.msra.mxu0 0.0
      %8946 = vmatprep.subr.mxu0 0.0
      %8947 = vmatpush1.msra.mxu0 0.0
      %8948 = vmatprep.subr.mxu0 0.0
      %8949 = vmatpush1.msra.mxu0 0.0
      %8950 = vmatprep.subr.mxu0 0.0
      %8951 = vmatpush1.msra.mxu0 0.0
      %8952 = vmatprep.subr.mxu0 0.0
      %8953 = vmatpush1.msra.mxu0 0.0
      %8954 = vmatprep.subr.mxu0 0.0
      %8955 = vmatpush1.msra.mxu0 0.0
      %8956 = vmatprep.subr.mxu0 0.0
      %8957 = vmatpush1.msra.mxu0 0.0
      %8958 = vmatprep.subr.mxu0 0.0
      %8959 = vmatpush1.msra.mxu0 0.0
      %8960 = vmatprep.subr.mxu0 0.0
      %8961 = vmatpush1.msra.mxu0 0.0
      %8962 = vmatprep.subr.mxu0 0.0
      %8963 = vmatpush1.msra.mxu0 0.0
      %8964 = vmatprep.subr.mxu0 0.0
      %8965 = vmatpush1.msra.mxu0 0.0
      %8966 = vmatprep.subr.mxu0 0.0
      %8967 = vmatpush1.msra.mxu0 0.0
      %8968 = vmatprep.subr.mxu0 0.0
      %8969 = vmatpush1.msra.mxu0 0.0
      %8970 = vmatprep.mubr.f32.mxu0 0.0
      %8971 = vmatmul.mubr.f32.gmra.mrb[0].mxu0 %v8526
      %v8972 = vpop.f32.mrb[0].mxu0
      %v8973 = vadd.f32 0.0, %v8972
      %v8974 = vpop.f32.mrb[0].mxu0
      %8975 = vmatprep.mubr.f32.mxu0 0.0
      %8976 = vmatmul.mubr.f32.gmra.mrb[0].mxu0 %v8529
      %v8977 = vpop.f32.mrb[0].mxu0
      %v8978 = vadd.f32 0.0, %v8977
      %v8979 = vpop.f32.mrb[0].mxu0
      %8980 = vdwg.mxu0
      %8981 = vmatprep.subr.mxu0 0.0
      %8982 = vmatpush1.msra.mxu0 %v2021
      %8983 = vmatprep.subr.mxu0 0.0
      %8984 = vmatpush1.msra.mxu0 %v2026
      %8985 = vmatprep.subr.mxu0 0.0
      %8986 = vmatpush1.msra.mxu0 %v3621
      %8987 = vmatprep.subr.mxu0 0.0
      %8988 = vmatpush1.msra.mxu0 %v3626
      %8989 = vmatprep.subr.mxu0 0.0
      %8990 = vmatpush1.msra.mxu0 %v5221
      %8991 = vmatprep.subr.mxu0 0.0
      %8992 = vmatpush1.msra.mxu0 %v5226
      %8993 = vmatprep.subr.mxu0 0.0
      %8994 = vmatpush1.msra.mxu0 %v6821
      %8995 = vmatprep.subr.mxu0 0.0
      %8996 = vmatpush1.msra.mxu0 %v6826
      %8997 = vmatprep.subr.mxu0 0.0
      %8998 = vmatpush1.msra.mxu0 0.0
      %8999 = vmatprep.subr.mxu0 0.0
      %9000 = vmatpush1.msra.mxu0 0.0
      %9001 = vmatprep.subr.mxu0 0.0
      %9002 = vmatpush1.msra.mxu0 0.0
      %9003 = vmatprep.subr.mxu0 0.0
      %9004 = vmatpush1.msra.mxu0 0.0
      %9005 = vmatprep.subr.mxu0 0.0
      %9006 = vmatpush1.msra.mxu0 0.0
      %9007 = vmatprep.subr.mxu0 0.0
      %9008 = vmatpush1.msra.mxu0 0.0
      %9009 = vmatprep.subr.mxu0 0.0
      %9010 = vmatpush1.msra.mxu0 0.0
      %9011 = vmatprep.subr.mxu0 0.0
      %9012 = vmatpush1.msra.mxu0 0.0
      %9013 = vmatprep.subr.mxu0 0.0
      %9014 = vmatpush1.msra.mxu0 0.0
      %9015 = vmatprep.subr.mxu0 0.0
      %9016 = vmatpush1.msra.mxu0 0.0
      %9017 = vmatprep.subr.mxu0 0.0
      %9018 = vmatpush1.msra.mxu0 0.0
      %9019 = vmatprep.subr.mxu0 0.0
      %9020 = vmatpush1.msra.mxu0 0.0
      %9021 = vmatprep.subr.mxu0 0.0
      %9022 = vmatpush1.msra.mxu0 0.0
      %9023 = vmatprep.subr.mxu0 0.0
      %9024 = vmatpush1.msra.mxu0 0.0
      %9025 = vmatprep.subr.mxu0 0.0
      %9026 = vmatpush1.msra.mxu0 0.0
      %9027 = vmatprep.subr.mxu0 0.0
      %9028 = vmatpush1.msra.mxu0 0.0
      %9029 = vmatprep.subr.mxu0 0.0
      %9030 = vmatpush1.msra.mxu0 0.0
      %9031 = vmatprep.subr.mxu0 0.0
      %9032 = vmatpush1.msra.mxu0 0.0
      %9033 = vmatprep.subr.mxu0 0.0
      %9034 = vmatpush1.msra.mxu0 0.0
      %9035 = vmatprep.subr.mxu0 0.0
      %9036 = vmatpush1.msra.mxu0 0.0
      %9037 = vmatprep.subr.mxu0 0.0
      %9038 = vmatpush1.msra.mxu0 0.0
      %9039 = vmatprep.subr.mxu0 0.0
      %9040 = vmatpush1.msra.mxu0 0.0
      %9041 = vmatprep.subr.mxu0 0.0
      %9042 = vmatpush1.msra.mxu0 0.0
      %9043 = vmatprep.subr.mxu0 0.0
      %9044 = vmatpush1.msra.mxu0 0.0
      %9045 = vmatprep.mubr.f32.mxu0 0.0
      %9046 = vmatmul.mubr.f32.gmra.mrb[0].mxu0 %v8526
      %v9047 = vpop.f32.mrb[0].mxu0
      %v9048 = vadd.f32 0.0, %v9047
      %v9049 = vpop.f32.mrb[0].mxu0
      %9050 = vmatprep.mubr.f32.mxu0 0.0
      %9051 = vmatmul.mubr.f32.gmra.mrb[0].mxu0 %v8529
      %v9052 = vpop.f32.mrb[0].mxu0
      %v9053 = vadd.f32 0.0, %v9052
      %v9054 = vpop.f32.mrb[0].mxu0
      %9055 = vdwg.mxu0
      %9056 = vmatprep.subr.mxu0 0.0
      %9057 = vmatpush1.msra.mxu0 %v2108
      %9058 = vmatprep.subr.mxu0 0.0
      %9059 = vmatpush1.msra.mxu0 %v2113
      %9060 = vmatprep.subr.mxu0 0.0
      %9061 = vmatpush1.msra.mxu0 %v3708
      %9062 = vmatprep.subr.mxu0 0.0
      %9063 = vmatpush1.msra.mxu0 %v3713
      %9064 = vmatprep.subr.mxu0 0.0
      %9065 = vmatpush1.msra.mxu0 %v5308
      %9066 = vmatprep.subr.mxu0 0.0
      %9067 = vmatpush1.msra.mxu0 %v5313
      %9068 = vmatprep.subr.mxu0 0.0
      %9069 = vmatpush1.msra.mxu0 %v6908
      %9070 = vmatprep.subr.mxu0 0.0
      %9071 = vmatpush1.msra.mxu0 %v6913
      %9072 = vmatprep.subr.mxu0 0.0
      %9073 = vmatpush1.msra.mxu0 0.0
      %9074 = vmatprep.subr.mxu0 0.0
      %9075 = vmatpush1.msra.mxu0 0.0
      %9076 = vmatprep.subr.mxu0 0.0
      %9077 = vmatpush1.msra.mxu0 0.0
      %9078 = vmatprep.subr.mxu0 0.0
      %9079 = vmatpush1.msra.mxu0 0.0
      %9080 = vmatprep.subr.mxu0 0.0
      %9081 = vmatpush1.msra.mxu0 0.0
      %9082 = vmatprep.subr.mxu0 0.0
      %9083 = vmatpush1.msra.mxu0 0.0
      %9084 = vmatprep.subr.mxu0 0.0
      %9085 = vmatpush1.msra.mxu0 0.0
      %9086 = vmatprep.subr.mxu0 0.0
      %9087 = vmatpush1.msra.mxu0 0.0
      %9088 = vmatprep.subr.mxu0 0.0
      %9089 = vmatpush1.msra.mxu0 0.0
      %9090 = vmatprep.subr.mxu0 0.0
      %9091 = vmatpush1.msra.mxu0 0.0
      %9092 = vmatprep.subr.mxu0 0.0
      %9093 = vmatpush1.msra.mxu0 0.0
      %9094 = vmatprep.subr.mxu0 0.0
      %9095 = vmatpush1.msra.mxu0 0.0
      %9096 = vmatprep.subr.mxu0 0.0
      %9097 = vmatpush1.msra.mxu0 0.0
      %9098 = vmatprep.subr.mxu0 0.0
      %9099 = vmatpush1.msra.mxu0 0.0
      %9100 = vmatprep.subr.mxu0 0.0
      %9101 = vmatpush1.msra.mxu0 0.0
      %9102 = vmatprep.subr.mxu0 0.0
      %9103 = vmatpush1.msra.mxu0 0.0
      %9104 = vmatprep.subr.mxu0 0.0
      %9105 = vmatpush1.msra.mxu0 0.0
      %9106 = vmatprep.subr.mxu0 0.0
      %9107 = vmatpush1.msra.mxu0 0.0
      %9108 = vmatprep.subr.mxu0 0.0
      %9109 = vmatpush1.msra.mxu0 0.0
      %9110 = vmatprep.subr.mxu0 0.0
      %9111 = vmatpush1.msra.mxu0 0.0
      %9112 = vmatprep.subr.mxu0 0.0
      %9113 = vmatpush1.msra.mxu0 0.0
      %9114 = vmatprep.subr.mxu0 0.0
      %9115 = vmatpush1.msra.mxu0 0.0
      %9116 = vmatprep.subr.mxu0 0.0
      %9117 = vmatpush1.msra.mxu0 0.0
      %9118 = vmatprep.subr.mxu0 0.0
      %9119 = vmatpush1.msra.mxu0 0.0
      %9120 = vmatprep.mubr.f32.mxu0 0.0
      %9121 = vmatmul.mubr.f32.gmra.mrb[0].mxu0 %v8526
      %v9122 = vpop.f32.mrb[0].mxu0
      %v9123 = vadd.f32 0.0, %v9122
      %v9124 = vpop.f32.mrb[0].mxu0
      %9125 = vmatprep.mubr.f32.mxu0 0.0
      %9126 = vmatmul.mubr.f32.gmra.mrb[0].mxu0 %v8529
      %v9127 = vpop.f32.mrb[0].mxu0
      %v9128 = vadd.f32 0.0, %v9127
      %v9129 = vpop.f32.mrb[0].mxu0
      %9130 = vdwg.mxu0
      %v9131 = vld [vmem:[%s4 + $0x10] sm:$0xff]
      %v9133 = vsel %vm536, %v8598, 0
      %v9136 = vsel %vm536, %v8603, 0
      %v9139 = vsel %vm536, %v8673, 0
      %v9142 = vsel %vm536, %v8678, 0
      %v9145 = vsel %vm536, %v8748, 0
      %v9148 = vsel %vm536, %v8753, 0
      %v9151 = vsel %vm536, %v8823, 0
      %v9154 = vsel %vm536, %v8828, 0
      %v9157 = vsel %vm536, %v8898, 0
      %v9160 = vsel %vm536, %v8903, 0
      %v9163 = vsel %vm536, %v8973, 0
      %v9166 = vsel %vm536, %v8978, 0
      %v9169 = vsel %vm536, %v9048, 0
      %v9172 = vsel %vm536, %v9053, 0
      %v9175 = vsel %vm536, %v9123, 0
      %v9178 = vsel %vm536, %v9128, 0
      %9180 = vmatprep.subr.mxu0 0.0
      %9181 = vmatpush1.msra.mxu0 %v9131
      %9182 = vmatprep.subr.mxu0 0.0
      %9183 = vmatpush1.msra.mxu0 0.0
      %9184 = vmatprep.subr.mxu0 0.0
      %9185 = vmatpush1.msra.mxu0 0.0
      %9186 = vmatprep.subr.mxu0 0.0
      %9187 = vmatpush1.msra.mxu0 0.0
      %9188 = vmatprep.subr.mxu0 0.0
      %9189 = vmatpush1.msra.mxu0 0.0
      %9190 = vmatprep.subr.mxu0 0.0
      %9191 = vmatpush1.msra.mxu0 0.0
      %9192 = vmatprep.subr.mxu0 0.0
      %9193 = vmatpush1.msra.mxu0 0.0
      %9194 = vmatprep.subr.mxu0 0.0
      %9195 = vmatpush1.msra.mxu0 0.0
      %9196 = vmatprep.subr.mxu0 0.0
      %9197 = vmatpush1.msra.mxu0 0.0
      %9198 = vmatprep.subr.mxu0 0.0
      %9199 = vmatpush1.msra.mxu0 0.0
      %9200 = vmatprep.subr.mxu0 0.0
      %9201 = vmatpush1.msra.mxu0 0.0
      %9202 = vmatprep.subr.mxu0 0.0
      %9203 = vmatpush1.msra.mxu0 0.0
      %9204 = vmatprep.subr.mxu0 0.0
      %9205 = vmatpush1.msra.mxu0 0.0
      %9206 = vmatprep.subr.mxu0 0.0
      %9207 = vmatpush1.msra.mxu0 0.0
      %9208 = vmatprep.subr.mxu0 0.0
      %9209 = vmatpush1.msra.mxu0 0.0
      %9210 = vmatprep.subr.mxu0 0.0
      %9211 = vmatpush1.msra.mxu0 0.0
      %9212 = vmatprep.subr.mxu0 0.0
      %9213 = vmatpush1.msra.mxu0 0.0
      %9214 = vmatprep.subr.mxu0 0.0
      %9215 = vmatpush1.msra.mxu0 0.0
      %9216 = vmatprep.subr.mxu0 0.0
      %9217 = vmatpush1.msra.mxu0 0.0
      %9218 = vmatprep.subr.mxu0 0.0
      %9219 = vmatpush1.msra.mxu0 0.0
      %9220 = vmatprep.subr.mxu0 0.0
      %9221 = vmatpush1.msra.mxu0 0.0
      %9222 = vmatprep.subr.mxu0 0.0
      %9223 = vmatpush1.msra.mxu0 0.0
      %9224 = vmatprep.subr.mxu0 0.0
      %9225 = vmatpush1.msra.mxu0 0.0
      %9226 = vmatprep.subr.mxu0 0.0
      %9227 = vmatpush1.msra.mxu0 0.0
      %9228 = vmatprep.subr.mxu0 0.0
      %9229 = vmatpush1.msra.mxu0 0.0
      %9230 = vmatprep.subr.mxu0 0.0
      %9231 = vmatpush1.msra.mxu0 0.0
      %9232 = vmatprep.subr.mxu0 0.0
      %9233 = vmatpush1.msra.mxu0 0.0
      %9234 = vmatprep.subr.mxu0 0.0
      %9235 = vmatpush1.msra.mxu0 0.0
      %9236 = vmatprep.subr.mxu0 0.0
      %9237 = vmatpush1.msra.mxu0 0.0
      %9238 = vmatprep.subr.mxu0 0.0
      %9239 = vmatpush1.msra.mxu0 0.0
      %9240 = vmatprep.subr.mxu0 0.0
      %9241 = vmatpush1.msra.mxu0 0.0
      %9242 = vmatprep.subr.mxu0 0.0
      %9243 = vmatpush1.msra.mxu0 0.0
      %9244 = vmatprep.mubr.f32.mxu0 0.0
      %9245 = vmatmul.mubr.f32.gmra.mrb[0].mxu0 %v9133
      %v9246 = vpop.f32.mrb[0].mxu0
      %v9247 = vadd.f32 0.0, %v9246
      %v9248 = vpop.f32.mrb[0].mxu0
      %9249 = vmatprep.mubr.f32.mxu0 0.0
      %9250 = vmatmul.mubr.f32.gmra.mrb[0].mxu0 %v9136
      %v9251 = vpop.f32.mrb[0].mxu0
      %v9252 = vadd.f32 0.0, %v9251
      %v9253 = vpop.f32.mrb[0].mxu0
      %9254 = vmatprep.mubr.f32.mxu0 0.0
      %9255 = vmatmul.mubr.f32.gmra.mrb[0].mxu0 %v9139
      %v9256 = vpop.f32.mrb[0].mxu0
      %v9257 = vadd.f32 0.0, %v9256
      %v9258 = vpop.f32.mrb[0].mxu0
      %9259 = vmatprep.mubr.f32.mxu0 0.0
      %9260 = vmatmul.mubr.f32.gmra.mrb[0].mxu0 %v9142
      %v9261 = vpop.f32.mrb[0].mxu0
      %v9262 = vadd.f32 0.0, %v9261
      %v9263 = vpop.f32.mrb[0].mxu0
      %9264 = vmatprep.mubr.f32.mxu0 0.0
      %9265 = vmatmul.mubr.f32.gmra.mrb[0].mxu0 %v9145
      %v9266 = vpop.f32.mrb[0].mxu0
      %v9267 = vadd.f32 0.0, %v9266
      %v9268 = vpop.f32.mrb[0].mxu0
      %9269 = vmatprep.mubr.f32.mxu0 0.0
      %9270 = vmatmul.mubr.f32.gmra.mrb[0].mxu0 %v9148
      %v9271 = vpop.f32.mrb[0].mxu0
      %v9272 = vadd.f32 0.0, %v9271
      %v9273 = vpop.f32.mrb[0].mxu0
      %9274 = vmatprep.mubr.f32.mxu0 0.0
      %9275 = vmatmul.mubr.f32.gmra.mrb[0].mxu0 %v9151
      %v9276 = vpop.f32.mrb[0].mxu0
      %v9277 = vadd.f32 0.0, %v9276
      %v9278 = vpop.f32.mrb[0].mxu0
      %9279 = vmatprep.mubr.f32.mxu0 0.0
      %9280 = vmatmul.mubr.f32.gmra.mrb[0].mxu0 %v9154
      %v9281 = vpop.f32.mrb[0].mxu0
      %v9282 = vadd.f32 0.0, %v9281
      %v9283 = vpop.f32.mrb[0].mxu0
      %9284 = vmatprep.mubr.f32.mxu0 0.0
      %9285 = vmatmul.mubr.f32.gmra.mrb[0].mxu0 %v9157
      %v9286 = vpop.f32.mrb[0].mxu0
      %v9287 = vadd.f32 0.0, %v9286
      %v9288 = vpop.f32.mrb[0].mxu0
      %9289 = vmatprep.mubr.f32.mxu0 0.0
      %9290 = vmatmul.mubr.f32.gmra.mrb[0].mxu0 %v9160
      %v9291 = vpop.f32.mrb[0].mxu0
      %v9292 = vadd.f32 0.0, %v9291
      %v9293 = vpop.f32.mrb[0].mxu0
      %9294 = vmatprep.mubr.f32.mxu0 0.0
      %9295 = vmatmul.mubr.f32.gmra.mrb[0].mxu0 %v9163
      %v9296 = vpop.f32.mrb[0].mxu0
      %v9297 = vadd.f32 0.0, %v9296
      %v9298 = vpop.f32.mrb[0].mxu0
      %9299 = vmatprep.mubr.f32.mxu0 0.0
      %9300 = vmatmul.mubr.f32.gmra.mrb[0].mxu0 %v9166
      %v9301 = vpop.f32.mrb[0].mxu0
      %v9302 = vadd.f32 0.0, %v9301
      %v9303 = vpop.f32.mrb[0].mxu0
      %9304 = vmatprep.mubr.f32.mxu0 0.0
      %9305 = vmatmul.mubr.f32.gmra.mrb[0].mxu0 %v9169
      %v9306 = vpop.f32.mrb[0].mxu0
      %v9307 = vadd.f32 0.0, %v9306
      %v9308 = vpop.f32.mrb[0].mxu0
      %9309 = vmatprep.mubr.f32.mxu0 0.0
      %9310 = vmatmul.mubr.f32.gmra.mrb[0].mxu0 %v9172
      %v9311 = vpop.f32.mrb[0].mxu0
      %v9312 = vadd.f32 0.0, %v9311
      %v9313 = vpop.f32.mrb[0].mxu0
      %9314 = vmatprep.mubr.f32.mxu0 0.0
      %9315 = vmatmul.mubr.f32.gmra.mrb[0].mxu0 %v9175
      %v9316 = vpop.f32.mrb[0].mxu0
      %v9317 = vadd.f32 0.0, %v9316
      %v9318 = vpop.f32.mrb[0].mxu0
      %9319 = vmatprep.mubr.f32.mxu0 0.0
      %9320 = vmatmul.mubr.f32.gmra.mrb[0].mxu0 %v9178
      %v9321 = vpop.f32.mrb[0].mxu0
      %v9322 = vadd.f32 0.0, %v9321
      %v9323 = vpop.f32.mrb[0].mxu0
      %9324 = vdwg.mxu0
      %v9325 = vadd.f32 %v8444, %v9247
      %v9326 = vadd.f32 %v8449, %v9252
      %v9327 = vadd.f32 %v8454, %v9257
      %v9328 = vadd.f32 %v8459, %v9262
      %v9329 = vadd.f32 %v8464, %v9267
      %v9330 = vadd.f32 %v8469, %v9272
      %v9331 = vadd.f32 %v8474, %v9277
      %v9332 = vadd.f32 %v8479, %v9282
      %v9333 = vadd.f32 %v8484, %v9287
      %v9334 = vadd.f32 %v8489, %v9292
      %v9335 = vadd.f32 %v8494, %v9297
      %v9336 = vadd.f32 %v8499, %v9302
      %v9337 = vadd.f32 %v8504, %v9307
      %v9338 = vadd.f32 %v8509, %v9312
      %v9339 = vadd.f32 %v8514, %v9317
      %v9340 = vadd.f32 %v8519, %v9322
      %s9341 = scalar_lea.vmem %s3, 48
      %v9342 = vld [vmem:[%s9341] sm:$0xff]
      %v9343 = vld [vmem:[%s9341 + $0x8] sm:$0xff]
      %v9345 = vsel %vm6918, %v9342, 0
      %v9348 = vsel %vm6918, %v9343, 0
      %9350 = vmatprep.subr.mxu0 0.0
      %9351 = vmatpush1.msra.mxu0 %v1499
      %9352 = vmatprep.subr.mxu0 0.0
      %9353 = vmatpush1.msra.mxu0 %v1504
      %9354 = vmatprep.subr.mxu0 0.0
      %9355 = vmatpush1.msra.mxu0 %v3099
      %9356 = vmatprep.subr.mxu0 0.0
      %9357 = vmatpush1.msra.mxu0 %v3104
      %9358 = vmatprep.subr.mxu0 0.0
      %9359 = vmatpush1.msra.mxu0 %v4699
      %9360 = vmatprep.subr.mxu0 0.0
      %9361 = vmatpush1.msra.mxu0 %v4704
      %9362 = vmatprep.subr.mxu0 0.0
      %9363 = vmatpush1.msra.mxu0 %v6299
      %9364 = vmatprep.subr.mxu0 0.0
      %9365 = vmatpush1.msra.mxu0 %v6304
      %9366 = vmatprep.subr.mxu0 0.0
      %9367 = vmatpush1.msra.mxu0 0.0
      %9368 = vmatprep.subr.mxu0 0.0
      %9369 = vmatpush1.msra.mxu0 0.0
      %9370 = vmatprep.subr.mxu0 0.0
      %9371 = vmatpush1.msra.mxu0 0.0
      %9372 = vmatprep.subr.mxu0 0.0
      %9373 = vmatpush1.msra.mxu0 0.0
      %9374 = vmatprep.subr.mxu0 0.0
      %9375 = vmatpush1.msra.mxu0 0.0
      %9376 = vmatprep.subr.mxu0 0.0
      %9377 = vmatpush1.msra.mxu0 0.0
      %9378 = vmatprep.subr.mxu0 0.0
      %9379 = vmatpush1.msra.mxu0 0.0
      %9380 = vmatprep.subr.mxu0 0.0
      %9381 = vmatpush1.msra.mxu0 0.0
      %9382 = vmatprep.subr.mxu0 0.0
      %9383 = vmatpush1.msra.mxu0 0.0
      %9384 = vmatprep.subr.mxu0 0.0
      %9385 = vmatpush1.msra.mxu0 0.0
      %9386 = vmatprep.subr.mxu0 0.0
      %9387 = vmatpush1.msra.mxu0 0.0
      %9388 = vmatprep.subr.mxu0 0.0
      %9389 = vmatpush1.msra.mxu0 0.0
      %9390 = vmatprep.subr.mxu0 0.0
      %9391 = vmatpush1.msra.mxu0 0.0
      %9392 = vmatprep.subr.mxu0 0.0
      %9393 = vmatpush1.msra.mxu0 0.0
      %9394 = vmatprep.subr.mxu0 0.0
      %9395 = vmatpush1.msra.mxu0 0.0
      %9396 = vmatprep.subr.mxu0 0.0
      %9397 = vmatpush1.msra.mxu0 0.0
      %9398 = vmatprep.subr.mxu0 0.0
      %9399 = vmatpush1.msra.mxu0 0.0
      %9400 = vmatprep.subr.mxu0 0.0
      %9401 = vmatpush1.msra.mxu0 0.0
      %9402 = vmatprep.subr.mxu0 0.0
      %9403 = vmatpush1.msra.mxu0 0.0
      %9404 = vmatprep.subr.mxu0 0.0
      %9405 = vmatpush1.msra.mxu0 0.0
      %9406 = vmatprep.subr.mxu0 0.0
      %9407 = vmatpush1.msra.mxu0 0.0
      %9408 = vmatprep.subr.mxu0 0.0
      %9409 = vmatpush1.msra.mxu0 0.0
      %9410 = vmatprep.subr.mxu0 0.0
      %9411 = vmatpush1.msra.mxu0 0.0
      %9412 = vmatprep.subr.mxu0 0.0
      %9413 = vmatpush1.msra.mxu0 0.0
      %9414 = vmatprep.mubr.f32.mxu0 0.0
      %9415 = vmatmul.mubr.f32.gmra.mrb[0].mxu0 %v9345
      %v9416 = vpop.f32.mrb[0].mxu0
      %v9417 = vadd.f32 0.0, %v9416
      %v9418 = vpop.f32.mrb[0].mxu0
      %9419 = vmatprep.mubr.f32.mxu0 0.0
      %9420 = vmatmul.mubr.f32.gmra.mrb[0].mxu0 %v9348
      %v9421 = vpop.f32.mrb[0].mxu0
      %v9422 = vadd.f32 0.0, %v9421
      %v9423 = vpop.f32.mrb[0].mxu0
      %9424 = vdwg.mxu0
      %9425 = vmatprep.subr.mxu0 0.0
      %9426 = vmatpush1.msra.mxu0 %v1586
      %9427 = vmatprep.subr.mxu0 0.0
      %9428 = vmatpush1.msra.mxu0 %v1591
      %9429 = vmatprep.subr.mxu0 0.0
      %9430 = vmatpush1.msra.mxu0 %v3186
      %9431 = vmatprep.subr.mxu0 0.0
      %9432 = vmatpush1.msra.mxu0 %v3191
      %9433 = vmatprep.subr.mxu0 0.0
      %9434 = vmatpush1.msra.mxu0 %v4786
      %9435 = vmatprep.subr.mxu0 0.0
      %9436 = vmatpush1.msra.mxu0 %v4791
      %9437 = vmatprep.subr.mxu0 0.0
      %9438 = vmatpush1.msra.mxu0 %v6386
      %9439 = vmatprep.subr.mxu0 0.0
      %9440 = vmatpush1.msra.mxu0 %v6391
      %9441 = vmatprep.subr.mxu0 0.0
      %9442 = vmatpush1.msra.mxu0 0.0
      %9443 = vmatprep.subr.mxu0 0.0
      %9444 = vmatpush1.msra.mxu0 0.0
      %9445 = vmatprep.subr.mxu0 0.0
      %9446 = vmatpush1.msra.mxu0 0.0
      %9447 = vmatprep.subr.mxu0 0.0
      %9448 = vmatpush1.msra.mxu0 0.0
      %9449 = vmatprep.subr.mxu0 0.0
      %9450 = vmatpush1.msra.mxu0 0.0
      %9451 = vmatprep.subr.mxu0 0.0
      %9452 = vmatpush1.msra.mxu0 0.0
      %9453 = vmatprep.subr.mxu0 0.0
      %9454 = vmatpush1.msra.mxu0 0.0
      %9455 = vmatprep.subr.mxu0 0.0
      %9456 = vmatpush1.msra.mxu0 0.0
      %9457 = vmatprep.subr.mxu0 0.0
      %9458 = vmatpush1.msra.mxu0 0.0
      %9459 = vmatprep.subr.mxu0 0.0
      %9460 = vmatpush1.msra.mxu0 0.0
      %9461 = vmatprep.subr.mxu0 0.0
      %9462 = vmatpush1.msra.mxu0 0.0
      %9463 = vmatprep.subr.mxu0 0.0
      %9464 = vmatpush1.msra.mxu0 0.0
      %9465 = vmatprep.subr.mxu0 0.0
      %9466 = vmatpush1.msra.mxu0 0.0
      %9467 = vmatprep.subr.mxu0 0.0
      %9468 = vmatpush1.msra.mxu0 0.0
      %9469 = vmatprep.subr.mxu0 0.0
      %9470 = vmatpush1.msra.mxu0 0.0
      %9471 = vmatprep.subr.mxu0 0.0
      %9472 = vmatpush1.msra.mxu0 0.0
      %9473 = vmatprep.subr.mxu0 0.0
      %9474 = vmatpush1.msra.mxu0 0.0
      %9475 = vmatprep.subr.mxu0 0.0
      %9476 = vmatpush1.msra.mxu0 0.0
      %9477 = vmatprep.subr.mxu0 0.0
      %9478 = vmatpush1.msra.mxu0 0.0
      %9479 = vmatprep.subr.mxu0 0.0
      %9480 = vmatpush1.msra.mxu0 0.0
      %9481 = vmatprep.subr.mxu0 0.0
      %9482 = vmatpush1.msra.mxu0 0.0
      %9483 = vmatprep.subr.mxu0 0.0
      %9484 = vmatpush1.msra.mxu0 0.0
      %9485 = vmatprep.subr.mxu0 0.0
      %9486 = vmatpush1.msra.mxu0 0.0
      %9487 = vmatprep.subr.mxu0 0.0
      %9488 = vmatpush1.msra.mxu0 0.0
      %9489 = vmatprep.mubr.f32.mxu0 0.0
      %9490 = vmatmul.mubr.f32.gmra.mrb[0].mxu0 %v9345
      %v9491 = vpop.f32.mrb[0].mxu0
      %v9492 = vadd.f32 0.0, %v9491
      %v9493 = vpop.f32.mrb[0].mxu0
      %9494 = vmatprep.mubr.f32.mxu0 0.0
      %9495 = vmatmul.mubr.f32.gmra.mrb[0].mxu0 %v9348
      %v9496 = vpop.f32.mrb[0].mxu0
      %v9497 = vadd.f32 0.0, %v9496
      %v9498 = vpop.f32.mrb[0].mxu0
      %9499 = vdwg.mxu0
      %9500 = vmatprep.subr.mxu0 0.0
      %9501 = vmatpush1.msra.mxu0 %v1673
      %9502 = vmatprep.subr.mxu0 0.0
      %9503 = vmatpush1.msra.mxu0 %v1678
      %9504 = vmatprep.subr.mxu0 0.0
      %9505 = vmatpush1.msra.mxu0 %v3273
      %9506 = vmatprep.subr.mxu0 0.0
      %9507 = vmatpush1.msra.mxu0 %v3278
      %9508 = vmatprep.subr.mxu0 0.0
      %9509 = vmatpush1.msra.mxu0 %v4873
      %9510 = vmatprep.subr.mxu0 0.0
      %9511 = vmatpush1.msra.mxu0 %v4878
      %9512 = vmatprep.subr.mxu0 0.0
      %9513 = vmatpush1.msra.mxu0 %v6473
      %9514 = vmatprep.subr.mxu0 0.0
      %9515 = vmatpush1.msra.mxu0 %v6478
      %9516 = vmatprep.subr.mxu0 0.0
      %9517 = vmatpush1.msra.mxu0 0.0
      %9518 = vmatprep.subr.mxu0 0.0
      %9519 = vmatpush1.msra.mxu0 0.0
      %9520 = vmatprep.subr.mxu0 0.0
      %9521 = vmatpush1.msra.mxu0 0.0
      %9522 = vmatprep.subr.mxu0 0.0
      %9523 = vmatpush1.msra.mxu0 0.0
      %9524 = vmatprep.subr.mxu0 0.0
      %9525 = vmatpush1.msra.mxu0 0.0
      %9526 = vmatprep.subr.mxu0 0.0
      %9527 = vmatpush1.msra.mxu0 0.0
      %9528 = vmatprep.subr.mxu0 0.0
      %9529 = vmatpush1.msra.mxu0 0.0
      %9530 = vmatprep.subr.mxu0 0.0
      %9531 = vmatpush1.msra.mxu0 0.0
      %9532 = vmatprep.subr.mxu0 0.0
      %9533 = vmatpush1.msra.mxu0 0.0
      %9534 = vmatprep.subr.mxu0 0.0
      %9535 = vmatpush1.msra.mxu0 0.0
      %9536 = vmatprep.subr.mxu0 0.0
      %9537 = vmatpush1.msra.mxu0 0.0
      %9538 = vmatprep.subr.mxu0 0.0
      %9539 = vmatpush1.msra.mxu0 0.0
      %9540 = vmatprep.subr.mxu0 0.0
      %9541 = vmatpush1.msra.mxu0 0.0
      %9542 = vmatprep.subr.mxu0 0.0
      %9543 = vmatpush1.msra.mxu0 0.0
      %9544 = vmatprep.subr.mxu0 0.0
      %9545 = vmatpush1.msra.mxu0 0.0
      %9546 = vmatprep.subr.mxu0 0.0
      %9547 = vmatpush1.msra.mxu0 0.0
      %9548 = vmatprep.subr.mxu0 0.0
      %9549 = vmatpush1.msra.mxu0 0.0
      %9550 = vmatprep.subr.mxu0 0.0
      %9551 = vmatpush1.msra.mxu0 0.0
      %9552 = vmatprep.subr.mxu0 0.0
      %9553 = vmatpush1.msra.mxu0 0.0
      %9554 = vmatprep.subr.mxu0 0.0
      %9555 = vmatpush1.msra.mxu0 0.0
      %9556 = vmatprep.subr.mxu0 0.0
      %9557 = vmatpush1.msra.mxu0 0.0
      %9558 = vmatprep.subr.mxu0 0.0
      %9559 = vmatpush1.msra.mxu0 0.0
      %9560 = vmatprep.subr.mxu0 0.0
      %9561 = vmatpush1.msra.mxu0 0.0
      %9562 = vmatprep.subr.mxu0 0.0
      %9563 = vmatpush1.msra.mxu0 0.0
      %9564 = vmatprep.mubr.f32.mxu0 0.0
      %9565 = vmatmul.mubr.f32.gmra.mrb[0].mxu0 %v9345
      %v9566 = vpop.f32.mrb[0].mxu0
      %v9567 = vadd.f32 0.0, %v9566
      %v9568 = vpop.f32.mrb[0].mxu0
      %9569 = vmatprep.mubr.f32.mxu0 0.0
      %9570 = vmatmul.mubr.f32.gmra.mrb[0].mxu0 %v9348
      %v9571 = vpop.f32.mrb[0].mxu0
      %v9572 = vadd.f32 0.0, %v9571
      %v9573 = vpop.f32.mrb[0].mxu0
      %9574 = vdwg.mxu0
      %9575 = vmatprep.subr.mxu0 0.0
      %9576 = vmatpush1.msra.mxu0 %v1760
      %9577 = vmatprep.subr.mxu0 0.0
      %9578 = vmatpush1.msra.mxu0 %v1765
      %9579 = vmatprep.subr.mxu0 0.0
      %9580 = vmatpush1.msra.mxu0 %v3360
      %9581 = vmatprep.subr.mxu0 0.0
      %9582 = vmatpush1.msra.mxu0 %v3365
      %9583 = vmatprep.subr.mxu0 0.0
      %9584 = vmatpush1.msra.mxu0 %v4960
      %9585 = vmatprep.subr.mxu0 0.0
      %9586 = vmatpush1.msra.mxu0 %v4965
      %9587 = vmatprep.subr.mxu0 0.0
      %9588 = vmatpush1.msra.mxu0 %v6560
      %9589 = vmatprep.subr.mxu0 0.0
      %9590 = vmatpush1.msra.mxu0 %v6565
      %9591 = vmatprep.subr.mxu0 0.0
      %9592 = vmatpush1.msra.mxu0 0.0
      %9593 = vmatprep.subr.mxu0 0.0
      %9594 = vmatpush1.msra.mxu0 0.0
      %9595 = vmatprep.subr.mxu0 0.0
      %9596 = vmatpush1.msra.mxu0 0.0
      %9597 = vmatprep.subr.mxu0 0.0
      %9598 = vmatpush1.msra.mxu0 0.0
      %9599 = vmatprep.subr.mxu0 0.0
      %9600 = vmatpush1.msra.mxu0 0.0
      %9601 = vmatprep.subr.mxu0 0.0
      %9602 = vmatpush1.msra.mxu0 0.0
      %9603 = vmatprep.subr.mxu0 0.0
      %9604 = vmatpush1.msra.mxu0 0.0
      %9605 = vmatprep.subr.mxu0 0.0
      %9606 = vmatpush1.msra.mxu0 0.0
      %9607 = vmatprep.subr.mxu0 0.0
      %9608 = vmatpush1.msra.mxu0 0.0
      %9609 = vmatprep.subr.mxu0 0.0
      %9610 = vmatpush1.msra.mxu0 0.0
      %9611 = vmatprep.subr.mxu0 0.0
      %9612 = vmatpush1.msra.mxu0 0.0
      %9613 = vmatprep.subr.mxu0 0.0
      %9614 = vmatpush1.msra.mxu0 0.0
      %9615 = vmatprep.subr.mxu0 0.0
      %9616 = vmatpush1.msra.mxu0 0.0
      %9617 = vmatprep.subr.mxu0 0.0
      %9618 = vmatpush1.msra.mxu0 0.0
      %9619 = vmatprep.subr.mxu0 0.0
      %9620 = vmatpush1.msra.mxu0 0.0
      %9621 = vmatprep.subr.mxu0 0.0
      %9622 = vmatpush1.msra.mxu0 0.0
      %9623 = vmatprep.subr.mxu0 0.0
      %9624 = vmatpush1.msra.mxu0 0.0
      %9625 = vmatprep.subr.mxu0 0.0
      %9626 = vmatpush1.msra.mxu0 0.0
      %9627 = vmatprep.subr.mxu0 0.0
      %9628 = vmatpush1.msra.mxu0 0.0
      %9629 = vmatprep.subr.mxu0 0.0
      %9630 = vmatpush1.msra.mxu0 0.0
      %9631 = vmatprep.subr.mxu0 0.0
      %9632 = vmatpush1.msra.mxu0 0.0
      %9633 = vmatprep.subr.mxu0 0.0
      %9634 = vmatpush1.msra.mxu0 0.0
      %9635 = vmatprep.subr.mxu0 0.0
      %9636 = vmatpush1.msra.mxu0 0.0
      %9637 = vmatprep.subr.mxu0 0.0
      %9638 = vmatpush1.msra.mxu0 0.0
      %9639 = vmatprep.mubr.f32.mxu0 0.0
      %9640 = vmatmul.mubr.f32.gmra.mrb[0].mxu0 %v9345
      %v9641 = vpop.f32.mrb[0].mxu0
      %v9642 = vadd.f32 0.0, %v9641
      %v9643 = vpop.f32.mrb[0].mxu0
      %9644 = vmatprep.mubr.f32.mxu0 0.0
      %9645 = vmatmul.mubr.f32.gmra.mrb[0].mxu0 %v9348
      %v9646 = vpop.f32.mrb[0].mxu0
      %v9647 = vadd.f32 0.0, %v9646
      %v9648 = vpop.f32.mrb[0].mxu0
      %9649 = vdwg.mxu0
      %9650 = vmatprep.subr.mxu0 0.0
      %9651 = vmatpush1.msra.mxu0 %v1847
      %9652 = vmatprep.subr.mxu0 0.0
      %9653 = vmatpush1.msra.mxu0 %v1852
      %9654 = vmatprep.subr.mxu0 0.0
      %9655 = vmatpush1.msra.mxu0 %v3447
      %9656 = vmatprep.subr.mxu0 0.0
      %9657 = vmatpush1.msra.mxu0 %v3452
      %9658 = vmatprep.subr.mxu0 0.0
      %9659 = vmatpush1.msra.mxu0 %v5047
      %9660 = vmatprep.subr.mxu0 0.0
      %9661 = vmatpush1.msra.mxu0 %v5052
      %9662 = vmatprep.subr.mxu0 0.0
      %9663 = vmatpush1.msra.mxu0 %v6647
      %9664 = vmatprep.subr.mxu0 0.0
      %9665 = vmatpush1.msra.mxu0 %v6652
      %9666 = vmatprep.subr.mxu0 0.0
      %9667 = vmatpush1.msra.mxu0 0.0
      %9668 = vmatprep.subr.mxu0 0.0
      %9669 = vmatpush1.msra.mxu0 0.0
      %9670 = vmatprep.subr.mxu0 0.0
      %9671 = vmatpush1.msra.mxu0 0.0
      %9672 = vmatprep.subr.mxu0 0.0
      %9673 = vmatpush1.msra.mxu0 0.0
      %9674 = vmatprep.subr.mxu0 0.0
      %9675 = vmatpush1.msra.mxu0 0.0
      %9676 = vmatprep.subr.mxu0 0.0
      %9677 = vmatpush1.msra.mxu0 0.0
      %9678 = vmatprep.subr.mxu0 0.0
      %9679 = vmatpush1.msra.mxu0 0.0
      %9680 = vmatprep.subr.mxu0 0.0
      %9681 = vmatpush1.msra.mxu0 0.0
      %9682 = vmatprep.subr.mxu0 0.0
      %9683 = vmatpush1.msra.mxu0 0.0
      %9684 = vmatprep.subr.mxu0 0.0
      %9685 = vmatpush1.msra.mxu0 0.0
      %9686 = vmatprep.subr.mxu0 0.0
      %9687 = vmatpush1.msra.mxu0 0.0
      %9688 = vmatprep.subr.mxu0 0.0
      %9689 = vmatpush1.msra.mxu0 0.0
      %9690 = vmatprep.subr.mxu0 0.0
      %9691 = vmatpush1.msra.mxu0 0.0
      %9692 = vmatprep.subr.mxu0 0.0
      %9693 = vmatpush1.msra.mxu0 0.0
      %9694 = vmatprep.subr.mxu0 0.0
      %9695 = vmatpush1.msra.mxu0 0.0
      %9696 = vmatprep.subr.mxu0 0.0
      %9697 = vmatpush1.msra.mxu0 0.0
      %9698 = vmatprep.subr.mxu0 0.0
      %9699 = vmatpush1.msra.mxu0 0.0
      %9700 = vmatprep.subr.mxu0 0.0
      %9701 = vmatpush1.msra.mxu0 0.0
      %9702 = vmatprep.subr.mxu0 0.0
      %9703 = vmatpush1.msra.mxu0 0.0
      %9704 = vmatprep.subr.mxu0 0.0
      %9705 = vmatpush1.msra.mxu0 0.0
      %9706 = vmatprep.subr.mxu0 0.0
      %9707 = vmatpush1.msra.mxu0 0.0
      %9708 = vmatprep.subr.mxu0 0.0
      %9709 = vmatpush1.msra.mxu0 0.0
      %9710 = vmatprep.subr.mxu0 0.0
      %9711 = vmatpush1.msra.mxu0 0.0
      %9712 = vmatprep.subr.mxu0 0.0
      %9713 = vmatpush1.msra.mxu0 0.0
      %9714 = vmatprep.mubr.f32.mxu0 0.0
      %9715 = vmatmul.mubr.f32.gmra.mrb[0].mxu0 %v9345
      %v9716 = vpop.f32.mrb[0].mxu0
      %v9717 = vadd.f32 0.0, %v9716
      %v9718 = vpop.f32.mrb[0].mxu0
      %9719 = vmatprep.mubr.f32.mxu0 0.0
      %9720 = vmatmul.mubr.f32.gmra.mrb[0].mxu0 %v9348
      %v9721 = vpop.f32.mrb[0].mxu0
      %v9722 = vadd.f32 0.0, %v9721
      %v9723 = vpop.f32.mrb[0].mxu0
      %9724 = vdwg.mxu0
      %9725 = vmatprep.subr.mxu0 0.0
      %9726 = vmatpush1.msra.mxu0 %v1934
      %9727 = vmatprep.subr.mxu0 0.0
      %9728 = vmatpush1.msra.mxu0 %v1939
      %9729 = vmatprep.subr.mxu0 0.0
      %9730 = vmatpush1.msra.mxu0 %v3534
      %9731 = vmatprep.subr.mxu0 0.0
      %9732 = vmatpush1.msra.mxu0 %v3539
      %9733 = vmatprep.subr.mxu0 0.0
      %9734 = vmatpush1.msra.mxu0 %v5134
      %9735 = vmatprep.subr.mxu0 0.0
      %9736 = vmatpush1.msra.mxu0 %v5139
      %9737 = vmatprep.subr.mxu0 0.0
      %9738 = vmatpush1.msra.mxu0 %v6734
      %9739 = vmatprep.subr.mxu0 0.0
      %9740 = vmatpush1.msra.mxu0 %v6739
      %9741 = vmatprep.subr.mxu0 0.0
      %9742 = vmatpush1.msra.mxu0 0.0
      %9743 = vmatprep.subr.mxu0 0.0
      %9744 = vmatpush1.msra.mxu0 0.0
      %9745 = vmatprep.subr.mxu0 0.0
      %9746 = vmatpush1.msra.mxu0 0.0
      %9747 = vmatprep.subr.mxu0 0.0
      %9748 = vmatpush1.msra.mxu0 0.0
      %9749 = vmatprep.subr.mxu0 0.0
      %9750 = vmatpush1.msra.mxu0 0.0
      %9751 = vmatprep.subr.mxu0 0.0
      %9752 = vmatpush1.msra.mxu0 0.0
      %9753 = vmatprep.subr.mxu0 0.0
      %9754 = vmatpush1.msra.mxu0 0.0
      %9755 = vmatprep.subr.mxu0 0.0
      %9756 = vmatpush1.msra.mxu0 0.0
      %9757 = vmatprep.subr.mxu0 0.0
      %9758 = vmatpush1.msra.mxu0 0.0
      %9759 = vmatprep.subr.mxu0 0.0
      %9760 = vmatpush1.msra.mxu0 0.0
      %9761 = vmatprep.subr.mxu0 0.0
      %9762 = vmatpush1.msra.mxu0 0.0
      %9763 = vmatprep.subr.mxu0 0.0
      %9764 = vmatpush1.msra.mxu0 0.0
      %9765 = vmatprep.subr.mxu0 0.0
      %9766 = vmatpush1.msra.mxu0 0.0
      %9767 = vmatprep.subr.mxu0 0.0
      %9768 = vmatpush1.msra.mxu0 0.0
      %9769 = vmatprep.subr.mxu0 0.0
      %9770 = vmatpush1.msra.mxu0 0.0
      %9771 = vmatprep.subr.mxu0 0.0
      %9772 = vmatpush1.msra.mxu0 0.0
      %9773 = vmatprep.subr.mxu0 0.0
      %9774 = vmatpush1.msra.mxu0 0.0
      %9775 = vmatprep.subr.mxu0 0.0
      %9776 = vmatpush1.msra.mxu0 0.0
      %9777 = vmatprep.subr.mxu0 0.0
      %9778 = vmatpush1.msra.mxu0 0.0
      %9779 = vmatprep.subr.mxu0 0.0
      %9780 = vmatpush1.msra.mxu0 0.0
      %9781 = vmatprep.subr.mxu0 0.0
      %9782 = vmatpush1.msra.mxu0 0.0
      %9783 = vmatprep.subr.mxu0 0.0
      %9784 = vmatpush1.msra.mxu0 0.0
      %9785 = vmatprep.subr.mxu0 0.0
      %9786 = vmatpush1.msra.mxu0 0.0
      %9787 = vmatprep.subr.mxu0 0.0
      %9788 = vmatpush1.msra.mxu0 0.0
      %9789 = vmatprep.mubr.f32.mxu0 0.0
      %9790 = vmatmul.mubr.f32.gmra.mrb[0].mxu0 %v9345
      %v9791 = vpop.f32.mrb[0].mxu0
      %v9792 = vadd.f32 0.0, %v9791
      %v9793 = vpop.f32.mrb[0].mxu0
      %9794 = vmatprep.mubr.f32.mxu0 0.0
      %9795 = vmatmul.mubr.f32.gmra.mrb[0].mxu0 %v9348
      %v9796 = vpop.f32.mrb[0].mxu0
      %v9797 = vadd.f32 0.0, %v9796
      %v9798 = vpop.f32.mrb[0].mxu0
      %9799 = vdwg.mxu0
      %9800 = vmatprep.subr.mxu0 0.0
      %9801 = vmatpush1.msra.mxu0 %v2021
      %9802 = vmatprep.subr.mxu0 0.0
      %9803 = vmatpush1.msra.mxu0 %v2026
      %9804 = vmatprep.subr.mxu0 0.0
      %9805 = vmatpush1.msra.mxu0 %v3621
      %9806 = vmatprep.subr.mxu0 0.0
      %9807 = vmatpush1.msra.mxu0 %v3626
      %9808 = vmatprep.subr.mxu0 0.0
      %9809 = vmatpush1.msra.mxu0 %v5221
      %9810 = vmatprep.subr.mxu0 0.0
      %9811 = vmatpush1.msra.mxu0 %v5226
      %9812 = vmatprep.subr.mxu0 0.0
      %9813 = vmatpush1.msra.mxu0 %v6821
      %9814 = vmatprep.subr.mxu0 0.0
      %9815 = vmatpush1.msra.mxu0 %v6826
      %9816 = vmatprep.subr.mxu0 0.0
      %9817 = vmatpush1.msra.mxu0 0.0
      %9818 = vmatprep.subr.mxu0 0.0
      %9819 = vmatpush1.msra.mxu0 0.0
      %9820 = vmatprep.subr.mxu0 0.0
      %9821 = vmatpush1.msra.mxu0 0.0
      %9822 = vmatprep.subr.mxu0 0.0
      %9823 = vmatpush1.msra.mxu0 0.0
      %9824 = vmatprep.subr.mxu0 0.0
      %9825 = vmatpush1.msra.mxu0 0.0
      %9826 = vmatprep.subr.mxu0 0.0
      %9827 = vmatpush1.msra.mxu0 0.0
      %9828 = vmatprep.subr.mxu0 0.0
      %9829 = vmatpush1.msra.mxu0 0.0
      %9830 = vmatprep.subr.mxu0 0.0
      %9831 = vmatpush1.msra.mxu0 0.0
      %9832 = vmatprep.subr.mxu0 0.0
      %9833 = vmatpush1.msra.mxu0 0.0
      %9834 = vmatprep.subr.mxu0 0.0
      %9835 = vmatpush1.msra.mxu0 0.0
      %9836 = vmatprep.subr.mxu0 0.0
      %9837 = vmatpush1.msra.mxu0 0.0
      %9838 = vmatprep.subr.mxu0 0.0
      %9839 = vmatpush1.msra.mxu0 0.0
      %9840 = vmatprep.subr.mxu0 0.0
      %9841 = vmatpush1.msra.mxu0 0.0
      %9842 = vmatprep.subr.mxu0 0.0
      %9843 = vmatpush1.msra.mxu0 0.0
      %9844 = vmatprep.subr.mxu0 0.0
      %9845 = vmatpush1.msra.mxu0 0.0
      %9846 = vmatprep.subr.mxu0 0.0
      %9847 = vmatpush1.msra.mxu0 0.0
      %9848 = vmatprep.subr.mxu0 0.0
      %9849 = vmatpush1.msra.mxu0 0.0
      %9850 = vmatprep.subr.mxu0 0.0
      %9851 = vmatpush1.msra.mxu0 0.0
      %9852 = vmatprep.subr.mxu0 0.0
      %9853 = vmatpush1.msra.mxu0 0.0
      %9854 = vmatprep.subr.mxu0 0.0
      %9855 = vmatpush1.msra.mxu0 0.0
      %9856 = vmatprep.subr.mxu0 0.0
      %9857 = vmatpush1.msra.mxu0 0.0
      %9858 = vmatprep.subr.mxu0 0.0
      %9859 = vmatpush1.msra.mxu0 0.0
      %9860 = vmatprep.subr.mxu0 0.0
      %9861 = vmatpush1.msra.mxu0 0.0
      %9862 = vmatprep.subr.mxu0 0.0
      %9863 = vmatpush1.msra.mxu0 0.0
      %9864 = vmatprep.mubr.f32.mxu0 0.0
      %9865 = vmatmul.mubr.f32.gmra.mrb[0].mxu0 %v9345
      %v9866 = vpop.f32.mrb[0].mxu0
      %v9867 = vadd.f32 0.0, %v9866
      %v9868 = vpop.f32.mrb[0].mxu0
      %9869 = vmatprep.mubr.f32.mxu0 0.0
      %9870 = vmatmul.mubr.f32.gmra.mrb[0].mxu0 %v9348
      %v9871 = vpop.f32.mrb[0].mxu0
      %v9872 = vadd.f32 0.0, %v9871
      %v9873 = vpop.f32.mrb[0].mxu0
      %9874 = vdwg.mxu0
      %9875 = vmatprep.subr.mxu0 0.0
      %9876 = vmatpush1.msra.mxu0 %v2108
      %9877 = vmatprep.subr.mxu0 0.0
      %9878 = vmatpush1.msra.mxu0 %v2113
      %9879 = vmatprep.subr.mxu0 0.0
      %9880 = vmatpush1.msra.mxu0 %v3708
      %9881 = vmatprep.subr.mxu0 0.0
      %9882 = vmatpush1.msra.mxu0 %v3713
      %9883 = vmatprep.subr.mxu0 0.0
      %9884 = vmatpush1.msra.mxu0 %v5308
      %9885 = vmatprep.subr.mxu0 0.0
      %9886 = vmatpush1.msra.mxu0 %v5313
      %9887 = vmatprep.subr.mxu0 0.0
      %9888 = vmatpush1.msra.mxu0 %v6908
      %9889 = vmatprep.subr.mxu0 0.0
      %9890 = vmatpush1.msra.mxu0 %v6913
      %9891 = vmatprep.subr.mxu0 0.0
      %9892 = vmatpush1.msra.mxu0 0.0
      %9893 = vmatprep.subr.mxu0 0.0
      %9894 = vmatpush1.msra.mxu0 0.0
      %9895 = vmatprep.subr.mxu0 0.0
      %9896 = vmatpush1.msra.mxu0 0.0
      %9897 = vmatprep.subr.mxu0 0.0
      %9898 = vmatpush1.msra.mxu0 0.0
      %9899 = vmatprep.subr.mxu0 0.0
      %9900 = vmatpush1.msra.mxu0 0.0
      %9901 = vmatprep.subr.mxu0 0.0
      %9902 = vmatpush1.msra.mxu0 0.0
      %9903 = vmatprep.subr.mxu0 0.0
      %9904 = vmatpush1.msra.mxu0 0.0
      %9905 = vmatprep.subr.mxu0 0.0
      %9906 = vmatpush1.msra.mxu0 0.0
      %9907 = vmatprep.subr.mxu0 0.0
      %9908 = vmatpush1.msra.mxu0 0.0
      %9909 = vmatprep.subr.mxu0 0.0
      %9910 = vmatpush1.msra.mxu0 0.0
      %9911 = vmatprep.subr.mxu0 0.0
      %9912 = vmatpush1.msra.mxu0 0.0
      %9913 = vmatprep.subr.mxu0 0.0
      %9914 = vmatpush1.msra.mxu0 0.0
      %9915 = vmatprep.subr.mxu0 0.0
      %9916 = vmatpush1.msra.mxu0 0.0
      %9917 = vmatprep.subr.mxu0 0.0
      %9918 = vmatpush1.msra.mxu0 0.0
      %9919 = vmatprep.subr.mxu0 0.0
      %9920 = vmatpush1.msra.mxu0 0.0
      %9921 = vmatprep.subr.mxu0 0.0
      %9922 = vmatpush1.msra.mxu0 0.0
      %9923 = vmatprep.subr.mxu0 0.0
      %9924 = vmatpush1.msra.mxu0 0.0
      %9925 = vmatprep.subr.mxu0 0.0
      %9926 = vmatpush1.msra.mxu0 0.0
      %9927 = vmatprep.subr.mxu0 0.0
      %9928 = vmatpush1.msra.mxu0 0.0
      %9929 = vmatprep.subr.mxu0 0.0
      %9930 = vmatpush1.msra.mxu0 0.0
      %9931 = vmatprep.subr.mxu0 0.0
      %9932 = vmatpush1.msra.mxu0 0.0
      %9933 = vmatprep.subr.mxu0 0.0
      %9934 = vmatpush1.msra.mxu0 0.0
      %9935 = vmatprep.subr.mxu0 0.0
      %9936 = vmatpush1.msra.mxu0 0.0
      %9937 = vmatprep.subr.mxu0 0.0
      %9938 = vmatpush1.msra.mxu0 0.0
      %9939 = vmatprep.mubr.f32.mxu0 0.0
      %9940 = vmatmul.mubr.f32.gmra.mrb[0].mxu0 %v9345
      %v9941 = vpop.f32.mrb[0].mxu0
      %v9942 = vadd.f32 0.0, %v9941
      %v9943 = vpop.f32.mrb[0].mxu0
      %9944 = vmatprep.mubr.f32.mxu0 0.0
      %9945 = vmatmul.mubr.f32.gmra.mrb[0].mxu0 %v9348
      %v9946 = vpop.f32.mrb[0].mxu0
      %v9947 = vadd.f32 0.0, %v9946
      %v9948 = vpop.f32.mrb[0].mxu0
      %9949 = vdwg.mxu0
      %v9950 = vld [vmem:[%s4 + $0x18] sm:$0xff]
      %v9952 = vsel %vm536, %v9417, 0
      %v9955 = vsel %vm536, %v9422, 0
      %v9958 = vsel %vm536, %v9492, 0
      %v9961 = vsel %vm536, %v9497, 0
      %v9964 = vsel %vm536, %v9567, 0
      %v9967 = vsel %vm536, %v9572, 0
      %v9970 = vsel %vm536, %v9642, 0
      %v9973 = vsel %vm536, %v9647, 0
      %v9976 = vsel %vm536, %v9717, 0
      %v9979 = vsel %vm536, %v9722, 0
      %v9982 = vsel %vm536, %v9792, 0
      %v9985 = vsel %vm536, %v9797, 0
      %v9988 = vsel %vm536, %v9867, 0
      %v9991 = vsel %vm536, %v9872, 0
      %v9994 = vsel %vm536, %v9942, 0
      %v9997 = vsel %vm536, %v9947, 0
      %9999 = vmatprep.subr.mxu0 0.0
      %10000 = vmatpush1.msra.mxu0 %v9950
      %10001 = vmatprep.subr.mxu0 0.0
      %10002 = vmatpush1.msra.mxu0 0.0
      %10003 = vmatprep.subr.mxu0 0.0
      %10004 = vmatpush1.msra.mxu0 0.0
      %10005 = vmatprep.subr.mxu0 0.0
      %10006 = vmatpush1.msra.mxu0 0.0
      %10007 = vmatprep.subr.mxu0 0.0
      %10008 = vmatpush1.msra.mxu0 0.0
      %10009 = vmatprep.subr.mxu0 0.0
      %10010 = vmatpush1.msra.mxu0 0.0
      %10011 = vmatprep.subr.mxu0 0.0
      %10012 = vmatpush1.msra.mxu0 0.0
      %10013 = vmatprep.subr.mxu0 0.0
      %10014 = vmatpush1.msra.mxu0 0.0
      %10015 = vmatprep.subr.mxu0 0.0
      %10016 = vmatpush1.msra.mxu0 0.0
      %10017 = vmatprep.subr.mxu0 0.0
      %10018 = vmatpush1.msra.mxu0 0.0
      %10019 = vmatprep.subr.mxu0 0.0
      %10020 = vmatpush1.msra.mxu0 0.0
      %10021 = vmatprep.subr.mxu0 0.0
      %10022 = vmatpush1.msra.mxu0 0.0
      %10023 = vmatprep.subr.mxu0 0.0
      %10024 = vmatpush1.msra.mxu0 0.0
      %10025 = vmatprep.subr.mxu0 0.0
      %10026 = vmatpush1.msra.mxu0 0.0
      %10027 = vmatprep.subr.mxu0 0.0
      %10028 = vmatpush1.msra.mxu0 0.0
      %10029 = vmatprep.subr.mxu0 0.0
      %10030 = vmatpush1.msra.mxu0 0.0
      %10031 = vmatprep.subr.mxu0 0.0
      %10032 = vmatpush1.msra.mxu0 0.0
      %10033 = vmatprep.subr.mxu0 0.0
      %10034 = vmatpush1.msra.mxu0 0.0
      %10035 = vmatprep.subr.mxu0 0.0
      %10036 = vmatpush1.msra.mxu0 0.0
      %10037 = vmatprep.subr.mxu0 0.0
      %10038 = vmatpush1.msra.mxu0 0.0
      %10039 = vmatprep.subr.mxu0 0.0
      %10040 = vmatpush1.msra.mxu0 0.0
      %10041 = vmatprep.subr.mxu0 0.0
      %10042 = vmatpush1.msra.mxu0 0.0
      %10043 = vmatprep.subr.mxu0 0.0
      %10044 = vmatpush1.msra.mxu0 0.0
      %10045 = vmatprep.subr.mxu0 0.0
      %10046 = vmatpush1.msra.mxu0 0.0
      %10047 = vmatprep.subr.mxu0 0.0
      %10048 = vmatpush1.msra.mxu0 0.0
      %10049 = vmatprep.subr.mxu0 0.0
      %10050 = vmatpush1.msra.mxu0 0.0
      %10051 = vmatprep.subr.mxu0 0.0
      %10052 = vmatpush1.msra.mxu0 0.0
      %10053 = vmatprep.subr.mxu0 0.0
      %10054 = vmatpush1.msra.mxu0 0.0
      %10055 = vmatprep.subr.mxu0 0.0
      %10056 = vmatpush1.msra.mxu0 0.0
      %10057 = vmatprep.subr.mxu0 0.0
      %10058 = vmatpush1.msra.mxu0 0.0
      %10059 = vmatprep.subr.mxu0 0.0
      %10060 = vmatpush1.msra.mxu0 0.0
      %10061 = vmatprep.subr.mxu0 0.0
      %10062 = vmatpush1.msra.mxu0 0.0
      %10063 = vmatprep.mubr.f32.mxu0 0.0
      %10064 = vmatmul.mubr.f32.gmra.mrb[0].mxu0 %v9952
      %v10065 = vpop.f32.mrb[0].mxu0
      %v10066 = vadd.f32 0.0, %v10065
      %v10067 = vpop.f32.mrb[0].mxu0
      %10068 = vmatprep.mubr.f32.mxu0 0.0
      %10069 = vmatmul.mubr.f32.gmra.mrb[0].mxu0 %v9955
      %v10070 = vpop.f32.mrb[0].mxu0
      %v10071 = vadd.f32 0.0, %v10070
      %v10072 = vpop.f32.mrb[0].mxu0
      %10073 = vmatprep.mubr.f32.mxu0 0.0
      %10074 = vmatmul.mubr.f32.gmra.mrb[0].mxu0 %v9958
      %v10075 = vpop.f32.mrb[0].mxu0
      %v10076 = vadd.f32 0.0, %v10075
      %v10077 = vpop.f32.mrb[0].mxu0
      %10078 = vmatprep.mubr.f32.mxu0 0.0
      %10079 = vmatmul.mubr.f32.gmra.mrb[0].mxu0 %v9961
      %v10080 = vpop.f32.mrb[0].mxu0
      %v10081 = vadd.f32 0.0, %v10080
      %v10082 = vpop.f32.mrb[0].mxu0
      %10083 = vmatprep.mubr.f32.mxu0 0.0
      %10084 = vmatmul.mubr.f32.gmra.mrb[0].mxu0 %v9964
      %v10085 = vpop.f32.mrb[0].mxu0
      %v10086 = vadd.f32 0.0, %v10085
      %v10087 = vpop.f32.mrb[0].mxu0
      %10088 = vmatprep.mubr.f32.mxu0 0.0
      %10089 = vmatmul.mubr.f32.gmra.mrb[0].mxu0 %v9967
      %v10090 = vpop.f32.mrb[0].mxu0
      %v10091 = vadd.f32 0.0, %v10090
      %v10092 = vpop.f32.mrb[0].mxu0
      %10093 = vmatprep.mubr.f32.mxu0 0.0
      %10094 = vmatmul.mubr.f32.gmra.mrb[0].mxu0 %v9970
      %v10095 = vpop.f32.mrb[0].mxu0
      %v10096 = vadd.f32 0.0, %v10095
      %v10097 = vpop.f32.mrb[0].mxu0
      %10098 = vmatprep.mubr.f32.mxu0 0.0
      %10099 = vmatmul.mubr.f32.gmra.mrb[0].mxu0 %v9973
      %v10100 = vpop.f32.mrb[0].mxu0
      %v10101 = vadd.f32 0.0, %v10100
      %v10102 = vpop.f32.mrb[0].mxu0
      %10103 = vmatprep.mubr.f32.mxu0 0.0
      %10104 = vmatmul.mubr.f32.gmra.mrb[0].mxu0 %v9976
      %v10105 = vpop.f32.mrb[0].mxu0
      %v10106 = vadd.f32 0.0, %v10105
      %v10107 = vpop.f32.mrb[0].mxu0
      %10108 = vmatprep.mubr.f32.mxu0 0.0
      %10109 = vmatmul.mubr.f32.gmra.mrb[0].mxu0 %v9979
      %v10110 = vpop.f32.mrb[0].mxu0
      %v10111 = vadd.f32 0.0, %v10110
      %v10112 = vpop.f32.mrb[0].mxu0
      %10113 = vmatprep.mubr.f32.mxu0 0.0
      %10114 = vmatmul.mubr.f32.gmra.mrb[0].mxu0 %v9982
      %v10115 = vpop.f32.mrb[0].mxu0
      %v10116 = vadd.f32 0.0, %v10115
      %v10117 = vpop.f32.mrb[0].mxu0
      %10118 = vmatprep.mubr.f32.mxu0 0.0
      %10119 = vmatmul.mubr.f32.gmra.mrb[0].mxu0 %v9985
      %v10120 = vpop.f32.mrb[0].mxu0
      %v10121 = vadd.f32 0.0, %v10120
      %v10122 = vpop.f32.mrb[0].mxu0
      %10123 = vmatprep.mubr.f32.mxu0 0.0
      %10124 = vmatmul.mubr.f32.gmra.mrb[0].mxu0 %v9988
      %v10125 = vpop.f32.mrb[0].mxu0
      %v10126 = vadd.f32 0.0, %v10125
      %v10127 = vpop.f32.mrb[0].mxu0
      %10128 = vmatprep.mubr.f32.mxu0 0.0
      %10129 = vmatmul.mubr.f32.gmra.mrb[0].mxu0 %v9991
      %v10130 = vpop.f32.mrb[0].mxu0
      %v10131 = vadd.f32 0.0, %v10130
      %v10132 = vpop.f32.mrb[0].mxu0
      %10133 = vmatprep.mubr.f32.mxu0 0.0
      %10134 = vmatmul.mubr.f32.gmra.mrb[0].mxu0 %v9994
      %v10135 = vpop.f32.mrb[0].mxu0
      %v10136 = vadd.f32 0.0, %v10135
      %v10137 = vpop.f32.mrb[0].mxu0
      %10138 = vmatprep.mubr.f32.mxu0 0.0
      %10139 = vmatmul.mubr.f32.gmra.mrb[0].mxu0 %v9997
      %v10140 = vpop.f32.mrb[0].mxu0
      %v10141 = vadd.f32 0.0, %v10140
      %v10142 = vpop.f32.mrb[0].mxu0
      %10143 = vdwg.mxu0
      %v10144 = vadd.f32 %v9325, %v10066
      %v10145 = vadd.f32 %v9326, %v10071
      %v10146 = vadd.f32 %v9327, %v10076
      %v10147 = vadd.f32 %v9328, %v10081
      %v10148 = vadd.f32 %v9329, %v10086
      %v10149 = vadd.f32 %v9330, %v10091
      %v10150 = vadd.f32 %v9331, %v10096
      %v10151 = vadd.f32 %v9332, %v10101
      %v10152 = vadd.f32 %v9333, %v10106
      %v10153 = vadd.f32 %v9334, %v10111
      %v10154 = vadd.f32 %v9335, %v10116
      %v10155 = vadd.f32 %v9336, %v10121
      %v10156 = vadd.f32 %v9337, %v10126
      %v10157 = vadd.f32 %v9338, %v10131
      %v10158 = vadd.f32 %v9339, %v10136
      %v10159 = vadd.f32 %v9340, %v10141
      %v10160 = vld [vmem:[%s7] sm:$0x1]
      %v10161 = vld [vmem:[%s7 + $0x1] sm:$0x1]
      %v10162 = vsel %vm336, %v10144, 0.0
      %10163 = vadd.xlane.f32.xlu0 %v10162
      %v10164 = vpop.xlane.xlu0 %10163
      %v10165 = vsel %vm336, %v10145, 0.0
      %10166 = vadd.xlane.f32.xlu0 %v10165
      %v10167 = vpop.xlane.xlu0 %10166
      %v10168 = vsel %vm336, %v10146, 0.0
      %10169 = vadd.xlane.f32.xlu0 %v10168
      %v10170 = vpop.xlane.xlu0 %10169
      %v10171 = vsel %vm336, %v10147, 0.0
      %10172 = vadd.xlane.f32.xlu0 %v10171
      %v10173 = vpop.xlane.xlu0 %10172
      %v10174 = vsel %vm336, %v10148, 0.0
      %10175 = vadd.xlane.f32.xlu0 %v10174
      %v10176 = vpop.xlane.xlu0 %10175
      %v10177 = vsel %vm336, %v10149, 0.0
      %10178 = vadd.xlane.f32.xlu0 %v10177
      %v10179 = vpop.xlane.xlu0 %10178
      %v10180 = vsel %vm336, %v10150, 0.0
      %10181 = vadd.xlane.f32.xlu0 %v10180
      %v10182 = vpop.xlane.xlu0 %10181
      %v10183 = vsel %vm336, %v10151, 0.0
      %10184 = vadd.xlane.f32.xlu0 %v10183
      %v10185 = vpop.xlane.xlu0 %10184
      %v10186 = vsel %vm336, %v10152, 0.0
      %10187 = vadd.xlane.f32.xlu0 %v10186
      %v10188 = vpop.xlane.xlu0 %10187
      %v10189 = vsel %vm336, %v10153, 0.0
      %10190 = vadd.xlane.f32.xlu0 %v10189
      %v10191 = vpop.xlane.xlu0 %10190
      %v10192 = vsel %vm336, %v10154, 0.0
      %10193 = vadd.xlane.f32.xlu0 %v10192
      %v10194 = vpop.xlane.xlu0 %10193
      %v10195 = vsel %vm336, %v10155, 0.0
      %10196 = vadd.xlane.f32.xlu0 %v10195
      %v10197 = vpop.xlane.xlu0 %10196
      %v10198 = vsel %vm336, %v10156, 0.0
      %10199 = vadd.xlane.f32.xlu0 %v10198
      %v10200 = vpop.xlane.xlu0 %10199
      %v10201 = vsel %vm336, %v10157, 0.0
      %10202 = vadd.xlane.f32.xlu0 %v10201
      %v10203 = vpop.xlane.xlu0 %10202
      %v10204 = vsel %vm336, %v10158, 0.0
      %10205 = vadd.xlane.f32.xlu0 %v10204
      %v10206 = vpop.xlane.xlu0 %10205
      %v10207 = vsel %vm336, %v10159, 0.0
      %10208 = vadd.xlane.f32.xlu0 %v10207
      %v10209 = vpop.xlane.xlu0 %10208
      %v10210 = vrcp.pop 32.0
      %v10211 = vmul.f32 %v10164, %v10210
      %v10212 = vmul.f32 %v10167, %v10210
      %v10213 = vmul.f32 %v10170, %v10210
      %v10214 = vmul.f32 %v10173, %v10210
      %v10215 = vmul.f32 %v10176, %v10210
      %v10216 = vmul.f32 %v10179, %v10210
      %v10217 = vmul.f32 %v10182, %v10210
      %v10218 = vmul.f32 %v10185, %v10210
      %v10219 = vmul.f32 %v10188, %v10210
      %v10220 = vmul.f32 %v10191, %v10210
      %v10221 = vmul.f32 %v10194, %v10210
      %v10222 = vmul.f32 %v10197, %v10210
      %v10223 = vmul.f32 %v10200, %v10210
      %v10224 = vmul.f32 %v10203, %v10210
      %v10225 = vmul.f32 %v10206, %v10210
      %v10226 = vmul.f32 %v10209, %v10210
      %v10227 = vsub.f32 %v10144, %v10211
      %v10228 = vsub.f32 %v10145, %v10212
      %v10229 = vsub.f32 %v10146, %v10213
      %v10230 = vsub.f32 %v10147, %v10214
      %v10231 = vsub.f32 %v10148, %v10215
      %v10232 = vsub.f32 %v10149, %v10216
      %v10233 = vsub.f32 %v10150, %v10217
      %v10234 = vsub.f32 %v10151, %v10218
      %v10235 = vsub.f32 %v10152, %v10219
      %v10236 = vsub.f32 %v10153, %v10220
      %v10237 = vsub.f32 %v10154, %v10221
      %v10238 = vsub.f32 %v10155, %v10222
      %v10239 = vsub.f32 %v10156, %v10223
      %v10240 = vsub.f32 %v10157, %v10224
      %v10241 = vsub.f32 %v10158, %v10225
      %v10242 = vsub.f32 %v10159, %v10226
      %v10243 = vmul.f32 %v10227, %v10227
      %v10244 = vmul.f32 %v10228, %v10228
      %v10245 = vmul.f32 %v10229, %v10229
      %v10246 = vmul.f32 %v10230, %v10230
      %v10247 = vmul.f32 %v10231, %v10231
      %v10248 = vmul.f32 %v10232, %v10232
      %v10249 = vmul.f32 %v10233, %v10233
      %v10250 = vmul.f32 %v10234, %v10234
      %v10251 = vmul.f32 %v10235, %v10235
      %v10252 = vmul.f32 %v10236, %v10236
      %v10253 = vmul.f32 %v10237, %v10237
      %v10254 = vmul.f32 %v10238, %v10238
      %v10255 = vmul.f32 %v10239, %v10239
      %v10256 = vmul.f32 %v10240, %v10240
      %v10257 = vmul.f32 %v10241, %v10241
      %v10258 = vmul.f32 %v10242, %v10242
      %v10259 = vsel %vm336, %v10243, 0.0
      %10260 = vadd.xlane.f32.xlu0 %v10259
      %v10261 = vpop.xlane.xlu0 %10260
      %v10262 = vsel %vm336, %v10244, 0.0
      %10263 = vadd.xlane.f32.xlu0 %v10262
      %v10264 = vpop.xlane.xlu0 %10263
      %v10265 = vsel %vm336, %v10245, 0.0
      %10266 = vadd.xlane.f32.xlu0 %v10265
      %v10267 = vpop.xlane.xlu0 %10266
      %v10268 = vsel %vm336, %v10246, 0.0
      %10269 = vadd.xlane.f32.xlu0 %v10268
      %v10270 = vpop.xlane.xlu0 %10269
      %v10271 = vsel %vm336, %v10247, 0.0
      %10272 = vadd.xlane.f32.xlu0 %v10271
      %v10273 = vpop.xlane.xlu0 %10272
      %v10274 = vsel %vm336, %v10248, 0.0
      %10275 = vadd.xlane.f32.xlu0 %v10274
      %v10276 = vpop.xlane.xlu0 %10275
      %v10277 = vsel %vm336, %v10249, 0.0
      %10278 = vadd.xlane.f32.xlu0 %v10277
      %v10279 = vpop.xlane.xlu0 %10278
      %v10280 = vsel %vm336, %v10250, 0.0
      %10281 = vadd.xlane.f32.xlu0 %v10280
      %v10282 = vpop.xlane.xlu0 %10281
      %v10283 = vsel %vm336, %v10251, 0.0
      %10284 = vadd.xlane.f32.xlu0 %v10283
      %v10285 = vpop.xlane.xlu0 %10284
      %v10286 = vsel %vm336, %v10252, 0.0
      %10287 = vadd.xlane.f32.xlu0 %v10286
      %v10288 = vpop.xlane.xlu0 %10287
      %v10289 = vsel %vm336, %v10253, 0.0
      %10290 = vadd.xlane.f32.xlu0 %v10289
      %v10291 = vpop.xlane.xlu0 %10290
      %v10292 = vsel %vm336, %v10254, 0.0
      %10293 = vadd.xlane.f32.xlu0 %v10292
      %v10294 = vpop.xlane.xlu0 %10293
      %v10295 = vsel %vm336, %v10255, 0.0
      %10296 = vadd.xlane.f32.xlu0 %v10295
      %v10297 = vpop.xlane.xlu0 %10296
      %v10298 = vsel %vm336, %v10256, 0.0
      %10299 = vadd.xlane.f32.xlu0 %v10298
      %v10300 = vpop.xlane.xlu0 %10299
      %v10301 = vsel %vm336, %v10257, 0.0
      %10302 = vadd.xlane.f32.xlu0 %v10301
      %v10303 = vpop.xlane.xlu0 %10302
      %v10304 = vsel %vm336, %v10258, 0.0
      %10305 = vadd.xlane.f32.xlu0 %v10304
      %v10306 = vpop.xlane.xlu0 %10305
      %v10307 = vmul.f32 %v10261, %v10210
      %v10308 = vmul.f32 %v10264, %v10210
      %v10309 = vmul.f32 %v10267, %v10210
      %v10310 = vmul.f32 %v10270, %v10210
      %v10311 = vmul.f32 %v10273, %v10210
      %v10312 = vmul.f32 %v10276, %v10210
      %v10313 = vmul.f32 %v10279, %v10210
      %v10314 = vmul.f32 %v10282, %v10210
      %v10315 = vmul.f32 %v10285, %v10210
      %v10316 = vmul.f32 %v10288, %v10210
      %v10317 = vmul.f32 %v10291, %v10210
      %v10318 = vmul.f32 %v10294, %v10210
      %v10319 = vmul.f32 %v10297, %v10210
      %v10320 = vmul.f32 %v10300, %v10210
      %v10321 = vmul.f32 %v10303, %v10210
      %v10322 = vmul.f32 %v10306, %v10210
      %v10323 = vadd.f32 %v10307, 1e-05
      %v10324 = vadd.f32 %v10308, 1e-05
      %v10325 = vadd.f32 %v10309, 1e-05
      %v10326 = vadd.f32 %v10310, 1e-05
      %v10327 = vadd.f32 %v10311, 1e-05
      %v10328 = vadd.f32 %v10312, 1e-05
      %v10329 = vadd.f32 %v10313, 1e-05
      %v10330 = vadd.f32 %v10314, 1e-05
      %v10331 = vadd.f32 %v10315, 1e-05
      %v10332 = vadd.f32 %v10316, 1e-05
      %v10333 = vadd.f32 %v10317, 1e-05
      %v10334 = vadd.f32 %v10318, 1e-05
      %v10335 = vadd.f32 %v10319, 1e-05
      %v10336 = vadd.f32 %v10320, 1e-05
      %v10337 = vadd.f32 %v10321, 1e-05
      %v10338 = vadd.f32 %v10322, 1e-05
      %v10339 = vrsqrt.pop %v10323
      %v10340 = vrsqrt.pop %v10324
      %v10341 = vrsqrt.pop %v10325
      %v10342 = vrsqrt.pop %v10326
      %v10343 = vrsqrt.pop %v10327
      %v10344 = vrsqrt.pop %v10328
      %v10345 = vrsqrt.pop %v10329
      %v10346 = vrsqrt.pop %v10330
      %v10347 = vrsqrt.pop %v10331
      %v10348 = vrsqrt.pop %v10332
      %v10349 = vrsqrt.pop %v10333
      %v10350 = vrsqrt.pop %v10334
      %v10351 = vrsqrt.pop %v10335
      %v10352 = vrsqrt.pop %v10336
      %v10353 = vrsqrt.pop %v10337
      %v10354 = vrsqrt.pop %v10338
      %v10355 = vmul.f32 %v10227, %v10339
      %v10356 = vmul.f32 %v10228, %v10340
      %v10357 = vmul.f32 %v10229, %v10341
      %v10358 = vmul.f32 %v10230, %v10342
      %v10359 = vmul.f32 %v10231, %v10343
      %v10360 = vmul.f32 %v10232, %v10344
      %v10361 = vmul.f32 %v10233, %v10345
      %v10362 = vmul.f32 %v10234, %v10346
      %v10363 = vmul.f32 %v10235, %v10347
      %v10364 = vmul.f32 %v10236, %v10348
      %v10365 = vmul.f32 %v10237, %v10349
      %v10366 = vmul.f32 %v10238, %v10350
      %v10367 = vmul.f32 %v10239, %v10351
      %v10368 = vmul.f32 %v10240, %v10352
      %v10369 = vmul.f32 %v10241, %v10353
      %v10370 = vmul.f32 %v10242, %v10354
      %v10371 = vlaneseq
      %v10372 = vshrl.u32 %v10371, 7
      %v10373 = vsub.s32 0, %v10372
      %v10374 = vrot.slane %v10160, %v10373
      %v10375 = vmul.f32 %v10355, %v10374
      %v10376 = vmul.f32 %v10356, %v10374
      %v10377 = vmul.f32 %v10357, %v10374
      %v10378 = vmul.f32 %v10358, %v10374
      %v10379 = vmul.f32 %v10359, %v10374
      %v10380 = vmul.f32 %v10360, %v10374
      %v10381 = vmul.f32 %v10361, %v10374
      %v10382 = vmul.f32 %v10362, %v10374
      %v10383 = vmul.f32 %v10363, %v10374
      %v10384 = vmul.f32 %v10364, %v10374
      %v10385 = vmul.f32 %v10365, %v10374
      %v10386 = vmul.f32 %v10366, %v10374
      %v10387 = vmul.f32 %v10367, %v10374
      %v10388 = vmul.f32 %v10368, %v10374
      %v10389 = vmul.f32 %v10369, %v10374
      %v10390 = vmul.f32 %v10370, %v10374
      %v10391 = vlaneseq
      %v10392 = vshrl.u32 %v10391, 7
      %v10393 = vsub.s32 0, %v10392
      %v10394 = vrot.slane %v10161, %v10393
      %v10395 = vadd.f32 %v10375, %v10394
      %v10396 = vadd.f32 %v10376, %v10394
      %v10397 = vadd.f32 %v10377, %v10394
      %v10398 = vadd.f32 %v10378, %v10394
      %v10399 = vadd.f32 %v10379, %v10394
      %v10400 = vadd.f32 %v10380, %v10394
      %v10401 = vadd.f32 %v10381, %v10394
      %v10402 = vadd.f32 %v10382, %v10394
      %v10403 = vadd.f32 %v10383, %v10394
      %v10404 = vadd.f32 %v10384, %v10394
      %v10405 = vadd.f32 %v10385, %v10394
      %v10406 = vadd.f32 %v10386, %v10394
      %v10407 = vadd.f32 %v10387, %v10394
      %v10408 = vadd.f32 %v10388, %v10394
      %v10409 = vadd.f32 %v10389, %v10394
      %v10410 = vadd.f32 %v10390, %v10394
      %v10411 = vld [vmem:[%s5] sm:$0xff]
      %v10412 = vld [vmem:[%s5 + $0x8] sm:$0xff]
      %v10413 = vld [vmem:[%s5 + $0x10] sm:$0xff]
      %v10414 = vld [vmem:[%s5 + $0x18] sm:$0xff]
      %v10415 = vld [vmem:[%s5 + $0x20] sm:$0xff]
      %v10416 = vld [vmem:[%s5 + $0x28] sm:$0xff]
      %v10417 = vld [vmem:[%s5 + $0x30] sm:$0xff]
      %v10418 = vld [vmem:[%s5 + $0x38] sm:$0xff]
      %v10420 = vsel %vm336, %v10395, 0
      %v10423 = vsel %vm336, %v10396, 0
      %v10426 = vsel %vm336, %v10397, 0
      %v10429 = vsel %vm336, %v10398, 0
      %v10432 = vsel %vm336, %v10399, 0
      %v10435 = vsel %vm336, %v10400, 0
      %v10438 = vsel %vm336, %v10401, 0
      %v10441 = vsel %vm336, %v10402, 0
      %v10444 = vsel %vm336, %v10403, 0
      %v10447 = vsel %vm336, %v10404, 0
      %v10450 = vsel %vm336, %v10405, 0
      %v10453 = vsel %vm336, %v10406, 0
      %v10456 = vsel %vm336, %v10407, 0
      %v10459 = vsel %vm336, %v10408, 0
      %v10462 = vsel %vm336, %v10409, 0
      %v10465 = vsel %vm336, %v10410, 0
      %10467 = vmatprep.subr.mxu0 0.0
      %10468 = vmatpush1.msra.mxu0 %v10415
      %10469 = vmatprep.subr.mxu0 0.0
      %10470 = vmatpush1.msra.mxu0 %v10416
      %10471 = vmatprep.subr.mxu0 0.0
      %10472 = vmatpush1.msra.mxu0 %v10417
      %10473 = vmatprep.subr.mxu0 0.0
      %10474 = vmatpush1.msra.mxu0 %v10418
      %10475 = vmatprep.subr.mxu0 0.0
      %10476 = vmatpush1.msra.mxu0 0.0
      %10477 = vmatprep.subr.mxu0 0.0
      %10478 = vmatpush1.msra.mxu0 0.0
      %10479 = vmatprep.subr.mxu0 0.0
      %10480 = vmatpush1.msra.mxu0 0.0
      %10481 = vmatprep.subr.mxu0 0.0
      %10482 = vmatpush1.msra.mxu0 0.0
      %10483 = vmatprep.subr.mxu0 0.0
      %10484 = vmatpush1.msra.mxu0 0.0
      %10485 = vmatprep.subr.mxu0 0.0
      %10486 = vmatpush1.msra.mxu0 0.0
      %10487 = vmatprep.subr.mxu0 0.0
      %10488 = vmatpush1.msra.mxu0 0.0
      %10489 = vmatprep.subr.mxu0 0.0
      %10490 = vmatpush1.msra.mxu0 0.0
      %10491 = vmatprep.subr.mxu0 0.0
      %10492 = vmatpush1.msra.mxu0 0.0
      %10493 = vmatprep.subr.mxu0 0.0
      %10494 = vmatpush1.msra.mxu0 0.0
      %10495 = vmatprep.subr.mxu0 0.0
      %10496 = vmatpush1.msra.mxu0 0.0
      %10497 = vmatprep.subr.mxu0 0.0
      %10498 = vmatpush1.msra.mxu0 0.0
      %10499 = vmatprep.subr.mxu0 0.0
      %10500 = vmatpush1.msra.mxu0 0.0
      %10501 = vmatprep.subr.mxu0 0.0
      %10502 = vmatpush1.msra.mxu0 0.0
      %10503 = vmatprep.subr.mxu0 0.0
      %10504 = vmatpush1.msra.mxu0 0.0
      %10505 = vmatprep.subr.mxu0 0.0
      %10506 = vmatpush1.msra.mxu0 0.0
      %10507 = vmatprep.subr.mxu0 0.0
      %10508 = vmatpush1.msra.mxu0 0.0
      %10509 = vmatprep.subr.mxu0 0.0
      %10510 = vmatpush1.msra.mxu0 0.0
      %10511 = vmatprep.subr.mxu0 0.0
      %10512 = vmatpush1.msra.mxu0 0.0
      %10513 = vmatprep.subr.mxu0 0.0
      %10514 = vmatpush1.msra.mxu0 0.0
      %10515 = vmatprep.subr.mxu0 0.0
      %10516 = vmatpush1.msra.mxu0 0.0
      %10517 = vmatprep.subr.mxu0 0.0
      %10518 = vmatpush1.msra.mxu0 0.0
      %10519 = vmatprep.subr.mxu0 0.0
      %10520 = vmatpush1.msra.mxu0 0.0
      %10521 = vmatprep.subr.mxu0 0.0
      %10522 = vmatpush1.msra.mxu0 0.0
      %10523 = vmatprep.subr.mxu0 0.0
      %10524 = vmatpush1.msra.mxu0 0.0
      %10525 = vmatprep.subr.mxu0 0.0
      %10526 = vmatpush1.msra.mxu0 0.0
      %10527 = vmatprep.subr.mxu0 0.0
      %10528 = vmatpush1.msra.mxu0 0.0
      %10529 = vmatprep.subr.mxu0 0.0
      %10530 = vmatpush1.msra.mxu0 0.0
      %10531 = vmatprep.mubr.f32.mxu0 0.0
      %10532 = vmatmul.mubr.f32.gmra.mrb[0].mxu0 %v10420
      %v10533 = vpop.f32.mrb[0].mxu0
      %v10534 = vadd.f32 0.0, %v10533
      %v10535 = vpop.f32.mrb[0].mxu0
      %10536 = vmatprep.mubr.f32.mxu0 0.0
      %10537 = vmatmul.mubr.f32.gmra.mrb[0].mxu0 %v10423
      %v10538 = vpop.f32.mrb[0].mxu0
      %v10539 = vadd.f32 0.0, %v10538
      %v10540 = vpop.f32.mrb[0].mxu0
      %10541 = vmatprep.mubr.f32.mxu0 0.0
      %10542 = vmatmul.mubr.f32.gmra.mrb[0].mxu0 %v10426
      %v10543 = vpop.f32.mrb[0].mxu0
      %v10544 = vadd.f32 0.0, %v10543
      %v10545 = vpop.f32.mrb[0].mxu0
      %10546 = vmatprep.mubr.f32.mxu0 0.0
      %10547 = vmatmul.mubr.f32.gmra.mrb[0].mxu0 %v10429
      %v10548 = vpop.f32.mrb[0].mxu0
      %v10549 = vadd.f32 0.0, %v10548
      %v10550 = vpop.f32.mrb[0].mxu0
      %10551 = vmatprep.mubr.f32.mxu0 0.0
      %10552 = vmatmul.mubr.f32.gmra.mrb[0].mxu0 %v10432
      %v10553 = vpop.f32.mrb[0].mxu0
      %v10554 = vadd.f32 0.0, %v10553
      %v10555 = vpop.f32.mrb[0].mxu0
      %10556 = vmatprep.mubr.f32.mxu0 0.0
      %10557 = vmatmul.mubr.f32.gmra.mrb[0].mxu0 %v10435
      %v10558 = vpop.f32.mrb[0].mxu0
      %v10559 = vadd.f32 0.0, %v10558
      %v10560 = vpop.f32.mrb[0].mxu0
      %10561 = vmatprep.mubr.f32.mxu0 0.0
      %10562 = vmatmul.mubr.f32.gmra.mrb[0].mxu0 %v10438
      %v10563 = vpop.f32.mrb[0].mxu0
      %v10564 = vadd.f32 0.0, %v10563
      %v10565 = vpop.f32.mrb[0].mxu0
      %10566 = vmatprep.mubr.f32.mxu0 0.0
      %10567 = vmatmul.mubr.f32.gmra.mrb[0].mxu0 %v10441
      %v10568 = vpop.f32.mrb[0].mxu0
      %v10569 = vadd.f32 0.0, %v10568
      %v10570 = vpop.f32.mrb[0].mxu0
      %10571 = vmatprep.mubr.f32.mxu0 0.0
      %10572 = vmatmul.mubr.f32.gmra.mrb[0].mxu0 %v10444
      %v10573 = vpop.f32.mrb[0].mxu0
      %v10574 = vadd.f32 0.0, %v10573
      %v10575 = vpop.f32.mrb[0].mxu0
      %10576 = vmatprep.mubr.f32.mxu0 0.0
      %10577 = vmatmul.mubr.f32.gmra.mrb[0].mxu0 %v10447
      %v10578 = vpop.f32.mrb[0].mxu0
      %v10579 = vadd.f32 0.0, %v10578
      %v10580 = vpop.f32.mrb[0].mxu0
      %10581 = vmatprep.mubr.f32.mxu0 0.0
      %10582 = vmatmul.mubr.f32.gmra.mrb[0].mxu0 %v10450
      %v10583 = vpop.f32.mrb[0].mxu0
      %v10584 = vadd.f32 0.0, %v10583
      %v10585 = vpop.f32.mrb[0].mxu0
      %10586 = vmatprep.mubr.f32.mxu0 0.0
      %10587 = vmatmul.mubr.f32.gmra.mrb[0].mxu0 %v10453
      %v10588 = vpop.f32.mrb[0].mxu0
      %v10589 = vadd.f32 0.0, %v10588
      %v10590 = vpop.f32.mrb[0].mxu0
      %10591 = vmatprep.mubr.f32.mxu0 0.0
      %10592 = vmatmul.mubr.f32.gmra.mrb[0].mxu0 %v10456
      %v10593 = vpop.f32.mrb[0].mxu0
      %v10594 = vadd.f32 0.0, %v10593
      %v10595 = vpop.f32.mrb[0].mxu0
      %10596 = vmatprep.mubr.f32.mxu0 0.0
      %10597 = vmatmul.mubr.f32.gmra.mrb[0].mxu0 %v10459
      %v10598 = vpop.f32.mrb[0].mxu0
      %v10599 = vadd.f32 0.0, %v10598
      %v10600 = vpop.f32.mrb[0].mxu0
      %10601 = vmatprep.mubr.f32.mxu0 0.0
      %10602 = vmatmul.mubr.f32.gmra.mrb[0].mxu0 %v10462
      %v10603 = vpop.f32.mrb[0].mxu0
      %v10604 = vadd.f32 0.0, %v10603
      %v10605 = vpop.f32.mrb[0].mxu0
      %10606 = vmatprep.mubr.f32.mxu0 0.0
      %10607 = vmatmul.mubr.f32.gmra.mrb[0].mxu0 %v10465
      %v10608 = vpop.f32.mrb[0].mxu0
      %v10609 = vadd.f32 0.0, %v10608
      %v10610 = vpop.f32.mrb[0].mxu0
      %10611 = vdwg.mxu0
      %10612 = vmatprep.subr.mxu0 0.0
      %10613 = vmatpush1.msra.mxu0 %v10411
      %10614 = vmatprep.subr.mxu0 0.0
      %10615 = vmatpush1.msra.mxu0 %v10412
      %10616 = vmatprep.subr.mxu0 0.0
      %10617 = vmatpush1.msra.mxu0 %v10413
      %10618 = vmatprep.subr.mxu0 0.0
      %10619 = vmatpush1.msra.mxu0 %v10414
      %10620 = vmatprep.subr.mxu0 0.0
      %10621 = vmatpush1.msra.mxu0 0.0
      %10622 = vmatprep.subr.mxu0 0.0
      %10623 = vmatpush1.msra.mxu0 0.0
      %10624 = vmatprep.subr.mxu0 0.0
      %10625 = vmatpush1.msra.mxu0 0.0
      %10626 = vmatprep.subr.mxu0 0.0
      %10627 = vmatpush1.msra.mxu0 0.0
      %10628 = vmatprep.subr.mxu0 0.0
      %10629 = vmatpush1.msra.mxu0 0.0
      %10630 = vmatprep.subr.mxu0 0.0
      %10631 = vmatpush1.msra.mxu0 0.0
      %10632 = vmatprep.subr.mxu0 0.0
      %10633 = vmatpush1.msra.mxu0 0.0
      %10634 = vmatprep.subr.mxu0 0.0
      %10635 = vmatpush1.msra.mxu0 0.0
      %10636 = vmatprep.subr.mxu0 0.0
      %10637 = vmatpush1.msra.mxu0 0.0
      %10638 = vmatprep.subr.mxu0 0.0
      %10639 = vmatpush1.msra.mxu0 0.0
      %10640 = vmatprep.subr.mxu0 0.0
      %10641 = vmatpush1.msra.mxu0 0.0
      %10642 = vmatprep.subr.mxu0 0.0
      %10643 = vmatpush1.msra.mxu0 0.0
      %10644 = vmatprep.subr.mxu0 0.0
      %10645 = vmatpush1.msra.mxu0 0.0
      %10646 = vmatprep.subr.mxu0 0.0
      %10647 = vmatpush1.msra.mxu0 0.0
      %10648 = vmatprep.subr.mxu0 0.0
      %10649 = vmatpush1.msra.mxu0 0.0
      %10650 = vmatprep.subr.mxu0 0.0
      %10651 = vmatpush1.msra.mxu0 0.0
      %10652 = vmatprep.subr.mxu0 0.0
      %10653 = vmatpush1.msra.mxu0 0.0
      %10654 = vmatprep.subr.mxu0 0.0
      %10655 = vmatpush1.msra.mxu0 0.0
      %10656 = vmatprep.subr.mxu0 0.0
      %10657 = vmatpush1.msra.mxu0 0.0
      %10658 = vmatprep.subr.mxu0 0.0
      %10659 = vmatpush1.msra.mxu0 0.0
      %10660 = vmatprep.subr.mxu0 0.0
      %10661 = vmatpush1.msra.mxu0 0.0
      %10662 = vmatprep.subr.mxu0 0.0
      %10663 = vmatpush1.msra.mxu0 0.0
      %10664 = vmatprep.subr.mxu0 0.0
      %10665 = vmatpush1.msra.mxu0 0.0
      %10666 = vmatprep.subr.mxu0 0.0
      %10667 = vmatpush1.msra.mxu0 0.0
      %10668 = vmatprep.subr.mxu0 0.0
      %10669 = vmatpush1.msra.mxu0 0.0
      %10670 = vmatprep.subr.mxu0 0.0
      %10671 = vmatpush1.msra.mxu0 0.0
      %10672 = vmatprep.subr.mxu0 0.0
      %10673 = vmatpush1.msra.mxu0 0.0
      %10674 = vmatprep.subr.mxu0 0.0
      %10675 = vmatpush1.msra.mxu0 0.0
      %10676 = vmatprep.mubr.f32.mxu0 0.0
      %10677 = vmatmul.mubr.f32.gmra.mrb[0].mxu0 %v338
      %v10678 = vpop.f32.mrb[0].mxu0
      %v10679 = vadd.f32 %v10534, %v10678
      %v10680 = vpop.f32.mrb[0].mxu0
      %10681 = vmatprep.mubr.f32.mxu0 0.0
      %10682 = vmatmul.mubr.f32.gmra.mrb[0].mxu0 %v341
      %v10683 = vpop.f32.mrb[0].mxu0
      %v10684 = vadd.f32 %v10539, %v10683
      %v10685 = vpop.f32.mrb[0].mxu0
      %10686 = vmatprep.mubr.f32.mxu0 0.0
      %10687 = vmatmul.mubr.f32.gmra.mrb[0].mxu0 %v344
      %v10688 = vpop.f32.mrb[0].mxu0
      %v10689 = vadd.f32 %v10544, %v10688
      %v10690 = vpop.f32.mrb[0].mxu0
      %10691 = vmatprep.mubr.f32.mxu0 0.0
      %10692 = vmatmul.mubr.f32.gmra.mrb[0].mxu0 %v347
      %v10693 = vpop.f32.mrb[0].mxu0
      %v10694 = vadd.f32 %v10549, %v10693
      %v10695 = vpop.f32.mrb[0].mxu0
      %10696 = vmatprep.mubr.f32.mxu0 0.0
      %10697 = vmatmul.mubr.f32.gmra.mrb[0].mxu0 %v350
      %v10698 = vpop.f32.mrb[0].mxu0
      %v10699 = vadd.f32 %v10554, %v10698
      %v10700 = vpop.f32.mrb[0].mxu0
      %10701 = vmatprep.mubr.f32.mxu0 0.0
      %10702 = vmatmul.mubr.f32.gmra.mrb[0].mxu0 %v353
      %v10703 = vpop.f32.mrb[0].mxu0
      %v10704 = vadd.f32 %v10559, %v10703
      %v10705 = vpop.f32.mrb[0].mxu0
      %10706 = vmatprep.mubr.f32.mxu0 0.0
      %10707 = vmatmul.mubr.f32.gmra.mrb[0].mxu0 %v356
      %v10708 = vpop.f32.mrb[0].mxu0
      %v10709 = vadd.f32 %v10564, %v10708
      %v10710 = vpop.f32.mrb[0].mxu0
      %10711 = vmatprep.mubr.f32.mxu0 0.0
      %10712 = vmatmul.mubr.f32.gmra.mrb[0].mxu0 %v359
      %v10713 = vpop.f32.mrb[0].mxu0
      %v10714 = vadd.f32 %v10569, %v10713
      %v10715 = vpop.f32.mrb[0].mxu0
      %10716 = vmatprep.mubr.f32.mxu0 0.0
      %10717 = vmatmul.mubr.f32.gmra.mrb[0].mxu0 %v362
      %v10718 = vpop.f32.mrb[0].mxu0
      %v10719 = vadd.f32 %v10574, %v10718
      %v10720 = vpop.f32.mrb[0].mxu0
      %10721 = vmatprep.mubr.f32.mxu0 0.0
      %10722 = vmatmul.mubr.f32.gmra.mrb[0].mxu0 %v365
      %v10723 = vpop.f32.mrb[0].mxu0
      %v10724 = vadd.f32 %v10579, %v10723
      %v10725 = vpop.f32.mrb[0].mxu0
      %10726 = vmatprep.mubr.f32.mxu0 0.0
      %10727 = vmatmul.mubr.f32.gmra.mrb[0].mxu0 %v368
      %v10728 = vpop.f32.mrb[0].mxu0
      %v10729 = vadd.f32 %v10584, %v10728
      %v10730 = vpop.f32.mrb[0].mxu0
      %10731 = vmatprep.mubr.f32.mxu0 0.0
      %10732 = vmatmul.mubr.f32.gmra.mrb[0].mxu0 %v371
      %v10733 = vpop.f32.mrb[0].mxu0
      %v10734 = vadd.f32 %v10589, %v10733
      %v10735 = vpop.f32.mrb[0].mxu0
      %10736 = vmatprep.mubr.f32.mxu0 0.0
      %10737 = vmatmul.mubr.f32.gmra.mrb[0].mxu0 %v374
      %v10738 = vpop.f32.mrb[0].mxu0
      %v10739 = vadd.f32 %v10594, %v10738
      %v10740 = vpop.f32.mrb[0].mxu0
      %10741 = vmatprep.mubr.f32.mxu0 0.0
      %10742 = vmatmul.mubr.f32.gmra.mrb[0].mxu0 %v377
      %v10743 = vpop.f32.mrb[0].mxu0
      %v10744 = vadd.f32 %v10599, %v10743
      %v10745 = vpop.f32.mrb[0].mxu0
      %10746 = vmatprep.mubr.f32.mxu0 0.0
      %10747 = vmatmul.mubr.f32.gmra.mrb[0].mxu0 %v380
      %v10748 = vpop.f32.mrb[0].mxu0
      %v10749 = vadd.f32 %v10604, %v10748
      %v10750 = vpop.f32.mrb[0].mxu0
      %10751 = vmatprep.mubr.f32.mxu0 0.0
      %10752 = vmatmul.mubr.f32.gmra.mrb[0].mxu0 %v383
      %v10753 = vpop.f32.mrb[0].mxu0
      %v10754 = vadd.f32 %v10609, %v10753
      %v10755 = vpop.f32.mrb[0].mxu0
      %10756 = vdwg.mxu0
      %v10757 = vmax.f32 %v10679, 0.0
      %v10758 = vmax.f32 %v10684, 0.0
      %v10759 = vmax.f32 %v10689, 0.0
      %v10760 = vmax.f32 %v10694, 0.0
      %v10761 = vmax.f32 %v10699, 0.0
      %v10762 = vmax.f32 %v10704, 0.0
      %v10763 = vmax.f32 %v10709, 0.0
      %v10764 = vmax.f32 %v10714, 0.0
      %v10765 = vmax.f32 %v10719, 0.0
      %v10766 = vmax.f32 %v10724, 0.0
      %v10767 = vmax.f32 %v10729, 0.0
      %v10768 = vmax.f32 %v10734, 0.0
      %v10769 = vmax.f32 %v10739, 0.0
      %v10770 = vmax.f32 %v10744, 0.0
      %v10771 = vmax.f32 %v10749, 0.0
      %v10772 = vmax.f32 %v10754, 0.0
      %v10773 = vld [vmem:[%s6] sm:$0xff]
      %v10774 = vld [vmem:[%s6 + $0x8] sm:$0xff]
      %v10775 = vld [vmem:[%s6 + $0x10] sm:$0xff]
      %v10776 = vld [vmem:[%s6 + $0x18] sm:$0xff]
      %v10777 = vld [vmem:[%s6 + $0x20] sm:$0xff]
      %v10778 = vld [vmem:[%s6 + $0x28] sm:$0xff]
      %v10779 = vld [vmem:[%s6 + $0x30] sm:$0xff]
      %v10780 = vld [vmem:[%s6 + $0x38] sm:$0xff]
      %v10782 = vsel %vm6918, %v10757, 0
      %v10785 = vsel %vm6918, %v10758, 0
      %v10788 = vsel %vm6918, %v10759, 0
      %v10791 = vsel %vm6918, %v10760, 0
      %v10794 = vsel %vm6918, %v10761, 0
      %v10797 = vsel %vm6918, %v10762, 0
      %v10800 = vsel %vm6918, %v10763, 0
      %v10803 = vsel %vm6918, %v10764, 0
      %v10806 = vsel %vm6918, %v10765, 0
      %v10809 = vsel %vm6918, %v10766, 0
      %v10812 = vsel %vm6918, %v10767, 0
      %v10815 = vsel %vm6918, %v10768, 0
      %v10818 = vsel %vm6918, %v10769, 0
      %v10821 = vsel %vm6918, %v10770, 0
      %v10824 = vsel %vm6918, %v10771, 0
      %v10827 = vsel %vm6918, %v10772, 0
      %10829 = vmatprep.subr.mxu0 0.0
      %10830 = vmatpush1.msra.mxu0 %v10773
      %10831 = vmatprep.subr.mxu0 0.0
      %10832 = vmatpush1.msra.mxu0 %v10774
      %10833 = vmatprep.subr.mxu0 0.0
      %10834 = vmatpush1.msra.mxu0 %v10775
      %10835 = vmatprep.subr.mxu0 0.0
      %10836 = vmatpush1.msra.mxu0 %v10776
      %10837 = vmatprep.subr.mxu0 0.0
      %10838 = vmatpush1.msra.mxu0 %v10777
      %10839 = vmatprep.subr.mxu0 0.0
      %10840 = vmatpush1.msra.mxu0 %v10778
      %10841 = vmatprep.subr.mxu0 0.0
      %10842 = vmatpush1.msra.mxu0 %v10779
      %10843 = vmatprep.subr.mxu0 0.0
      %10844 = vmatpush1.msra.mxu0 %v10780
      %10845 = vmatprep.subr.mxu0 0.0
      %10846 = vmatpush1.msra.mxu0 0.0
      %10847 = vmatprep.subr.mxu0 0.0
      %10848 = vmatpush1.msra.mxu0 0.0
      %10849 = vmatprep.subr.mxu0 0.0
      %10850 = vmatpush1.msra.mxu0 0.0
      %10851 = vmatprep.subr.mxu0 0.0
      %10852 = vmatpush1.msra.mxu0 0.0
      %10853 = vmatprep.subr.mxu0 0.0
      %10854 = vmatpush1.msra.mxu0 0.0
      %10855 = vmatprep.subr.mxu0 0.0
      %10856 = vmatpush1.msra.mxu0 0.0
      %10857 = vmatprep.subr.mxu0 0.0
      %10858 = vmatpush1.msra.mxu0 0.0
      %10859 = vmatprep.subr.mxu0 0.0
      %10860 = vmatpush1.msra.mxu0 0.0
      %10861 = vmatprep.subr.mxu0 0.0
      %10862 = vmatpush1.msra.mxu0 0.0
      %10863 = vmatprep.subr.mxu0 0.0
      %10864 = vmatpush1.msra.mxu0 0.0
      %10865 = vmatprep.subr.mxu0 0.0
      %10866 = vmatpush1.msra.mxu0 0.0
      %10867 = vmatprep.subr.mxu0 0.0
      %10868 = vmatpush1.msra.mxu0 0.0
      %10869 = vmatprep.subr.mxu0 0.0
      %10870 = vmatpush1.msra.mxu0 0.0
      %10871 = vmatprep.subr.mxu0 0.0
      %10872 = vmatpush1.msra.mxu0 0.0
      %10873 = vmatprep.subr.mxu0 0.0
      %10874 = vmatpush1.msra.mxu0 0.0
      %10875 = vmatprep.subr.mxu0 0.0
      %10876 = vmatpush1.msra.mxu0 0.0
      %10877 = vmatprep.subr.mxu0 0.0
      %10878 = vmatpush1.msra.mxu0 0.0
      %10879 = vmatprep.subr.mxu0 0.0
      %10880 = vmatpush1.msra.mxu0 0.0
      %10881 = vmatprep.subr.mxu0 0.0
      %10882 = vmatpush1.msra.mxu0 0.0
      %10883 = vmatprep.subr.mxu0 0.0
      %10884 = vmatpush1.msra.mxu0 0.0
      %10885 = vmatprep.subr.mxu0 0.0
      %10886 = vmatpush1.msra.mxu0 0.0
      %10887 = vmatprep.subr.mxu0 0.0
      %10888 = vmatpush1.msra.mxu0 0.0
      %10889 = vmatprep.subr.mxu0 0.0
      %10890 = vmatpush1.msra.mxu0 0.0
      %10891 = vmatprep.subr.mxu0 0.0
      %10892 = vmatpush1.msra.mxu0 0.0
      %10893 = vmatprep.mubr.f32.mxu0 0.0
      %10894 = vmatmul.mubr.f32.gmra.mrb[0].mxu0 %v10782
      %v10895 = vpop.f32.mrb[0].mxu0
      %v10896 = vadd.f32 0.0, %v10895
      %v10897 = vpop.f32.mrb[0].mxu0
      %10898 = vmatprep.mubr.f32.mxu0 0.0
      %10899 = vmatmul.mubr.f32.gmra.mrb[0].mxu0 %v10785
      %v10900 = vpop.f32.mrb[0].mxu0
      %v10901 = vadd.f32 0.0, %v10900
      %v10902 = vpop.f32.mrb[0].mxu0
      %10903 = vmatprep.mubr.f32.mxu0 0.0
      %10904 = vmatmul.mubr.f32.gmra.mrb[0].mxu0 %v10788
      %v10905 = vpop.f32.mrb[0].mxu0
      %v10906 = vadd.f32 0.0, %v10905
      %v10907 = vpop.f32.mrb[0].mxu0
      %10908 = vmatprep.mubr.f32.mxu0 0.0
      %10909 = vmatmul.mubr.f32.gmra.mrb[0].mxu0 %v10791
      %v10910 = vpop.f32.mrb[0].mxu0
      %v10911 = vadd.f32 0.0, %v10910
      %v10912 = vpop.f32.mrb[0].mxu0
      %10913 = vmatprep.mubr.f32.mxu0 0.0
      %10914 = vmatmul.mubr.f32.gmra.mrb[0].mxu0 %v10794
      %v10915 = vpop.f32.mrb[0].mxu0
      %v10916 = vadd.f32 0.0, %v10915
      %v10917 = vpop.f32.mrb[0].mxu0
      %10918 = vmatprep.mubr.f32.mxu0 0.0
      %10919 = vmatmul.mubr.f32.gmra.mrb[0].mxu0 %v10797
      %v10920 = vpop.f32.mrb[0].mxu0
      %v10921 = vadd.f32 0.0, %v10920
      %v10922 = vpop.f32.mrb[0].mxu0
      %10923 = vmatprep.mubr.f32.mxu0 0.0
      %10924 = vmatmul.mubr.f32.gmra.mrb[0].mxu0 %v10800
      %v10925 = vpop.f32.mrb[0].mxu0
      %v10926 = vadd.f32 0.0, %v10925
      %v10927 = vpop.f32.mrb[0].mxu0
      %10928 = vmatprep.mubr.f32.mxu0 0.0
      %10929 = vmatmul.mubr.f32.gmra.mrb[0].mxu0 %v10803
      %v10930 = vpop.f32.mrb[0].mxu0
      %v10931 = vadd.f32 0.0, %v10930
      %v10932 = vpop.f32.mrb[0].mxu0
      %10933 = vmatprep.mubr.f32.mxu0 0.0
      %10934 = vmatmul.mubr.f32.gmra.mrb[0].mxu0 %v10806
      %v10935 = vpop.f32.mrb[0].mxu0
      %v10936 = vadd.f32 0.0, %v10935
      %v10937 = vpop.f32.mrb[0].mxu0
      %10938 = vmatprep.mubr.f32.mxu0 0.0
      %10939 = vmatmul.mubr.f32.gmra.mrb[0].mxu0 %v10809
      %v10940 = vpop.f32.mrb[0].mxu0
      %v10941 = vadd.f32 0.0, %v10940
      %v10942 = vpop.f32.mrb[0].mxu0
      %10943 = vmatprep.mubr.f32.mxu0 0.0
      %10944 = vmatmul.mubr.f32.gmra.mrb[0].mxu0 %v10812
      %v10945 = vpop.f32.mrb[0].mxu0
      %v10946 = vadd.f32 0.0, %v10945
      %v10947 = vpop.f32.mrb[0].mxu0
      %10948 = vmatprep.mubr.f32.mxu0 0.0
      %10949 = vmatmul.mubr.f32.gmra.mrb[0].mxu0 %v10815
      %v10950 = vpop.f32.mrb[0].mxu0
      %v10951 = vadd.f32 0.0, %v10950
      %v10952 = vpop.f32.mrb[0].mxu0
      %10953 = vmatprep.mubr.f32.mxu0 0.0
      %10954 = vmatmul.mubr.f32.gmra.mrb[0].mxu0 %v10818
      %v10955 = vpop.f32.mrb[0].mxu0
      %v10956 = vadd.f32 0.0, %v10955
      %v10957 = vpop.f32.mrb[0].mxu0
      %10958 = vmatprep.mubr.f32.mxu0 0.0
      %10959 = vmatmul.mubr.f32.gmra.mrb[0].mxu0 %v10821
      %v10960 = vpop.f32.mrb[0].mxu0
      %v10961 = vadd.f32 0.0, %v10960
      %v10962 = vpop.f32.mrb[0].mxu0
      %10963 = vmatprep.mubr.f32.mxu0 0.0
      %10964 = vmatmul.mubr.f32.gmra.mrb[0].mxu0 %v10824
      %v10965 = vpop.f32.mrb[0].mxu0
      %v10966 = vadd.f32 0.0, %v10965
      %v10967 = vpop.f32.mrb[0].mxu0
      %10968 = vmatprep.mubr.f32.mxu0 0.0
      %10969 = vmatmul.mubr.f32.gmra.mrb[0].mxu0 %v10827
      %v10970 = vpop.f32.mrb[0].mxu0
      %v10971 = vadd.f32 0.0, %v10970
      %v10972 = vpop.f32.mrb[0].mxu0
      %10973 = vdwg.mxu0
      %v10974 = vld [vmem:[%s7 + $0x2] sm:$0x1]
      %v10975 = vld [vmem:[%s7 + $0x3] sm:$0x1]
      %v10976 = vsel %vm336, %v10896, 0.0
      %10977 = vadd.xlane.f32.xlu0 %v10976
      %v10978 = vpop.xlane.xlu0 %10977
      %v10979 = vsel %vm336, %v10901, 0.0
      %10980 = vadd.xlane.f32.xlu0 %v10979
      %v10981 = vpop.xlane.xlu0 %10980
      %v10982 = vsel %vm336, %v10906, 0.0
      %10983 = vadd.xlane.f32.xlu0 %v10982
      %v10984 = vpop.xlane.xlu0 %10983
      %v10985 = vsel %vm336, %v10911, 0.0
      %10986 = vadd.xlane.f32.xlu0 %v10985
      %v10987 = vpop.xlane.xlu0 %10986
      %v10988 = vsel %vm336, %v10916, 0.0
      %10989 = vadd.xlane.f32.xlu0 %v10988
      %v10990 = vpop.xlane.xlu0 %10989
      %v10991 = vsel %vm336, %v10921, 0.0
      %10992 = vadd.xlane.f32.xlu0 %v10991
      %v10993 = vpop.xlane.xlu0 %10992
      %v10994 = vsel %vm336, %v10926, 0.0
      %10995 = vadd.xlane.f32.xlu0 %v10994
      %v10996 = vpop.xlane.xlu0 %10995
      %v10997 = vsel %vm336, %v10931, 0.0
      %10998 = vadd.xlane.f32.xlu0 %v10997
      %v10999 = vpop.xlane.xlu0 %10998
      %v11000 = vsel %vm336, %v10936, 0.0
      %11001 = vadd.xlane.f32.xlu0 %v11000
      %v11002 = vpop.xlane.xlu0 %11001
      %v11003 = vsel %vm336, %v10941, 0.0
      %11004 = vadd.xlane.f32.xlu0 %v11003
      %v11005 = vpop.xlane.xlu0 %11004
      %v11006 = vsel %vm336, %v10946, 0.0
      %11007 = vadd.xlane.f32.xlu0 %v11006
      %v11008 = vpop.xlane.xlu0 %11007
      %v11009 = vsel %vm336, %v10951, 0.0
      %11010 = vadd.xlane.f32.xlu0 %v11009
      %v11011 = vpop.xlane.xlu0 %11010
      %v11012 = vsel %vm336, %v10956, 0.0
      %11013 = vadd.xlane.f32.xlu0 %v11012
      %v11014 = vpop.xlane.xlu0 %11013
      %v11015 = vsel %vm336, %v10961, 0.0
      %11016 = vadd.xlane.f32.xlu0 %v11015
      %v11017 = vpop.xlane.xlu0 %11016
      %v11018 = vsel %vm336, %v10966, 0.0
      %11019 = vadd.xlane.f32.xlu0 %v11018
      %v11020 = vpop.xlane.xlu0 %11019
      %v11021 = vsel %vm336, %v10971, 0.0
      %11022 = vadd.xlane.f32.xlu0 %v11021
      %v11023 = vpop.xlane.xlu0 %11022
      %v11024 = vmul.f32 %v10978, %v10210
      %v11025 = vmul.f32 %v10981, %v10210
      %v11026 = vmul.f32 %v10984, %v10210
      %v11027 = vmul.f32 %v10987, %v10210
      %v11028 = vmul.f32 %v10990, %v10210
      %v11029 = vmul.f32 %v10993, %v10210
      %v11030 = vmul.f32 %v10996, %v10210
      %v11031 = vmul.f32 %v10999, %v10210
      %v11032 = vmul.f32 %v11002, %v10210
      %v11033 = vmul.f32 %v11005, %v10210
      %v11034 = vmul.f32 %v11008, %v10210
      %v11035 = vmul.f32 %v11011, %v10210
      %v11036 = vmul.f32 %v11014, %v10210
      %v11037 = vmul.f32 %v11017, %v10210
      %v11038 = vmul.f32 %v11020, %v10210
      %v11039 = vmul.f32 %v11023, %v10210
      %v11040 = vsub.f32 %v10896, %v11024
      %v11041 = vsub.f32 %v10901, %v11025
      %v11042 = vsub.f32 %v10906, %v11026
      %v11043 = vsub.f32 %v10911, %v11027
      %v11044 = vsub.f32 %v10916, %v11028
      %v11045 = vsub.f32 %v10921, %v11029
      %v11046 = vsub.f32 %v10926, %v11030
      %v11047 = vsub.f32 %v10931, %v11031
      %v11048 = vsub.f32 %v10936, %v11032
      %v11049 = vsub.f32 %v10941, %v11033
      %v11050 = vsub.f32 %v10946, %v11034
      %v11051 = vsub.f32 %v10951, %v11035
      %v11052 = vsub.f32 %v10956, %v11036
      %v11053 = vsub.f32 %v10961, %v11037
      %v11054 = vsub.f32 %v10966, %v11038
      %v11055 = vsub.f32 %v10971, %v11039
      %v11056 = vmul.f32 %v11040, %v11040
      %v11057 = vmul.f32 %v11041, %v11041
      %v11058 = vmul.f32 %v11042, %v11042
      %v11059 = vmul.f32 %v11043, %v11043
      %v11060 = vmul.f32 %v11044, %v11044
      %v11061 = vmul.f32 %v11045, %v11045
      %v11062 = vmul.f32 %v11046, %v11046
      %v11063 = vmul.f32 %v11047, %v11047
      %v11064 = vmul.f32 %v11048, %v11048
      %v11065 = vmul.f32 %v11049, %v11049
      %v11066 = vmul.f32 %v11050, %v11050
      %v11067 = vmul.f32 %v11051, %v11051
      %v11068 = vmul.f32 %v11052, %v11052
      %v11069 = vmul.f32 %v11053, %v11053
      %v11070 = vmul.f32 %v11054, %v11054
      %v11071 = vmul.f32 %v11055, %v11055
      %v11072 = vsel %vm336, %v11056, 0.0
      %11073 = vadd.xlane.f32.xlu0 %v11072
      %v11074 = vpop.xlane.xlu0 %11073
      %v11075 = vsel %vm336, %v11057, 0.0
      %11076 = vadd.xlane.f32.xlu0 %v11075
      %v11077 = vpop.xlane.xlu0 %11076
      %v11078 = vsel %vm336, %v11058, 0.0
      %11079 = vadd.xlane.f32.xlu0 %v11078
      %v11080 = vpop.xlane.xlu0 %11079
      %v11081 = vsel %vm336, %v11059, 0.0
      %11082 = vadd.xlane.f32.xlu0 %v11081
      %v11083 = vpop.xlane.xlu0 %11082
      %v11084 = vsel %vm336, %v11060, 0.0
      %11085 = vadd.xlane.f32.xlu0 %v11084
      %v11086 = vpop.xlane.xlu0 %11085
      %v11087 = vsel %vm336, %v11061, 0.0
      %11088 = vadd.xlane.f32.xlu0 %v11087
      %v11089 = vpop.xlane.xlu0 %11088
      %v11090 = vsel %vm336, %v11062, 0.0
      %11091 = vadd.xlane.f32.xlu0 %v11090
      %v11092 = vpop.xlane.xlu0 %11091
      %v11093 = vsel %vm336, %v11063, 0.0
      %11094 = vadd.xlane.f32.xlu0 %v11093
      %v11095 = vpop.xlane.xlu0 %11094
      %v11096 = vsel %vm336, %v11064, 0.0
      %11097 = vadd.xlane.f32.xlu0 %v11096
      %v11098 = vpop.xlane.xlu0 %11097
      %v11099 = vsel %vm336, %v11065, 0.0
      %11100 = vadd.xlane.f32.xlu0 %v11099
      %v11101 = vpop.xlane.xlu0 %11100
      %v11102 = vsel %vm336, %v11066, 0.0
      %11103 = vadd.xlane.f32.xlu0 %v11102
      %v11104 = vpop.xlane.xlu0 %11103
      %v11105 = vsel %vm336, %v11067, 0.0
      %11106 = vadd.xlane.f32.xlu0 %v11105
      %v11107 = vpop.xlane.xlu0 %11106
      %v11108 = vsel %vm336, %v11068, 0.0
      %11109 = vadd.xlane.f32.xlu0 %v11108
      %v11110 = vpop.xlane.xlu0 %11109
      %v11111 = vsel %vm336, %v11069, 0.0
      %11112 = vadd.xlane.f32.xlu0 %v11111
      %v11113 = vpop.xlane.xlu0 %11112
      %v11114 = vsel %vm336, %v11070, 0.0
      %11115 = vadd.xlane.f32.xlu0 %v11114
      %v11116 = vpop.xlane.xlu0 %11115
      %v11117 = vsel %vm336, %v11071, 0.0
      %11118 = vadd.xlane.f32.xlu0 %v11117
      %v11119 = vpop.xlane.xlu0 %11118
      %v11120 = vmul.f32 %v11074, %v10210
      %v11121 = vmul.f32 %v11077, %v10210
      %v11122 = vmul.f32 %v11080, %v10210
      %v11123 = vmul.f32 %v11083, %v10210
      %v11124 = vmul.f32 %v11086, %v10210
      %v11125 = vmul.f32 %v11089, %v10210
      %v11126 = vmul.f32 %v11092, %v10210
      %v11127 = vmul.f32 %v11095, %v10210
      %v11128 = vmul.f32 %v11098, %v10210
      %v11129 = vmul.f32 %v11101, %v10210
      %v11130 = vmul.f32 %v11104, %v10210
      %v11131 = vmul.f32 %v11107, %v10210
      %v11132 = vmul.f32 %v11110, %v10210
      %v11133 = vmul.f32 %v11113, %v10210
      %v11134 = vmul.f32 %v11116, %v10210
      %v11135 = vmul.f32 %v11119, %v10210
      %v11136 = vadd.f32 %v11120, 1e-05
      %v11137 = vadd.f32 %v11121, 1e-05
      %v11138 = vadd.f32 %v11122, 1e-05
      %v11139 = vadd.f32 %v11123, 1e-05
      %v11140 = vadd.f32 %v11124, 1e-05
      %v11141 = vadd.f32 %v11125, 1e-05
      %v11142 = vadd.f32 %v11126, 1e-05
      %v11143 = vadd.f32 %v11127, 1e-05
      %v11144 = vadd.f32 %v11128, 1e-05
      %v11145 = vadd.f32 %v11129, 1e-05
      %v11146 = vadd.f32 %v11130, 1e-05
      %v11147 = vadd.f32 %v11131, 1e-05
      %v11148 = vadd.f32 %v11132, 1e-05
      %v11149 = vadd.f32 %v11133, 1e-05
      %v11150 = vadd.f32 %v11134, 1e-05
      %v11151 = vadd.f32 %v11135, 1e-05
      %v11152 = vrsqrt.pop %v11136
      %v11153 = vrsqrt.pop %v11137
      %v11154 = vrsqrt.pop %v11138
      %v11155 = vrsqrt.pop %v11139
      %v11156 = vrsqrt.pop %v11140
      %v11157 = vrsqrt.pop %v11141
      %v11158 = vrsqrt.pop %v11142
      %v11159 = vrsqrt.pop %v11143
      %v11160 = vrsqrt.pop %v11144
      %v11161 = vrsqrt.pop %v11145
      %v11162 = vrsqrt.pop %v11146
      %v11163 = vrsqrt.pop %v11147
      %v11164 = vrsqrt.pop %v11148
      %v11165 = vrsqrt.pop %v11149
      %v11166 = vrsqrt.pop %v11150
      %v11167 = vrsqrt.pop %v11151
      %v11168 = vmul.f32 %v11040, %v11152
      %v11169 = vmul.f32 %v11041, %v11153
      %v11170 = vmul.f32 %v11042, %v11154
      %v11171 = vmul.f32 %v11043, %v11155
      %v11172 = vmul.f32 %v11044, %v11156
      %v11173 = vmul.f32 %v11045, %v11157
      %v11174 = vmul.f32 %v11046, %v11158
      %v11175 = vmul.f32 %v11047, %v11159
      %v11176 = vmul.f32 %v11048, %v11160
      %v11177 = vmul.f32 %v11049, %v11161
      %v11178 = vmul.f32 %v11050, %v11162
      %v11179 = vmul.f32 %v11051, %v11163
      %v11180 = vmul.f32 %v11052, %v11164
      %v11181 = vmul.f32 %v11053, %v11165
      %v11182 = vmul.f32 %v11054, %v11166
      %v11183 = vmul.f32 %v11055, %v11167
      %v11184 = vlaneseq
      %v11185 = vshrl.u32 %v11184, 7
      %v11186 = vsub.s32 0, %v11185
      %v11187 = vrot.slane %v10974, %v11186
      %v11188 = vmul.f32 %v11168, %v11187
      %v11189 = vmul.f32 %v11169, %v11187
      %v11190 = vmul.f32 %v11170, %v11187
      %v11191 = vmul.f32 %v11171, %v11187
      %v11192 = vmul.f32 %v11172, %v11187
      %v11193 = vmul.f32 %v11173, %v11187
      %v11194 = vmul.f32 %v11174, %v11187
      %v11195 = vmul.f32 %v11175, %v11187
      %v11196 = vmul.f32 %v11176, %v11187
      %v11197 = vmul.f32 %v11177, %v11187
      %v11198 = vmul.f32 %v11178, %v11187
      %v11199 = vmul.f32 %v11179, %v11187
      %v11200 = vmul.f32 %v11180, %v11187
      %v11201 = vmul.f32 %v11181, %v11187
      %v11202 = vmul.f32 %v11182, %v11187
      %v11203 = vmul.f32 %v11183, %v11187
      %v11204 = vlaneseq
      %v11205 = vshrl.u32 %v11204, 7
      %v11206 = vsub.s32 0, %v11205
      %v11207 = vrot.slane %v10975, %v11206
      %v11208 = vadd.f32 %v11188, %v11207
      %v11209 = vadd.f32 %v11189, %v11207
      %v11210 = vadd.f32 %v11190, %v11207
      %v11211 = vadd.f32 %v11191, %v11207
      %v11212 = vadd.f32 %v11192, %v11207
      %v11213 = vadd.f32 %v11193, %v11207
      %v11214 = vadd.f32 %v11194, %v11207
      %v11215 = vadd.f32 %v11195, %v11207
      %v11216 = vadd.f32 %v11196, %v11207
      %v11217 = vadd.f32 %v11197, %v11207
      %v11218 = vadd.f32 %v11198, %v11207
      %v11219 = vadd.f32 %v11199, %v11207
      %v11220 = vadd.f32 %v11200, %v11207
      %v11221 = vadd.f32 %v11201, %v11207
      %v11222 = vadd.f32 %v11202, %v11207
      %v11223 = vadd.f32 %v11203, %v11207
      %v11224 = vadd.f32 %v309, %v11208
      %v11225 = vadd.f32 %v310, %v11209
      %v11226 = vadd.f32 %v311, %v11210
      %v11227 = vadd.f32 %v312, %v11211
      %v11228 = vadd.f32 %v313, %v11212
      %v11229 = vadd.f32 %v314, %v11213
      %v11230 = vadd.f32 %v315, %v11214
      %v11231 = vadd.f32 %v316, %v11215
      %v11232 = vadd.f32 %v317, %v11216
      %v11233 = vadd.f32 %v318, %v11217
      %v11234 = vadd.f32 %v319, %v11218
      %v11235 = vadd.f32 %v320, %v11219
      %v11236 = vadd.f32 %v321, %v11220
      %v11237 = vadd.f32 %v322, %v11221
      %v11238 = vadd.f32 %v323, %v11222
      %v11239 = vadd.f32 %v324, %v11223
      %11240 = vst.msk [vmem:[%s307] sm:$0xff] %vm336, %v11224
      %11241 = vst.msk [vmem:[%s307 + $0x8] sm:$0xff] %vm336, %v11225
      %11242 = vst.msk [vmem:[%s307 + $0x10] sm:$0xff] %vm336, %v11226
      %11243 = vst.msk [vmem:[%s307 + $0x18] sm:$0xff] %vm336, %v11227
      %11244 = vst.msk [vmem:[%s307 + $0x20] sm:$0xff] %vm336, %v11228
      %11245 = vst.msk [vmem:[%s307 + $0x28] sm:$0xff] %vm336, %v11229
      %11246 = vst.msk [vmem:[%s307 + $0x30] sm:$0xff] %vm336, %v11230
      %11247 = vst.msk [vmem:[%s307 + $0x38] sm:$0xff] %vm336, %v11231
      %11248 = vst.msk [vmem:[%s307 + $0x40] sm:$0xff] %vm336, %v11232
      %11249 = vst.msk [vmem:[%s307 + $0x48] sm:$0xff] %vm336, %v11233
      %11250 = vst.msk [vmem:[%s307 + $0x50] sm:$0xff] %vm336, %v11234
      %11251 = vst.msk [vmem:[%s307 + $0x58] sm:$0xff] %vm336, %v11235
      %11252 = vst.msk [vmem:[%s307 + $0x60] sm:$0xff] %vm336, %v11236
      %11253 = vst.msk [vmem:[%s307 + $0x68] sm:$0xff] %vm336, %v11237
      %11254 = vst.msk [vmem:[%s307 + $0x70] sm:$0xff] %vm336, %v11238
      %11255 = vst.msk [vmem:[%s307 + $0x78] sm:$0xff] %vm336, %v11239
      %s11256 = smul.u32 16, %s19
      %p11257 = scmp.lt.s32.totalorder %s11256, 31
      %s11258 = scalar_select %p11257, %s11256, 31
      %s11259 = smul.addr %s11258, 8
      %s11260 = scalar_lea.vmem %s8, %s11259
      // Predicated region
      $region53: #{window_attention_forward.1} parent=51 // pred_check
        %p11261 = pneg %p210
      $region54: #{window_attention_forward.1} parent=51 // pred_check_branch
        %11263 = sbr.rel (%p11261) target = $region56
      $region55: #{window_attention_forward.1} parent=51 // pred_region
        %s11264 = smul.u32 16, %s19
      $region56: #{window_attention_forward.1} parent=51 // pred_fallthru
        _
    $region52: #{window_attention_forward.1} parent=5 // pred_fallthru
      _
    %p11265 = scmp.le.s32.totalorder 2, %s14
    // Predicated region
    $region57: #{window_attention_forward.1} parent=5 // pred_check
      %p11266 = pneg %p11265
    $region58: #{window_attention_forward.1} parent=5 // pred_check_branch
      %11268 = sbr.rel (%p11266) target = $region60
    $region59: #{window_attention_forward.1} parent=5 // pred_region
      %s11269 = ssub.s32 %s14, 2
      // Predicated region
      $region61: #{window_attention_forward.1} parent=59 // pred_check
        %p11270 = pneg %p216
      $region62: #{window_attention_forward.1} parent=59 // pred_check_branch
        %11272 = sbr.rel (%p11270) target = $region64
      $region63: #{window_attention_forward.1} parent=59 // pred_region
        %s11273 = smul.u32 16, %s20
        %p11274 = scmp.lt.s32.totalorder %s11273, 31
        %s11275 = scalar_select %p11274, %s11273, 31
        %s11276 = smul.addr %s11275, 8
        %s11277 = scalar_lea.vmem %s8, %s11276
      $region64: #{window_attention_forward.1} parent=59 // pred_fallthru
        _
    $region60: #{window_attention_forward.1} parent=5 // pred_fallthru
      _
  $region6: #{window_attention_forward.1} parent=0 // loop_footer
    %s18 = sadd.s32 1, %s14
  $region7: #{window_attention_forward.1} parent=0 // loop_footer_branch
    %13 = sbr.rel target = $region3
  $region8: #{window_attention_forward.1} parent=0 // loop_exit
    _

</llo_original>
